<compile_context>
chip_gen: v6e
topology: v6e:2x2x1
jax: 0.10.0
libtpu: 0.0.40
codegen_flags: <defaults>
</compile_context>

<pallas_src>
import functools

import jax
import jax.numpy as jnp
from jax import lax
from jax.experimental import pallas as pl
from jax.experimental.pallas import tpu as pltpu

BN_EPS = 9.999999747378752e-06


def _round_up(x, m):
    return ((x + m - 1) // m) * m


# ---------------------------------------------------------------------------
# Pallas kernels
# ---------------------------------------------------------------------------
def _mm_bn_kernel(x_ref, w_ref, shift_ref, o_ref):
    # o = x @ w_scaled + shift          (1x1 conv + BN, no ReLU)
    acc = jnp.dot(x_ref[...], w_ref[...], preferred_element_type=jnp.float32)
    o_ref[...] = acc + shift_ref[...]


def _mm_bn_relu_kernel(x_ref, w_ref, shift_ref, o_ref):
    # o = relu(x @ w_scaled + shift)    (1x1 conv + BN + ReLU)
    acc = jnp.dot(x_ref[...], w_ref[...], preferred_element_type=jnp.float32)
    o_ref[...] = jnp.maximum(acc + shift_ref[...], 0.0)


def _mm_bn_add_relu_kernel(x_ref, w_ref, shift_ref, r_ref, o_ref):
    # o = relu(x @ w_scaled + shift + residual)   (branch2c + skip, fused)
    acc = jnp.dot(x_ref[...], w_ref[...], preferred_element_type=jnp.float32)
    o_ref[...] = jnp.maximum(acc + shift_ref[...] + r_ref[...], 0.0)


def _conv3x3_kernel(x_ref, w_ref, shift_ref, o_ref, *, wp, lv):
    # x_ref: (1, Lp, Cin) -- one zero-padded image, rows flattened as
    #        (H+2)*(W+2) with a small tail of zero rows.
    # w_ref: (9, Cin, Cout) -- BN-scaled weights, tap order (dy, dx).
    # o_ref: (1, lv, Cout) with lv = H*(W+2); columns w >= W are garbage and
    #        are discarded by the wrapper.
    x = x_ref[0]                                  # (Lp, Cin)
    cout = o_ref.shape[2]
    acc = jnp.zeros((lv, cout), jnp.float32)
    for dy in range(3):
        for dx in range(3):
            off = dy * wp + dx                    # static sublane offset
            acc = acc + jnp.dot(x[off:off + lv, :], w_ref[dy * 3 + dx],
                                preferred_element_type=jnp.float32)
    o_ref[0] = jnp.maximum(acc + shift_ref[...], 0.0)


# ---------------------------------------------------------------------------
# Pallas wrappers
# ---------------------------------------------------------------------------
def _matmul_bn(x2d, w, shift, *, relu, residual=None, tm=256):
    """y = [relu](x2d @ w + shift [+ residual]) with M tiled over the grid."""
    M, K = x2d.shape
    Cout = w.shape[1]

    Mp = _round_up(M, 8)
    tm = min(tm, Mp)
    Mp = _round_up(Mp, tm)
    if Mp != M:
        x2d = jnp.pad(x2d, ((0, Mp - M), (0, 0)))
        if residual is not None:
            residual = jnp.pad(residual, ((0, Mp - M), (0, 0)))

    in_specs = [
        pl.BlockSpec((tm, K), lambda i: (i, 0)),
        pl.BlockSpec((K, Cout), lambda i: (0, 0)),
        pl.BlockSpec((1, Cout), lambda i: (0, 0)),
    ]
    args = [x2d, w, shift]
    if residual is not None:
        kernel = _mm_bn_add_relu_kernel
        in_specs.append(pl.BlockSpec((tm, Cout), lambda i: (i, 0)))
        args.append(residual)
    else:
        kernel = _mm_bn_relu_kernel if relu else _mm_bn_kernel

    out = pl.pallas_call(
        kernel,
        out_shape=jax.ShapeDtypeStruct((Mp, Cout), jnp.float32),
        grid_spec=pltpu.PrefetchScalarGridSpec(
            num_scalar_prefetch=0,
            grid=(Mp // tm,),
            in_specs=in_specs,
            out_specs=pl.BlockSpec((tm, Cout), lambda i: (i, 0)),
        ),
        compiler_params=pltpu.CompilerParams(dimension_semantics=("parallel",)),
    )(*args)
    return out[:M] if Mp != M else out


def _conv3x3_bn_relu(x_nhwc, w9, shift):
    """3x3/s1 conv (pad=1) + folded BN + ReLU, one image per grid step."""
    N, H, W, Cin = x_nhwc.shape
    Cout = w9.shape[2]
    wp = W + 2
    xp = jnp.pad(x_nhwc, ((0, 0), (1, 1), (1, 1), (0, 0)))   # (N, H+2, W+2, C)
    L = (H + 2) * wp
    lv = H * wp
    x_flat = xp.reshape(N, L, Cin)
    # tail padding so the largest shifted slice (off = 2*wp+2) stays in bounds
    Lp = _round_up(L + 2, 8)
    x_flat = jnp.pad(x_flat, ((0, 0), (0, Lp - L), (0, 0)))

    kernel = functools.partial(_conv3x3_kernel, wp=wp, lv=lv)
    out = pl.pallas_call(
        kernel,
        out_shape=jax.ShapeDtypeStruct((N, lv, Cout), jnp.float32),
        grid_spec=pltpu.PrefetchScalarGridSpec(
            num_scalar_prefetch=0,
            grid=(N,),
            in_specs=[
                pl.BlockSpec((1, Lp, Cin), lambda n: (n, 0, 0)),
                pl.BlockSpec((9, Cin, Cout), lambda n: (0, 0, 0)),
                pl.BlockSpec((1, Cout), lambda n: (0, 0)),
            ],
            out_specs=pl.BlockSpec((1, lv, Cout), lambda n: (n, 0, 0)),
        ),
        compiler_params=pltpu.CompilerParams(dimension_semantics=("parallel",)),
    )(x_flat, w9, shift)
    # drop the (W+2)-wide garbage columns introduced by row flattening
    return out.reshape(N, H, wp, Cout)[:, :, :W, :]


# ---------------------------------------------------------------------------
# BN folding (running stats -> per-channel scale folded into weights + shift)
# ---------------------------------------------------------------------------
def _fold(w, bn):
    gamma, beta, mean, var = bn
    s = gamma / jnp.sqrt(var + BN_EPS)                         # (Cout,)
    shift = (beta - mean * s).reshape(1, -1).astype(jnp.float32)
    cout, cin, kh, kw = w.shape
    if kh == 1 and kw == 1:
        wm = jnp.transpose(w.reshape(cout, cin), (1, 0)) * s[None, :]   # (Cin, Cout)
    else:
        wm = jnp.transpose(w, (2, 3, 1, 0)).reshape(kh * kw, cin, cout) \
             * s[None, None, :]                                          # (9, Cin, Cout)
    return wm.astype(jnp.float32), shift


# ---------------------------------------------------------------------------
# Forward pass (res4a .. res4f)
# ---------------------------------------------------------------------------
def res50_layer4_forward(x_nchw, raw_params):
    x = jnp.transpose(x_nchw, (0, 2, 3, 1)).astype(jnp.float32)   # NHWC
    N = x.shape[0]
    xs = x[:, ::2, ::2, :]                       # stride-2 sampling for the 1x1/s2 convs
    Ho, Wo = xs.shape[1], xs.shape[2]
    M = N * Ho * Wo
    xs2 = xs.reshape(M, -1)                      # (M, 512)

    # ---- block 4a (projection shortcut) ----
    p = raw_params["4a"]
    w_b1, s_b1 = _fold(p["w_b1"], p["bn_b1"])
    w_2a, s_2a = _fold(p["w_2a"], p["bn_2a"])
    w_2b, s_2b = _fold(p["w_2b"], p["bn_2b"])
    w_2c, s_2c = _fold(p["w_2c"], p["bn_2c"])

    branch1 = _matmul_bn(xs2, w_b1, s_b1, relu=False)                        # (M, 1024)
    y = _matmul_bn(xs2, w_2a, s_2a, relu=True)                               # (M, 256)
    y = _conv3x3_bn_relu(y.reshape(N, Ho, Wo, -1), w_2b, s_2b).reshape(M, -1)
    out = _matmul_bn(y, w_2c, s_2c, relu=True, residual=branch1)             # (M, 1024)

    # ---- blocks 4b .. 4f (identity shortcuts) ----
    for name in ("4b", "4c", "4d", "4e", "4f"):
        p = raw_params[name]
        w_2a, s_2a = _fold(p["w_2a"], p["bn_2a"])
        w_2b, s_2b = _fold(p["w_2b"], p["bn_2b"])
        w_2c, s_2c = _fold(p["w_2c"], p["bn_2c"])
        y = _matmul_bn(out, w_2a, s_2a, relu=True)                           # (M, 256)
        y = _conv3x3_bn_relu(y.reshape(N, Ho, Wo, -1), w_2b, s_2b).reshape(M, -1)
        out = _matmul_bn(y, w_2c, s_2c, relu=True, residual=out)             # (M, 1024)

    return jnp.transpose(out.reshape(N, Ho, Wo, -1), (0, 3, 1, 2))           # NCHW


# ---------------------------------------------------------------------------
# Deterministic parameter init (shapes from res50_layer4.__init__)
# ---------------------------------------------------------------------------
def init_raw_params(key):
    keys = iter(jax.random.split(key, 64))

    def conv_init(cout, cin, kh, kw):
        std = (2.0 / (cin * kh * kw)) ** 0.5
        return std * jax.random.normal(next(keys), (cout, cin, kh, kw), jnp.float32)

    def bn_init(c):
        k1, k2, k3, k4 = jax.random.split(next(keys), 4)
        return (1.0 + 0.1 * jax.random.normal(k1, (c,), jnp.float32),
                0.1 * jax.random.normal(k2, (c,), jnp.float32),
                0.1 * jax.random.normal(k3, (c,), jnp.float32),
                jax.random.uniform(k4, (c,), jnp.float32, 0.5, 1.5))

    params = {
        "4a": {
            "w_b1": conv_init(1024, 512, 1, 1), "bn_b1": bn_init(1024),
            "w_2a": conv_init(256, 512, 1, 1), "bn_2a": bn_init(256),
            "w_2b": conv_init(256, 256, 3, 3), "bn_2b": bn_init(256),
            "w_2c": conv_init(1024, 256, 1, 1), "bn_2c": bn_init(1024),
        }
    }
    for name in ("4b", "4c", "4d", "4e", "4f"):
        params[name] = {
            "w_2a": conv_init(256, 1024, 1, 1), "bn_2a": bn_init(256),
            "w_2b": conv_init(256, 256, 3, 3), "bn_2b": bn_init(256),
            "w_2c": conv_init(1024, 256, 1, 1), "bn_2c": bn_init(1024),
        }
    return params


# ---------------------------------------------------------------------------
# Pure-JAX reference (for correctness check)
# ---------------------------------------------------------------------------
def _ref_conv(x, w, stride=1, pad=0):
    return lax.conv_general_dilated(
        x, w, (stride, stride), ((pad, pad), (pad, pad)),
        dimension_numbers=("NCHW", "OIHW", "NCHW"),
        precision=lax.Precision.HIGHEST)


def _ref_bn(x, bn):
    gamma, beta, mean, var = bn
    inv = 1.0 / jnp.sqrt(var + BN_EPS)
    return (x - mean[None, :, None, None]) * inv[None, :, None, None] \
        * gamma[None, :, None, None] + beta[None, :, None, None]


def _reference(x, raw):
    p = raw["4a"]
    b1 = _ref_bn(_ref_conv(x, p["w_b1"], stride=2), p["bn_b1"])
    y = jax.nn.relu(_ref_bn(_ref_conv(x, p["w_2a"], stride=2), p["bn_2a"]))
    y = jax.nn.relu(_ref_bn(_ref_conv(y, p["w_2b"], pad=1), p["bn_2b"]))
    y = _ref_bn(_ref_conv(y, p["w_2c"]), p["bn_2c"])
    out = jax.nn.relu(b1 + y)
    for name in ("4b", "4c", "4d", "4e", "4f"):
        p = raw[name]
        y = jax.nn.relu(_ref_bn(_ref_conv(out, p["w_2a"]), p["bn_2a"]))
        y = jax.nn.relu(_ref_bn(_ref_conv(y, p["w_2b"], pad=1), p["bn_2b"]))
        y = _ref_bn(_ref_conv(y, p["w_2c"]), p["bn_2c"])
        out = jax.nn.relu(out + y)
    return out


if __name__ == "__main__":
    key = jax.random.PRNGKey(0)
    kx, kp = jax.random.split(key)
    x = jax.random.normal(kx, (2, 512, 16, 16), jnp.float32)   # NCHW, 512 in-channels
    raw = init_raw_params(kp)

    fwd = jax.jit(res50_layer4_forward)
    out = jax.block_until_ready(fwd(x, raw))

    ref = jax.block_until_ready(_reference(x, raw))
    assert out.shape == ref.shape == (2, 1024, 8, 8), (out.shape, ref.shape)
    max_err = float(jnp.max(jnp.abs(out - ref)))
    assert jnp.allclose(out, ref, atol=5e-2, rtol=5e-2), max_err

    print("KERNEL_OK")
</pallas_src>

<mosaic_0001>
module attributes {stable_mosaic.version = 11 : i64} {
  func.func @_mm_bn_relu_kernel(%arg0: i32, %arg1: memref<128x512xf32, #tpu.memory_space<vmem>>, %arg2: memref<512x256xf32, #tpu.memory_space<vmem>>, %arg3: memref<1x256xf32, #tpu.memory_space<vmem>>, %arg4: memref<128x256xf32, #tpu.memory_space<vmem>>) attributes {dimension_semantics = [#tpu.dimension_semantics<parallel>], iteration_bounds = array<i64: 1>, scalar_prefetch = 0 : i64, scratch_operands = 0 : i64, tpu.core_type = #tpu.core_type<tc>, window_params = [{transform_indices = @transform_0, window_bounds = array<i64: 128, 512>}, {pipeline_mode = #tpu.pipeline_mode<synchronous>, transform_indices = @transform_1, window_bounds = array<i64: 512, 256>}, {pipeline_mode = #tpu.pipeline_mode<synchronous>, transform_indices = @transform_2, window_bounds = array<i64: 1, 256>}, {transform_indices = @transform_3, window_bounds = array<i64: 128, 256>}]} {
    %c0 = arith.constant 0 : index
    %c0_0 = arith.constant 0 : index
    %0 = vector.load %arg1[%c0, %c0_0] : memref<128x512xf32, #tpu.memory_space<vmem>>, vector<128x512xf32>
    %c0_1 = arith.constant 0 : index
    %c0_2 = arith.constant 0 : index
    %1 = vector.load %arg2[%c0_1, %c0_2] : memref<512x256xf32, #tpu.memory_space<vmem>>, vector<512x256xf32>
    %cst = arith.constant dense<0.000000e+00> : vector<128x256xf32>
    %2 = tpu.matmul %0, %1, %cst {dimension_numbers = #tpu.dot_dimension_numbers<[1], [0], [0], [1], [0, 0, 1, 1], [], []>} : vector<128x512xf32>, vector<512x256xf32>, vector<128x256xf32> -> vector<128x256xf32>
    %c0_3 = arith.constant 0 : index
    %c0_4 = arith.constant 0 : index
    %3 = vector.load %arg3[%c0_3, %c0_4] : memref<1x256xf32, #tpu.memory_space<vmem>>, vector<1x256xf32>
    %4 = vector.broadcast %3 : vector<1x256xf32> to vector<128x256xf32>
    %5 = arith.addf %2, %4 : vector<128x256xf32>
    %cst_5 = arith.constant 0.000000e+00 : f32
    %6 = vector.broadcast %cst_5 : f32 to vector<128x256xf32>
    %7 = arith.maximumf %5, %6 : vector<128x256xf32>
    %c0_6 = arith.constant 0 : index
    %c0_7 = arith.constant 0 : index
    %8 = vector.load %arg4[%c0_6, %c0_7] : memref<128x256xf32, #tpu.memory_space<vmem>>, vector<128x256xf32>
    tpu.vector_store %arg4[%c0_6, %c0_7], %7 {strides = array<i32>} : memref<128x256xf32, #tpu.memory_space<vmem>>, vector<128x256xf32>,
    return
  }
  func.func @transform_0(%arg0: i32) -> (i32, i32) {
    %c0_i32 = arith.constant 0 : i32
    %c0_i32_0 = arith.constant 0 : i32
    return %arg0, %c0_i32 : i32, i32
  }
  func.func @transform_1(%arg0: i32) -> (i32, i32) {
    %c0_i32 = arith.constant 0 : i32
    %c0_i32_0 = arith.constant 0 : i32
    %c0_i32_1 = arith.constant 0 : i32
    return %c0_i32, %c0_i32_0 : i32, i32
  }
  func.func @transform_2(%arg0: i32) -> (i32, i32) {
    %c0_i32 = arith.constant 0 : i32
    %c0_i32_0 = arith.constant 0 : i32
    %c0_i32_1 = arith.constant 0 : i32
    return %c0_i32, %c0_i32_0 : i32, i32
  }
  func.func @transform_3(%arg0: i32) -> (i32, i32) {
    %c0_i32 = arith.constant 0 : i32
    %c0_i32_0 = arith.constant 0 : i32
    return %arg0, %c0_i32 : i32, i32
  }
}

module attributes {stable_mosaic.version = 11 : i64} {
  func.func @_conv3x3_kernel(%arg0: i32, %arg1: memref<1x104x256xf32, #tpu.memory_space<vmem>>, %arg2: memref<9x256x256xf32, #tpu.memory_space<vmem>>, %arg3: memref<1x256xf32, #tpu.memory_space<vmem>>, %arg4: memref<1x80x256xf32, #tpu.memory_space<vmem>>) attributes {dimension_semantics = [#tpu.dimension_semantics<parallel>], iteration_bounds = array<i64: 2>, scalar_prefetch = 0 : i64, scratch_operands = 0 : i64, tpu.core_type = #tpu.core_type<tc>, window_params = [{transform_indices = @transform_0, window_bounds = array<i64: 1, 104, 256>}, {pipeline_mode = #tpu.pipeline_mode<synchronous>, transform_indices = @transform_1, window_bounds = array<i64: 9, 256, 256>}, {pipeline_mode = #tpu.pipeline_mode<synchronous>, transform_indices = @transform_2, window_bounds = array<i64: 1, 256>}, {transform_indices = @transform_3, window_bounds = array<i64: 1, 80, 256>}]} {
    %c0 = arith.constant 0 : index
    %c0_0 = arith.constant 0 : index
    %c0_1 = arith.constant 0 : index
    %0 = vector.load %arg1[%c0, %c0_0, %c0_1] : memref<1x104x256xf32, #tpu.memory_space<vmem>>, vector<1x104x256xf32>
    %1 = vector.shape_cast %0 : vector<1x104x256xf32> to vector<104x256xf32>
    %cst = arith.constant 0.000000e+00 : f32
    %2 = vector.broadcast %cst : f32 to vector<80x256xf32>
    %3 = vector.extract_strided_slice %1 {offsets = [0, 0], sizes = [80, 256], strides = [1, 1]} : vector<104x256xf32> to vector<80x256xf32>
    %c0_2 = arith.constant 0 : index
    %c0_3 = arith.constant 0 : index
    %c0_4 = arith.constant 0 : index
    %4 = vector.load %arg2[%c0_2, %c0_3, %c0_4] : memref<9x256x256xf32, #tpu.memory_space<vmem>>, vector<1x256x256xf32>
    %5 = vector.shape_cast %4 : vector<1x256x256xf32> to vector<256x256xf32>
    %cst_5 = arith.constant dense<0.000000e+00> : vector<80x256xf32>
    %6 = tpu.matmul %3, %5, %cst_5 {dimension_numbers = #tpu.dot_dimension_numbers<[1], [0], [0], [1], [0, 0, 1, 1], [], []>} : vector<80x256xf32>, vector<256x256xf32>, vector<80x256xf32> -> vector<80x256xf32>
    %7 = arith.addf %2, %6 : vector<80x256xf32>
    %8 = vector.extract_strided_slice %1 {offsets = [1, 0], sizes = [80, 256], strides = [1, 1]} : vector<104x256xf32> to vector<80x256xf32>
    %c1 = arith.constant 1 : index
    %c0_6 = arith.constant 0 : index
    %c0_7 = arith.constant 0 : index
    %9 = vector.load %arg2[%c1, %c0_6, %c0_7] : memref<9x256x256xf32, #tpu.memory_space<vmem>>, vector<1x256x256xf32>
    %10 = vector.shape_cast %9 : vector<1x256x256xf32> to vector<256x256xf32>
    %cst_8 = arith.constant dense<0.000000e+00> : vector<80x256xf32>
    %11 = tpu.matmul %8, %10, %cst_8 {dimension_numbers = #tpu.dot_dimension_numbers<[1], [0], [0], [1], [0, 0, 1, 1], [], []>} : vector<80x256xf32>, vector<256x256xf32>, vector<80x256xf32> -> vector<80x256xf32>
    %12 = arith.addf %7, %11 : vector<80x256xf32>
    %13 = vector.extract_strided_slice %1 {offsets = [2, 0], sizes = [80, 256], strides = [1, 1]} : vector<104x256xf32> to vector<80x256xf32>
    %c2 = arith.constant 2 : index
    %c0_9 = arith.constant 0 : index
    %c0_10 = arith.constant 0 : index
    %14 = vector.load %arg2[%c2, %c0_9, %c0_10] : memref<9x256x256xf32, #tpu.memory_space<vmem>>, vector<1x256x256xf32>
    %15 = vector.shape_cast %14 : vector<1x256x256xf32> to vector<256x256xf32>
    %cst_11 = arith.constant dense<0.000000e+00> : vector<80x256xf32>
    %16 = tpu.matmul %13, %15, %cst_11 {dimension_numbers = #tpu.dot_dimension_numbers<[1], [0], [0], [1], [0, 0, 1, 1], [], []>} : vector<80x256xf32>, vector<256x256xf32>, vector<80x256xf32> -> vector<80x256xf32>
    %17 = arith.addf %12, %16 : vector<80x256xf32>
    %18 = vector.extract_strided_slice %1 {offsets = [10, 0], sizes = [80, 256], strides = [1, 1]} : vector<104x256xf32> to vector<80x256xf32>
    %c3 = arith.constant 3 : index
    %c0_12 = arith.constant 0 : index
    %c0_13 = arith.constant 0 : index
    %19 = vector.load %arg2[%c3, %c0_12, %c0_13] : memref<9x256x256xf32, #tpu.memory_space<vmem>>, vector<1x256x256xf32>
    %20 = vector.shape_cast %19 : vector<1x256x256xf32> to vector<256x256xf32>
    %cst_14 = arith.constant dense<0.000000e+00> : vector<80x256xf32>
    %21 = tpu.matmul %18, %20, %cst_14 {dimension_numbers = #tpu.dot_dimension_numbers<[1], [0], [0], [1], [0, 0, 1, 1], [], []>} : vector<80x256xf32>, vector<256x256xf32>, vector<80x256xf32> -> vector<80x256xf32>
    %22 = arith.addf %17, %21 : vector<80x256xf32>
    %23 = vector.extract_strided_slice %1 {offsets = [11, 0], sizes = [80, 256], strides = [1, 1]} : vector<104x256xf32> to vector<80x256xf32>
    %c4 = arith.constant 4 : index
    %c0_15 = arith.constant 0 : index
    %c0_16 = arith.constant 0 : index
    %24 = vector.load %arg2[%c4, %c0_15, %c0_16] : memref<9x256x256xf32, #tpu.memory_space<vmem>>, vector<1x256x256xf32>
    %25 = vector.shape_cast %24 : vector<1x256x256xf32> to vector<256x256xf32>
    %cst_17 = arith.constant dense<0.000000e+00> : vector<80x256xf32>
    %26 = tpu.matmul %23, %25, %cst_17 {dimension_numbers = #tpu.dot_dimension_numbers<[1], [0], [0], [1], [0, 0, 1, 1], [], []>} : vector<80x256xf32>, vector<256x256xf32>, vector<80x256xf32> -> vector<80x256xf32>
    %27 = arith.addf %22, %26 : vector<80x256xf32>
    %28 = vector.extract_strided_slice %1 {offsets = [12, 0], sizes = [80, 256], strides = [1, 1]} : vector<104x256xf32> to vector<80x256xf32>
    %c5 = arith.constant 5 : index
    %c0_18 = arith.constant 0 : index
    %c0_19 = arith.constant 0 : index
    %29 = vector.load %arg2[%c5, %c0_18, %c0_19] : memref<9x256x256xf32, #tpu.memory_space<vmem>>, vector<1x256x256xf32>
    %30 = vector.shape_cast %29 : vector<1x256x256xf32> to vector<256x256xf32>
    %cst_20 = arith.constant dense<0.000000e+00> : vector<80x256xf32>
    %31 = tpu.matmul %28, %30, %cst_20 {dimension_numbers = #tpu.dot_dimension_numbers<[1], [0], [0], [1], [0, 0, 1, 1], [], []>} : vector<80x256xf32>, vector<256x256xf32>, vector<80x256xf32> -> vector<80x256xf32>
    %32 = arith.addf %27, %31 : vector<80x256xf32>
    %33 = vector.extract_strided_slice %1 {offsets = [20, 0], sizes = [80, 256], strides = [1, 1]} : vector<104x256xf32> to vector<80x256xf32>
    %c6 = arith.constant 6 : index
    %c0_21 = arith.constant 0 : index
    %c0_22 = arith.constant 0 : index
    %34 = vector.load %arg2[%c6, %c0_21, %c0_22] : memref<9x256x256xf32, #tpu.memory_space<vmem>>, vector<1x256x256xf32>
    %35 = vector.shape_cast %34 : vector<1x256x256xf32> to vector<256x256xf32>
    %cst_23 = arith.constant dense<0.000000e+00> : vector<80x256xf32>
    %36 = tpu.matmul %33, %35, %cst_23 {dimension_numbers = #tpu.dot_dimension_numbers<[1], [0], [0], [1], [0, 0, 1, 1], [], []>} : vector<80x256xf32>, vector<256x256xf32>, vector<80x256xf32> -> vector<80x256xf32>
    %37 = arith.addf %32, %36 : vector<80x256xf32>
    %38 = vector.extract_strided_slice %1 {offsets = [21, 0], sizes = [80, 256], strides = [1, 1]} : vector<104x256xf32> to vector<80x256xf32>
    %c7 = arith.constant 7 : index
    %c0_24 = arith.constant 0 : index
    %c0_25 = arith.constant 0 : index
    %39 = vector.load %arg2[%c7, %c0_24, %c0_25] : memref<9x256x256xf32, #tpu.memory_space<vmem>>, vector<1x256x256xf32>
    %40 = vector.shape_cast %39 : vector<1x256x256xf32> to vector<256x256xf32>
    %cst_26 = arith.constant dense<0.000000e+00> : vector<80x256xf32>
    %41 = tpu.matmul %38, %40, %cst_26 {dimension_numbers = #tpu.dot_dimension_numbers<[1], [0], [0], [1], [0, 0, 1, 1], [], []>} : vector<80x256xf32>, vector<256x256xf32>, vector<80x256xf32> -> vector<80x256xf32>
    %42 = arith.addf %37, %41 : vector<80x256xf32>
    %43 = vector.extract_strided_slice %1 {offsets = [22, 0], sizes = [80, 256], strides = [1, 1]} : vector<104x256xf32> to vector<80x256xf32>
    %c8 = arith.constant 8 : index
    %c0_27 = arith.constant 0 : index
    %c0_28 = arith.constant 0 : index
    %44 = vector.load %arg2[%c8, %c0_27, %c0_28] : memref<9x256x256xf32, #tpu.memory_space<vmem>>, vector<1x256x256xf32>
    %45 = vector.shape_cast %44 : vector<1x256x256xf32> to vector<256x256xf32>
    %cst_29 = arith.constant dense<0.000000e+00> : vector<80x256xf32>
    %46 = tpu.matmul %43, %45, %cst_29 {dimension_numbers = #tpu.dot_dimension_numbers<[1], [0], [0], [1], [0, 0, 1, 1], [], []>} : vector<80x256xf32>, vector<256x256xf32>, vector<80x256xf32> -> vector<80x256xf32>
    %47 = arith.addf %42, %46 : vector<80x256xf32>
    %c0_30 = arith.constant 0 : index
    %c0_31 = arith.constant 0 : index
    %48 = vector.load %arg3[%c0_30, %c0_31] : memref<1x256xf32, #tpu.memory_space<vmem>>, vector<1x256xf32>
    %49 = vector.broadcast %48 : vector<1x256xf32> to vector<80x256xf32>
    %50 = arith.addf %47, %49 : vector<80x256xf32>
    %cst_32 = arith.constant 0.000000e+00 : f32
    %51 = vector.broadcast %cst_32 : f32 to vector<80x256xf32>
    %52 = arith.maximumf %50, %51 : vector<80x256xf32>
    %c0_33 = arith.constant 0 : index
    %c0_34 = arith.constant 0 : index
    %c0_35 = arith.constant 0 : index
    %53 = vector.load %arg4[%c0_33, %c0_34, %c0_35] : memref<1x80x256xf32, #tpu.memory_space<vmem>>, vector<1x80x256xf32>
    %54 = vector.shape_cast %53 : vector<1x80x256xf32> to vector<80x256xf32>
    %55 = vector.shape_cast %52 : vector<80x256xf32> to vector<1x80x256xf32>
    tpu.vector_store %arg4[%c0_33, %c0_34, %c0_35], %55 {strides = array<i32>} : memref<1x80x256xf32, #tpu.memory_space<vmem>>, vector<1x80x256xf32>,
    return
  }
  func.func @transform_0(%arg0: i32) -> (i32, i32, i32) {
    %c0_i32 = arith.constant 0 : i32
    %c0_i32_0 = arith.constant 0 : i32
    %c0_i32_1 = arith.constant 0 : i32
    return %arg0, %c0_i32, %c0_i32_0 : i32, i32, i32
  }
  func.func @transform_1(%arg0: i32) -> (i32, i32, i32) {
    %c0_i32 = arith.constant 0 : i32
    %c0_i32_0 = arith.constant 0 : i32
    %c0_i32_1 = arith.constant 0 : i32
    %c0_i32_2 = arith.constant 0 : i32
    return %c0_i32, %c0_i32_0, %c0_i32_1 : i32, i32, i32
  }
  func.func @transform_2(%arg0: i32) -> (i32, i32) {
    %c0_i32 = arith.constant 0 : i32
    %c0_i32_0 = arith.constant 0 : i32
    %c0_i32_1 = arith.constant 0 : i32
    return %c0_i32, %c0_i32_0 : i32, i32
  }
  func.func @transform_3(%arg0: i32) -> (i32, i32, i32) {
    %c0_i32 = arith.constant 0 : i32
    %c0_i32_0 = arith.constant 0 : i32
    %c0_i32_1 = arith.constant 0 : i32
    return %arg0, %c0_i32, %c0_i32_0 : i32, i32, i32
  }
}

module attributes {stable_mosaic.version = 11 : i64} {
  func.func @_mm_bn_kernel(%arg0: i32, %arg1: memref<128x512xf32, #tpu.memory_space<vmem>>, %arg2: memref<512x1024xf32, #tpu.memory_space<vmem>>, %arg3: memref<1x1024xf32, #tpu.memory_space<vmem>>, %arg4: memref<128x1024xf32, #tpu.memory_space<vmem>>) attributes {dimension_semantics = [#tpu.dimension_semantics<parallel>], iteration_bounds = array<i64: 1>, scalar_prefetch = 0 : i64, scratch_operands = 0 : i64, tpu.core_type = #tpu.core_type<tc>, window_params = [{transform_indices = @transform_0, window_bounds = array<i64: 128, 512>}, {pipeline_mode = #tpu.pipeline_mode<synchronous>, transform_indices = @transform_1, window_bounds = array<i64: 512, 1024>}, {pipeline_mode = #tpu.pipeline_mode<synchronous>, transform_indices = @transform_2, window_bounds = array<i64: 1, 1024>}, {transform_indices = @transform_3, window_bounds = array<i64: 128, 1024>}]} {
    %c0 = arith.constant 0 : index
    %c0_0 = arith.constant 0 : index
    %0 = vector.load %arg1[%c0, %c0_0] : memref<128x512xf32, #tpu.memory_space<vmem>>, vector<128x512xf32>
    %c0_1 = arith.constant 0 : index
    %c0_2 = arith.constant 0 : index
    %1 = vector.load %arg2[%c0_1, %c0_2] : memref<512x1024xf32, #tpu.memory_space<vmem>>, vector<512x1024xf32>
    %cst = arith.constant dense<0.000000e+00> : vector<128x1024xf32>
    %2 = tpu.matmul %0, %1, %cst {dimension_numbers = #tpu.dot_dimension_numbers<[1], [0], [0], [1], [0, 0, 1, 1], [], []>} : vector<128x512xf32>, vector<512x1024xf32>, vector<128x1024xf32> -> vector<128x1024xf32>
    %c0_3 = arith.constant 0 : index
    %c0_4 = arith.constant 0 : index
    %3 = vector.load %arg3[%c0_3, %c0_4] : memref<1x1024xf32, #tpu.memory_space<vmem>>, vector<1x1024xf32>
    %4 = vector.broadcast %3 : vector<1x1024xf32> to vector<128x1024xf32>
    %5 = arith.addf %2, %4 : vector<128x1024xf32>
    %c0_5 = arith.constant 0 : index
    %c0_6 = arith.constant 0 : index
    %6 = vector.load %arg4[%c0_5, %c0_6] : memref<128x1024xf32, #tpu.memory_space<vmem>>, vector<128x1024xf32>
    tpu.vector_store %arg4[%c0_5, %c0_6], %5 {strides = array<i32>} : memref<128x1024xf32, #tpu.memory_space<vmem>>, vector<128x1024xf32>,
    return
  }
  func.func @transform_0(%arg0: i32) -> (i32, i32) {
    %c0_i32 = arith.constant 0 : i32
    %c0_i32_0 = arith.constant 0 : i32
    return %arg0, %c0_i32 : i32, i32
  }
  func.func @transform_1(%arg0: i32) -> (i32, i32) {
    %c0_i32 = arith.constant 0 : i32
    %c0_i32_0 = arith.constant 0 : i32
    %c0_i32_1 = arith.constant 0 : i32
    return %c0_i32, %c0_i32_0 : i32, i32
  }
  func.func @transform_2(%arg0: i32) -> (i32, i32) {
    %c0_i32 = arith.constant 0 : i32
    %c0_i32_0 = arith.constant 0 : i32
    %c0_i32_1 = arith.constant 0 : i32
    return %c0_i32, %c0_i32_0 : i32, i32
  }
  func.func @transform_3(%arg0: i32) -> (i32, i32) {
    %c0_i32 = arith.constant 0 : i32
    %c0_i32_0 = arith.constant 0 : i32
    return %arg0, %c0_i32 : i32, i32
  }
}

module attributes {stable_mosaic.version = 11 : i64} {
  func.func @_mm_bn_add_relu_kernel(%arg0: i32, %arg1: memref<128x256xf32, #tpu.memory_space<vmem>>, %arg2: memref<256x1024xf32, #tpu.memory_space<vmem>>, %arg3: memref<1x1024xf32, #tpu.memory_space<vmem>>, %arg4: memref<128x1024xf32, #tpu.memory_space<vmem>>, %arg5: memref<128x1024xf32, #tpu.memory_space<vmem>>) attributes {dimension_semantics = [#tpu.dimension_semantics<parallel>], iteration_bounds = array<i64: 1>, scalar_prefetch = 0 : i64, scratch_operands = 0 : i64, tpu.core_type = #tpu.core_type<tc>, window_params = [{transform_indices = @transform_0, window_bounds = array<i64: 128, 256>}, {pipeline_mode = #tpu.pipeline_mode<synchronous>, transform_indices = @transform_1, window_bounds = array<i64: 256, 1024>}, {pipeline_mode = #tpu.pipeline_mode<synchronous>, transform_indices = @transform_2, window_bounds = array<i64: 1, 1024>}, {transform_indices = @transform_3, window_bounds = array<i64: 128, 1024>}, {transform_indices = @transform_4, window_bounds = array<i64: 128, 1024>}]} {
    %c0 = arith.constant 0 : index
    %c0_0 = arith.constant 0 : index
    %0 = vector.load %arg1[%c0, %c0_0] : memref<128x256xf32, #tpu.memory_space<vmem>>, vector<128x256xf32>
    %c0_1 = arith.constant 0 : index
    %c0_2 = arith.constant 0 : index
    %1 = vector.load %arg2[%c0_1, %c0_2] : memref<256x1024xf32, #tpu.memory_space<vmem>>, vector<256x1024xf32>
    %cst = arith.constant dense<0.000000e+00> : vector<128x1024xf32>
    %2 = tpu.matmul %0, %1, %cst {dimension_numbers = #tpu.dot_dimension_numbers<[1], [0], [0], [1], [0, 0, 1, 1], [], []>} : vector<128x256xf32>, vector<256x1024xf32>, vector<128x1024xf32> -> vector<128x1024xf32>
    %c0_3 = arith.constant 0 : index
    %c0_4 = arith.constant 0 : index
    %3 = vector.load %arg3[%c0_3, %c0_4] : memref<1x1024xf32, #tpu.memory_space<vmem>>, vector<1x1024xf32>
    %4 = vector.broadcast %3 : vector<1x1024xf32> to vector<128x1024xf32>
    %5 = arith.addf %2, %4 : vector<128x1024xf32>
    %c0_5 = arith.constant 0 : index
    %c0_6 = arith.constant 0 : index
    %6 = vector.load %arg4[%c0_5, %c0_6] : memref<128x1024xf32, #tpu.memory_space<vmem>>, vector<128x1024xf32>
    %7 = arith.addf %5, %6 : vector<128x1024xf32>
    %cst_7 = arith.constant 0.000000e+00 : f32
    %8 = vector.broadcast %cst_7 : f32 to vector<128x1024xf32>
    %9 = arith.maximumf %7, %8 : vector<128x1024xf32>
    %c0_8 = arith.constant 0 : index
    %c0_9 = arith.constant 0 : index
    %10 = vector.load %arg5[%c0_8, %c0_9] : memref<128x1024xf32, #tpu.memory_space<vmem>>, vector<128x1024xf32>
    tpu.vector_store %arg5[%c0_8, %c0_9], %9 {strides = array<i32>} : memref<128x1024xf32, #tpu.memory_space<vmem>>, vector<128x1024xf32>,
    return
  }
  func.func @transform_0(%arg0: i32) -> (i32, i32) {
    %c0_i32 = arith.constant 0 : i32
    %c0_i32_0 = arith.constant 0 : i32
    return %arg0, %c0_i32 : i32, i32
  }
  func.func @transform_1(%arg0: i32) -> (i32, i32) {
    %c0_i32 = arith.constant 0 : i32
    %c0_i32_0 = arith.constant 0 : i32
    %c0_i32_1 = arith.constant 0 : i32
    return %c0_i32, %c0_i32_0 : i32, i32
  }
  func.func @transform_2(%arg0: i32) -> (i32, i32) {
    %c0_i32 = arith.constant 0 : i32
    %c0_i32_0 = arith.constant 0 : i32
    %c0_i32_1 = arith.constant 0 : i32
    return %c0_i32, %c0_i32_0 : i32, i32
  }
  func.func @transform_3(%arg0: i32) -> (i32, i32) {
    %c0_i32 = arith.constant 0 : i32
    %c0_i32_0 = arith.constant 0 : i32
    return %arg0, %c0_i32 : i32, i32
  }
  func.func @transform_4(%arg0: i32) -> (i32, i32) {
    %c0_i32 = arith.constant 0 : i32
    %c0_i32_0 = arith.constant 0 : i32
    return %arg0, %c0_i32 : i32, i32
  }
}

module attributes {stable_mosaic.version = 11 : i64} {
  func.func @_mm_bn_relu_kernel(%arg0: i32, %arg1: memref<128x1024xf32, #tpu.memory_space<vmem>>, %arg2: memref<1024x256xf32, #tpu.memory_space<vmem>>, %arg3: memref<1x256xf32, #tpu.memory_space<vmem>>, %arg4: memref<128x256xf32, #tpu.memory_space<vmem>>) attributes {dimension_semantics = [#tpu.dimension_semantics<parallel>], iteration_bounds = array<i64: 1>, scalar_prefetch = 0 : i64, scratch_operands = 0 : i64, tpu.core_type = #tpu.core_type<tc>, window_params = [{transform_indices = @transform_0, window_bounds = array<i64: 128, 1024>}, {pipeline_mode = #tpu.pipeline_mode<synchronous>, transform_indices = @transform_1, window_bounds = array<i64: 1024, 256>}, {pipeline_mode = #tpu.pipeline_mode<synchronous>, transform_indices = @transform_2, window_bounds = array<i64: 1, 256>}, {transform_indices = @transform_3, window_bounds = array<i64: 128, 256>}]} {
    %c0 = arith.constant 0 : index
    %c0_0 = arith.constant 0 : index
    %0 = vector.load %arg1[%c0, %c0_0] : memref<128x1024xf32, #tpu.memory_space<vmem>>, vector<128x1024xf32>
    %c0_1 = arith.constant 0 : index
    %c0_2 = arith.constant 0 : index
    %1 = vector.load %arg2[%c0_1, %c0_2] : memref<1024x256xf32, #tpu.memory_space<vmem>>, vector<1024x256xf32>
    %cst = arith.constant dense<0.000000e+00> : vector<128x256xf32>
    %2 = tpu.matmul %0, %1, %cst {dimension_numbers = #tpu.dot_dimension_numbers<[1], [0], [0], [1], [0, 0, 1, 1], [], []>} : vector<128x1024xf32>, vector<1024x256xf32>, vector<128x256xf32> -> vector<128x256xf32>
    %c0_3 = arith.constant 0 : index
    %c0_4 = arith.constant 0 : index
    %3 = vector.load %arg3[%c0_3, %c0_4] : memref<1x256xf32, #tpu.memory_space<vmem>>, vector<1x256xf32>
    %4 = vector.broadcast %3 : vector<1x256xf32> to vector<128x256xf32>
    %5 = arith.addf %2, %4 : vector<128x256xf32>
    %cst_5 = arith.constant 0.000000e+00 : f32
    %6 = vector.broadcast %cst_5 : f32 to vector<128x256xf32>
    %7 = arith.maximumf %5, %6 : vector<128x256xf32>
    %c0_6 = arith.constant 0 : index
    %c0_7 = arith.constant 0 : index
    %8 = vector.load %arg4[%c0_6, %c0_7] : memref<128x256xf32, #tpu.memory_space<vmem>>, vector<128x256xf32>
    tpu.vector_store %arg4[%c0_6, %c0_7], %7 {strides = array<i32>} : memref<128x256xf32, #tpu.memory_space<vmem>>, vector<128x256xf32>,
    return
  }
  func.func @transform_0(%arg0: i32) -> (i32, i32) {
    %c0_i32 = arith.constant 0 : i32
    %c0_i32_0 = arith.constant 0 : i32
    return %arg0, %c0_i32 : i32, i32
  }
  func.func @transform_1(%arg0: i32) -> (i32, i32) {
    %c0_i32 = arith.constant 0 : i32
    %c0_i32_0 = arith.constant 0 : i32
    %c0_i32_1 = arith.constant 0 : i32
    return %c0_i32, %c0_i32_0 : i32, i32
  }
  func.func @transform_2(%arg0: i32) -> (i32, i32) {
    %c0_i32 = arith.constant 0 : i32
    %c0_i32_0 = arith.constant 0 : i32
    %c0_i32_1 = arith.constant 0 : i32
    return %c0_i32, %c0_i32_0 : i32, i32
  }
  func.func @transform_3(%arg0: i32) -> (i32, i32) {
    %c0_i32 = arith.constant 0 : i32
    %c0_i32_0 = arith.constant 0 : i32
    return %arg0, %c0_i32 : i32, i32
  }
}

module attributes {stable_mosaic.version = 11 : i64} {
  func.func @_mm_bn_add_relu_kernel(%arg0: i32, %arg1: memref<128x256xf32, #tpu.memory_space<vmem>>, %arg2: memref<256x1024xf32, #tpu.memory_space<vmem>>, %arg3: memref<1x1024xf32, #tpu.memory_space<vmem>>, %arg4: memref<128x1024xf32, #tpu.memory_space<vmem>>, %arg5: memref<128x1024xf32, #tpu.memory_space<vmem>>) attributes {dimension_semantics = [#tpu.dimension_semantics<parallel>], iteration_bounds = array<i64: 1>, scalar_prefetch = 0 : i64, scratch_operands = 0 : i64, tpu.core_type = #tpu.core_type<tc>, window_params = [{transform_indices = @transform_0, window_bounds = array<i64: 128, 256>}, {pipeline_mode = #tpu.pipeline_mode<synchronous>, transform_indices = @transform_1, window_bounds = array<i64: 256, 1024>}, {pipeline_mode = #tpu.pipeline_mode<synchronous>, transform_indices = @transform_2, window_bounds = array<i64: 1, 1024>}, {transform_indices = @transform_3, window_bounds = array<i64: 128, 1024>}, {transform_indices = @transform_4, window_bounds = array<i64: 128, 1024>}]} {
    %c0 = arith.constant 0 : index
    %c0_0 = arith.constant 0 : index
    %0 = vector.load %arg1[%c0, %c0_0] : memref<128x256xf32, #tpu.memory_space<vmem>>, vector<128x256xf32>
    %c0_1 = arith.constant 0 : index
    %c0_2 = arith.constant 0 : index
    %1 = vector.load %arg2[%c0_1, %c0_2] : memref<256x1024xf32, #tpu.memory_space<vmem>>, vector<256x1024xf32>
    %cst = arith.constant dense<0.000000e+00> : vector<128x1024xf32>
    %2 = tpu.matmul %0, %1, %cst {dimension_numbers = #tpu.dot_dimension_numbers<[1], [0], [0], [1], [0, 0, 1, 1], [], []>} : vector<128x256xf32>, vector<256x1024xf32>, vector<128x1024xf32> -> vector<128x1024xf32>
    %c0_3 = arith.constant 0 : index
    %c0_4 = arith.constant 0 : index
    %3 = vector.load %arg3[%c0_3, %c0_4] : memref<1x1024xf32, #tpu.memory_space<vmem>>, vector<1x1024xf32>
    %4 = vector.broadcast %3 : vector<1x1024xf32> to vector<128x1024xf32>
    %5 = arith.addf %2, %4 : vector<128x1024xf32>
    %c0_5 = arith.constant 0 : index
    %c0_6 = arith.constant 0 : index
    %6 = vector.load %arg4[%c0_5, %c0_6] : memref<128x1024xf32, #tpu.memory_space<vmem>>, vector<128x1024xf32>
    %7 = arith.addf %5, %6 : vector<128x1024xf32>
    %cst_7 = arith.constant 0.000000e+00 : f32
    %8 = vector.broadcast %cst_7 : f32 to vector<128x1024xf32>
    %9 = arith.maximumf %7, %8 : vector<128x1024xf32>
    %c0_8 = arith.constant 0 : index
    %c0_9 = arith.constant 0 : index
    %10 = vector.load %arg5[%c0_8, %c0_9] : memref<128x1024xf32, #tpu.memory_space<vmem>>, vector<128x1024xf32>
    tpu.vector_store %arg5[%c0_8, %c0_9], %9 {strides = array<i32>} : memref<128x1024xf32, #tpu.memory_space<vmem>>, vector<128x1024xf32>,
    return
  }
  func.func @transform_0(%arg0: i32) -> (i32, i32) {
    %c0_i32 = arith.constant 0 : i32
    %c0_i32_0 = arith.constant 0 : i32
    return %arg0, %c0_i32 : i32, i32
  }
  func.func @transform_1(%arg0: i32) -> (i32, i32) {
    %c0_i32 = arith.constant 0 : i32
    %c0_i32_0 = arith.constant 0 : i32
    %c0_i32_1 = arith.constant 0 : i32
    return %c0_i32, %c0_i32_0 : i32, i32
  }
  func.func @transform_2(%arg0: i32) -> (i32, i32) {
    %c0_i32 = arith.constant 0 : i32
    %c0_i32_0 = arith.constant 0 : i32
    %c0_i32_1 = arith.constant 0 : i32
    return %c0_i32, %c0_i32_0 : i32, i32
  }
  func.func @transform_3(%arg0: i32) -> (i32, i32) {
    %c0_i32 = arith.constant 0 : i32
    %c0_i32_0 = arith.constant 0 : i32
    return %arg0, %c0_i32 : i32, i32
  }
  func.func @transform_4(%arg0: i32) -> (i32, i32) {
    %c0_i32 = arith.constant 0 : i32
    %c0_i32_0 = arith.constant 0 : i32
    return %arg0, %c0_i32 : i32, i32
  }
}

</mosaic_0001>

<llo_original>
// kernel: res50_layer4_forward.20
$region0: #{res50_layer4_forward.20}
  #allocation0 [shape = 'u32[]', space=smem, size = 0x4, offset = 0x4, fixed_abs, tag = 'smem constant byte address 0x4 - core index']
  #allocation1 [shape = 'u32[144,128]{1,0:T(1,128)}', space=vmem, size = 0x12000, scoped, tag = 'internal scratch']
  %s0 = inlined_call_operand.vmem [shape: f32[128,512], index: 0, kind: input, shape index: {}]
  %s1 = inlined_call_operand.vmem [shape: f32[512,256], index: 1, kind: input, shape index: {}]
  %s2 = inlined_call_operand.vmem [shape: f32[1,256], index: 2, kind: input, shape index: {}]
  %s3 = inlined_call_operand.vmem [shape: f32[128,256], index: 3, kind: output, shape index: {}]
  %s4 = sld [smem:[#allocation0]]
  $region22: #{res50_layer4_forward.20} parent=0
    _
  %s6 = ssub.s32 1, %s4
  %s7 = scalar_select 0, %s6, %s4
  // Predicated region
  $region2: #{res50_layer4_forward.20} parent=0 // pred_check
    _
  $region3: #{res50_layer4_forward.20} parent=0 // pred_check_branch
    %9 = sbr.rel (0) target = $region5
  $region4: #{res50_layer4_forward.20} parent=0 // pred_region
    _
  $region5: #{res50_layer4_forward.20} parent=0 // pred_fallthru
    _
  // Predicated region
  $region6: #{res50_layer4_forward.20} parent=0 // pred_check
    _
  $region7: #{res50_layer4_forward.20} parent=0 // pred_check_branch
    %11 = sbr.rel (0) target = $region9
  $region8: #{res50_layer4_forward.20} parent=0 // pred_region
    _
  $region9: #{res50_layer4_forward.20} parent=0 // pred_fallthru
    _
  // Predicated region
  $region10: #{res50_layer4_forward.20} parent=0 // pred_check
    _
  $region11: #{res50_layer4_forward.20} parent=0 // pred_check_branch
    %13 = sbr.rel (0) target = $region13
  $region12: #{res50_layer4_forward.20} parent=0 // pred_region
    _
  $region13: #{res50_layer4_forward.20} parent=0 // pred_fallthru
    _
  %v14 = vld [vmem:[%s0] sm:$0xff]
  %v15 = vld [vmem:[%s0 + $0x8] sm:$0xff]
  %v16 = vld [vmem:[%s0 + $0x10] sm:$0xff]
  %v17 = vld [vmem:[%s0 + $0x18] sm:$0xff]
  %v18 = vld [vmem:[%s0 + $0x20] sm:$0xff]
  %v19 = vld [vmem:[%s0 + $0x28] sm:$0xff]
  %v20 = vld [vmem:[%s0 + $0x30] sm:$0xff]
  %v21 = vld [vmem:[%s0 + $0x38] sm:$0xff]
  %v22 = vld [vmem:[%s0 + $0x40] sm:$0xff]
  %v23 = vld [vmem:[%s0 + $0x48] sm:$0xff]
  %v24 = vld [vmem:[%s0 + $0x50] sm:$0xff]
  %v25 = vld [vmem:[%s0 + $0x58] sm:$0xff]
  %v26 = vld [vmem:[%s0 + $0x60] sm:$0xff]
  %v27 = vld [vmem:[%s0 + $0x68] sm:$0xff]
  %v28 = vld [vmem:[%s0 + $0x70] sm:$0xff]
  %v29 = vld [vmem:[%s0 + $0x78] sm:$0xff]
  %v30 = vld [vmem:[%s0 + $0x80] sm:$0xff]
  %v31 = vld [vmem:[%s0 + $0x88] sm:$0xff]
  %v32 = vld [vmem:[%s0 + $0x90] sm:$0xff]
  %v33 = vld [vmem:[%s0 + $0x98] sm:$0xff]
  %v34 = vld [vmem:[%s0 + $0xa0] sm:$0xff]
  %v35 = vld [vmem:[%s0 + $0xa8] sm:$0xff]
  %v36 = vld [vmem:[%s0 + $0xb0] sm:$0xff]
  %v37 = vld [vmem:[%s0 + $0xb8] sm:$0xff]
  %v38 = vld [vmem:[%s0 + $0xc0] sm:$0xff]
  %v39 = vld [vmem:[%s0 + $0xc8] sm:$0xff]
  %v40 = vld [vmem:[%s0 + $0xd0] sm:$0xff]
  %v41 = vld [vmem:[%s0 + $0xd8] sm:$0xff]
  %v42 = vld [vmem:[%s0 + $0xe0] sm:$0xff]
  %v43 = vld [vmem:[%s0 + $0xe8] sm:$0xff]
  %v44 = vld [vmem:[%s0 + $0xf0] sm:$0xff]
  %v45 = vld [vmem:[%s0 + $0xf8] sm:$0xff]
  %v46 = vld [vmem:[%s0 + $0x100] sm:$0xff]
  %v47 = vld [vmem:[%s0 + $0x108] sm:$0xff]
  %v48 = vld [vmem:[%s0 + $0x110] sm:$0xff]
  %v49 = vld [vmem:[%s0 + $0x118] sm:$0xff]
  %v50 = vld [vmem:[%s0 + $0x120] sm:$0xff]
  %v51 = vld [vmem:[%s0 + $0x128] sm:$0xff]
  %v52 = vld [vmem:[%s0 + $0x130] sm:$0xff]
  %v53 = vld [vmem:[%s0 + $0x138] sm:$0xff]
  %v54 = vld [vmem:[%s0 + $0x140] sm:$0xff]
  %v55 = vld [vmem:[%s0 + $0x148] sm:$0xff]
  %v56 = vld [vmem:[%s0 + $0x150] sm:$0xff]
  %v57 = vld [vmem:[%s0 + $0x158] sm:$0xff]
  %v58 = vld [vmem:[%s0 + $0x160] sm:$0xff]
  %v59 = vld [vmem:[%s0 + $0x168] sm:$0xff]
  %v60 = vld [vmem:[%s0 + $0x170] sm:$0xff]
  %v61 = vld [vmem:[%s0 + $0x178] sm:$0xff]
  %v62 = vld [vmem:[%s0 + $0x180] sm:$0xff]
  %v63 = vld [vmem:[%s0 + $0x188] sm:$0xff]
  %v64 = vld [vmem:[%s0 + $0x190] sm:$0xff]
  %v65 = vld [vmem:[%s0 + $0x198] sm:$0xff]
  %v66 = vld [vmem:[%s0 + $0x1a0] sm:$0xff]
  %v67 = vld [vmem:[%s0 + $0x1a8] sm:$0xff]
  %v68 = vld [vmem:[%s0 + $0x1b0] sm:$0xff]
  %v69 = vld [vmem:[%s0 + $0x1b8] sm:$0xff]
  %v70 = vld [vmem:[%s0 + $0x1c0] sm:$0xff]
  %v71 = vld [vmem:[%s0 + $0x1c8] sm:$0xff]
  %v72 = vld [vmem:[%s0 + $0x1d0] sm:$0xff]
  %v73 = vld [vmem:[%s0 + $0x1d8] sm:$0xff]
  %v74 = vld [vmem:[%s0 + $0x1e0] sm:$0xff]
  %v75 = vld [vmem:[%s0 + $0x1e8] sm:$0xff]
  %v76 = vld [vmem:[%s0 + $0x1f0] sm:$0xff]
  %v77 = vld [vmem:[%s0 + $0x1f8] sm:$0xff]
  %v78 = vld [vmem:[%s1] sm:$0xff]
  %v79 = vld [vmem:[%s1 + $0x8] sm:$0xff]
  %v80 = vld [vmem:[%s1 + $0x10] sm:$0xff]
  %v81 = vld [vmem:[%s1 + $0x18] sm:$0xff]
  %v82 = vld [vmem:[%s1 + $0x20] sm:$0xff]
  %v83 = vld [vmem:[%s1 + $0x28] sm:$0xff]
  %v84 = vld [vmem:[%s1 + $0x30] sm:$0xff]
  %v85 = vld [vmem:[%s1 + $0x38] sm:$0xff]
  %v86 = vld [vmem:[%s1 + $0x40] sm:$0xff]
  %v87 = vld [vmem:[%s1 + $0x48] sm:$0xff]
  %v88 = vld [vmem:[%s1 + $0x50] sm:$0xff]
  %v89 = vld [vmem:[%s1 + $0x58] sm:$0xff]
  %v90 = vld [vmem:[%s1 + $0x60] sm:$0xff]
  %v91 = vld [vmem:[%s1 + $0x68] sm:$0xff]
  %v92 = vld [vmem:[%s1 + $0x70] sm:$0xff]
  %v93 = vld [vmem:[%s1 + $0x78] sm:$0xff]
  %v94 = vld [vmem:[%s1 + $0x80] sm:$0xff]
  %v95 = vld [vmem:[%s1 + $0x88] sm:$0xff]
  %v96 = vld [vmem:[%s1 + $0x90] sm:$0xff]
  %v97 = vld [vmem:[%s1 + $0x98] sm:$0xff]
  %v98 = vld [vmem:[%s1 + $0xa0] sm:$0xff]
  %v99 = vld [vmem:[%s1 + $0xa8] sm:$0xff]
  %v100 = vld [vmem:[%s1 + $0xb0] sm:$0xff]
  %v101 = vld [vmem:[%s1 + $0xb8] sm:$0xff]
  %v102 = vld [vmem:[%s1 + $0xc0] sm:$0xff]
  %v103 = vld [vmem:[%s1 + $0xc8] sm:$0xff]
  %v104 = vld [vmem:[%s1 + $0xd0] sm:$0xff]
  %v105 = vld [vmem:[%s1 + $0xd8] sm:$0xff]
  %v106 = vld [vmem:[%s1 + $0xe0] sm:$0xff]
  %v107 = vld [vmem:[%s1 + $0xe8] sm:$0xff]
  %v108 = vld [vmem:[%s1 + $0xf0] sm:$0xff]
  %v109 = vld [vmem:[%s1 + $0xf8] sm:$0xff]
  %v110 = vld [vmem:[%s1 + $0x100] sm:$0xff]
  %v111 = vld [vmem:[%s1 + $0x108] sm:$0xff]
  %v112 = vld [vmem:[%s1 + $0x110] sm:$0xff]
  %v113 = vld [vmem:[%s1 + $0x118] sm:$0xff]
  %v114 = vld [vmem:[%s1 + $0x120] sm:$0xff]
  %v115 = vld [vmem:[%s1 + $0x128] sm:$0xff]
  %v116 = vld [vmem:[%s1 + $0x130] sm:$0xff]
  %v117 = vld [vmem:[%s1 + $0x138] sm:$0xff]
  %v118 = vld [vmem:[%s1 + $0x140] sm:$0xff]
  %v119 = vld [vmem:[%s1 + $0x148] sm:$0xff]
  %v120 = vld [vmem:[%s1 + $0x150] sm:$0xff]
  %v121 = vld [vmem:[%s1 + $0x158] sm:$0xff]
  %v122 = vld [vmem:[%s1 + $0x160] sm:$0xff]
  %v123 = vld [vmem:[%s1 + $0x168] sm:$0xff]
  %v124 = vld [vmem:[%s1 + $0x170] sm:$0xff]
  %v125 = vld [vmem:[%s1 + $0x178] sm:$0xff]
  %v126 = vld [vmem:[%s1 + $0x180] sm:$0xff]
  %v127 = vld [vmem:[%s1 + $0x188] sm:$0xff]
  %v128 = vld [vmem:[%s1 + $0x190] sm:$0xff]
  %v129 = vld [vmem:[%s1 + $0x198] sm:$0xff]
  %v130 = vld [vmem:[%s1 + $0x1a0] sm:$0xff]
  %v131 = vld [vmem:[%s1 + $0x1a8] sm:$0xff]
  %v132 = vld [vmem:[%s1 + $0x1b0] sm:$0xff]
  %v133 = vld [vmem:[%s1 + $0x1b8] sm:$0xff]
  %v134 = vld [vmem:[%s1 + $0x1c0] sm:$0xff]
  %v135 = vld [vmem:[%s1 + $0x1c8] sm:$0xff]
  %v136 = vld [vmem:[%s1 + $0x1d0] sm:$0xff]
  %v137 = vld [vmem:[%s1 + $0x1d8] sm:$0xff]
  %v138 = vld [vmem:[%s1 + $0x1e0] sm:$0xff]
  %v139 = vld [vmem:[%s1 + $0x1e8] sm:$0xff]
  %v140 = vld [vmem:[%s1 + $0x1f0] sm:$0xff]
  %v141 = vld [vmem:[%s1 + $0x1f8] sm:$0xff]
  %v142 = vld [vmem:[%s1 + $0x200] sm:$0xff]
  %v143 = vld [vmem:[%s1 + $0x208] sm:$0xff]
  %v144 = vld [vmem:[%s1 + $0x210] sm:$0xff]
  %v145 = vld [vmem:[%s1 + $0x218] sm:$0xff]
  %v146 = vld [vmem:[%s1 + $0x220] sm:$0xff]
  %v147 = vld [vmem:[%s1 + $0x228] sm:$0xff]
  %v148 = vld [vmem:[%s1 + $0x230] sm:$0xff]
  %v149 = vld [vmem:[%s1 + $0x238] sm:$0xff]
  %v150 = vld [vmem:[%s1 + $0x240] sm:$0xff]
  %v151 = vld [vmem:[%s1 + $0x248] sm:$0xff]
  %v152 = vld [vmem:[%s1 + $0x250] sm:$0xff]
  %v153 = vld [vmem:[%s1 + $0x258] sm:$0xff]
  %v154 = vld [vmem:[%s1 + $0x260] sm:$0xff]
  %v155 = vld [vmem:[%s1 + $0x268] sm:$0xff]
  %v156 = vld [vmem:[%s1 + $0x270] sm:$0xff]
  %v157 = vld [vmem:[%s1 + $0x278] sm:$0xff]
  %v158 = vld [vmem:[%s1 + $0x280] sm:$0xff]
  %v159 = vld [vmem:[%s1 + $0x288] sm:$0xff]
  %v160 = vld [vmem:[%s1 + $0x290] sm:$0xff]
  %v161 = vld [vmem:[%s1 + $0x298] sm:$0xff]
  %v162 = vld [vmem:[%s1 + $0x2a0] sm:$0xff]
  %v163 = vld [vmem:[%s1 + $0x2a8] sm:$0xff]
  %v164 = vld [vmem:[%s1 + $0x2b0] sm:$0xff]
  %v165 = vld [vmem:[%s1 + $0x2b8] sm:$0xff]
  %v166 = vld [vmem:[%s1 + $0x2c0] sm:$0xff]
  %v167 = vld [vmem:[%s1 + $0x2c8] sm:$0xff]
  %v168 = vld [vmem:[%s1 + $0x2d0] sm:$0xff]
  %v169 = vld [vmem:[%s1 + $0x2d8] sm:$0xff]
  %v170 = vld [vmem:[%s1 + $0x2e0] sm:$0xff]
  %v171 = vld [vmem:[%s1 + $0x2e8] sm:$0xff]
  %v172 = vld [vmem:[%s1 + $0x2f0] sm:$0xff]
  %v173 = vld [vmem:[%s1 + $0x2f8] sm:$0xff]
  %v174 = vld [vmem:[%s1 + $0x300] sm:$0xff]
  %v175 = vld [vmem:[%s1 + $0x308] sm:$0xff]
  %v176 = vld [vmem:[%s1 + $0x310] sm:$0xff]
  %v177 = vld [vmem:[%s1 + $0x318] sm:$0xff]
  %v178 = vld [vmem:[%s1 + $0x320] sm:$0xff]
  %v179 = vld [vmem:[%s1 + $0x328] sm:$0xff]
  %v180 = vld [vmem:[%s1 + $0x330] sm:$0xff]
  %v181 = vld [vmem:[%s1 + $0x338] sm:$0xff]
  %v182 = vld [vmem:[%s1 + $0x340] sm:$0xff]
  %v183 = vld [vmem:[%s1 + $0x348] sm:$0xff]
  %v184 = vld [vmem:[%s1 + $0x350] sm:$0xff]
  %v185 = vld [vmem:[%s1 + $0x358] sm:$0xff]
  %v186 = vld [vmem:[%s1 + $0x360] sm:$0xff]
  %v187 = vld [vmem:[%s1 + $0x368] sm:$0xff]
  %v188 = vld [vmem:[%s1 + $0x370] sm:$0xff]
  %v189 = vld [vmem:[%s1 + $0x378] sm:$0xff]
  %v190 = vld [vmem:[%s1 + $0x380] sm:$0xff]
  %v191 = vld [vmem:[%s1 + $0x388] sm:$0xff]
  %v192 = vld [vmem:[%s1 + $0x390] sm:$0xff]
  %v193 = vld [vmem:[%s1 + $0x398] sm:$0xff]
  %v194 = vld [vmem:[%s1 + $0x3a0] sm:$0xff]
  %v195 = vld [vmem:[%s1 + $0x3a8] sm:$0xff]
  %v196 = vld [vmem:[%s1 + $0x3b0] sm:$0xff]
  %v197 = vld [vmem:[%s1 + $0x3b8] sm:$0xff]
  %v198 = vld [vmem:[%s1 + $0x3c0] sm:$0xff]
  %v199 = vld [vmem:[%s1 + $0x3c8] sm:$0xff]
  %v200 = vld [vmem:[%s1 + $0x3d0] sm:$0xff]
  %v201 = vld [vmem:[%s1 + $0x3d8] sm:$0xff]
  %v202 = vld [vmem:[%s1 + $0x3e0] sm:$0xff]
  %v203 = vld [vmem:[%s1 + $0x3e8] sm:$0xff]
  %v204 = vld [vmem:[%s1 + $0x3f0] sm:$0xff]
  %v205 = vld [vmem:[%s1 + $0x3f8] sm:$0xff]
  %v206 = vld [vmem:[%s2] sm:$0x3]
  %v208 = vlaneseq
  %v209 = vshrl.u32 %v208, 7
  %v210 = vsub.s32 0, %v209
  %v211 = vrot.slane %v206, %v210
  %v212 = vlaneseq
  %v213 = vshrl.u32 %v212, 7
  %v214 = vsub.s32 1, %v213
  %v215 = vrot.slane %v206, %v214
  %218 = vmatprep.subr.mxu0 %v109
  %219 = vmatpush1.msra.mxu0 %v108
  %220 = vmatprep.subr.mxu0 %v107
  %221 = vmatpush1.msra.mxu0 %v106
  %222 = vmatprep.subr.mxu0 %v105
  %223 = vmatpush1.msra.mxu0 %v104
  %224 = vmatprep.subr.mxu0 %v103
  %225 = vmatpush1.msra.mxu0 %v102
  %226 = vmatprep.subr.mxu0 %v101
  %227 = vmatpush1.msra.mxu0 %v100
  %228 = vmatprep.subr.mxu0 %v99
  %229 = vmatpush1.msra.mxu0 %v98
  %230 = vmatprep.subr.mxu0 %v97
  %231 = vmatpush1.msra.mxu0 %v96
  %232 = vmatprep.subr.mxu0 %v95
  %233 = vmatpush1.msra.mxu0 %v94
  %234 = vmatprep.subr.mxu0 %v93
  %235 = vmatpush1.msra.mxu0 %v92
  %236 = vmatprep.subr.mxu0 %v91
  %237 = vmatpush1.msra.mxu0 %v90
  %238 = vmatprep.subr.mxu0 %v89
  %239 = vmatpush1.msra.mxu0 %v88
  %240 = vmatprep.subr.mxu0 %v87
  %241 = vmatpush1.msra.mxu0 %v86
  %242 = vmatprep.subr.mxu0 %v85
  %243 = vmatpush1.msra.mxu0 %v84
  %244 = vmatprep.subr.mxu0 %v83
  %245 = vmatpush1.msra.mxu0 %v82
  %246 = vmatprep.subr.mxu0 %v81
  %247 = vmatpush1.msra.mxu0 %v80
  %248 = vmatprep.subr.mxu0 %v79
  %249 = vmatpush1.msra.mxu0 %v78
  %250 = vmatprep.subr.mxu0 %v141
  %251 = vmatpush2.msra.mxu0 %v140
  %252 = vmatprep.subr.mxu0 %v139
  %253 = vmatpush2.msra.mxu0 %v138
  %254 = vmatprep.subr.mxu0 %v137
  %255 = vmatpush2.msra.mxu0 %v136
  %256 = vmatprep.subr.mxu0 %v135
  %257 = vmatpush2.msra.mxu0 %v134
  %258 = vmatprep.subr.mxu0 %v133
  %259 = vmatpush2.msra.mxu0 %v132
  %260 = vmatprep.subr.mxu0 %v131
  %261 = vmatpush2.msra.mxu0 %v130
  %262 = vmatprep.subr.mxu0 %v129
  %263 = vmatpush2.msra.mxu0 %v128
  %264 = vmatprep.subr.mxu0 %v127
  %265 = vmatpush2.msra.mxu0 %v126
  %266 = vmatprep.subr.mxu0 %v125
  %267 = vmatpush2.msra.mxu0 %v124
  %268 = vmatprep.subr.mxu0 %v123
  %269 = vmatpush2.msra.mxu0 %v122
  %270 = vmatprep.subr.mxu0 %v121
  %271 = vmatpush2.msra.mxu0 %v120
  %272 = vmatprep.subr.mxu0 %v119
  %273 = vmatpush2.msra.mxu0 %v118
  %274 = vmatprep.subr.mxu0 %v117
  %275 = vmatpush2.msra.mxu0 %v116
  %276 = vmatprep.subr.mxu0 %v115
  %277 = vmatpush2.msra.mxu0 %v114
  %278 = vmatprep.subr.mxu0 %v113
  %279 = vmatpush2.msra.mxu0 %v112
  %280 = vmatprep.subr.mxu0 %v111
  %281 = vmatpush2.msra.mxu0 %v110
  %282 = vmatprep.mubr.f32.mxu0 %v15
  %283 = vmatmul.mubr.f32.gmra.mxu0 %v14
  %v284 = vpop.f32.mrf.mxu0
  %v285 = vadd.f32 %v211, %v284
  %v286 = vpop.f32.mrf.mxu0
  %v287 = vadd.f32 %v215, %v286
  %288 = vmatprep.mubr.f32.mxu0 %v19
  %289 = vmatmul.mubr.f32.gmra.mxu0 %v18
  %v290 = vpop.f32.mrf.mxu0
  %v291 = vadd.f32 %v211, %v290
  %v292 = vpop.f32.mrf.mxu0
  %v293 = vadd.f32 %v215, %v292
  %294 = vmatprep.mubr.f32.mxu0 %v23
  %295 = vmatmul.mubr.f32.gmra.mxu0 %v22
  %v296 = vpop.f32.mrf.mxu0
  %v297 = vadd.f32 %v211, %v296
  %v298 = vpop.f32.mrf.mxu0
  %v299 = vadd.f32 %v215, %v298
  %300 = vmatprep.mubr.f32.mxu0 %v27
  %301 = vmatmul.mubr.f32.gmra.mxu0 %v26
  %v302 = vpop.f32.mrf.mxu0
  %v303 = vadd.f32 %v211, %v302
  %v304 = vpop.f32.mrf.mxu0
  %v305 = vadd.f32 %v215, %v304
  %306 = vmatprep.mubr.f32.mxu0 %v31
  %307 = vmatmul.mubr.f32.gmra.mxu0 %v30
  %v308 = vpop.f32.mrf.mxu0
  %v309 = vadd.f32 %v211, %v308
  %v310 = vpop.f32.mrf.mxu0
  %v311 = vadd.f32 %v215, %v310
  %312 = vmatprep.mubr.f32.mxu0 %v35
  %313 = vmatmul.mubr.f32.gmra.mxu0 %v34
  %v314 = vpop.f32.mrf.mxu0
  %v315 = vadd.f32 %v211, %v314
  %v316 = vpop.f32.mrf.mxu0
  %v317 = vadd.f32 %v215, %v316
  %318 = vmatprep.mubr.f32.mxu0 %v39
  %319 = vmatmul.mubr.f32.gmra.mxu0 %v38
  %v320 = vpop.f32.mrf.mxu0
  %v321 = vadd.f32 %v211, %v320
  %v322 = vpop.f32.mrf.mxu0
  %v323 = vadd.f32 %v215, %v322
  %324 = vmatprep.mubr.f32.mxu0 %v43
  %325 = vmatmul.mubr.f32.gmra.mxu0 %v42
  %v326 = vpop.f32.mrf.mxu0
  %v327 = vadd.f32 %v211, %v326
  %v328 = vpop.f32.mrf.mxu0
  %v329 = vadd.f32 %v215, %v328
  %330 = vmatprep.mubr.f32.mxu0 %v47
  %331 = vmatmul.mubr.f32.gmra.mxu0 %v46
  %v332 = vpop.f32.mrf.mxu0
  %v333 = vadd.f32 %v211, %v332
  %v334 = vpop.f32.mrf.mxu0
  %v335 = vadd.f32 %v215, %v334
  %336 = vmatprep.mubr.f32.mxu0 %v51
  %337 = vmatmul.mubr.f32.gmra.mxu0 %v50
  %v338 = vpop.f32.mrf.mxu0
  %v339 = vadd.f32 %v211, %v338
  %v340 = vpop.f32.mrf.mxu0
  %v341 = vadd.f32 %v215, %v340
  %342 = vmatprep.mubr.f32.mxu0 %v55
  %343 = vmatmul.mubr.f32.gmra.mxu0 %v54
  %v344 = vpop.f32.mrf.mxu0
  %v345 = vadd.f32 %v211, %v344
  %v346 = vpop.f32.mrf.mxu0
  %v347 = vadd.f32 %v215, %v346
  %348 = vmatprep.mubr.f32.mxu0 %v59
  %349 = vmatmul.mubr.f32.gmra.mxu0 %v58
  %v350 = vpop.f32.mrf.mxu0
  %v351 = vadd.f32 %v211, %v350
  %v352 = vpop.f32.mrf.mxu0
  %v353 = vadd.f32 %v215, %v352
  %354 = vmatprep.mubr.f32.mxu0 %v63
  %355 = vmatmul.mubr.f32.gmra.mxu0 %v62
  %v356 = vpop.f32.mrf.mxu0
  %v357 = vadd.f32 %v211, %v356
  %v358 = vpop.f32.mrf.mxu0
  %v359 = vadd.f32 %v215, %v358
  %360 = vmatprep.mubr.f32.mxu0 %v67
  %361 = vmatmul.mubr.f32.gmra.mxu0 %v66
  %v362 = vpop.f32.mrf.mxu0
  %v363 = vadd.f32 %v211, %v362
  %v364 = vpop.f32.mrf.mxu0
  %v365 = vadd.f32 %v215, %v364
  %366 = vmatprep.mubr.f32.mxu0 %v71
  %367 = vmatmul.mubr.f32.gmra.mxu0 %v70
  %v368 = vpop.f32.mrf.mxu0
  %v369 = vadd.f32 %v211, %v368
  %v370 = vpop.f32.mrf.mxu0
  %v371 = vadd.f32 %v215, %v370
  %372 = vmatprep.mubr.f32.mxu0 %v75
  %373 = vmatmul.mubr.f32.gmra.mxu0 %v74
  %v374 = vpop.f32.mrf.mxu0
  %v375 = vadd.f32 %v211, %v374
  %v376 = vpop.f32.mrf.mxu0
  %v377 = vadd.f32 %v215, %v376
  %378 = vdwg.mxu0
  %379 = vmatprep.subr.mxu0 %v173
  %380 = vmatpush1.msra.mxu0 %v172
  %381 = vmatprep.subr.mxu0 %v171
  %382 = vmatpush1.msra.mxu0 %v170
  %383 = vmatprep.subr.mxu0 %v169
  %384 = vmatpush1.msra.mxu0 %v168
  %385 = vmatprep.subr.mxu0 %v167
  %386 = vmatpush1.msra.mxu0 %v166
  %387 = vmatprep.subr.mxu0 %v165
  %388 = vmatpush1.msra.mxu0 %v164
  %389 = vmatprep.subr.mxu0 %v163
  %390 = vmatpush1.msra.mxu0 %v162
  %391 = vmatprep.subr.mxu0 %v161
  %392 = vmatpush1.msra.mxu0 %v160
  %393 = vmatprep.subr.mxu0 %v159
  %394 = vmatpush1.msra.mxu0 %v158
  %395 = vmatprep.subr.mxu0 %v157
  %396 = vmatpush1.msra.mxu0 %v156
  %397 = vmatprep.subr.mxu0 %v155
  %398 = vmatpush1.msra.mxu0 %v154
  %399 = vmatprep.subr.mxu0 %v153
  %400 = vmatpush1.msra.mxu0 %v152
  %401 = vmatprep.subr.mxu0 %v151
  %402 = vmatpush1.msra.mxu0 %v150
  %403 = vmatprep.subr.mxu0 %v149
  %404 = vmatpush1.msra.mxu0 %v148
  %405 = vmatprep.subr.mxu0 %v147
  %406 = vmatpush1.msra.mxu0 %v146
  %407 = vmatprep.subr.mxu0 %v145
  %408 = vmatpush1.msra.mxu0 %v144
  %409 = vmatprep.subr.mxu0 %v143
  %410 = vmatpush1.msra.mxu0 %v142
  %411 = vmatprep.subr.mxu0 %v205
  %412 = vmatpush2.msra.mxu0 %v204
  %413 = vmatprep.subr.mxu0 %v203
  %414 = vmatpush2.msra.mxu0 %v202
  %415 = vmatprep.subr.mxu0 %v201
  %416 = vmatpush2.msra.mxu0 %v200
  %417 = vmatprep.subr.mxu0 %v199
  %418 = vmatpush2.msra.mxu0 %v198
  %419 = vmatprep.subr.mxu0 %v197
  %420 = vmatpush2.msra.mxu0 %v196
  %421 = vmatprep.subr.mxu0 %v195
  %422 = vmatpush2.msra.mxu0 %v194
  %423 = vmatprep.subr.mxu0 %v193
  %424 = vmatpush2.msra.mxu0 %v192
  %425 = vmatprep.subr.mxu0 %v191
  %426 = vmatpush2.msra.mxu0 %v190
  %427 = vmatprep.subr.mxu0 %v189
  %428 = vmatpush2.msra.mxu0 %v188
  %429 = vmatprep.subr.mxu0 %v187
  %430 = vmatpush2.msra.mxu0 %v186
  %431 = vmatprep.subr.mxu0 %v185
  %432 = vmatpush2.msra.mxu0 %v184
  %433 = vmatprep.subr.mxu0 %v183
  %434 = vmatpush2.msra.mxu0 %v182
  %435 = vmatprep.subr.mxu0 %v181
  %436 = vmatpush2.msra.mxu0 %v180
  %437 = vmatprep.subr.mxu0 %v179
  %438 = vmatpush2.msra.mxu0 %v178
  %439 = vmatprep.subr.mxu0 %v177
  %440 = vmatpush2.msra.mxu0 %v176
  %441 = vmatprep.subr.mxu0 %v175
  %442 = vmatpush2.msra.mxu0 %v174
  %443 = vmatprep.mubr.f32.mxu0 %v17
  %444 = vmatmul.mubr.f32.gmra.mxu0 %v16
  %v445 = vpop.f32.mrf.mxu0
  %v446 = vadd.f32 %v285, %v445
  %v447 = vpop.f32.mrf.mxu0
  %v448 = vadd.f32 %v287, %v447
  %449 = vmatprep.mubr.f32.mxu0 %v21
  %450 = vmatmul.mubr.f32.gmra.mxu0 %v20
  %v451 = vpop.f32.mrf.mxu0
  %v452 = vadd.f32 %v291, %v451
  %v453 = vpop.f32.mrf.mxu0
  %v454 = vadd.f32 %v293, %v453
  %455 = vmatprep.mubr.f32.mxu0 %v25
  %456 = vmatmul.mubr.f32.gmra.mxu0 %v24
  %v457 = vpop.f32.mrf.mxu0
  %v458 = vadd.f32 %v297, %v457
  %v459 = vpop.f32.mrf.mxu0
  %v460 = vadd.f32 %v299, %v459
  %461 = vmatprep.mubr.f32.mxu0 %v29
  %462 = vmatmul.mubr.f32.gmra.mxu0 %v28
  %v463 = vpop.f32.mrf.mxu0
  %v464 = vadd.f32 %v303, %v463
  %v465 = vpop.f32.mrf.mxu0
  %v466 = vadd.f32 %v305, %v465
  %467 = vmatprep.mubr.f32.mxu0 %v33
  %468 = vmatmul.mubr.f32.gmra.mxu0 %v32
  %v469 = vpop.f32.mrf.mxu0
  %v470 = vadd.f32 %v309, %v469
  %v471 = vpop.f32.mrf.mxu0
  %v472 = vadd.f32 %v311, %v471
  %473 = vmatprep.mubr.f32.mxu0 %v37
  %474 = vmatmul.mubr.f32.gmra.mxu0 %v36
  %v475 = vpop.f32.mrf.mxu0
  %v476 = vadd.f32 %v315, %v475
  %v477 = vpop.f32.mrf.mxu0
  %v478 = vadd.f32 %v317, %v477
  %479 = vmatprep.mubr.f32.mxu0 %v41
  %480 = vmatmul.mubr.f32.gmra.mxu0 %v40
  %v481 = vpop.f32.mrf.mxu0
  %v482 = vadd.f32 %v321, %v481
  %v483 = vpop.f32.mrf.mxu0
  %v484 = vadd.f32 %v323, %v483
  %485 = vmatprep.mubr.f32.mxu0 %v45
  %486 = vmatmul.mubr.f32.gmra.mxu0 %v44
  %v487 = vpop.f32.mrf.mxu0
  %v488 = vadd.f32 %v327, %v487
  %v489 = vpop.f32.mrf.mxu0
  %v490 = vadd.f32 %v329, %v489
  %491 = vmatprep.mubr.f32.mxu0 %v49
  %492 = vmatmul.mubr.f32.gmra.mxu0 %v48
  %v493 = vpop.f32.mrf.mxu0
  %v494 = vadd.f32 %v333, %v493
  %v495 = vpop.f32.mrf.mxu0
  %v496 = vadd.f32 %v335, %v495
  %497 = vmatprep.mubr.f32.mxu0 %v53
  %498 = vmatmul.mubr.f32.gmra.mxu0 %v52
  %v499 = vpop.f32.mrf.mxu0
  %v500 = vadd.f32 %v339, %v499
  %v501 = vpop.f32.mrf.mxu0
  %v502 = vadd.f32 %v341, %v501
  %503 = vmatprep.mubr.f32.mxu0 %v57
  %504 = vmatmul.mubr.f32.gmra.mxu0 %v56
  %v505 = vpop.f32.mrf.mxu0
  %v506 = vadd.f32 %v345, %v505
  %v507 = vpop.f32.mrf.mxu0
  %v508 = vadd.f32 %v347, %v507
  %509 = vmatprep.mubr.f32.mxu0 %v61
  %510 = vmatmul.mubr.f32.gmra.mxu0 %v60
  %v511 = vpop.f32.mrf.mxu0
  %v512 = vadd.f32 %v351, %v511
  %v513 = vpop.f32.mrf.mxu0
  %v514 = vadd.f32 %v353, %v513
  %515 = vmatprep.mubr.f32.mxu0 %v65
  %516 = vmatmul.mubr.f32.gmra.mxu0 %v64
  %v517 = vpop.f32.mrf.mxu0
  %v518 = vadd.f32 %v357, %v517
  %v519 = vpop.f32.mrf.mxu0
  %v520 = vadd.f32 %v359, %v519
  %521 = vmatprep.mubr.f32.mxu0 %v69
  %522 = vmatmul.mubr.f32.gmra.mxu0 %v68
  %v523 = vpop.f32.mrf.mxu0
  %v524 = vadd.f32 %v363, %v523
  %v525 = vpop.f32.mrf.mxu0
  %v526 = vadd.f32 %v365, %v525
  %527 = vmatprep.mubr.f32.mxu0 %v73
  %528 = vmatmul.mubr.f32.gmra.mxu0 %v72
  %v529 = vpop.f32.mrf.mxu0
  %v530 = vadd.f32 %v369, %v529
  %v531 = vpop.f32.mrf.mxu0
  %v532 = vadd.f32 %v371, %v531
  %533 = vmatprep.mubr.f32.mxu0 %v77
  %534 = vmatmul.mubr.f32.gmra.mxu0 %v76
  %v535 = vpop.f32.mrf.mxu0
  %v536 = vadd.f32 %v375, %v535
  %v537 = vpop.f32.mrf.mxu0
  %v538 = vadd.f32 %v377, %v537
  %539 = vdwg.mxu0
  %v540 = vmax.f32 %v446, 0.0
  %v541 = vmax.f32 %v448, 0.0
  %v542 = vmax.f32 %v452, 0.0
  %v543 = vmax.f32 %v454, 0.0
  %v544 = vmax.f32 %v458, 0.0
  %v545 = vmax.f32 %v460, 0.0
  %v546 = vmax.f32 %v464, 0.0
  %v547 = vmax.f32 %v466, 0.0
  %v548 = vmax.f32 %v470, 0.0
  %v549 = vmax.f32 %v472, 0.0
  %v550 = vmax.f32 %v476, 0.0
  %v551 = vmax.f32 %v478, 0.0
  %v552 = vmax.f32 %v482, 0.0
  %v553 = vmax.f32 %v484, 0.0
  %v554 = vmax.f32 %v488, 0.0
  %v555 = vmax.f32 %v490, 0.0
  %v556 = vmax.f32 %v494, 0.0
  %v557 = vmax.f32 %v496, 0.0
  %v558 = vmax.f32 %v500, 0.0
  %v559 = vmax.f32 %v502, 0.0
  %v560 = vmax.f32 %v506, 0.0
  %v561 = vmax.f32 %v508, 0.0
  %v562 = vmax.f32 %v512, 0.0
  %v563 = vmax.f32 %v514, 0.0
  %v564 = vmax.f32 %v518, 0.0
  %v565 = vmax.f32 %v520, 0.0
  %v566 = vmax.f32 %v524, 0.0
  %v567 = vmax.f32 %v526, 0.0
  %v568 = vmax.f32 %v530, 0.0
  %v569 = vmax.f32 %v532, 0.0
  %v570 = vmax.f32 %v536, 0.0
  %v571 = vmax.f32 %v538, 0.0
  %572 = vst [vmem:[%s3] sm:$0xff] %v540
  %573 = vst [vmem:[%s3 + $0x8] sm:$0xff] %v541
  %574 = vst [vmem:[%s3 + $0x10] sm:$0xff] %v542
  %575 = vst [vmem:[%s3 + $0x18] sm:$0xff] %v543
  %576 = vst [vmem:[%s3 + $0x20] sm:$0xff] %v544
  %577 = vst [vmem:[%s3 + $0x28] sm:$0xff] %v545
  %578 = vst [vmem:[%s3 + $0x30] sm:$0xff] %v546
  %579 = vst [vmem:[%s3 + $0x38] sm:$0xff] %v547
  %580 = vst [vmem:[%s3 + $0x40] sm:$0xff] %v548
  %581 = vst [vmem:[%s3 + $0x48] sm:$0xff] %v549
  %582 = vst [vmem:[%s3 + $0x50] sm:$0xff] %v550
  %583 = vst [vmem:[%s3 + $0x58] sm:$0xff] %v551
  %584 = vst [vmem:[%s3 + $0x60] sm:$0xff] %v552
  %585 = vst [vmem:[%s3 + $0x68] sm:$0xff] %v553
  %586 = vst [vmem:[%s3 + $0x70] sm:$0xff] %v554
  %587 = vst [vmem:[%s3 + $0x78] sm:$0xff] %v555
  %588 = vst [vmem:[%s3 + $0x80] sm:$0xff] %v556
  %589 = vst [vmem:[%s3 + $0x88] sm:$0xff] %v557
  %590 = vst [vmem:[%s3 + $0x90] sm:$0xff] %v558
  %591 = vst [vmem:[%s3 + $0x98] sm:$0xff] %v559
  %592 = vst [vmem:[%s3 + $0xa0] sm:$0xff] %v560
  %593 = vst [vmem:[%s3 + $0xa8] sm:$0xff] %v561
  %594 = vst [vmem:[%s3 + $0xb0] sm:$0xff] %v562
  %595 = vst [vmem:[%s3 + $0xb8] sm:$0xff] %v563
  %596 = vst [vmem:[%s3 + $0xc0] sm:$0xff] %v564
  %597 = vst [vmem:[%s3 + $0xc8] sm:$0xff] %v565
  %598 = vst [vmem:[%s3 + $0xd0] sm:$0xff] %v566
  %599 = vst [vmem:[%s3 + $0xd8] sm:$0xff] %v567
  %600 = vst [vmem:[%s3 + $0xe0] sm:$0xff] %v568
  %601 = vst [vmem:[%s3 + $0xe8] sm:$0xff] %v569
  %602 = vst [vmem:[%s3 + $0xf0] sm:$0xff] %v570
  %603 = vst [vmem:[%s3 + $0xf8] sm:$0xff] %v571
  // Predicated region
  $region14: #{res50_layer4_forward.20} parent=0 // pred_check
    _
  $region15: #{res50_layer4_forward.20} parent=0 // pred_check_branch
    %605 = sbr.rel (0) target = $region17
  $region16: #{res50_layer4_forward.20} parent=0 // pred_region
    _
  $region17: #{res50_layer4_forward.20} parent=0 // pred_fallthru
    _
  // Predicated region
  $region18: #{res50_layer4_forward.20} parent=0 // pred_check
    _
  $region19: #{res50_layer4_forward.20} parent=0 // pred_check_branch
    %607 = sbr.rel (0) target = $region21
  $region20: #{res50_layer4_forward.20} parent=0 // pred_region
    _
  $region21: #{res50_layer4_forward.20} parent=0 // pred_fallthru
    _

// kernel: res50_layer4_forward.21
$region0: #{res50_layer4_forward.21}
  #allocation0 [shape = 'u32[]', space=smem, size = 0x4, offset = 0x4, fixed_abs, tag = 'smem constant byte address 0x4 - core index']
  #allocation1 [shape = 'u32[144,128]{1,0:T(1,128)}', space=vmem, size = 0x12000, scoped, tag = 'internal scratch']
  %s0 = inlined_call_operand.vmem [shape: f32[2,104,256], index: 0, kind: input, shape index: {}]
  %s1 = inlined_call_operand.vmem [shape: f32[9,256,256], index: 1, kind: input, shape index: {}]
  %s2 = inlined_call_operand.vmem [shape: f32[1,256], index: 2, kind: input, shape index: {}]
  %s3 = inlined_call_operand.vmem [shape: f32[2,80,256], index: 3, kind: output, shape index: {}]
  %s4 = sld [smem:[#allocation0]]
  $region45: #{res50_layer4_forward.21} parent=0
    _
  %s6 = ssub.s32 1, %s4
  %s7 = scalar_select 0, %s6, %s4
  loop: start=0, step=1, limit=4
  $region2: #{res50_layer4_forward.21} parent=0 // loop_pre_header
    _
  $region3: #{res50_layer4_forward.21} parent=0 // loop_header
    %s9 = sphi 0, %s13
    %p10 = scmp.ge.s32.totalorder %s9, 4
    %s19 = sphi 0, %s21
    %s22 = sphi 0, %s19
    %s23 = sphi 0, %s22
    %s39 = sphi 0, %s23
    %s43 = sphi 0, %s43
    %s45 = sphi 0, %s43
    %s46 = sphi 0, %s45
    %s60 = sphi 0, %s46
    %s64 = sphi 0, %s64
    %s66 = sphi 0, %s64
    %s67 = sphi 0, %s66
    %s81 = sphi 0, %s67
    %s87 = sphi 0, %s89
    %s90 = sphi 0, %s87
    %s91 = sphi 0, %s90
    %s107 = sphi 0, %s91
  $region4: #{res50_layer4_forward.21} parent=0 // loop_header_branch
    %12 = sbr.rel (%p10) target = $region8
  $region5: #{res50_layer4_forward.21} parent=0 // loop_body
    %s14 = ssub.s32 %s9, 1
    %s15 = ssub.s32 %s9, 2
    %s16 = sadd.s32 %s9, 1
    %s17 = ssub.s32 %s9, %s16
    %p18 = scmp.eq.s32.totalorder %s17, 0
    %s20 = sadd.s32 %s19, 1
    %s21 = scalar_select %p18, %s19, %s20
    %p24 = pneg %p18
    %p25 = scmp.eq.s32.totalorder %s9, 1
    %p26 = por %p24, %p25
    %p27 = scmp.ne.s32.totalorder %s19, %s22
    %p28 = scmp.eq.s32.totalorder %s9, 0
    %p29 = por %p27, %p28
    %p30 = scmp.ne.s32.totalorder %s19, %s22
    %p31 = scmp.eq.s32.totalorder %s14, 1
    %p32 = por %p30, %p31
    %p33 = scmp.ne.s32.totalorder %s22, %s23
    %p34 = scmp.eq.s32.totalorder %s14, 0
    %p35 = por %p33, %p34
    %p36 = scmp.ne.s32.totalorder %s22, %s23
    %p37 = scmp.eq.s32.totalorder %s15, 1
    %p38 = por %p36, %p37
    %p40 = scmp.ne.s32.totalorder %s23, %s39
    %p41 = scmp.eq.s32.totalorder %s15, 0
    %p42 = por %p40, %p41
    %s44 = sadd.s32 %s43, 1
    %p47 = scmp.eq.s32.totalorder %s9, 1
    %p48 = scmp.ne.s32.totalorder %s43, %s45
    %p49 = scmp.eq.s32.totalorder %s9, 0
    %p50 = por %p48, %p49
    %p51 = scmp.ne.s32.totalorder %s43, %s45
    %p52 = scmp.eq.s32.totalorder %s14, 1
    %p53 = por %p51, %p52
    %p54 = scmp.ne.s32.totalorder %s45, %s46
    %p55 = scmp.eq.s32.totalorder %s14, 0
    %p56 = por %p54, %p55
    %p57 = scmp.ne.s32.totalorder %s45, %s46
    %p58 = scmp.eq.s32.totalorder %s15, 1
    %p59 = por %p57, %p58
    %p61 = scmp.ne.s32.totalorder %s46, %s60
    %p62 = scmp.eq.s32.totalorder %s15, 0
    %p63 = por %p61, %p62
    %s65 = sadd.s32 %s64, 1
    %p68 = scmp.eq.s32.totalorder %s9, 1
    %p69 = scmp.ne.s32.totalorder %s64, %s66
    %p70 = scmp.eq.s32.totalorder %s9, 0
    %p71 = por %p69, %p70
    %p72 = scmp.ne.s32.totalorder %s64, %s66
    %p73 = scmp.eq.s32.totalorder %s14, 1
    %p74 = por %p72, %p73
    %p75 = scmp.ne.s32.totalorder %s66, %s67
    %p76 = scmp.eq.s32.totalorder %s14, 0
    %p77 = por %p75, %p76
    %p78 = scmp.ne.s32.totalorder %s66, %s67
    %p79 = scmp.eq.s32.totalorder %s15, 1
    %p80 = por %p78, %p79
    %p82 = scmp.ne.s32.totalorder %s67, %s81
    %p83 = scmp.eq.s32.totalorder %s15, 0
    %p84 = por %p82, %p83
    %s85 = ssub.s32 %s9, %s16
    %p86 = scmp.eq.s32.totalorder %s85, 0
    %s88 = sadd.s32 %s87, 1
    %s89 = scalar_select %p86, %s87, %s88
    %p92 = pneg %p86
    %p93 = scmp.eq.s32.totalorder %s9, 1
    %p94 = por %p92, %p93
    %p95 = scmp.ne.s32.totalorder %s87, %s90
    %p96 = scmp.eq.s32.totalorder %s9, 0
    %p97 = por %p95, %p96
    %p98 = scmp.ne.s32.totalorder %s87, %s90
    %p99 = scmp.eq.s32.totalorder %s14, 1
    %p100 = por %p98, %p99
    %p101 = scmp.ne.s32.totalorder %s90, %s91
    %p102 = scmp.eq.s32.totalorder %s14, 0
    %p103 = por %p101, %p102
    %p104 = scmp.ne.s32.totalorder %s90, %s91
    %p105 = scmp.eq.s32.totalorder %s15, 1
    %p106 = por %p104, %p105
    %p108 = scmp.ne.s32.totalorder %s91, %s107
    %p109 = scmp.eq.s32.totalorder %s15, 0
    %p110 = por %p108, %p109
    %p111 = scmp.le.s32.totalorder 1, %s9
    %p112 = scmp.lt.s32.totalorder %s9, 3
    %p113 = pnand %p111, %p112
    %p114 = pneg %p113
    // Predicated region
    $region9: #{res50_layer4_forward.21} parent=5 // pred_check
      _
    $region10: #{res50_layer4_forward.21} parent=5 // pred_check_branch
      %116 = sbr.rel (%p113) target = $region12
    $region11: #{res50_layer4_forward.21} parent=5 // pred_region
      %s117 = ssub.s32 %s9, 1
      // Predicated region
      $region13: #{res50_layer4_forward.21} parent=11 // pred_check
        %p118 = pneg %p56
      $region14: #{res50_layer4_forward.21} parent=11 // pred_check_branch
        %120 = sbr.rel (%p118) target = $region16
      $region15: #{res50_layer4_forward.21} parent=11 // pred_region
        _
      $region16: #{res50_layer4_forward.21} parent=11 // pred_fallthru
        _
      // Predicated region
      $region17: #{res50_layer4_forward.21} parent=11 // pred_check
        %p121 = pneg %p77
      $region18: #{res50_layer4_forward.21} parent=11 // pred_check_branch
        %123 = sbr.rel (%p121) target = $region20
      $region19: #{res50_layer4_forward.21} parent=11 // pred_region
        _
      $region20: #{res50_layer4_forward.21} parent=11 // pred_fallthru
        _
    $region12: #{res50_layer4_forward.21} parent=5 // pred_fallthru
      _
    %p124 = scmp.lt.s32.totalorder %s9, 2
    // Predicated region
    $region21: #{res50_layer4_forward.21} parent=5 // pred_check
      %p125 = pneg %p124
    $region22: #{res50_layer4_forward.21} parent=5 // pred_check_branch
      %127 = sbr.rel (%p125) target = $region24
    $region23: #{res50_layer4_forward.21} parent=5 // pred_region
      // Predicated region
      $region25: #{res50_layer4_forward.21} parent=23 // pred_check
        %p128 = pneg %p29
      $region26: #{res50_layer4_forward.21} parent=23 // pred_check_branch
        %130 = sbr.rel (%p128) target = $region28
      $region27: #{res50_layer4_forward.21} parent=23 // pred_region
        %p131 = scmp.lt.s32.totalorder %s9, 1
        %s132 = scalar_select %p131, %s9, 1
        %s133 = smul.addr %s132, 26
        %s134 = smul.addr %s133, 8
        %s135 = scalar_lea.vmem %s0, %s134
      $region28: #{res50_layer4_forward.21} parent=23 // pred_fallthru
        _
    $region24: #{res50_layer4_forward.21} parent=5 // pred_fallthru
      _
    %p136 = scmp.le.s32.totalorder 1, %s9
    %p137 = scmp.lt.s32.totalorder %s9, 3
    %p138 = pnand %p136, %p137
    %p139 = pneg %p138
    // Predicated region
    $region29: #{res50_layer4_forward.21} parent=5 // pred_check
      _
    $region30: #{res50_layer4_forward.21} parent=5 // pred_check_branch
      %141 = sbr.rel (%p138) target = $region32
    $region31: #{res50_layer4_forward.21} parent=5 // pred_region
      %s142 = ssub.s32 %s9, 1
      %p143 = scmp.lt.s32.totalorder %s14, 1
      %s144 = scalar_select %p143, %s14, 1
      %s145 = smul.addr %s144, 26
      %s146 = smul.addr %s145, 8
      %s147 = scalar_lea.vmem %s0, %s146
      %p148 = pneg %p35
      %p149 = pneg %p32
      %p150 = pneg %p56
      %p151 = pneg %p53
      %p152 = pneg %p77
      %p153 = pneg %p74
      %p154 = pneg %p103
      %p155 = pneg %p100
      %p156 = scmp.lt.s32.totalorder %s14, 1
      %s157 = scalar_select %p156, %s14, 1
      %s158 = smul.addr %s157, 20
      %s159 = smul.addr %s158, 8
      %s160 = scalar_lea.vmem %s3, %s159
      %p161 = scmp.lt.s32.totalorder %s14, 1
      %s162 = scalar_select %p161, %s14, 1
      %s163 = smul.addr %s162, 26
      %s164 = smul.addr %s163, 8
      %s165 = scalar_lea.vmem %s0, %s164
      %p166 = scmp.lt.s32.totalorder %s14, 1
      %s167 = scalar_select %p166, %s14, 1
      %s168 = smul.addr %s167, 20
      %s169 = smul.addr %s168, 8
      %s170 = scalar_lea.vmem %s3, %s169
      %v171 = vld [vmem:[%s165] sm:$0xff]
      %v172 = vld [vmem:[%s165 + $0x8] sm:$0xff]
      %v173 = vld [vmem:[%s165 + $0x10] sm:$0xff]
      %v174 = vld [vmem:[%s165 + $0x18] sm:$0xff]
      %v175 = vld [vmem:[%s165 + $0x20] sm:$0xff]
      %v176 = vld [vmem:[%s165 + $0x28] sm:$0xff]
      %v177 = vld [vmem:[%s165 + $0x30] sm:$0xff]
      %v178 = vld [vmem:[%s165 + $0x38] sm:$0xff]
      %v179 = vld [vmem:[%s165 + $0x40] sm:$0xff]
      %v180 = vld [vmem:[%s165 + $0x48] sm:$0xff]
      %v181 = vld [vmem:[%s165 + $0x50] sm:$0xff]
      %v182 = vld [vmem:[%s165 + $0x58] sm:$0xff]
      %v183 = vld [vmem:[%s165 + $0x60] sm:$0xff]
      %v184 = vld [vmem:[%s165 + $0x68] sm:$0xff]
      %v185 = vld [vmem:[%s165 + $0x70] sm:$0xff]
      %v186 = vld [vmem:[%s165 + $0x78] sm:$0xff]
      %v187 = vld [vmem:[%s165 + $0x80] sm:$0xff]
      %v188 = vld [vmem:[%s165 + $0x88] sm:$0xff]
      %v189 = vld [vmem:[%s165 + $0x90] sm:$0xff]
      %v190 = vld [vmem:[%s165 + $0x98] sm:$0xff]
      %v191 = vld [vmem:[%s165 + $0xa0] sm:$0xff]
      %v192 = vld [vmem:[%s165 + $0xa8] sm:$0xff]
      %v193 = vld [vmem:[%s165 + $0xb0] sm:$0xff]
      %v194 = vld [vmem:[%s165 + $0xb8] sm:$0xff]
      %v195 = vld [vmem:[%s165 + $0xc0] sm:$0xff]
      %v196 = vld [vmem:[%s165 + $0xc8] sm:$0xff]
      %v197 = vld [vmem:[%s1] sm:$0xff]
      %v198 = vld [vmem:[%s1 + $0x8] sm:$0xff]
      %v199 = vld [vmem:[%s1 + $0x10] sm:$0xff]
      %v200 = vld [vmem:[%s1 + $0x18] sm:$0xff]
      %v201 = vld [vmem:[%s1 + $0x20] sm:$0xff]
      %v202 = vld [vmem:[%s1 + $0x28] sm:$0xff]
      %v203 = vld [vmem:[%s1 + $0x30] sm:$0xff]
      %v204 = vld [vmem:[%s1 + $0x38] sm:$0xff]
      %v205 = vld [vmem:[%s1 + $0x40] sm:$0xff]
      %v206 = vld [vmem:[%s1 + $0x48] sm:$0xff]
      %v207 = vld [vmem:[%s1 + $0x50] sm:$0xff]
      %v208 = vld [vmem:[%s1 + $0x58] sm:$0xff]
      %v209 = vld [vmem:[%s1 + $0x60] sm:$0xff]
      %v210 = vld [vmem:[%s1 + $0x68] sm:$0xff]
      %v211 = vld [vmem:[%s1 + $0x70] sm:$0xff]
      %v212 = vld [vmem:[%s1 + $0x78] sm:$0xff]
      %v213 = vld [vmem:[%s1 + $0x80] sm:$0xff]
      %v214 = vld [vmem:[%s1 + $0x88] sm:$0xff]
      %v215 = vld [vmem:[%s1 + $0x90] sm:$0xff]
      %v216 = vld [vmem:[%s1 + $0x98] sm:$0xff]
      %v217 = vld [vmem:[%s1 + $0xa0] sm:$0xff]
      %v218 = vld [vmem:[%s1 + $0xa8] sm:$0xff]
      %v219 = vld [vmem:[%s1 + $0xb0] sm:$0xff]
      %v220 = vld [vmem:[%s1 + $0xb8] sm:$0xff]
      %v221 = vld [vmem:[%s1 + $0xc0] sm:$0xff]
      %v222 = vld [vmem:[%s1 + $0xc8] sm:$0xff]
      %v223 = vld [vmem:[%s1 + $0xd0] sm:$0xff]
      %v224 = vld [vmem:[%s1 + $0xd8] sm:$0xff]
      %v225 = vld [vmem:[%s1 + $0xe0] sm:$0xff]
      %v226 = vld [vmem:[%s1 + $0xe8] sm:$0xff]
      %v227 = vld [vmem:[%s1 + $0xf0] sm:$0xff]
      %v228 = vld [vmem:[%s1 + $0xf8] sm:$0xff]
      %v229 = vld [vmem:[%s1 + $0x100] sm:$0xff]
      %v230 = vld [vmem:[%s1 + $0x108] sm:$0xff]
      %v231 = vld [vmem:[%s1 + $0x110] sm:$0xff]
      %v232 = vld [vmem:[%s1 + $0x118] sm:$0xff]
      %v233 = vld [vmem:[%s1 + $0x120] sm:$0xff]
      %v234 = vld [vmem:[%s1 + $0x128] sm:$0xff]
      %v235 = vld [vmem:[%s1 + $0x130] sm:$0xff]
      %v236 = vld [vmem:[%s1 + $0x138] sm:$0xff]
      %v237 = vld [vmem:[%s1 + $0x140] sm:$0xff]
      %v238 = vld [vmem:[%s1 + $0x148] sm:$0xff]
      %v239 = vld [vmem:[%s1 + $0x150] sm:$0xff]
      %v240 = vld [vmem:[%s1 + $0x158] sm:$0xff]
      %v241 = vld [vmem:[%s1 + $0x160] sm:$0xff]
      %v242 = vld [vmem:[%s1 + $0x168] sm:$0xff]
      %v243 = vld [vmem:[%s1 + $0x170] sm:$0xff]
      %v244 = vld [vmem:[%s1 + $0x178] sm:$0xff]
      %v245 = vld [vmem:[%s1 + $0x180] sm:$0xff]
      %v246 = vld [vmem:[%s1 + $0x188] sm:$0xff]
      %v247 = vld [vmem:[%s1 + $0x190] sm:$0xff]
      %v248 = vld [vmem:[%s1 + $0x198] sm:$0xff]
      %v249 = vld [vmem:[%s1 + $0x1a0] sm:$0xff]
      %v250 = vld [vmem:[%s1 + $0x1a8] sm:$0xff]
      %v251 = vld [vmem:[%s1 + $0x1b0] sm:$0xff]
      %v252 = vld [vmem:[%s1 + $0x1b8] sm:$0xff]
      %v253 = vld [vmem:[%s1 + $0x1c0] sm:$0xff]
      %v254 = vld [vmem:[%s1 + $0x1c8] sm:$0xff]
      %v255 = vld [vmem:[%s1 + $0x1d0] sm:$0xff]
      %v256 = vld [vmem:[%s1 + $0x1d8] sm:$0xff]
      %v257 = vld [vmem:[%s1 + $0x1e0] sm:$0xff]
      %v258 = vld [vmem:[%s1 + $0x1e8] sm:$0xff]
      %v259 = vld [vmem:[%s1 + $0x1f0] sm:$0xff]
      %v260 = vld [vmem:[%s1 + $0x1f8] sm:$0xff]
      %s261 = scalar_lea.vmem %s1, 512
      %v262 = vld [vmem:[%s261] sm:$0xff]
      %v263 = vld [vmem:[%s261 + $0x8] sm:$0xff]
      %v264 = vld [vmem:[%s261 + $0x10] sm:$0xff]
      %v265 = vld [vmem:[%s261 + $0x18] sm:$0xff]
      %v266 = vld [vmem:[%s261 + $0x20] sm:$0xff]
      %v267 = vld [vmem:[%s261 + $0x28] sm:$0xff]
      %v268 = vld [vmem:[%s261 + $0x30] sm:$0xff]
      %v269 = vld [vmem:[%s261 + $0x38] sm:$0xff]
      %v270 = vld [vmem:[%s261 + $0x40] sm:$0xff]
      %v271 = vld [vmem:[%s261 + $0x48] sm:$0xff]
      %v272 = vld [vmem:[%s261 + $0x50] sm:$0xff]
      %v273 = vld [vmem:[%s261 + $0x58] sm:$0xff]
      %v274 = vld [vmem:[%s261 + $0x60] sm:$0xff]
      %v275 = vld [vmem:[%s261 + $0x68] sm:$0xff]
      %v276 = vld [vmem:[%s261 + $0x70] sm:$0xff]
      %v277 = vld [vmem:[%s261 + $0x78] sm:$0xff]
      %v278 = vld [vmem:[%s261 + $0x80] sm:$0xff]
      %v279 = vld [vmem:[%s261 + $0x88] sm:$0xff]
      %v280 = vld [vmem:[%s261 + $0x90] sm:$0xff]
      %v281 = vld [vmem:[%s261 + $0x98] sm:$0xff]
      %v282 = vld [vmem:[%s261 + $0xa0] sm:$0xff]
      %v283 = vld [vmem:[%s261 + $0xa8] sm:$0xff]
      %v284 = vld [vmem:[%s261 + $0xb0] sm:$0xff]
      %v285 = vld [vmem:[%s261 + $0xb8] sm:$0xff]
      %v286 = vld [vmem:[%s261 + $0xc0] sm:$0xff]
      %v287 = vld [vmem:[%s261 + $0xc8] sm:$0xff]
      %v288 = vld [vmem:[%s261 + $0xd0] sm:$0xff]
      %v289 = vld [vmem:[%s261 + $0xd8] sm:$0xff]
      %v290 = vld [vmem:[%s261 + $0xe0] sm:$0xff]
      %v291 = vld [vmem:[%s261 + $0xe8] sm:$0xff]
      %v292 = vld [vmem:[%s261 + $0xf0] sm:$0xff]
      %v293 = vld [vmem:[%s261 + $0xf8] sm:$0xff]
      %v294 = vld [vmem:[%s261 + $0x100] sm:$0xff]
      %v295 = vld [vmem:[%s261 + $0x108] sm:$0xff]
      %v296 = vld [vmem:[%s261 + $0x110] sm:$0xff]
      %v297 = vld [vmem:[%s261 + $0x118] sm:$0xff]
      %v298 = vld [vmem:[%s261 + $0x120] sm:$0xff]
      %v299 = vld [vmem:[%s261 + $0x128] sm:$0xff]
      %v300 = vld [vmem:[%s261 + $0x130] sm:$0xff]
      %v301 = vld [vmem:[%s261 + $0x138] sm:$0xff]
      %v302 = vld [vmem:[%s261 + $0x140] sm:$0xff]
      %v303 = vld [vmem:[%s261 + $0x148] sm:$0xff]
      %v304 = vld [vmem:[%s261 + $0x150] sm:$0xff]
      %v305 = vld [vmem:[%s261 + $0x158] sm:$0xff]
      %v306 = vld [vmem:[%s261 + $0x160] sm:$0xff]
      %v307 = vld [vmem:[%s261 + $0x168] sm:$0xff]
      %v308 = vld [vmem:[%s261 + $0x170] sm:$0xff]
      %v309 = vld [vmem:[%s261 + $0x178] sm:$0xff]
      %v310 = vld [vmem:[%s261 + $0x180] sm:$0xff]
      %v311 = vld [vmem:[%s261 + $0x188] sm:$0xff]
      %v312 = vld [vmem:[%s261 + $0x190] sm:$0xff]
      %v313 = vld [vmem:[%s261 + $0x198] sm:$0xff]
      %v314 = vld [vmem:[%s261 + $0x1a0] sm:$0xff]
      %v315 = vld [vmem:[%s261 + $0x1a8] sm:$0xff]
      %v316 = vld [vmem:[%s261 + $0x1b0] sm:$0xff]
      %v317 = vld [vmem:[%s261 + $0x1b8] sm:$0xff]
      %v318 = vld [vmem:[%s261 + $0x1c0] sm:$0xff]
      %v319 = vld [vmem:[%s261 + $0x1c8] sm:$0xff]
      %v320 = vld [vmem:[%s261 + $0x1d0] sm:$0xff]
      %v321 = vld [vmem:[%s261 + $0x1d8] sm:$0xff]
      %v322 = vld [vmem:[%s261 + $0x1e0] sm:$0xff]
      %v323 = vld [vmem:[%s261 + $0x1e8] sm:$0xff]
      %v324 = vld [vmem:[%s261 + $0x1f0] sm:$0xff]
      %v325 = vld [vmem:[%s261 + $0x1f8] sm:$0xff]
      %vm348 = vcmask 1046528
      %v349 = vrot.slane %v171, 1
      %v350 = vrot.slane %v173, 1
      %v351 = vsel %vm348, %v349, %v350
      %v352 = vrot.slane %v172, 1
      %v353 = vrot.slane %v174, 1
      %v354 = vsel %vm348, %v352, %v353
      %v355 = vrot.slane %v175, 1
      %v356 = vsel %vm348, %v350, %v355
      %v357 = vrot.slane %v176, 1
      %v358 = vsel %vm348, %v353, %v357
      %v359 = vrot.slane %v177, 1
      %v360 = vsel %vm348, %v355, %v359
      %v361 = vrot.slane %v178, 1
      %v362 = vsel %vm348, %v357, %v361
      %v363 = vrot.slane %v179, 1
      %v364 = vsel %vm348, %v359, %v363
      %v365 = vrot.slane %v180, 1
      %v366 = vsel %vm348, %v361, %v365
      %v367 = vrot.slane %v181, 1
      %v368 = vsel %vm348, %v363, %v367
      %v369 = vrot.slane %v182, 1
      %v370 = vsel %vm348, %v365, %v369
      %v371 = vrot.slane %v183, 1
      %v372 = vsel %vm348, %v367, %v371
      %v373 = vrot.slane %v184, 1
      %v374 = vsel %vm348, %v369, %v373
      %v375 = vrot.slane %v185, 1
      %v376 = vsel %vm348, %v371, %v375
      %v377 = vrot.slane %v186, 1
      %v378 = vsel %vm348, %v373, %v377
      %v379 = vrot.slane %v187, 1
      %v380 = vsel %vm348, %v375, %v379
      %v381 = vrot.slane %v188, 1
      %v382 = vsel %vm348, %v377, %v381
      %v383 = vrot.slane %v189, 1
      %v384 = vsel %vm348, %v379, %v383
      %v385 = vrot.slane %v190, 1
      %v386 = vsel %vm348, %v381, %v385
      %v387 = vrot.slane %v191, 1
      %v388 = vsel %vm348, %v383, %v387
      %v389 = vrot.slane %v192, 1
      %v390 = vsel %vm348, %v385, %v389
      %411 = vmatprep.subr.mxu0 %v293
      %412 = vmatpush1.msra.mxu0 %v292
      %413 = vmatprep.subr.mxu0 %v291
      %414 = vmatpush1.msra.mxu0 %v290
      %415 = vmatprep.subr.mxu0 %v289
      %416 = vmatpush1.msra.mxu0 %v288
      %417 = vmatprep.subr.mxu0 %v287
      %418 = vmatpush1.msra.mxu0 %v286
      %419 = vmatprep.subr.mxu0 %v285
      %420 = vmatpush1.msra.mxu0 %v284
      %421 = vmatprep.subr.mxu0 %v283
      %422 = vmatpush1.msra.mxu0 %v282
      %423 = vmatprep.subr.mxu0 %v281
      %424 = vmatpush1.msra.mxu0 %v280
      %425 = vmatprep.subr.mxu0 %v279
      %426 = vmatpush1.msra.mxu0 %v278
      %427 = vmatprep.subr.mxu0 %v277
      %428 = vmatpush1.msra.mxu0 %v276
      %429 = vmatprep.subr.mxu0 %v275
      %430 = vmatpush1.msra.mxu0 %v274
      %431 = vmatprep.subr.mxu0 %v273
      %432 = vmatpush1.msra.mxu0 %v272
      %433 = vmatprep.subr.mxu0 %v271
      %434 = vmatpush1.msra.mxu0 %v270
      %435 = vmatprep.subr.mxu0 %v269
      %436 = vmatpush1.msra.mxu0 %v268
      %437 = vmatprep.subr.mxu0 %v267
      %438 = vmatpush1.msra.mxu0 %v266
      %439 = vmatprep.subr.mxu0 %v265
      %440 = vmatpush1.msra.mxu0 %v264
      %441 = vmatprep.subr.mxu0 %v263
      %442 = vmatpush1.msra.mxu0 %v262
      %443 = vmatprep.subr.mxu0 %v325
      %444 = vmatpush2.msra.mxu0 %v324
      %445 = vmatprep.subr.mxu0 %v323
      %446 = vmatpush2.msra.mxu0 %v322
      %447 = vmatprep.subr.mxu0 %v321
      %448 = vmatpush2.msra.mxu0 %v320
      %449 = vmatprep.subr.mxu0 %v319
      %450 = vmatpush2.msra.mxu0 %v318
      %451 = vmatprep.subr.mxu0 %v317
      %452 = vmatpush2.msra.mxu0 %v316
      %453 = vmatprep.subr.mxu0 %v315
      %454 = vmatpush2.msra.mxu0 %v314
      %455 = vmatprep.subr.mxu0 %v313
      %456 = vmatpush2.msra.mxu0 %v312
      %457 = vmatprep.subr.mxu0 %v311
      %458 = vmatpush2.msra.mxu0 %v310
      %459 = vmatprep.subr.mxu0 %v309
      %460 = vmatpush2.msra.mxu0 %v308
      %461 = vmatprep.subr.mxu0 %v307
      %462 = vmatpush2.msra.mxu0 %v306
      %463 = vmatprep.subr.mxu0 %v305
      %464 = vmatpush2.msra.mxu0 %v304
      %465 = vmatprep.subr.mxu0 %v303
      %466 = vmatpush2.msra.mxu0 %v302
      %467 = vmatprep.subr.mxu0 %v301
      %468 = vmatpush2.msra.mxu0 %v300
      %469 = vmatprep.subr.mxu0 %v299
      %470 = vmatpush2.msra.mxu0 %v298
      %471 = vmatprep.subr.mxu0 %v297
      %472 = vmatpush2.msra.mxu0 %v296
      %473 = vmatprep.subr.mxu0 %v295
      %474 = vmatpush2.msra.mxu0 %v294
      %475 = vmatprep.mubr.f32.mxu0 %v354
      %476 = vmatmul.mubr.f32.gmra.mxu0 %v351
      %v477 = vpop.f32.mrf.mxu0
      %v478 = vadd.f32 0.0, %v477
      %v479 = vpop.f32.mrf.mxu0
      %v480 = vadd.f32 0.0, %v479
      %481 = vmatprep.mubr.f32.mxu0 %v358
      %482 = vmatmul.mubr.f32.gmra.mxu0 %v356
      %v483 = vpop.f32.mrf.mxu0
      %v484 = vadd.f32 0.0, %v483
      %v485 = vpop.f32.mrf.mxu0
      %v486 = vadd.f32 0.0, %v485
      %487 = vmatprep.mubr.f32.mxu0 %v362
      %488 = vmatmul.mubr.f32.gmra.mxu0 %v360
      %v489 = vpop.f32.mrf.mxu0
      %v490 = vadd.f32 0.0, %v489
      %v491 = vpop.f32.mrf.mxu0
      %v492 = vadd.f32 0.0, %v491
      %493 = vmatprep.mubr.f32.mxu0 %v366
      %494 = vmatmul.mubr.f32.gmra.mxu0 %v364
      %v495 = vpop.f32.mrf.mxu0
      %v496 = vadd.f32 0.0, %v495
      %v497 = vpop.f32.mrf.mxu0
      %v498 = vadd.f32 0.0, %v497
      %499 = vmatprep.mubr.f32.mxu0 %v370
      %500 = vmatmul.mubr.f32.gmra.mxu0 %v368
      %v501 = vpop.f32.mrf.mxu0
      %v502 = vadd.f32 0.0, %v501
      %v503 = vpop.f32.mrf.mxu0
      %v504 = vadd.f32 0.0, %v503
      %505 = vmatprep.mubr.f32.mxu0 %v374
      %506 = vmatmul.mubr.f32.gmra.mxu0 %v372
      %v507 = vpop.f32.mrf.mxu0
      %v508 = vadd.f32 0.0, %v507
      %v509 = vpop.f32.mrf.mxu0
      %v510 = vadd.f32 0.0, %v509
      %511 = vmatprep.mubr.f32.mxu0 %v378
      %512 = vmatmul.mubr.f32.gmra.mxu0 %v376
      %v513 = vpop.f32.mrf.mxu0
      %v514 = vadd.f32 0.0, %v513
      %v515 = vpop.f32.mrf.mxu0
      %v516 = vadd.f32 0.0, %v515
      %517 = vmatprep.mubr.f32.mxu0 %v382
      %518 = vmatmul.mubr.f32.gmra.mxu0 %v380
      %v519 = vpop.f32.mrf.mxu0
      %v520 = vadd.f32 0.0, %v519
      %v521 = vpop.f32.mrf.mxu0
      %v522 = vadd.f32 0.0, %v521
      %523 = vmatprep.mubr.f32.mxu0 %v386
      %524 = vmatmul.mubr.f32.gmra.mxu0 %v384
      %v525 = vpop.f32.mrf.mxu0
      %v526 = vadd.f32 0.0, %v525
      %v527 = vpop.f32.mrf.mxu0
      %v528 = vadd.f32 0.0, %v527
      %529 = vmatprep.mubr.f32.mxu0 %v390
      %530 = vmatmul.mubr.f32.gmra.mxu0 %v388
      %v531 = vpop.f32.mrf.mxu0
      %v532 = vadd.f32 0.0, %v531
      %v533 = vpop.f32.mrf.mxu0
      %v534 = vadd.f32 0.0, %v533
      %535 = vdwg.mxu0
      %536 = vmatprep.subr.mxu0 %v228
      %537 = vmatpush1.msra.mxu0 %v227
      %538 = vmatprep.subr.mxu0 %v226
      %539 = vmatpush1.msra.mxu0 %v225
      %540 = vmatprep.subr.mxu0 %v224
      %541 = vmatpush1.msra.mxu0 %v223
      %542 = vmatprep.subr.mxu0 %v222
      %543 = vmatpush1.msra.mxu0 %v221
      %544 = vmatprep.subr.mxu0 %v220
      %545 = vmatpush1.msra.mxu0 %v219
      %546 = vmatprep.subr.mxu0 %v218
      %547 = vmatpush1.msra.mxu0 %v217
      %548 = vmatprep.subr.mxu0 %v216
      %549 = vmatpush1.msra.mxu0 %v215
      %550 = vmatprep.subr.mxu0 %v214
      %551 = vmatpush1.msra.mxu0 %v213
      %552 = vmatprep.subr.mxu0 %v212
      %553 = vmatpush1.msra.mxu0 %v211
      %554 = vmatprep.subr.mxu0 %v210
      %555 = vmatpush1.msra.mxu0 %v209
      %556 = vmatprep.subr.mxu0 %v208
      %557 = vmatpush1.msra.mxu0 %v207
      %558 = vmatprep.subr.mxu0 %v206
      %559 = vmatpush1.msra.mxu0 %v205
      %560 = vmatprep.subr.mxu0 %v204
      %561 = vmatpush1.msra.mxu0 %v203
      %562 = vmatprep.subr.mxu0 %v202
      %563 = vmatpush1.msra.mxu0 %v201
      %564 = vmatprep.subr.mxu0 %v200
      %565 = vmatpush1.msra.mxu0 %v199
      %566 = vmatprep.subr.mxu0 %v198
      %567 = vmatpush1.msra.mxu0 %v197
      %568 = vmatprep.subr.mxu0 %v260
      %569 = vmatpush2.msra.mxu0 %v259
      %570 = vmatprep.subr.mxu0 %v258
      %571 = vmatpush2.msra.mxu0 %v257
      %572 = vmatprep.subr.mxu0 %v256
      %573 = vmatpush2.msra.mxu0 %v255
      %574 = vmatprep.subr.mxu0 %v254
      %575 = vmatpush2.msra.mxu0 %v253
      %576 = vmatprep.subr.mxu0 %v252
      %577 = vmatpush2.msra.mxu0 %v251
      %578 = vmatprep.subr.mxu0 %v250
      %579 = vmatpush2.msra.mxu0 %v249
      %580 = vmatprep.subr.mxu0 %v248
      %581 = vmatpush2.msra.mxu0 %v247
      %582 = vmatprep.subr.mxu0 %v246
      %583 = vmatpush2.msra.mxu0 %v245
      %584 = vmatprep.subr.mxu0 %v244
      %585 = vmatpush2.msra.mxu0 %v243
      %586 = vmatprep.subr.mxu0 %v242
      %587 = vmatpush2.msra.mxu0 %v241
      %588 = vmatprep.subr.mxu0 %v240
      %589 = vmatpush2.msra.mxu0 %v239
      %590 = vmatprep.subr.mxu0 %v238
      %591 = vmatpush2.msra.mxu0 %v237
      %592 = vmatprep.subr.mxu0 %v236
      %593 = vmatpush2.msra.mxu0 %v235
      %594 = vmatprep.subr.mxu0 %v234
      %595 = vmatpush2.msra.mxu0 %v233
      %596 = vmatprep.subr.mxu0 %v232
      %597 = vmatpush2.msra.mxu0 %v231
      %598 = vmatprep.subr.mxu0 %v230
      %599 = vmatpush2.msra.mxu0 %v229
      %600 = vmatprep.mubr.f32.mxu0 %v172
      %601 = vmatmul.mubr.f32.gmra.mxu0 %v171
      %v602 = vpop.f32.mrf.mxu0
      %v603 = vadd.f32 %v478, %v602
      %v604 = vpop.f32.mrf.mxu0
      %v605 = vadd.f32 %v480, %v604
      %606 = vmatprep.mubr.f32.mxu0 %v174
      %607 = vmatmul.mubr.f32.gmra.mxu0 %v173
      %v608 = vpop.f32.mrf.mxu0
      %v609 = vadd.f32 %v484, %v608
      %v610 = vpop.f32.mrf.mxu0
      %v611 = vadd.f32 %v486, %v610
      %612 = vmatprep.mubr.f32.mxu0 %v176
      %613 = vmatmul.mubr.f32.gmra.mxu0 %v175
      %v614 = vpop.f32.mrf.mxu0
      %v615 = vadd.f32 %v490, %v614
      %v616 = vpop.f32.mrf.mxu0
      %v617 = vadd.f32 %v492, %v616
      %618 = vmatprep.mubr.f32.mxu0 %v178
      %619 = vmatmul.mubr.f32.gmra.mxu0 %v177
      %v620 = vpop.f32.mrf.mxu0
      %v621 = vadd.f32 %v496, %v620
      %v622 = vpop.f32.mrf.mxu0
      %v623 = vadd.f32 %v498, %v622
      %624 = vmatprep.mubr.f32.mxu0 %v180
      %625 = vmatmul.mubr.f32.gmra.mxu0 %v179
      %v626 = vpop.f32.mrf.mxu0
      %v627 = vadd.f32 %v502, %v626
      %v628 = vpop.f32.mrf.mxu0
      %v629 = vadd.f32 %v504, %v628
      %630 = vmatprep.mubr.f32.mxu0 %v182
      %631 = vmatmul.mubr.f32.gmra.mxu0 %v181
      %v632 = vpop.f32.mrf.mxu0
      %v633 = vadd.f32 %v508, %v632
      %v634 = vpop.f32.mrf.mxu0
      %v635 = vadd.f32 %v510, %v634
      %636 = vmatprep.mubr.f32.mxu0 %v184
      %637 = vmatmul.mubr.f32.gmra.mxu0 %v183
      %v638 = vpop.f32.mrf.mxu0
      %v639 = vadd.f32 %v514, %v638
      %v640 = vpop.f32.mrf.mxu0
      %v641 = vadd.f32 %v516, %v640
      %642 = vmatprep.mubr.f32.mxu0 %v186
      %643 = vmatmul.mubr.f32.gmra.mxu0 %v185
      %v644 = vpop.f32.mrf.mxu0
      %v645 = vadd.f32 %v520, %v644
      %v646 = vpop.f32.mrf.mxu0
      %v647 = vadd.f32 %v522, %v646
      %648 = vmatprep.mubr.f32.mxu0 %v188
      %649 = vmatmul.mubr.f32.gmra.mxu0 %v187
      %v650 = vpop.f32.mrf.mxu0
      %v651 = vadd.f32 %v526, %v650
      %v652 = vpop.f32.mrf.mxu0
      %v653 = vadd.f32 %v528, %v652
      %654 = vmatprep.mubr.f32.mxu0 %v190
      %655 = vmatmul.mubr.f32.gmra.mxu0 %v189
      %v656 = vpop.f32.mrf.mxu0
      %v657 = vadd.f32 %v532, %v656
      %v658 = vpop.f32.mrf.mxu0
      %v659 = vadd.f32 %v534, %v658
      %660 = vdwg.mxu0
      %s661 = scalar_lea.vmem %s1, 1024
      %v662 = vld [vmem:[%s661] sm:$0xff]
      %v663 = vld [vmem:[%s661 + $0x8] sm:$0xff]
      %v664 = vld [vmem:[%s661 + $0x10] sm:$0xff]
      %v665 = vld [vmem:[%s661 + $0x18] sm:$0xff]
      %v666 = vld [vmem:[%s661 + $0x20] sm:$0xff]
      %v667 = vld [vmem:[%s661 + $0x28] sm:$0xff]
      %v668 = vld [vmem:[%s661 + $0x30] sm:$0xff]
      %v669 = vld [vmem:[%s661 + $0x38] sm:$0xff]
      %v670 = vld [vmem:[%s661 + $0x40] sm:$0xff]
      %v671 = vld [vmem:[%s661 + $0x48] sm:$0xff]
      %v672 = vld [vmem:[%s661 + $0x50] sm:$0xff]
      %v673 = vld [vmem:[%s661 + $0x58] sm:$0xff]
      %v674 = vld [vmem:[%s661 + $0x60] sm:$0xff]
      %v675 = vld [vmem:[%s661 + $0x68] sm:$0xff]
      %v676 = vld [vmem:[%s661 + $0x70] sm:$0xff]
      %v677 = vld [vmem:[%s661 + $0x78] sm:$0xff]
      %v678 = vld [vmem:[%s661 + $0x80] sm:$0xff]
      %v679 = vld [vmem:[%s661 + $0x88] sm:$0xff]
      %v680 = vld [vmem:[%s661 + $0x90] sm:$0xff]
      %v681 = vld [vmem:[%s661 + $0x98] sm:$0xff]
      %v682 = vld [vmem:[%s661 + $0xa0] sm:$0xff]
      %v683 = vld [vmem:[%s661 + $0xa8] sm:$0xff]
      %v684 = vld [vmem:[%s661 + $0xb0] sm:$0xff]
      %v685 = vld [vmem:[%s661 + $0xb8] sm:$0xff]
      %v686 = vld [vmem:[%s661 + $0xc0] sm:$0xff]
      %v687 = vld [vmem:[%s661 + $0xc8] sm:$0xff]
      %v688 = vld [vmem:[%s661 + $0xd0] sm:$0xff]
      %v689 = vld [vmem:[%s661 + $0xd8] sm:$0xff]
      %v690 = vld [vmem:[%s661 + $0xe0] sm:$0xff]
      %v691 = vld [vmem:[%s661 + $0xe8] sm:$0xff]
      %v692 = vld [vmem:[%s661 + $0xf0] sm:$0xff]
      %v693 = vld [vmem:[%s661 + $0xf8] sm:$0xff]
      %v694 = vld [vmem:[%s661 + $0x100] sm:$0xff]
      %v695 = vld [vmem:[%s661 + $0x108] sm:$0xff]
      %v696 = vld [vmem:[%s661 + $0x110] sm:$0xff]
      %v697 = vld [vmem:[%s661 + $0x118] sm:$0xff]
      %v698 = vld [vmem:[%s661 + $0x120] sm:$0xff]
      %v699 = vld [vmem:[%s661 + $0x128] sm:$0xff]
      %v700 = vld [vmem:[%s661 + $0x130] sm:$0xff]
      %v701 = vld [vmem:[%s661 + $0x138] sm:$0xff]
      %v702 = vld [vmem:[%s661 + $0x140] sm:$0xff]
      %v703 = vld [vmem:[%s661 + $0x148] sm:$0xff]
      %v704 = vld [vmem:[%s661 + $0x150] sm:$0xff]
      %v705 = vld [vmem:[%s661 + $0x158] sm:$0xff]
      %v706 = vld [vmem:[%s661 + $0x160] sm:$0xff]
      %v707 = vld [vmem:[%s661 + $0x168] sm:$0xff]
      %v708 = vld [vmem:[%s661 + $0x170] sm:$0xff]
      %v709 = vld [vmem:[%s661 + $0x178] sm:$0xff]
      %v710 = vld [vmem:[%s661 + $0x180] sm:$0xff]
      %v711 = vld [vmem:[%s661 + $0x188] sm:$0xff]
      %v712 = vld [vmem:[%s661 + $0x190] sm:$0xff]
      %v713 = vld [vmem:[%s661 + $0x198] sm:$0xff]
      %v714 = vld [vmem:[%s661 + $0x1a0] sm:$0xff]
      %v715 = vld [vmem:[%s661 + $0x1a8] sm:$0xff]
      %v716 = vld [vmem:[%s661 + $0x1b0] sm:$0xff]
      %v717 = vld [vmem:[%s661 + $0x1b8] sm:$0xff]
      %v718 = vld [vmem:[%s661 + $0x1c0] sm:$0xff]
      %v719 = vld [vmem:[%s661 + $0x1c8] sm:$0xff]
      %v720 = vld [vmem:[%s661 + $0x1d0] sm:$0xff]
      %v721 = vld [vmem:[%s661 + $0x1d8] sm:$0xff]
      %v722 = vld [vmem:[%s661 + $0x1e0] sm:$0xff]
      %v723 = vld [vmem:[%s661 + $0x1e8] sm:$0xff]
      %v724 = vld [vmem:[%s661 + $0x1f0] sm:$0xff]
      %v725 = vld [vmem:[%s661 + $0x1f8] sm:$0xff]
      %vm726 = vcmask 1045504
      %v727 = vrot.slane %v171, 2
      %v728 = vrot.slane %v173, 2
      %v729 = vsel %vm726, %v727, %v728
      %v730 = vrot.slane %v172, 2
      %v731 = vrot.slane %v174, 2
      %v732 = vsel %vm726, %v730, %v731
      %v733 = vrot.slane %v175, 2
      %v734 = vsel %vm726, %v728, %v733
      %v735 = vrot.slane %v176, 2
      %v736 = vsel %vm726, %v731, %v735
      %v737 = vrot.slane %v177, 2
      %v738 = vsel %vm726, %v733, %v737
      %v739 = vrot.slane %v178, 2
      %v740 = vsel %vm726, %v735, %v739
      %v741 = vrot.slane %v179, 2
      %v742 = vsel %vm726, %v737, %v741
      %v743 = vrot.slane %v180, 2
      %v744 = vsel %vm726, %v739, %v743
      %v745 = vrot.slane %v181, 2
      %v746 = vsel %vm726, %v741, %v745
      %v747 = vrot.slane %v182, 2
      %v748 = vsel %vm726, %v743, %v747
      %v749 = vrot.slane %v183, 2
      %v750 = vsel %vm726, %v745, %v749
      %v751 = vrot.slane %v184, 2
      %v752 = vsel %vm726, %v747, %v751
      %v753 = vrot.slane %v185, 2
      %v754 = vsel %vm726, %v749, %v753
      %v755 = vrot.slane %v186, 2
      %v756 = vsel %vm726, %v751, %v755
      %v757 = vrot.slane %v187, 2
      %v758 = vsel %vm726, %v753, %v757
      %v759 = vrot.slane %v188, 2
      %v760 = vsel %vm726, %v755, %v759
      %v761 = vrot.slane %v189, 2
      %v762 = vsel %vm726, %v757, %v761
      %v763 = vrot.slane %v190, 2
      %v764 = vsel %vm726, %v759, %v763
      %v765 = vrot.slane %v191, 2
      %v766 = vsel %vm726, %v761, %v765
      %v767 = vrot.slane %v192, 2
      %v768 = vsel %vm726, %v763, %v767
      %789 = vmatprep.subr.mxu0 %v693
      %790 = vmatpush1.msra.mxu0 %v692
      %791 = vmatprep.subr.mxu0 %v691
      %792 = vmatpush1.msra.mxu0 %v690
      %793 = vmatprep.subr.mxu0 %v689
      %794 = vmatpush1.msra.mxu0 %v688
      %795 = vmatprep.subr.mxu0 %v687
      %796 = vmatpush1.msra.mxu0 %v686
      %797 = vmatprep.subr.mxu0 %v685
      %798 = vmatpush1.msra.mxu0 %v684
      %799 = vmatprep.subr.mxu0 %v683
      %800 = vmatpush1.msra.mxu0 %v682
      %801 = vmatprep.subr.mxu0 %v681
      %802 = vmatpush1.msra.mxu0 %v680
      %803 = vmatprep.subr.mxu0 %v679
      %804 = vmatpush1.msra.mxu0 %v678
      %805 = vmatprep.subr.mxu0 %v677
      %806 = vmatpush1.msra.mxu0 %v676
      %807 = vmatprep.subr.mxu0 %v675
      %808 = vmatpush1.msra.mxu0 %v674
      %809 = vmatprep.subr.mxu0 %v673
      %810 = vmatpush1.msra.mxu0 %v672
      %811 = vmatprep.subr.mxu0 %v671
      %812 = vmatpush1.msra.mxu0 %v670
      %813 = vmatprep.subr.mxu0 %v669
      %814 = vmatpush1.msra.mxu0 %v668
      %815 = vmatprep.subr.mxu0 %v667
      %816 = vmatpush1.msra.mxu0 %v666
      %817 = vmatprep.subr.mxu0 %v665
      %818 = vmatpush1.msra.mxu0 %v664
      %819 = vmatprep.subr.mxu0 %v663
      %820 = vmatpush1.msra.mxu0 %v662
      %821 = vmatprep.subr.mxu0 %v725
      %822 = vmatpush2.msra.mxu0 %v724
      %823 = vmatprep.subr.mxu0 %v723
      %824 = vmatpush2.msra.mxu0 %v722
      %825 = vmatprep.subr.mxu0 %v721
      %826 = vmatpush2.msra.mxu0 %v720
      %827 = vmatprep.subr.mxu0 %v719
      %828 = vmatpush2.msra.mxu0 %v718
      %829 = vmatprep.subr.mxu0 %v717
      %830 = vmatpush2.msra.mxu0 %v716
      %831 = vmatprep.subr.mxu0 %v715
      %832 = vmatpush2.msra.mxu0 %v714
      %833 = vmatprep.subr.mxu0 %v713
      %834 = vmatpush2.msra.mxu0 %v712
      %835 = vmatprep.subr.mxu0 %v711
      %836 = vmatpush2.msra.mxu0 %v710
      %837 = vmatprep.subr.mxu0 %v709
      %838 = vmatpush2.msra.mxu0 %v708
      %839 = vmatprep.subr.mxu0 %v707
      %840 = vmatpush2.msra.mxu0 %v706
      %841 = vmatprep.subr.mxu0 %v705
      %842 = vmatpush2.msra.mxu0 %v704
      %843 = vmatprep.subr.mxu0 %v703
      %844 = vmatpush2.msra.mxu0 %v702
      %845 = vmatprep.subr.mxu0 %v701
      %846 = vmatpush2.msra.mxu0 %v700
      %847 = vmatprep.subr.mxu0 %v699
      %848 = vmatpush2.msra.mxu0 %v698
      %849 = vmatprep.subr.mxu0 %v697
      %850 = vmatpush2.msra.mxu0 %v696
      %851 = vmatprep.subr.mxu0 %v695
      %852 = vmatpush2.msra.mxu0 %v694
      %853 = vmatprep.mubr.f32.mxu0 %v732
      %854 = vmatmul.mubr.f32.gmra.mxu0 %v729
      %v855 = vpop.f32.mrf.mxu0
      %v856 = vadd.f32 0.0, %v855
      %v857 = vpop.f32.mrf.mxu0
      %v858 = vadd.f32 0.0, %v857
      %859 = vmatprep.mubr.f32.mxu0 %v736
      %860 = vmatmul.mubr.f32.gmra.mxu0 %v734
      %v861 = vpop.f32.mrf.mxu0
      %v862 = vadd.f32 0.0, %v861
      %v863 = vpop.f32.mrf.mxu0
      %v864 = vadd.f32 0.0, %v863
      %865 = vmatprep.mubr.f32.mxu0 %v740
      %866 = vmatmul.mubr.f32.gmra.mxu0 %v738
      %v867 = vpop.f32.mrf.mxu0
      %v868 = vadd.f32 0.0, %v867
      %v869 = vpop.f32.mrf.mxu0
      %v870 = vadd.f32 0.0, %v869
      %871 = vmatprep.mubr.f32.mxu0 %v744
      %872 = vmatmul.mubr.f32.gmra.mxu0 %v742
      %v873 = vpop.f32.mrf.mxu0
      %v874 = vadd.f32 0.0, %v873
      %v875 = vpop.f32.mrf.mxu0
      %v876 = vadd.f32 0.0, %v875
      %877 = vmatprep.mubr.f32.mxu0 %v748
      %878 = vmatmul.mubr.f32.gmra.mxu0 %v746
      %v879 = vpop.f32.mrf.mxu0
      %v880 = vadd.f32 0.0, %v879
      %v881 = vpop.f32.mrf.mxu0
      %v882 = vadd.f32 0.0, %v881
      %883 = vmatprep.mubr.f32.mxu0 %v752
      %884 = vmatmul.mubr.f32.gmra.mxu0 %v750
      %v885 = vpop.f32.mrf.mxu0
      %v886 = vadd.f32 0.0, %v885
      %v887 = vpop.f32.mrf.mxu0
      %v888 = vadd.f32 0.0, %v887
      %889 = vmatprep.mubr.f32.mxu0 %v756
      %890 = vmatmul.mubr.f32.gmra.mxu0 %v754
      %v891 = vpop.f32.mrf.mxu0
      %v892 = vadd.f32 0.0, %v891
      %v893 = vpop.f32.mrf.mxu0
      %v894 = vadd.f32 0.0, %v893
      %895 = vmatprep.mubr.f32.mxu0 %v760
      %896 = vmatmul.mubr.f32.gmra.mxu0 %v758
      %v897 = vpop.f32.mrf.mxu0
      %v898 = vadd.f32 0.0, %v897
      %v899 = vpop.f32.mrf.mxu0
      %v900 = vadd.f32 0.0, %v899
      %901 = vmatprep.mubr.f32.mxu0 %v764
      %902 = vmatmul.mubr.f32.gmra.mxu0 %v762
      %v903 = vpop.f32.mrf.mxu0
      %v904 = vadd.f32 0.0, %v903
      %v905 = vpop.f32.mrf.mxu0
      %v906 = vadd.f32 0.0, %v905
      %907 = vmatprep.mubr.f32.mxu0 %v768
      %908 = vmatmul.mubr.f32.gmra.mxu0 %v766
      %v909 = vpop.f32.mrf.mxu0
      %v910 = vadd.f32 0.0, %v909
      %v911 = vpop.f32.mrf.mxu0
      %v912 = vadd.f32 0.0, %v911
      %913 = vdwg.mxu0
      %v914 = vadd.f32 %v603, %v856
      %v915 = vadd.f32 %v605, %v858
      %v916 = vadd.f32 %v609, %v862
      %v917 = vadd.f32 %v611, %v864
      %v918 = vadd.f32 %v615, %v868
      %v919 = vadd.f32 %v617, %v870
      %v920 = vadd.f32 %v621, %v874
      %v921 = vadd.f32 %v623, %v876
      %v922 = vadd.f32 %v627, %v880
      %v923 = vadd.f32 %v629, %v882
      %v924 = vadd.f32 %v633, %v886
      %v925 = vadd.f32 %v635, %v888
      %v926 = vadd.f32 %v639, %v892
      %v927 = vadd.f32 %v641, %v894
      %v928 = vadd.f32 %v645, %v898
      %v929 = vadd.f32 %v647, %v900
      %v930 = vadd.f32 %v651, %v904
      %v931 = vadd.f32 %v653, %v906
      %v932 = vadd.f32 %v657, %v910
      %v933 = vadd.f32 %v659, %v912
      %s934 = scalar_lea.vmem %s1, 1536
      %v935 = vld [vmem:[%s934] sm:$0xff]
      %v936 = vld [vmem:[%s934 + $0x8] sm:$0xff]
      %v937 = vld [vmem:[%s934 + $0x10] sm:$0xff]
      %v938 = vld [vmem:[%s934 + $0x18] sm:$0xff]
      %v939 = vld [vmem:[%s934 + $0x20] sm:$0xff]
      %v940 = vld [vmem:[%s934 + $0x28] sm:$0xff]
      %v941 = vld [vmem:[%s934 + $0x30] sm:$0xff]
      %v942 = vld [vmem:[%s934 + $0x38] sm:$0xff]
      %v943 = vld [vmem:[%s934 + $0x40] sm:$0xff]
      %v944 = vld [vmem:[%s934 + $0x48] sm:$0xff]
      %v945 = vld [vmem:[%s934 + $0x50] sm:$0xff]
      %v946 = vld [vmem:[%s934 + $0x58] sm:$0xff]
      %v947 = vld [vmem:[%s934 + $0x60] sm:$0xff]
      %v948 = vld [vmem:[%s934 + $0x68] sm:$0xff]
      %v949 = vld [vmem:[%s934 + $0x70] sm:$0xff]
      %v950 = vld [vmem:[%s934 + $0x78] sm:$0xff]
      %v951 = vld [vmem:[%s934 + $0x80] sm:$0xff]
      %v952 = vld [vmem:[%s934 + $0x88] sm:$0xff]
      %v953 = vld [vmem:[%s934 + $0x90] sm:$0xff]
      %v954 = vld [vmem:[%s934 + $0x98] sm:$0xff]
      %v955 = vld [vmem:[%s934 + $0xa0] sm:$0xff]
      %v956 = vld [vmem:[%s934 + $0xa8] sm:$0xff]
      %v957 = vld [vmem:[%s934 + $0xb0] sm:$0xff]
      %v958 = vld [vmem:[%s934 + $0xb8] sm:$0xff]
      %v959 = vld [vmem:[%s934 + $0xc0] sm:$0xff]
      %v960 = vld [vmem:[%s934 + $0xc8] sm:$0xff]
      %v961 = vld [vmem:[%s934 + $0xd0] sm:$0xff]
      %v962 = vld [vmem:[%s934 + $0xd8] sm:$0xff]
      %v963 = vld [vmem:[%s934 + $0xe0] sm:$0xff]
      %v964 = vld [vmem:[%s934 + $0xe8] sm:$0xff]
      %v965 = vld [vmem:[%s934 + $0xf0] sm:$0xff]
      %v966 = vld [vmem:[%s934 + $0xf8] sm:$0xff]
      %v967 = vld [vmem:[%s934 + $0x100] sm:$0xff]
      %v968 = vld [vmem:[%s934 + $0x108] sm:$0xff]
      %v969 = vld [vmem:[%s934 + $0x110] sm:$0xff]
      %v970 = vld [vmem:[%s934 + $0x118] sm:$0xff]
      %v971 = vld [vmem:[%s934 + $0x120] sm:$0xff]
      %v972 = vld [vmem:[%s934 + $0x128] sm:$0xff]
      %v973 = vld [vmem:[%s934 + $0x130] sm:$0xff]
      %v974 = vld [vmem:[%s934 + $0x138] sm:$0xff]
      %v975 = vld [vmem:[%s934 + $0x140] sm:$0xff]
      %v976 = vld [vmem:[%s934 + $0x148] sm:$0xff]
      %v977 = vld [vmem:[%s934 + $0x150] sm:$0xff]
      %v978 = vld [vmem:[%s934 + $0x158] sm:$0xff]
      %v979 = vld [vmem:[%s934 + $0x160] sm:$0xff]
      %v980 = vld [vmem:[%s934 + $0x168] sm:$0xff]
      %v981 = vld [vmem:[%s934 + $0x170] sm:$0xff]
      %v982 = vld [vmem:[%s934 + $0x178] sm:$0xff]
      %v983 = vld [vmem:[%s934 + $0x180] sm:$0xff]
      %v984 = vld [vmem:[%s934 + $0x188] sm:$0xff]
      %v985 = vld [vmem:[%s934 + $0x190] sm:$0xff]
      %v986 = vld [vmem:[%s934 + $0x198] sm:$0xff]
      %v987 = vld [vmem:[%s934 + $0x1a0] sm:$0xff]
      %v988 = vld [vmem:[%s934 + $0x1a8] sm:$0xff]
      %v989 = vld [vmem:[%s934 + $0x1b0] sm:$0xff]
      %v990 = vld [vmem:[%s934 + $0x1b8] sm:$0xff]
      %v991 = vld [vmem:[%s934 + $0x1c0] sm:$0xff]
      %v992 = vld [vmem:[%s934 + $0x1c8] sm:$0xff]
      %v993 = vld [vmem:[%s934 + $0x1d0] sm:$0xff]
      %v994 = vld [vmem:[%s934 + $0x1d8] sm:$0xff]
      %v995 = vld [vmem:[%s934 + $0x1e0] sm:$0xff]
      %v996 = vld [vmem:[%s934 + $0x1e8] sm:$0xff]
      %v997 = vld [vmem:[%s934 + $0x1f0] sm:$0xff]
      %v998 = vld [vmem:[%s934 + $0x1f8] sm:$0xff]
      %v1001 = vrot.slane %v193, 2
      %v1002 = vsel %vm726, %v765, %v1001
      %v1003 = vrot.slane %v194, 2
      %v1004 = vsel %vm726, %v767, %v1003
      %1007 = vmatprep.subr.mxu0 %v966
      %1008 = vmatpush1.msra.mxu0 %v965
      %1009 = vmatprep.subr.mxu0 %v964
      %1010 = vmatpush1.msra.mxu0 %v963
      %1011 = vmatprep.subr.mxu0 %v962
      %1012 = vmatpush1.msra.mxu0 %v961
      %1013 = vmatprep.subr.mxu0 %v960
      %1014 = vmatpush1.msra.mxu0 %v959
      %1015 = vmatprep.subr.mxu0 %v958
      %1016 = vmatpush1.msra.mxu0 %v957
      %1017 = vmatprep.subr.mxu0 %v956
      %1018 = vmatpush1.msra.mxu0 %v955
      %1019 = vmatprep.subr.mxu0 %v954
      %1020 = vmatpush1.msra.mxu0 %v953
      %1021 = vmatprep.subr.mxu0 %v952
      %1022 = vmatpush1.msra.mxu0 %v951
      %1023 = vmatprep.subr.mxu0 %v950
      %1024 = vmatpush1.msra.mxu0 %v949
      %1025 = vmatprep.subr.mxu0 %v948
      %1026 = vmatpush1.msra.mxu0 %v947
      %1027 = vmatprep.subr.mxu0 %v946
      %1028 = vmatpush1.msra.mxu0 %v945
      %1029 = vmatprep.subr.mxu0 %v944
      %1030 = vmatpush1.msra.mxu0 %v943
      %1031 = vmatprep.subr.mxu0 %v942
      %1032 = vmatpush1.msra.mxu0 %v941
      %1033 = vmatprep.subr.mxu0 %v940
      %1034 = vmatpush1.msra.mxu0 %v939
      %1035 = vmatprep.subr.mxu0 %v938
      %1036 = vmatpush1.msra.mxu0 %v937
      %1037 = vmatprep.subr.mxu0 %v936
      %1038 = vmatpush1.msra.mxu0 %v935
      %1039 = vmatprep.subr.mxu0 %v998
      %1040 = vmatpush2.msra.mxu0 %v997
      %1041 = vmatprep.subr.mxu0 %v996
      %1042 = vmatpush2.msra.mxu0 %v995
      %1043 = vmatprep.subr.mxu0 %v994
      %1044 = vmatpush2.msra.mxu0 %v993
      %1045 = vmatprep.subr.mxu0 %v992
      %1046 = vmatpush2.msra.mxu0 %v991
      %1047 = vmatprep.subr.mxu0 %v990
      %1048 = vmatpush2.msra.mxu0 %v989
      %1049 = vmatprep.subr.mxu0 %v988
      %1050 = vmatpush2.msra.mxu0 %v987
      %1051 = vmatprep.subr.mxu0 %v986
      %1052 = vmatpush2.msra.mxu0 %v985
      %1053 = vmatprep.subr.mxu0 %v984
      %1054 = vmatpush2.msra.mxu0 %v983
      %1055 = vmatprep.subr.mxu0 %v982
      %1056 = vmatpush2.msra.mxu0 %v981
      %1057 = vmatprep.subr.mxu0 %v980
      %1058 = vmatpush2.msra.mxu0 %v979
      %1059 = vmatprep.subr.mxu0 %v978
      %1060 = vmatpush2.msra.mxu0 %v977
      %1061 = vmatprep.subr.mxu0 %v976
      %1062 = vmatpush2.msra.mxu0 %v975
      %1063 = vmatprep.subr.mxu0 %v974
      %1064 = vmatpush2.msra.mxu0 %v973
      %1065 = vmatprep.subr.mxu0 %v972
      %1066 = vmatpush2.msra.mxu0 %v971
      %1067 = vmatprep.subr.mxu0 %v970
      %1068 = vmatpush2.msra.mxu0 %v969
      %1069 = vmatprep.subr.mxu0 %v968
      %1070 = vmatpush2.msra.mxu0 %v967
      %1071 = vmatprep.mubr.f32.mxu0 %v736
      %1072 = vmatmul.mubr.f32.gmra.mxu0 %v734
      %v1073 = vpop.f32.mrf.mxu0
      %v1074 = vadd.f32 0.0, %v1073
      %v1075 = vpop.f32.mrf.mxu0
      %v1076 = vadd.f32 0.0, %v1075
      %1077 = vmatprep.mubr.f32.mxu0 %v740
      %1078 = vmatmul.mubr.f32.gmra.mxu0 %v738
      %v1079 = vpop.f32.mrf.mxu0
      %v1080 = vadd.f32 0.0, %v1079
      %v1081 = vpop.f32.mrf.mxu0
      %v1082 = vadd.f32 0.0, %v1081
      %1083 = vmatprep.mubr.f32.mxu0 %v744
      %1084 = vmatmul.mubr.f32.gmra.mxu0 %v742
      %v1085 = vpop.f32.mrf.mxu0
      %v1086 = vadd.f32 0.0, %v1085
      %v1087 = vpop.f32.mrf.mxu0
      %v1088 = vadd.f32 0.0, %v1087
      %1089 = vmatprep.mubr.f32.mxu0 %v748
      %1090 = vmatmul.mubr.f32.gmra.mxu0 %v746
      %v1091 = vpop.f32.mrf.mxu0
      %v1092 = vadd.f32 0.0, %v1091
      %v1093 = vpop.f32.mrf.mxu0
      %v1094 = vadd.f32 0.0, %v1093
      %1095 = vmatprep.mubr.f32.mxu0 %v752
      %1096 = vmatmul.mubr.f32.gmra.mxu0 %v750
      %v1097 = vpop.f32.mrf.mxu0
      %v1098 = vadd.f32 0.0, %v1097
      %v1099 = vpop.f32.mrf.mxu0
      %v1100 = vadd.f32 0.0, %v1099
      %1101 = vmatprep.mubr.f32.mxu0 %v756
      %1102 = vmatmul.mubr.f32.gmra.mxu0 %v754
      %v1103 = vpop.f32.mrf.mxu0
      %v1104 = vadd.f32 0.0, %v1103
      %v1105 = vpop.f32.mrf.mxu0
      %v1106 = vadd.f32 0.0, %v1105
      %1107 = vmatprep.mubr.f32.mxu0 %v760
      %1108 = vmatmul.mubr.f32.gmra.mxu0 %v758
      %v1109 = vpop.f32.mrf.mxu0
      %v1110 = vadd.f32 0.0, %v1109
      %v1111 = vpop.f32.mrf.mxu0
      %v1112 = vadd.f32 0.0, %v1111
      %1113 = vmatprep.mubr.f32.mxu0 %v764
      %1114 = vmatmul.mubr.f32.gmra.mxu0 %v762
      %v1115 = vpop.f32.mrf.mxu0
      %v1116 = vadd.f32 0.0, %v1115
      %v1117 = vpop.f32.mrf.mxu0
      %v1118 = vadd.f32 0.0, %v1117
      %1119 = vmatprep.mubr.f32.mxu0 %v768
      %1120 = vmatmul.mubr.f32.gmra.mxu0 %v766
      %v1121 = vpop.f32.mrf.mxu0
      %v1122 = vadd.f32 0.0, %v1121
      %v1123 = vpop.f32.mrf.mxu0
      %v1124 = vadd.f32 0.0, %v1123
      %1125 = vmatprep.mubr.f32.mxu0 %v1004
      %1126 = vmatmul.mubr.f32.gmra.mxu0 %v1002
      %v1127 = vpop.f32.mrf.mxu0
      %v1128 = vadd.f32 0.0, %v1127
      %v1129 = vpop.f32.mrf.mxu0
      %v1130 = vadd.f32 0.0, %v1129
      %1131 = vdwg.mxu0
      %v1132 = vadd.f32 %v914, %v1074
      %v1133 = vadd.f32 %v915, %v1076
      %v1134 = vadd.f32 %v916, %v1080
      %v1135 = vadd.f32 %v917, %v1082
      %v1136 = vadd.f32 %v918, %v1086
      %v1137 = vadd.f32 %v919, %v1088
      %v1138 = vadd.f32 %v920, %v1092
      %v1139 = vadd.f32 %v921, %v1094
      %v1140 = vadd.f32 %v922, %v1098
      %v1141 = vadd.f32 %v923, %v1100
      %v1142 = vadd.f32 %v924, %v1104
      %v1143 = vadd.f32 %v925, %v1106
      %v1144 = vadd.f32 %v926, %v1110
      %v1145 = vadd.f32 %v927, %v1112
      %v1146 = vadd.f32 %v928, %v1116
      %v1147 = vadd.f32 %v929, %v1118
      %v1148 = vadd.f32 %v930, %v1122
      %v1149 = vadd.f32 %v931, %v1124
      %v1150 = vadd.f32 %v932, %v1128
      %v1151 = vadd.f32 %v933, %v1130
      %s1152 = scalar_lea.vmem %s1, 2048
      %v1153 = vld [vmem:[%s1152] sm:$0xff]
      %v1154 = vld [vmem:[%s1152 + $0x8] sm:$0xff]
      %v1155 = vld [vmem:[%s1152 + $0x10] sm:$0xff]
      %v1156 = vld [vmem:[%s1152 + $0x18] sm:$0xff]
      %v1157 = vld [vmem:[%s1152 + $0x20] sm:$0xff]
      %v1158 = vld [vmem:[%s1152 + $0x28] sm:$0xff]
      %v1159 = vld [vmem:[%s1152 + $0x30] sm:$0xff]
      %v1160 = vld [vmem:[%s1152 + $0x38] sm:$0xff]
      %v1161 = vld [vmem:[%s1152 + $0x40] sm:$0xff]
      %v1162 = vld [vmem:[%s1152 + $0x48] sm:$0xff]
      %v1163 = vld [vmem:[%s1152 + $0x50] sm:$0xff]
      %v1164 = vld [vmem:[%s1152 + $0x58] sm:$0xff]
      %v1165 = vld [vmem:[%s1152 + $0x60] sm:$0xff]
      %v1166 = vld [vmem:[%s1152 + $0x68] sm:$0xff]
      %v1167 = vld [vmem:[%s1152 + $0x70] sm:$0xff]
      %v1168 = vld [vmem:[%s1152 + $0x78] sm:$0xff]
      %v1169 = vld [vmem:[%s1152 + $0x80] sm:$0xff]
      %v1170 = vld [vmem:[%s1152 + $0x88] sm:$0xff]
      %v1171 = vld [vmem:[%s1152 + $0x90] sm:$0xff]
      %v1172 = vld [vmem:[%s1152 + $0x98] sm:$0xff]
      %v1173 = vld [vmem:[%s1152 + $0xa0] sm:$0xff]
      %v1174 = vld [vmem:[%s1152 + $0xa8] sm:$0xff]
      %v1175 = vld [vmem:[%s1152 + $0xb0] sm:$0xff]
      %v1176 = vld [vmem:[%s1152 + $0xb8] sm:$0xff]
      %v1177 = vld [vmem:[%s1152 + $0xc0] sm:$0xff]
      %v1178 = vld [vmem:[%s1152 + $0xc8] sm:$0xff]
      %v1179 = vld [vmem:[%s1152 + $0xd0] sm:$0xff]
      %v1180 = vld [vmem:[%s1152 + $0xd8] sm:$0xff]
      %v1181 = vld [vmem:[%s1152 + $0xe0] sm:$0xff]
      %v1182 = vld [vmem:[%s1152 + $0xe8] sm:$0xff]
      %v1183 = vld [vmem:[%s1152 + $0xf0] sm:$0xff]
      %v1184 = vld [vmem:[%s1152 + $0xf8] sm:$0xff]
      %v1185 = vld [vmem:[%s1152 + $0x100] sm:$0xff]
      %v1186 = vld [vmem:[%s1152 + $0x108] sm:$0xff]
      %v1187 = vld [vmem:[%s1152 + $0x110] sm:$0xff]
      %v1188 = vld [vmem:[%s1152 + $0x118] sm:$0xff]
      %v1189 = vld [vmem:[%s1152 + $0x120] sm:$0xff]
      %v1190 = vld [vmem:[%s1152 + $0x128] sm:$0xff]
      %v1191 = vld [vmem:[%s1152 + $0x130] sm:$0xff]
      %v1192 = vld [vmem:[%s1152 + $0x138] sm:$0xff]
      %v1193 = vld [vmem:[%s1152 + $0x140] sm:$0xff]
      %v1194 = vld [vmem:[%s1152 + $0x148] sm:$0xff]
      %v1195 = vld [vmem:[%s1152 + $0x150] sm:$0xff]
      %v1196 = vld [vmem:[%s1152 + $0x158] sm:$0xff]
      %v1197 = vld [vmem:[%s1152 + $0x160] sm:$0xff]
      %v1198 = vld [vmem:[%s1152 + $0x168] sm:$0xff]
      %v1199 = vld [vmem:[%s1152 + $0x170] sm:$0xff]
      %v1200 = vld [vmem:[%s1152 + $0x178] sm:$0xff]
      %v1201 = vld [vmem:[%s1152 + $0x180] sm:$0xff]
      %v1202 = vld [vmem:[%s1152 + $0x188] sm:$0xff]
      %v1203 = vld [vmem:[%s1152 + $0x190] sm:$0xff]
      %v1204 = vld [vmem:[%s1152 + $0x198] sm:$0xff]
      %v1205 = vld [vmem:[%s1152 + $0x1a0] sm:$0xff]
      %v1206 = vld [vmem:[%s1152 + $0x1a8] sm:$0xff]
      %v1207 = vld [vmem:[%s1152 + $0x1b0] sm:$0xff]
      %v1208 = vld [vmem:[%s1152 + $0x1b8] sm:$0xff]
      %v1209 = vld [vmem:[%s1152 + $0x1c0] sm:$0xff]
      %v1210 = vld [vmem:[%s1152 + $0x1c8] sm:$0xff]
      %v1211 = vld [vmem:[%s1152 + $0x1d0] sm:$0xff]
      %v1212 = vld [vmem:[%s1152 + $0x1d8] sm:$0xff]
      %v1213 = vld [vmem:[%s1152 + $0x1e0] sm:$0xff]
      %v1214 = vld [vmem:[%s1152 + $0x1e8] sm:$0xff]
      %v1215 = vld [vmem:[%s1152 + $0x1f0] sm:$0xff]
      %v1216 = vld [vmem:[%s1152 + $0x1f8] sm:$0xff]
      %vm1217 = vcmask 1044480
      %v1218 = vrot.slane %v173, 3
      %v1219 = vrot.slane %v175, 3
      %v1220 = vsel %vm1217, %v1218, %v1219
      %v1221 = vrot.slane %v174, 3
      %v1222 = vrot.slane %v176, 3
      %v1223 = vsel %vm1217, %v1221, %v1222
      %v1224 = vrot.slane %v177, 3
      %v1225 = vsel %vm1217, %v1219, %v1224
      %v1226 = vrot.slane %v178, 3
      %v1227 = vsel %vm1217, %v1222, %v1226
      %v1228 = vrot.slane %v179, 3
      %v1229 = vsel %vm1217, %v1224, %v1228
      %v1230 = vrot.slane %v180, 3
      %v1231 = vsel %vm1217, %v1226, %v1230
      %v1232 = vrot.slane %v181, 3
      %v1233 = vsel %vm1217, %v1228, %v1232
      %v1234 = vrot.slane %v182, 3
      %v1235 = vsel %vm1217, %v1230, %v1234
      %v1236 = vrot.slane %v183, 3
      %v1237 = vsel %vm1217, %v1232, %v1236
      %v1238 = vrot.slane %v184, 3
      %v1239 = vsel %vm1217, %v1234, %v1238
      %v1240 = vrot.slane %v185, 3
      %v1241 = vsel %vm1217, %v1236, %v1240
      %v1242 = vrot.slane %v186, 3
      %v1243 = vsel %vm1217, %v1238, %v1242
      %v1244 = vrot.slane %v187, 3
      %v1245 = vsel %vm1217, %v1240, %v1244
      %v1246 = vrot.slane %v188, 3
      %v1247 = vsel %vm1217, %v1242, %v1246
      %v1248 = vrot.slane %v189, 3
      %v1249 = vsel %vm1217, %v1244, %v1248
      %v1250 = vrot.slane %v190, 3
      %v1251 = vsel %vm1217, %v1246, %v1250
      %v1252 = vrot.slane %v191, 3
      %v1253 = vsel %vm1217, %v1248, %v1252
      %v1254 = vrot.slane %v192, 3
      %v1255 = vsel %vm1217, %v1250, %v1254
      %v1256 = vrot.slane %v193, 3
      %v1257 = vsel %vm1217, %v1252, %v1256
      %v1258 = vrot.slane %v194, 3
      %v1259 = vsel %vm1217, %v1254, %v1258
      %1280 = vmatprep.subr.mxu0 %v1184
      %1281 = vmatpush1.msra.mxu0 %v1183
      %1282 = vmatprep.subr.mxu0 %v1182
      %1283 = vmatpush1.msra.mxu0 %v1181
      %1284 = vmatprep.subr.mxu0 %v1180
      %1285 = vmatpush1.msra.mxu0 %v1179
      %1286 = vmatprep.subr.mxu0 %v1178
      %1287 = vmatpush1.msra.mxu0 %v1177
      %1288 = vmatprep.subr.mxu0 %v1176
      %1289 = vmatpush1.msra.mxu0 %v1175
      %1290 = vmatprep.subr.mxu0 %v1174
      %1291 = vmatpush1.msra.mxu0 %v1173
      %1292 = vmatprep.subr.mxu0 %v1172
      %1293 = vmatpush1.msra.mxu0 %v1171
      %1294 = vmatprep.subr.mxu0 %v1170
      %1295 = vmatpush1.msra.mxu0 %v1169
      %1296 = vmatprep.subr.mxu0 %v1168
      %1297 = vmatpush1.msra.mxu0 %v1167
      %1298 = vmatprep.subr.mxu0 %v1166
      %1299 = vmatpush1.msra.mxu0 %v1165
      %1300 = vmatprep.subr.mxu0 %v1164
      %1301 = vmatpush1.msra.mxu0 %v1163
      %1302 = vmatprep.subr.mxu0 %v1162
      %1303 = vmatpush1.msra.mxu0 %v1161
      %1304 = vmatprep.subr.mxu0 %v1160
      %1305 = vmatpush1.msra.mxu0 %v1159
      %1306 = vmatprep.subr.mxu0 %v1158
      %1307 = vmatpush1.msra.mxu0 %v1157
      %1308 = vmatprep.subr.mxu0 %v1156
      %1309 = vmatpush1.msra.mxu0 %v1155
      %1310 = vmatprep.subr.mxu0 %v1154
      %1311 = vmatpush1.msra.mxu0 %v1153
      %1312 = vmatprep.subr.mxu0 %v1216
      %1313 = vmatpush2.msra.mxu0 %v1215
      %1314 = vmatprep.subr.mxu0 %v1214
      %1315 = vmatpush2.msra.mxu0 %v1213
      %1316 = vmatprep.subr.mxu0 %v1212
      %1317 = vmatpush2.msra.mxu0 %v1211
      %1318 = vmatprep.subr.mxu0 %v1210
      %1319 = vmatpush2.msra.mxu0 %v1209
      %1320 = vmatprep.subr.mxu0 %v1208
      %1321 = vmatpush2.msra.mxu0 %v1207
      %1322 = vmatprep.subr.mxu0 %v1206
      %1323 = vmatpush2.msra.mxu0 %v1205
      %1324 = vmatprep.subr.mxu0 %v1204
      %1325 = vmatpush2.msra.mxu0 %v1203
      %1326 = vmatprep.subr.mxu0 %v1202
      %1327 = vmatpush2.msra.mxu0 %v1201
      %1328 = vmatprep.subr.mxu0 %v1200
      %1329 = vmatpush2.msra.mxu0 %v1199
      %1330 = vmatprep.subr.mxu0 %v1198
      %1331 = vmatpush2.msra.mxu0 %v1197
      %1332 = vmatprep.subr.mxu0 %v1196
      %1333 = vmatpush2.msra.mxu0 %v1195
      %1334 = vmatprep.subr.mxu0 %v1194
      %1335 = vmatpush2.msra.mxu0 %v1193
      %1336 = vmatprep.subr.mxu0 %v1192
      %1337 = vmatpush2.msra.mxu0 %v1191
      %1338 = vmatprep.subr.mxu0 %v1190
      %1339 = vmatpush2.msra.mxu0 %v1189
      %1340 = vmatprep.subr.mxu0 %v1188
      %1341 = vmatpush2.msra.mxu0 %v1187
      %1342 = vmatprep.subr.mxu0 %v1186
      %1343 = vmatpush2.msra.mxu0 %v1185
      %1344 = vmatprep.mubr.f32.mxu0 %v1223
      %1345 = vmatmul.mubr.f32.gmra.mxu0 %v1220
      %v1346 = vpop.f32.mrf.mxu0
      %v1347 = vadd.f32 0.0, %v1346
      %v1348 = vpop.f32.mrf.mxu0
      %v1349 = vadd.f32 0.0, %v1348
      %1350 = vmatprep.mubr.f32.mxu0 %v1227
      %1351 = vmatmul.mubr.f32.gmra.mxu0 %v1225
      %v1352 = vpop.f32.mrf.mxu0
      %v1353 = vadd.f32 0.0, %v1352
      %v1354 = vpop.f32.mrf.mxu0
      %v1355 = vadd.f32 0.0, %v1354
      %1356 = vmatprep.mubr.f32.mxu0 %v1231
      %1357 = vmatmul.mubr.f32.gmra.mxu0 %v1229
      %v1358 = vpop.f32.mrf.mxu0
      %v1359 = vadd.f32 0.0, %v1358
      %v1360 = vpop.f32.mrf.mxu0
      %v1361 = vadd.f32 0.0, %v1360
      %1362 = vmatprep.mubr.f32.mxu0 %v1235
      %1363 = vmatmul.mubr.f32.gmra.mxu0 %v1233
      %v1364 = vpop.f32.mrf.mxu0
      %v1365 = vadd.f32 0.0, %v1364
      %v1366 = vpop.f32.mrf.mxu0
      %v1367 = vadd.f32 0.0, %v1366
      %1368 = vmatprep.mubr.f32.mxu0 %v1239
      %1369 = vmatmul.mubr.f32.gmra.mxu0 %v1237
      %v1370 = vpop.f32.mrf.mxu0
      %v1371 = vadd.f32 0.0, %v1370
      %v1372 = vpop.f32.mrf.mxu0
      %v1373 = vadd.f32 0.0, %v1372
      %1374 = vmatprep.mubr.f32.mxu0 %v1243
      %1375 = vmatmul.mubr.f32.gmra.mxu0 %v1241
      %v1376 = vpop.f32.mrf.mxu0
      %v1377 = vadd.f32 0.0, %v1376
      %v1378 = vpop.f32.mrf.mxu0
      %v1379 = vadd.f32 0.0, %v1378
      %1380 = vmatprep.mubr.f32.mxu0 %v1247
      %1381 = vmatmul.mubr.f32.gmra.mxu0 %v1245
      %v1382 = vpop.f32.mrf.mxu0
      %v1383 = vadd.f32 0.0, %v1382
      %v1384 = vpop.f32.mrf.mxu0
      %v1385 = vadd.f32 0.0, %v1384
      %1386 = vmatprep.mubr.f32.mxu0 %v1251
      %1387 = vmatmul.mubr.f32.gmra.mxu0 %v1249
      %v1388 = vpop.f32.mrf.mxu0
      %v1389 = vadd.f32 0.0, %v1388
      %v1390 = vpop.f32.mrf.mxu0
      %v1391 = vadd.f32 0.0, %v1390
      %1392 = vmatprep.mubr.f32.mxu0 %v1255
      %1393 = vmatmul.mubr.f32.gmra.mxu0 %v1253
      %v1394 = vpop.f32.mrf.mxu0
      %v1395 = vadd.f32 0.0, %v1394
      %v1396 = vpop.f32.mrf.mxu0
      %v1397 = vadd.f32 0.0, %v1396
      %1398 = vmatprep.mubr.f32.mxu0 %v1259
      %1399 = vmatmul.mubr.f32.gmra.mxu0 %v1257
      %v1400 = vpop.f32.mrf.mxu0
      %v1401 = vadd.f32 0.0, %v1400
      %v1402 = vpop.f32.mrf.mxu0
      %v1403 = vadd.f32 0.0, %v1402
      %1404 = vdwg.mxu0
      %v1405 = vadd.f32 %v1132, %v1347
      %v1406 = vadd.f32 %v1133, %v1349
      %v1407 = vadd.f32 %v1134, %v1353
      %v1408 = vadd.f32 %v1135, %v1355
      %v1409 = vadd.f32 %v1136, %v1359
      %v1410 = vadd.f32 %v1137, %v1361
      %v1411 = vadd.f32 %v1138, %v1365
      %v1412 = vadd.f32 %v1139, %v1367
      %v1413 = vadd.f32 %v1140, %v1371
      %v1414 = vadd.f32 %v1141, %v1373
      %v1415 = vadd.f32 %v1142, %v1377
      %v1416 = vadd.f32 %v1143, %v1379
      %v1417 = vadd.f32 %v1144, %v1383
      %v1418 = vadd.f32 %v1145, %v1385
      %v1419 = vadd.f32 %v1146, %v1389
      %v1420 = vadd.f32 %v1147, %v1391
      %v1421 = vadd.f32 %v1148, %v1395
      %v1422 = vadd.f32 %v1149, %v1397
      %v1423 = vadd.f32 %v1150, %v1401
      %v1424 = vadd.f32 %v1151, %v1403
      %s1425 = scalar_lea.vmem %s1, 2560
      %v1426 = vld [vmem:[%s1425] sm:$0xff]
      %v1427 = vld [vmem:[%s1425 + $0x8] sm:$0xff]
      %v1428 = vld [vmem:[%s1425 + $0x10] sm:$0xff]
      %v1429 = vld [vmem:[%s1425 + $0x18] sm:$0xff]
      %v1430 = vld [vmem:[%s1425 + $0x20] sm:$0xff]
      %v1431 = vld [vmem:[%s1425 + $0x28] sm:$0xff]
      %v1432 = vld [vmem:[%s1425 + $0x30] sm:$0xff]
      %v1433 = vld [vmem:[%s1425 + $0x38] sm:$0xff]
      %v1434 = vld [vmem:[%s1425 + $0x40] sm:$0xff]
      %v1435 = vld [vmem:[%s1425 + $0x48] sm:$0xff]
      %v1436 = vld [vmem:[%s1425 + $0x50] sm:$0xff]
      %v1437 = vld [vmem:[%s1425 + $0x58] sm:$0xff]
      %v1438 = vld [vmem:[%s1425 + $0x60] sm:$0xff]
      %v1439 = vld [vmem:[%s1425 + $0x68] sm:$0xff]
      %v1440 = vld [vmem:[%s1425 + $0x70] sm:$0xff]
      %v1441 = vld [vmem:[%s1425 + $0x78] sm:$0xff]
      %v1442 = vld [vmem:[%s1425 + $0x80] sm:$0xff]
      %v1443 = vld [vmem:[%s1425 + $0x88] sm:$0xff]
      %v1444 = vld [vmem:[%s1425 + $0x90] sm:$0xff]
      %v1445 = vld [vmem:[%s1425 + $0x98] sm:$0xff]
      %v1446 = vld [vmem:[%s1425 + $0xa0] sm:$0xff]
      %v1447 = vld [vmem:[%s1425 + $0xa8] sm:$0xff]
      %v1448 = vld [vmem:[%s1425 + $0xb0] sm:$0xff]
      %v1449 = vld [vmem:[%s1425 + $0xb8] sm:$0xff]
      %v1450 = vld [vmem:[%s1425 + $0xc0] sm:$0xff]
      %v1451 = vld [vmem:[%s1425 + $0xc8] sm:$0xff]
      %v1452 = vld [vmem:[%s1425 + $0xd0] sm:$0xff]
      %v1453 = vld [vmem:[%s1425 + $0xd8] sm:$0xff]
      %v1454 = vld [vmem:[%s1425 + $0xe0] sm:$0xff]
      %v1455 = vld [vmem:[%s1425 + $0xe8] sm:$0xff]
      %v1456 = vld [vmem:[%s1425 + $0xf0] sm:$0xff]
      %v1457 = vld [vmem:[%s1425 + $0xf8] sm:$0xff]
      %v1458 = vld [vmem:[%s1425 + $0x100] sm:$0xff]
      %v1459 = vld [vmem:[%s1425 + $0x108] sm:$0xff]
      %v1460 = vld [vmem:[%s1425 + $0x110] sm:$0xff]
      %v1461 = vld [vmem:[%s1425 + $0x118] sm:$0xff]
      %v1462 = vld [vmem:[%s1425 + $0x120] sm:$0xff]
      %v1463 = vld [vmem:[%s1425 + $0x128] sm:$0xff]
      %v1464 = vld [vmem:[%s1425 + $0x130] sm:$0xff]
      %v1465 = vld [vmem:[%s1425 + $0x138] sm:$0xff]
      %v1466 = vld [vmem:[%s1425 + $0x140] sm:$0xff]
      %v1467 = vld [vmem:[%s1425 + $0x148] sm:$0xff]
      %v1468 = vld [vmem:[%s1425 + $0x150] sm:$0xff]
      %v1469 = vld [vmem:[%s1425 + $0x158] sm:$0xff]
      %v1470 = vld [vmem:[%s1425 + $0x160] sm:$0xff]
      %v1471 = vld [vmem:[%s1425 + $0x168] sm:$0xff]
      %v1472 = vld [vmem:[%s1425 + $0x170] sm:$0xff]
      %v1473 = vld [vmem:[%s1425 + $0x178] sm:$0xff]
      %v1474 = vld [vmem:[%s1425 + $0x180] sm:$0xff]
      %v1475 = vld [vmem:[%s1425 + $0x188] sm:$0xff]
      %v1476 = vld [vmem:[%s1425 + $0x190] sm:$0xff]
      %v1477 = vld [vmem:[%s1425 + $0x198] sm:$0xff]
      %v1478 = vld [vmem:[%s1425 + $0x1a0] sm:$0xff]
      %v1479 = vld [vmem:[%s1425 + $0x1a8] sm:$0xff]
      %v1480 = vld [vmem:[%s1425 + $0x1b0] sm:$0xff]
      %v1481 = vld [vmem:[%s1425 + $0x1b8] sm:$0xff]
      %v1482 = vld [vmem:[%s1425 + $0x1c0] sm:$0xff]
      %v1483 = vld [vmem:[%s1425 + $0x1c8] sm:$0xff]
      %v1484 = vld [vmem:[%s1425 + $0x1d0] sm:$0xff]
      %v1485 = vld [vmem:[%s1425 + $0x1d8] sm:$0xff]
      %v1486 = vld [vmem:[%s1425 + $0x1e0] sm:$0xff]
      %v1487 = vld [vmem:[%s1425 + $0x1e8] sm:$0xff]
      %v1488 = vld [vmem:[%s1425 + $0x1f0] sm:$0xff]
      %v1489 = vld [vmem:[%s1425 + $0x1f8] sm:$0xff]
      %vm1490 = vcmask 1043456
      %v1491 = vrot.slane %v173, 4
      %v1492 = vrot.slane %v175, 4
      %v1493 = vsel %vm1490, %v1491, %v1492
      %v1494 = vrot.slane %v174, 4
      %v1495 = vrot.slane %v176, 4
      %v1496 = vsel %vm1490, %v1494, %v1495
      %v1497 = vrot.slane %v177, 4
      %v1498 = vsel %vm1490, %v1492, %v1497
      %v1499 = vrot.slane %v178, 4
      %v1500 = vsel %vm1490, %v1495, %v1499
      %v1501 = vrot.slane %v179, 4
      %v1502 = vsel %vm1490, %v1497, %v1501
      %v1503 = vrot.slane %v180, 4
      %v1504 = vsel %vm1490, %v1499, %v1503
      %v1505 = vrot.slane %v181, 4
      %v1506 = vsel %vm1490, %v1501, %v1505
      %v1507 = vrot.slane %v182, 4
      %v1508 = vsel %vm1490, %v1503, %v1507
      %v1509 = vrot.slane %v183, 4
      %v1510 = vsel %vm1490, %v1505, %v1509
      %v1511 = vrot.slane %v184, 4
      %v1512 = vsel %vm1490, %v1507, %v1511
      %v1513 = vrot.slane %v185, 4
      %v1514 = vsel %vm1490, %v1509, %v1513
      %v1515 = vrot.slane %v186, 4
      %v1516 = vsel %vm1490, %v1511, %v1515
      %v1517 = vrot.slane %v187, 4
      %v1518 = vsel %vm1490, %v1513, %v1517
      %v1519 = vrot.slane %v188, 4
      %v1520 = vsel %vm1490, %v1515, %v1519
      %v1521 = vrot.slane %v189, 4
      %v1522 = vsel %vm1490, %v1517, %v1521
      %v1523 = vrot.slane %v190, 4
      %v1524 = vsel %vm1490, %v1519, %v1523
      %v1525 = vrot.slane %v191, 4
      %v1526 = vsel %vm1490, %v1521, %v1525
      %v1527 = vrot.slane %v192, 4
      %v1528 = vsel %vm1490, %v1523, %v1527
      %v1529 = vrot.slane %v193, 4
      %v1530 = vsel %vm1490, %v1525, %v1529
      %v1531 = vrot.slane %v194, 4
      %v1532 = vsel %vm1490, %v1527, %v1531
      %1553 = vmatprep.subr.mxu0 %v1457
      %1554 = vmatpush1.msra.mxu0 %v1456
      %1555 = vmatprep.subr.mxu0 %v1455
      %1556 = vmatpush1.msra.mxu0 %v1454
      %1557 = vmatprep.subr.mxu0 %v1453
      %1558 = vmatpush1.msra.mxu0 %v1452
      %1559 = vmatprep.subr.mxu0 %v1451
      %1560 = vmatpush1.msra.mxu0 %v1450
      %1561 = vmatprep.subr.mxu0 %v1449
      %1562 = vmatpush1.msra.mxu0 %v1448
      %1563 = vmatprep.subr.mxu0 %v1447
      %1564 = vmatpush1.msra.mxu0 %v1446
      %1565 = vmatprep.subr.mxu0 %v1445
      %1566 = vmatpush1.msra.mxu0 %v1444
      %1567 = vmatprep.subr.mxu0 %v1443
      %1568 = vmatpush1.msra.mxu0 %v1442
      %1569 = vmatprep.subr.mxu0 %v1441
      %1570 = vmatpush1.msra.mxu0 %v1440
      %1571 = vmatprep.subr.mxu0 %v1439
      %1572 = vmatpush1.msra.mxu0 %v1438
      %1573 = vmatprep.subr.mxu0 %v1437
      %1574 = vmatpush1.msra.mxu0 %v1436
      %1575 = vmatprep.subr.mxu0 %v1435
      %1576 = vmatpush1.msra.mxu0 %v1434
      %1577 = vmatprep.subr.mxu0 %v1433
      %1578 = vmatpush1.msra.mxu0 %v1432
      %1579 = vmatprep.subr.mxu0 %v1431
      %1580 = vmatpush1.msra.mxu0 %v1430
      %1581 = vmatprep.subr.mxu0 %v1429
      %1582 = vmatpush1.msra.mxu0 %v1428
      %1583 = vmatprep.subr.mxu0 %v1427
      %1584 = vmatpush1.msra.mxu0 %v1426
      %1585 = vmatprep.subr.mxu0 %v1489
      %1586 = vmatpush2.msra.mxu0 %v1488
      %1587 = vmatprep.subr.mxu0 %v1487
      %1588 = vmatpush2.msra.mxu0 %v1486
      %1589 = vmatprep.subr.mxu0 %v1485
      %1590 = vmatpush2.msra.mxu0 %v1484
      %1591 = vmatprep.subr.mxu0 %v1483
      %1592 = vmatpush2.msra.mxu0 %v1482
      %1593 = vmatprep.subr.mxu0 %v1481
      %1594 = vmatpush2.msra.mxu0 %v1480
      %1595 = vmatprep.subr.mxu0 %v1479
      %1596 = vmatpush2.msra.mxu0 %v1478
      %1597 = vmatprep.subr.mxu0 %v1477
      %1598 = vmatpush2.msra.mxu0 %v1476
      %1599 = vmatprep.subr.mxu0 %v1475
      %1600 = vmatpush2.msra.mxu0 %v1474
      %1601 = vmatprep.subr.mxu0 %v1473
      %1602 = vmatpush2.msra.mxu0 %v1472
      %1603 = vmatprep.subr.mxu0 %v1471
      %1604 = vmatpush2.msra.mxu0 %v1470
      %1605 = vmatprep.subr.mxu0 %v1469
      %1606 = vmatpush2.msra.mxu0 %v1468
      %1607 = vmatprep.subr.mxu0 %v1467
      %1608 = vmatpush2.msra.mxu0 %v1466
      %1609 = vmatprep.subr.mxu0 %v1465
      %1610 = vmatpush2.msra.mxu0 %v1464
      %1611 = vmatprep.subr.mxu0 %v1463
      %1612 = vmatpush2.msra.mxu0 %v1462
      %1613 = vmatprep.subr.mxu0 %v1461
      %1614 = vmatpush2.msra.mxu0 %v1460
      %1615 = vmatprep.subr.mxu0 %v1459
      %1616 = vmatpush2.msra.mxu0 %v1458
      %1617 = vmatprep.mubr.f32.mxu0 %v1496
      %1618 = vmatmul.mubr.f32.gmra.mxu0 %v1493
      %v1619 = vpop.f32.mrf.mxu0
      %v1620 = vadd.f32 0.0, %v1619
      %v1621 = vpop.f32.mrf.mxu0
      %v1622 = vadd.f32 0.0, %v1621
      %1623 = vmatprep.mubr.f32.mxu0 %v1500
      %1624 = vmatmul.mubr.f32.gmra.mxu0 %v1498
      %v1625 = vpop.f32.mrf.mxu0
      %v1626 = vadd.f32 0.0, %v1625
      %v1627 = vpop.f32.mrf.mxu0
      %v1628 = vadd.f32 0.0, %v1627
      %1629 = vmatprep.mubr.f32.mxu0 %v1504
      %1630 = vmatmul.mubr.f32.gmra.mxu0 %v1502
      %v1631 = vpop.f32.mrf.mxu0
      %v1632 = vadd.f32 0.0, %v1631
      %v1633 = vpop.f32.mrf.mxu0
      %v1634 = vadd.f32 0.0, %v1633
      %1635 = vmatprep.mubr.f32.mxu0 %v1508
      %1636 = vmatmul.mubr.f32.gmra.mxu0 %v1506
      %v1637 = vpop.f32.mrf.mxu0
      %v1638 = vadd.f32 0.0, %v1637
      %v1639 = vpop.f32.mrf.mxu0
      %v1640 = vadd.f32 0.0, %v1639
      %1641 = vmatprep.mubr.f32.mxu0 %v1512
      %1642 = vmatmul.mubr.f32.gmra.mxu0 %v1510
      %v1643 = vpop.f32.mrf.mxu0
      %v1644 = vadd.f32 0.0, %v1643
      %v1645 = vpop.f32.mrf.mxu0
      %v1646 = vadd.f32 0.0, %v1645
      %1647 = vmatprep.mubr.f32.mxu0 %v1516
      %1648 = vmatmul.mubr.f32.gmra.mxu0 %v1514
      %v1649 = vpop.f32.mrf.mxu0
      %v1650 = vadd.f32 0.0, %v1649
      %v1651 = vpop.f32.mrf.mxu0
      %v1652 = vadd.f32 0.0, %v1651
      %1653 = vmatprep.mubr.f32.mxu0 %v1520
      %1654 = vmatmul.mubr.f32.gmra.mxu0 %v1518
      %v1655 = vpop.f32.mrf.mxu0
      %v1656 = vadd.f32 0.0, %v1655
      %v1657 = vpop.f32.mrf.mxu0
      %v1658 = vadd.f32 0.0, %v1657
      %1659 = vmatprep.mubr.f32.mxu0 %v1524
      %1660 = vmatmul.mubr.f32.gmra.mxu0 %v1522
      %v1661 = vpop.f32.mrf.mxu0
      %v1662 = vadd.f32 0.0, %v1661
      %v1663 = vpop.f32.mrf.mxu0
      %v1664 = vadd.f32 0.0, %v1663
      %1665 = vmatprep.mubr.f32.mxu0 %v1528
      %1666 = vmatmul.mubr.f32.gmra.mxu0 %v1526
      %v1667 = vpop.f32.mrf.mxu0
      %v1668 = vadd.f32 0.0, %v1667
      %v1669 = vpop.f32.mrf.mxu0
      %v1670 = vadd.f32 0.0, %v1669
      %1671 = vmatprep.mubr.f32.mxu0 %v1532
      %1672 = vmatmul.mubr.f32.gmra.mxu0 %v1530
      %v1673 = vpop.f32.mrf.mxu0
      %v1674 = vadd.f32 0.0, %v1673
      %v1675 = vpop.f32.mrf.mxu0
      %v1676 = vadd.f32 0.0, %v1675
      %1677 = vdwg.mxu0
      %v1678 = vadd.f32 %v1405, %v1620
      %v1679 = vadd.f32 %v1406, %v1622
      %v1680 = vadd.f32 %v1407, %v1626
      %v1681 = vadd.f32 %v1408, %v1628
      %v1682 = vadd.f32 %v1409, %v1632
      %v1683 = vadd.f32 %v1410, %v1634
      %v1684 = vadd.f32 %v1411, %v1638
      %v1685 = vadd.f32 %v1412, %v1640
      %v1686 = vadd.f32 %v1413, %v1644
      %v1687 = vadd.f32 %v1414, %v1646
      %v1688 = vadd.f32 %v1415, %v1650
      %v1689 = vadd.f32 %v1416, %v1652
      %v1690 = vadd.f32 %v1417, %v1656
      %v1691 = vadd.f32 %v1418, %v1658
      %v1692 = vadd.f32 %v1419, %v1662
      %v1693 = vadd.f32 %v1420, %v1664
      %v1694 = vadd.f32 %v1421, %v1668
      %v1695 = vadd.f32 %v1422, %v1670
      %v1696 = vadd.f32 %v1423, %v1674
      %v1697 = vadd.f32 %v1424, %v1676
      %s1698 = scalar_lea.vmem %s1, 3072
      %v1699 = vld [vmem:[%s1698] sm:$0xff]
      %v1700 = vld [vmem:[%s1698 + $0x8] sm:$0xff]
      %v1701 = vld [vmem:[%s1698 + $0x10] sm:$0xff]
      %v1702 = vld [vmem:[%s1698 + $0x18] sm:$0xff]
      %v1703 = vld [vmem:[%s1698 + $0x20] sm:$0xff]
      %v1704 = vld [vmem:[%s1698 + $0x28] sm:$0xff]
      %v1705 = vld [vmem:[%s1698 + $0x30] sm:$0xff]
      %v1706 = vld [vmem:[%s1698 + $0x38] sm:$0xff]
      %v1707 = vld [vmem:[%s1698 + $0x40] sm:$0xff]
      %v1708 = vld [vmem:[%s1698 + $0x48] sm:$0xff]
      %v1709 = vld [vmem:[%s1698 + $0x50] sm:$0xff]
      %v1710 = vld [vmem:[%s1698 + $0x58] sm:$0xff]
      %v1711 = vld [vmem:[%s1698 + $0x60] sm:$0xff]
      %v1712 = vld [vmem:[%s1698 + $0x68] sm:$0xff]
      %v1713 = vld [vmem:[%s1698 + $0x70] sm:$0xff]
      %v1714 = vld [vmem:[%s1698 + $0x78] sm:$0xff]
      %v1715 = vld [vmem:[%s1698 + $0x80] sm:$0xff]
      %v1716 = vld [vmem:[%s1698 + $0x88] sm:$0xff]
      %v1717 = vld [vmem:[%s1698 + $0x90] sm:$0xff]
      %v1718 = vld [vmem:[%s1698 + $0x98] sm:$0xff]
      %v1719 = vld [vmem:[%s1698 + $0xa0] sm:$0xff]
      %v1720 = vld [vmem:[%s1698 + $0xa8] sm:$0xff]
      %v1721 = vld [vmem:[%s1698 + $0xb0] sm:$0xff]
      %v1722 = vld [vmem:[%s1698 + $0xb8] sm:$0xff]
      %v1723 = vld [vmem:[%s1698 + $0xc0] sm:$0xff]
      %v1724 = vld [vmem:[%s1698 + $0xc8] sm:$0xff]
      %v1725 = vld [vmem:[%s1698 + $0xd0] sm:$0xff]
      %v1726 = vld [vmem:[%s1698 + $0xd8] sm:$0xff]
      %v1727 = vld [vmem:[%s1698 + $0xe0] sm:$0xff]
      %v1728 = vld [vmem:[%s1698 + $0xe8] sm:$0xff]
      %v1729 = vld [vmem:[%s1698 + $0xf0] sm:$0xff]
      %v1730 = vld [vmem:[%s1698 + $0xf8] sm:$0xff]
      %v1731 = vld [vmem:[%s1698 + $0x100] sm:$0xff]
      %v1732 = vld [vmem:[%s1698 + $0x108] sm:$0xff]
      %v1733 = vld [vmem:[%s1698 + $0x110] sm:$0xff]
      %v1734 = vld [vmem:[%s1698 + $0x118] sm:$0xff]
      %v1735 = vld [vmem:[%s1698 + $0x120] sm:$0xff]
      %v1736 = vld [vmem:[%s1698 + $0x128] sm:$0xff]
      %v1737 = vld [vmem:[%s1698 + $0x130] sm:$0xff]
      %v1738 = vld [vmem:[%s1698 + $0x138] sm:$0xff]
      %v1739 = vld [vmem:[%s1698 + $0x140] sm:$0xff]
      %v1740 = vld [vmem:[%s1698 + $0x148] sm:$0xff]
      %v1741 = vld [vmem:[%s1698 + $0x150] sm:$0xff]
      %v1742 = vld [vmem:[%s1698 + $0x158] sm:$0xff]
      %v1743 = vld [vmem:[%s1698 + $0x160] sm:$0xff]
      %v1744 = vld [vmem:[%s1698 + $0x168] sm:$0xff]
      %v1745 = vld [vmem:[%s1698 + $0x170] sm:$0xff]
      %v1746 = vld [vmem:[%s1698 + $0x178] sm:$0xff]
      %v1747 = vld [vmem:[%s1698 + $0x180] sm:$0xff]
      %v1748 = vld [vmem:[%s1698 + $0x188] sm:$0xff]
      %v1749 = vld [vmem:[%s1698 + $0x190] sm:$0xff]
      %v1750 = vld [vmem:[%s1698 + $0x198] sm:$0xff]
      %v1751 = vld [vmem:[%s1698 + $0x1a0] sm:$0xff]
      %v1752 = vld [vmem:[%s1698 + $0x1a8] sm:$0xff]
      %v1753 = vld [vmem:[%s1698 + $0x1b0] sm:$0xff]
      %v1754 = vld [vmem:[%s1698 + $0x1b8] sm:$0xff]
      %v1755 = vld [vmem:[%s1698 + $0x1c0] sm:$0xff]
      %v1756 = vld [vmem:[%s1698 + $0x1c8] sm:$0xff]
      %v1757 = vld [vmem:[%s1698 + $0x1d0] sm:$0xff]
      %v1758 = vld [vmem:[%s1698 + $0x1d8] sm:$0xff]
      %v1759 = vld [vmem:[%s1698 + $0x1e0] sm:$0xff]
      %v1760 = vld [vmem:[%s1698 + $0x1e8] sm:$0xff]
      %v1761 = vld [vmem:[%s1698 + $0x1f0] sm:$0xff]
      %v1762 = vld [vmem:[%s1698 + $0x1f8] sm:$0xff]
      %v1765 = vrot.slane %v195, 4
      %v1766 = vsel %vm1490, %v1529, %v1765
      %v1767 = vrot.slane %v196, 4
      %v1768 = vsel %vm1490, %v1531, %v1767
      %1771 = vmatprep.subr.mxu0 %v1730
      %1772 = vmatpush1.msra.mxu0 %v1729
      %1773 = vmatprep.subr.mxu0 %v1728
      %1774 = vmatpush1.msra.mxu0 %v1727
      %1775 = vmatprep.subr.mxu0 %v1726
      %1776 = vmatpush1.msra.mxu0 %v1725
      %1777 = vmatprep.subr.mxu0 %v1724
      %1778 = vmatpush1.msra.mxu0 %v1723
      %1779 = vmatprep.subr.mxu0 %v1722
      %1780 = vmatpush1.msra.mxu0 %v1721
      %1781 = vmatprep.subr.mxu0 %v1720
      %1782 = vmatpush1.msra.mxu0 %v1719
      %1783 = vmatprep.subr.mxu0 %v1718
      %1784 = vmatpush1.msra.mxu0 %v1717
      %1785 = vmatprep.subr.mxu0 %v1716
      %1786 = vmatpush1.msra.mxu0 %v1715
      %1787 = vmatprep.subr.mxu0 %v1714
      %1788 = vmatpush1.msra.mxu0 %v1713
      %1789 = vmatprep.subr.mxu0 %v1712
      %1790 = vmatpush1.msra.mxu0 %v1711
      %1791 = vmatprep.subr.mxu0 %v1710
      %1792 = vmatpush1.msra.mxu0 %v1709
      %1793 = vmatprep.subr.mxu0 %v1708
      %1794 = vmatpush1.msra.mxu0 %v1707
      %1795 = vmatprep.subr.mxu0 %v1706
      %1796 = vmatpush1.msra.mxu0 %v1705
      %1797 = vmatprep.subr.mxu0 %v1704
      %1798 = vmatpush1.msra.mxu0 %v1703
      %1799 = vmatprep.subr.mxu0 %v1702
      %1800 = vmatpush1.msra.mxu0 %v1701
      %1801 = vmatprep.subr.mxu0 %v1700
      %1802 = vmatpush1.msra.mxu0 %v1699
      %1803 = vmatprep.subr.mxu0 %v1762
      %1804 = vmatpush2.msra.mxu0 %v1761
      %1805 = vmatprep.subr.mxu0 %v1760
      %1806 = vmatpush2.msra.mxu0 %v1759
      %1807 = vmatprep.subr.mxu0 %v1758
      %1808 = vmatpush2.msra.mxu0 %v1757
      %1809 = vmatprep.subr.mxu0 %v1756
      %1810 = vmatpush2.msra.mxu0 %v1755
      %1811 = vmatprep.subr.mxu0 %v1754
      %1812 = vmatpush2.msra.mxu0 %v1753
      %1813 = vmatprep.subr.mxu0 %v1752
      %1814 = vmatpush2.msra.mxu0 %v1751
      %1815 = vmatprep.subr.mxu0 %v1750
      %1816 = vmatpush2.msra.mxu0 %v1749
      %1817 = vmatprep.subr.mxu0 %v1748
      %1818 = vmatpush2.msra.mxu0 %v1747
      %1819 = vmatprep.subr.mxu0 %v1746
      %1820 = vmatpush2.msra.mxu0 %v1745
      %1821 = vmatprep.subr.mxu0 %v1744
      %1822 = vmatpush2.msra.mxu0 %v1743
      %1823 = vmatprep.subr.mxu0 %v1742
      %1824 = vmatpush2.msra.mxu0 %v1741
      %1825 = vmatprep.subr.mxu0 %v1740
      %1826 = vmatpush2.msra.mxu0 %v1739
      %1827 = vmatprep.subr.mxu0 %v1738
      %1828 = vmatpush2.msra.mxu0 %v1737
      %1829 = vmatprep.subr.mxu0 %v1736
      %1830 = vmatpush2.msra.mxu0 %v1735
      %1831 = vmatprep.subr.mxu0 %v1734
      %1832 = vmatpush2.msra.mxu0 %v1733
      %1833 = vmatprep.subr.mxu0 %v1732
      %1834 = vmatpush2.msra.mxu0 %v1731
      %1835 = vmatprep.mubr.f32.mxu0 %v1500
      %1836 = vmatmul.mubr.f32.gmra.mxu0 %v1498
      %v1837 = vpop.f32.mrf.mxu0
      %v1838 = vadd.f32 0.0, %v1837
      %v1839 = vpop.f32.mrf.mxu0
      %v1840 = vadd.f32 0.0, %v1839
      %1841 = vmatprep.mubr.f32.mxu0 %v1504
      %1842 = vmatmul.mubr.f32.gmra.mxu0 %v1502
      %v1843 = vpop.f32.mrf.mxu0
      %v1844 = vadd.f32 0.0, %v1843
      %v1845 = vpop.f32.mrf.mxu0
      %v1846 = vadd.f32 0.0, %v1845
      %1847 = vmatprep.mubr.f32.mxu0 %v1508
      %1848 = vmatmul.mubr.f32.gmra.mxu0 %v1506
      %v1849 = vpop.f32.mrf.mxu0
      %v1850 = vadd.f32 0.0, %v1849
      %v1851 = vpop.f32.mrf.mxu0
      %v1852 = vadd.f32 0.0, %v1851
      %1853 = vmatprep.mubr.f32.mxu0 %v1512
      %1854 = vmatmul.mubr.f32.gmra.mxu0 %v1510
      %v1855 = vpop.f32.mrf.mxu0
      %v1856 = vadd.f32 0.0, %v1855
      %v1857 = vpop.f32.mrf.mxu0
      %v1858 = vadd.f32 0.0, %v1857
      %1859 = vmatprep.mubr.f32.mxu0 %v1516
      %1860 = vmatmul.mubr.f32.gmra.mxu0 %v1514
      %v1861 = vpop.f32.mrf.mxu0
      %v1862 = vadd.f32 0.0, %v1861
      %v1863 = vpop.f32.mrf.mxu0
      %v1864 = vadd.f32 0.0, %v1863
      %1865 = vmatprep.mubr.f32.mxu0 %v1520
      %1866 = vmatmul.mubr.f32.gmra.mxu0 %v1518
      %v1867 = vpop.f32.mrf.mxu0
      %v1868 = vadd.f32 0.0, %v1867
      %v1869 = vpop.f32.mrf.mxu0
      %v1870 = vadd.f32 0.0, %v1869
      %1871 = vmatprep.mubr.f32.mxu0 %v1524
      %1872 = vmatmul.mubr.f32.gmra.mxu0 %v1522
      %v1873 = vpop.f32.mrf.mxu0
      %v1874 = vadd.f32 0.0, %v1873
      %v1875 = vpop.f32.mrf.mxu0
      %v1876 = vadd.f32 0.0, %v1875
      %1877 = vmatprep.mubr.f32.mxu0 %v1528
      %1878 = vmatmul.mubr.f32.gmra.mxu0 %v1526
      %v1879 = vpop.f32.mrf.mxu0
      %v1880 = vadd.f32 0.0, %v1879
      %v1881 = vpop.f32.mrf.mxu0
      %v1882 = vadd.f32 0.0, %v1881
      %1883 = vmatprep.mubr.f32.mxu0 %v1532
      %1884 = vmatmul.mubr.f32.gmra.mxu0 %v1530
      %v1885 = vpop.f32.mrf.mxu0
      %v1886 = vadd.f32 0.0, %v1885
      %v1887 = vpop.f32.mrf.mxu0
      %v1888 = vadd.f32 0.0, %v1887
      %1889 = vmatprep.mubr.f32.mxu0 %v1768
      %1890 = vmatmul.mubr.f32.gmra.mxu0 %v1766
      %v1891 = vpop.f32.mrf.mxu0
      %v1892 = vadd.f32 0.0, %v1891
      %v1893 = vpop.f32.mrf.mxu0
      %v1894 = vadd.f32 0.0, %v1893
      %1895 = vdwg.mxu0
      %v1896 = vadd.f32 %v1678, %v1838
      %v1897 = vadd.f32 %v1679, %v1840
      %v1898 = vadd.f32 %v1680, %v1844
      %v1899 = vadd.f32 %v1681, %v1846
      %v1900 = vadd.f32 %v1682, %v1850
      %v1901 = vadd.f32 %v1683, %v1852
      %v1902 = vadd.f32 %v1684, %v1856
      %v1903 = vadd.f32 %v1685, %v1858
      %v1904 = vadd.f32 %v1686, %v1862
      %v1905 = vadd.f32 %v1687, %v1864
      %v1906 = vadd.f32 %v1688, %v1868
      %v1907 = vadd.f32 %v1689, %v1870
      %v1908 = vadd.f32 %v1690, %v1874
      %v1909 = vadd.f32 %v1691, %v1876
      %v1910 = vadd.f32 %v1692, %v1880
      %v1911 = vadd.f32 %v1693, %v1882
      %v1912 = vadd.f32 %v1694, %v1886
      %v1913 = vadd.f32 %v1695, %v1888
      %v1914 = vadd.f32 %v1696, %v1892
      %v1915 = vadd.f32 %v1697, %v1894
      %s1916 = scalar_lea.vmem %s1, 3584
      %v1917 = vld [vmem:[%s1916] sm:$0xff]
      %v1918 = vld [vmem:[%s1916 + $0x8] sm:$0xff]
      %v1919 = vld [vmem:[%s1916 + $0x10] sm:$0xff]
      %v1920 = vld [vmem:[%s1916 + $0x18] sm:$0xff]
      %v1921 = vld [vmem:[%s1916 + $0x20] sm:$0xff]
      %v1922 = vld [vmem:[%s1916 + $0x28] sm:$0xff]
      %v1923 = vld [vmem:[%s1916 + $0x30] sm:$0xff]
      %v1924 = vld [vmem:[%s1916 + $0x38] sm:$0xff]
      %v1925 = vld [vmem:[%s1916 + $0x40] sm:$0xff]
      %v1926 = vld [vmem:[%s1916 + $0x48] sm:$0xff]
      %v1927 = vld [vmem:[%s1916 + $0x50] sm:$0xff]
      %v1928 = vld [vmem:[%s1916 + $0x58] sm:$0xff]
      %v1929 = vld [vmem:[%s1916 + $0x60] sm:$0xff]
      %v1930 = vld [vmem:[%s1916 + $0x68] sm:$0xff]
      %v1931 = vld [vmem:[%s1916 + $0x70] sm:$0xff]
      %v1932 = vld [vmem:[%s1916 + $0x78] sm:$0xff]
      %v1933 = vld [vmem:[%s1916 + $0x80] sm:$0xff]
      %v1934 = vld [vmem:[%s1916 + $0x88] sm:$0xff]
      %v1935 = vld [vmem:[%s1916 + $0x90] sm:$0xff]
      %v1936 = vld [vmem:[%s1916 + $0x98] sm:$0xff]
      %v1937 = vld [vmem:[%s1916 + $0xa0] sm:$0xff]
      %v1938 = vld [vmem:[%s1916 + $0xa8] sm:$0xff]
      %v1939 = vld [vmem:[%s1916 + $0xb0] sm:$0xff]
      %v1940 = vld [vmem:[%s1916 + $0xb8] sm:$0xff]
      %v1941 = vld [vmem:[%s1916 + $0xc0] sm:$0xff]
      %v1942 = vld [vmem:[%s1916 + $0xc8] sm:$0xff]
      %v1943 = vld [vmem:[%s1916 + $0xd0] sm:$0xff]
      %v1944 = vld [vmem:[%s1916 + $0xd8] sm:$0xff]
      %v1945 = vld [vmem:[%s1916 + $0xe0] sm:$0xff]
      %v1946 = vld [vmem:[%s1916 + $0xe8] sm:$0xff]
      %v1947 = vld [vmem:[%s1916 + $0xf0] sm:$0xff]
      %v1948 = vld [vmem:[%s1916 + $0xf8] sm:$0xff]
      %v1949 = vld [vmem:[%s1916 + $0x100] sm:$0xff]
      %v1950 = vld [vmem:[%s1916 + $0x108] sm:$0xff]
      %v1951 = vld [vmem:[%s1916 + $0x110] sm:$0xff]
      %v1952 = vld [vmem:[%s1916 + $0x118] sm:$0xff]
      %v1953 = vld [vmem:[%s1916 + $0x120] sm:$0xff]
      %v1954 = vld [vmem:[%s1916 + $0x128] sm:$0xff]
      %v1955 = vld [vmem:[%s1916 + $0x130] sm:$0xff]
      %v1956 = vld [vmem:[%s1916 + $0x138] sm:$0xff]
      %v1957 = vld [vmem:[%s1916 + $0x140] sm:$0xff]
      %v1958 = vld [vmem:[%s1916 + $0x148] sm:$0xff]
      %v1959 = vld [vmem:[%s1916 + $0x150] sm:$0xff]
      %v1960 = vld [vmem:[%s1916 + $0x158] sm:$0xff]
      %v1961 = vld [vmem:[%s1916 + $0x160] sm:$0xff]
      %v1962 = vld [vmem:[%s1916 + $0x168] sm:$0xff]
      %v1963 = vld [vmem:[%s1916 + $0x170] sm:$0xff]
      %v1964 = vld [vmem:[%s1916 + $0x178] sm:$0xff]
      %v1965 = vld [vmem:[%s1916 + $0x180] sm:$0xff]
      %v1966 = vld [vmem:[%s1916 + $0x188] sm:$0xff]
      %v1967 = vld [vmem:[%s1916 + $0x190] sm:$0xff]
      %v1968 = vld [vmem:[%s1916 + $0x198] sm:$0xff]
      %v1969 = vld [vmem:[%s1916 + $0x1a0] sm:$0xff]
      %v1970 = vld [vmem:[%s1916 + $0x1a8] sm:$0xff]
      %v1971 = vld [vmem:[%s1916 + $0x1b0] sm:$0xff]
      %v1972 = vld [vmem:[%s1916 + $0x1b8] sm:$0xff]
      %v1973 = vld [vmem:[%s1916 + $0x1c0] sm:$0xff]
      %v1974 = vld [vmem:[%s1916 + $0x1c8] sm:$0xff]
      %v1975 = vld [vmem:[%s1916 + $0x1d0] sm:$0xff]
      %v1976 = vld [vmem:[%s1916 + $0x1d8] sm:$0xff]
      %v1977 = vld [vmem:[%s1916 + $0x1e0] sm:$0xff]
      %v1978 = vld [vmem:[%s1916 + $0x1e8] sm:$0xff]
      %v1979 = vld [vmem:[%s1916 + $0x1f0] sm:$0xff]
      %v1980 = vld [vmem:[%s1916 + $0x1f8] sm:$0xff]
      %vm1981 = vcmask 1042432
      %v1982 = vrot.slane %v175, 5
      %v1983 = vrot.slane %v177, 5
      %v1984 = vsel %vm1981, %v1982, %v1983
      %v1985 = vrot.slane %v176, 5
      %v1986 = vrot.slane %v178, 5
      %v1987 = vsel %vm1981, %v1985, %v1986
      %v1988 = vrot.slane %v179, 5
      %v1989 = vsel %vm1981, %v1983, %v1988
      %v1990 = vrot.slane %v180, 5
      %v1991 = vsel %vm1981, %v1986, %v1990
      %v1992 = vrot.slane %v181, 5
      %v1993 = vsel %vm1981, %v1988, %v1992
      %v1994 = vrot.slane %v182, 5
      %v1995 = vsel %vm1981, %v1990, %v1994
      %v1996 = vrot.slane %v183, 5
      %v1997 = vsel %vm1981, %v1992, %v1996
      %v1998 = vrot.slane %v184, 5
      %v1999 = vsel %vm1981, %v1994, %v1998
      %v2000 = vrot.slane %v185, 5
      %v2001 = vsel %vm1981, %v1996, %v2000
      %v2002 = vrot.slane %v186, 5
      %v2003 = vsel %vm1981, %v1998, %v2002
      %v2004 = vrot.slane %v187, 5
      %v2005 = vsel %vm1981, %v2000, %v2004
      %v2006 = vrot.slane %v188, 5
      %v2007 = vsel %vm1981, %v2002, %v2006
      %v2008 = vrot.slane %v189, 5
      %v2009 = vsel %vm1981, %v2004, %v2008
      %v2010 = vrot.slane %v190, 5
      %v2011 = vsel %vm1981, %v2006, %v2010
      %v2012 = vrot.slane %v191, 5
      %v2013 = vsel %vm1981, %v2008, %v2012
      %v2014 = vrot.slane %v192, 5
      %v2015 = vsel %vm1981, %v2010, %v2014
      %v2016 = vrot.slane %v193, 5
      %v2017 = vsel %vm1981, %v2012, %v2016
      %v2018 = vrot.slane %v194, 5
      %v2019 = vsel %vm1981, %v2014, %v2018
      %v2020 = vrot.slane %v195, 5
      %v2021 = vsel %vm1981, %v2016, %v2020
      %v2022 = vrot.slane %v196, 5
      %v2023 = vsel %vm1981, %v2018, %v2022
      %2044 = vmatprep.subr.mxu0 %v1948
      %2045 = vmatpush1.msra.mxu0 %v1947
      %2046 = vmatprep.subr.mxu0 %v1946
      %2047 = vmatpush1.msra.mxu0 %v1945
      %2048 = vmatprep.subr.mxu0 %v1944
      %2049 = vmatpush1.msra.mxu0 %v1943
      %2050 = vmatprep.subr.mxu0 %v1942
      %2051 = vmatpush1.msra.mxu0 %v1941
      %2052 = vmatprep.subr.mxu0 %v1940
      %2053 = vmatpush1.msra.mxu0 %v1939
      %2054 = vmatprep.subr.mxu0 %v1938
      %2055 = vmatpush1.msra.mxu0 %v1937
      %2056 = vmatprep.subr.mxu0 %v1936
      %2057 = vmatpush1.msra.mxu0 %v1935
      %2058 = vmatprep.subr.mxu0 %v1934
      %2059 = vmatpush1.msra.mxu0 %v1933
      %2060 = vmatprep.subr.mxu0 %v1932
      %2061 = vmatpush1.msra.mxu0 %v1931
      %2062 = vmatprep.subr.mxu0 %v1930
      %2063 = vmatpush1.msra.mxu0 %v1929
      %2064 = vmatprep.subr.mxu0 %v1928
      %2065 = vmatpush1.msra.mxu0 %v1927
      %2066 = vmatprep.subr.mxu0 %v1926
      %2067 = vmatpush1.msra.mxu0 %v1925
      %2068 = vmatprep.subr.mxu0 %v1924
      %2069 = vmatpush1.msra.mxu0 %v1923
      %2070 = vmatprep.subr.mxu0 %v1922
      %2071 = vmatpush1.msra.mxu0 %v1921
      %2072 = vmatprep.subr.mxu0 %v1920
      %2073 = vmatpush1.msra.mxu0 %v1919
      %2074 = vmatprep.subr.mxu0 %v1918
      %2075 = vmatpush1.msra.mxu0 %v1917
      %2076 = vmatprep.subr.mxu0 %v1980
      %2077 = vmatpush2.msra.mxu0 %v1979
      %2078 = vmatprep.subr.mxu0 %v1978
      %2079 = vmatpush2.msra.mxu0 %v1977
      %2080 = vmatprep.subr.mxu0 %v1976
      %2081 = vmatpush2.msra.mxu0 %v1975
      %2082 = vmatprep.subr.mxu0 %v1974
      %2083 = vmatpush2.msra.mxu0 %v1973
      %2084 = vmatprep.subr.mxu0 %v1972
      %2085 = vmatpush2.msra.mxu0 %v1971
      %2086 = vmatprep.subr.mxu0 %v1970
      %2087 = vmatpush2.msra.mxu0 %v1969
      %2088 = vmatprep.subr.mxu0 %v1968
      %2089 = vmatpush2.msra.mxu0 %v1967
      %2090 = vmatprep.subr.mxu0 %v1966
      %2091 = vmatpush2.msra.mxu0 %v1965
      %2092 = vmatprep.subr.mxu0 %v1964
      %2093 = vmatpush2.msra.mxu0 %v1963
      %2094 = vmatprep.subr.mxu0 %v1962
      %2095 = vmatpush2.msra.mxu0 %v1961
      %2096 = vmatprep.subr.mxu0 %v1960
      %2097 = vmatpush2.msra.mxu0 %v1959
      %2098 = vmatprep.subr.mxu0 %v1958
      %2099 = vmatpush2.msra.mxu0 %v1957
      %2100 = vmatprep.subr.mxu0 %v1956
      %2101 = vmatpush2.msra.mxu0 %v1955
      %2102 = vmatprep.subr.mxu0 %v1954
      %2103 = vmatpush2.msra.mxu0 %v1953
      %2104 = vmatprep.subr.mxu0 %v1952
      %2105 = vmatpush2.msra.mxu0 %v1951
      %2106 = vmatprep.subr.mxu0 %v1950
      %2107 = vmatpush2.msra.mxu0 %v1949
      %2108 = vmatprep.mubr.f32.mxu0 %v1987
      %2109 = vmatmul.mubr.f32.gmra.mxu0 %v1984
      %v2110 = vpop.f32.mrf.mxu0
      %v2111 = vadd.f32 0.0, %v2110
      %v2112 = vpop.f32.mrf.mxu0
      %v2113 = vadd.f32 0.0, %v2112
      %2114 = vmatprep.mubr.f32.mxu0 %v1991
      %2115 = vmatmul.mubr.f32.gmra.mxu0 %v1989
      %v2116 = vpop.f32.mrf.mxu0
      %v2117 = vadd.f32 0.0, %v2116
      %v2118 = vpop.f32.mrf.mxu0
      %v2119 = vadd.f32 0.0, %v2118
      %2120 = vmatprep.mubr.f32.mxu0 %v1995
      %2121 = vmatmul.mubr.f32.gmra.mxu0 %v1993
      %v2122 = vpop.f32.mrf.mxu0
      %v2123 = vadd.f32 0.0, %v2122
      %v2124 = vpop.f32.mrf.mxu0
      %v2125 = vadd.f32 0.0, %v2124
      %2126 = vmatprep.mubr.f32.mxu0 %v1999
      %2127 = vmatmul.mubr.f32.gmra.mxu0 %v1997
      %v2128 = vpop.f32.mrf.mxu0
      %v2129 = vadd.f32 0.0, %v2128
      %v2130 = vpop.f32.mrf.mxu0
      %v2131 = vadd.f32 0.0, %v2130
      %2132 = vmatprep.mubr.f32.mxu0 %v2003
      %2133 = vmatmul.mubr.f32.gmra.mxu0 %v2001
      %v2134 = vpop.f32.mrf.mxu0
      %v2135 = vadd.f32 0.0, %v2134
      %v2136 = vpop.f32.mrf.mxu0
      %v2137 = vadd.f32 0.0, %v2136
      %2138 = vmatprep.mubr.f32.mxu0 %v2007
      %2139 = vmatmul.mubr.f32.gmra.mxu0 %v2005
      %v2140 = vpop.f32.mrf.mxu0
      %v2141 = vadd.f32 0.0, %v2140
      %v2142 = vpop.f32.mrf.mxu0
      %v2143 = vadd.f32 0.0, %v2142
      %2144 = vmatprep.mubr.f32.mxu0 %v2011
      %2145 = vmatmul.mubr.f32.gmra.mxu0 %v2009
      %v2146 = vpop.f32.mrf.mxu0
      %v2147 = vadd.f32 0.0, %v2146
      %v2148 = vpop.f32.mrf.mxu0
      %v2149 = vadd.f32 0.0, %v2148
      %2150 = vmatprep.mubr.f32.mxu0 %v2015
      %2151 = vmatmul.mubr.f32.gmra.mxu0 %v2013
      %v2152 = vpop.f32.mrf.mxu0
      %v2153 = vadd.f32 0.0, %v2152
      %v2154 = vpop.f32.mrf.mxu0
      %v2155 = vadd.f32 0.0, %v2154
      %2156 = vmatprep.mubr.f32.mxu0 %v2019
      %2157 = vmatmul.mubr.f32.gmra.mxu0 %v2017
      %v2158 = vpop.f32.mrf.mxu0
      %v2159 = vadd.f32 0.0, %v2158
      %v2160 = vpop.f32.mrf.mxu0
      %v2161 = vadd.f32 0.0, %v2160
      %2162 = vmatprep.mubr.f32.mxu0 %v2023
      %2163 = vmatmul.mubr.f32.gmra.mxu0 %v2021
      %v2164 = vpop.f32.mrf.mxu0
      %v2165 = vadd.f32 0.0, %v2164
      %v2166 = vpop.f32.mrf.mxu0
      %v2167 = vadd.f32 0.0, %v2166
      %2168 = vdwg.mxu0
      %v2169 = vadd.f32 %v1896, %v2111
      %v2170 = vadd.f32 %v1897, %v2113
      %v2171 = vadd.f32 %v1898, %v2117
      %v2172 = vadd.f32 %v1899, %v2119
      %v2173 = vadd.f32 %v1900, %v2123
      %v2174 = vadd.f32 %v1901, %v2125
      %v2175 = vadd.f32 %v1902, %v2129
      %v2176 = vadd.f32 %v1903, %v2131
      %v2177 = vadd.f32 %v1904, %v2135
      %v2178 = vadd.f32 %v1905, %v2137
      %v2179 = vadd.f32 %v1906, %v2141
      %v2180 = vadd.f32 %v1907, %v2143
      %v2181 = vadd.f32 %v1908, %v2147
      %v2182 = vadd.f32 %v1909, %v2149
      %v2183 = vadd.f32 %v1910, %v2153
      %v2184 = vadd.f32 %v1911, %v2155
      %v2185 = vadd.f32 %v1912, %v2159
      %v2186 = vadd.f32 %v1913, %v2161
      %v2187 = vadd.f32 %v1914, %v2165
      %v2188 = vadd.f32 %v1915, %v2167
      %s2189 = scalar_lea.vmem %s1, 4096
      %v2190 = vld [vmem:[%s2189] sm:$0xff]
      %v2191 = vld [vmem:[%s2189 + $0x8] sm:$0xff]
      %v2192 = vld [vmem:[%s2189 + $0x10] sm:$0xff]
      %v2193 = vld [vmem:[%s2189 + $0x18] sm:$0xff]
      %v2194 = vld [vmem:[%s2189 + $0x20] sm:$0xff]
      %v2195 = vld [vmem:[%s2189 + $0x28] sm:$0xff]
      %v2196 = vld [vmem:[%s2189 + $0x30] sm:$0xff]
      %v2197 = vld [vmem:[%s2189 + $0x38] sm:$0xff]
      %v2198 = vld [vmem:[%s2189 + $0x40] sm:$0xff]
      %v2199 = vld [vmem:[%s2189 + $0x48] sm:$0xff]
      %v2200 = vld [vmem:[%s2189 + $0x50] sm:$0xff]
      %v2201 = vld [vmem:[%s2189 + $0x58] sm:$0xff]
      %v2202 = vld [vmem:[%s2189 + $0x60] sm:$0xff]
      %v2203 = vld [vmem:[%s2189 + $0x68] sm:$0xff]
      %v2204 = vld [vmem:[%s2189 + $0x70] sm:$0xff]
      %v2205 = vld [vmem:[%s2189 + $0x78] sm:$0xff]
      %v2206 = vld [vmem:[%s2189 + $0x80] sm:$0xff]
      %v2207 = vld [vmem:[%s2189 + $0x88] sm:$0xff]
      %v2208 = vld [vmem:[%s2189 + $0x90] sm:$0xff]
      %v2209 = vld [vmem:[%s2189 + $0x98] sm:$0xff]
      %v2210 = vld [vmem:[%s2189 + $0xa0] sm:$0xff]
      %v2211 = vld [vmem:[%s2189 + $0xa8] sm:$0xff]
      %v2212 = vld [vmem:[%s2189 + $0xb0] sm:$0xff]
      %v2213 = vld [vmem:[%s2189 + $0xb8] sm:$0xff]
      %v2214 = vld [vmem:[%s2189 + $0xc0] sm:$0xff]
      %v2215 = vld [vmem:[%s2189 + $0xc8] sm:$0xff]
      %v2216 = vld [vmem:[%s2189 + $0xd0] sm:$0xff]
      %v2217 = vld [vmem:[%s2189 + $0xd8] sm:$0xff]
      %v2218 = vld [vmem:[%s2189 + $0xe0] sm:$0xff]
      %v2219 = vld [vmem:[%s2189 + $0xe8] sm:$0xff]
      %v2220 = vld [vmem:[%s2189 + $0xf0] sm:$0xff]
      %v2221 = vld [vmem:[%s2189 + $0xf8] sm:$0xff]
      %v2222 = vld [vmem:[%s2189 + $0x100] sm:$0xff]
      %v2223 = vld [vmem:[%s2189 + $0x108] sm:$0xff]
      %v2224 = vld [vmem:[%s2189 + $0x110] sm:$0xff]
      %v2225 = vld [vmem:[%s2189 + $0x118] sm:$0xff]
      %v2226 = vld [vmem:[%s2189 + $0x120] sm:$0xff]
      %v2227 = vld [vmem:[%s2189 + $0x128] sm:$0xff]
      %v2228 = vld [vmem:[%s2189 + $0x130] sm:$0xff]
      %v2229 = vld [vmem:[%s2189 + $0x138] sm:$0xff]
      %v2230 = vld [vmem:[%s2189 + $0x140] sm:$0xff]
      %v2231 = vld [vmem:[%s2189 + $0x148] sm:$0xff]
      %v2232 = vld [vmem:[%s2189 + $0x150] sm:$0xff]
      %v2233 = vld [vmem:[%s2189 + $0x158] sm:$0xff]
      %v2234 = vld [vmem:[%s2189 + $0x160] sm:$0xff]
      %v2235 = vld [vmem:[%s2189 + $0x168] sm:$0xff]
      %v2236 = vld [vmem:[%s2189 + $0x170] sm:$0xff]
      %v2237 = vld [vmem:[%s2189 + $0x178] sm:$0xff]
      %v2238 = vld [vmem:[%s2189 + $0x180] sm:$0xff]
      %v2239 = vld [vmem:[%s2189 + $0x188] sm:$0xff]
      %v2240 = vld [vmem:[%s2189 + $0x190] sm:$0xff]
      %v2241 = vld [vmem:[%s2189 + $0x198] sm:$0xff]
      %v2242 = vld [vmem:[%s2189 + $0x1a0] sm:$0xff]
      %v2243 = vld [vmem:[%s2189 + $0x1a8] sm:$0xff]
      %v2244 = vld [vmem:[%s2189 + $0x1b0] sm:$0xff]
      %v2245 = vld [vmem:[%s2189 + $0x1b8] sm:$0xff]
      %v2246 = vld [vmem:[%s2189 + $0x1c0] sm:$0xff]
      %v2247 = vld [vmem:[%s2189 + $0x1c8] sm:$0xff]
      %v2248 = vld [vmem:[%s2189 + $0x1d0] sm:$0xff]
      %v2249 = vld [vmem:[%s2189 + $0x1d8] sm:$0xff]
      %v2250 = vld [vmem:[%s2189 + $0x1e0] sm:$0xff]
      %v2251 = vld [vmem:[%s2189 + $0x1e8] sm:$0xff]
      %v2252 = vld [vmem:[%s2189 + $0x1f0] sm:$0xff]
      %v2253 = vld [vmem:[%s2189 + $0x1f8] sm:$0xff]
      %vm2254 = vcmask 1041408
      %v2255 = vrot.slane %v175, 6
      %v2256 = vrot.slane %v177, 6
      %v2257 = vsel %vm2254, %v2255, %v2256
      %v2258 = vrot.slane %v176, 6
      %v2259 = vrot.slane %v178, 6
      %v2260 = vsel %vm2254, %v2258, %v2259
      %v2261 = vrot.slane %v179, 6
      %v2262 = vsel %vm2254, %v2256, %v2261
      %v2263 = vrot.slane %v180, 6
      %v2264 = vsel %vm2254, %v2259, %v2263
      %v2265 = vrot.slane %v181, 6
      %v2266 = vsel %vm2254, %v2261, %v2265
      %v2267 = vrot.slane %v182, 6
      %v2268 = vsel %vm2254, %v2263, %v2267
      %v2269 = vrot.slane %v183, 6
      %v2270 = vsel %vm2254, %v2265, %v2269
      %v2271 = vrot.slane %v184, 6
      %v2272 = vsel %vm2254, %v2267, %v2271
      %v2273 = vrot.slane %v185, 6
      %v2274 = vsel %vm2254, %v2269, %v2273
      %v2275 = vrot.slane %v186, 6
      %v2276 = vsel %vm2254, %v2271, %v2275
      %v2277 = vrot.slane %v187, 6
      %v2278 = vsel %vm2254, %v2273, %v2277
      %v2279 = vrot.slane %v188, 6
      %v2280 = vsel %vm2254, %v2275, %v2279
      %v2281 = vrot.slane %v189, 6
      %v2282 = vsel %vm2254, %v2277, %v2281
      %v2283 = vrot.slane %v190, 6
      %v2284 = vsel %vm2254, %v2279, %v2283
      %v2285 = vrot.slane %v191, 6
      %v2286 = vsel %vm2254, %v2281, %v2285
      %v2287 = vrot.slane %v192, 6
      %v2288 = vsel %vm2254, %v2283, %v2287
      %v2289 = vrot.slane %v193, 6
      %v2290 = vsel %vm2254, %v2285, %v2289
      %v2291 = vrot.slane %v194, 6
      %v2292 = vsel %vm2254, %v2287, %v2291
      %v2293 = vrot.slane %v195, 6
      %v2294 = vsel %vm2254, %v2289, %v2293
      %v2295 = vrot.slane %v196, 6
      %v2296 = vsel %vm2254, %v2291, %v2295
      %2317 = vmatprep.subr.mxu0 %v2221
      %2318 = vmatpush1.msra.mxu0 %v2220
      %2319 = vmatprep.subr.mxu0 %v2219
      %2320 = vmatpush1.msra.mxu0 %v2218
      %2321 = vmatprep.subr.mxu0 %v2217
      %2322 = vmatpush1.msra.mxu0 %v2216
      %2323 = vmatprep.subr.mxu0 %v2215
      %2324 = vmatpush1.msra.mxu0 %v2214
      %2325 = vmatprep.subr.mxu0 %v2213
      %2326 = vmatpush1.msra.mxu0 %v2212
      %2327 = vmatprep.subr.mxu0 %v2211
      %2328 = vmatpush1.msra.mxu0 %v2210
      %2329 = vmatprep.subr.mxu0 %v2209
      %2330 = vmatpush1.msra.mxu0 %v2208
      %2331 = vmatprep.subr.mxu0 %v2207
      %2332 = vmatpush1.msra.mxu0 %v2206
      %2333 = vmatprep.subr.mxu0 %v2205
      %2334 = vmatpush1.msra.mxu0 %v2204
      %2335 = vmatprep.subr.mxu0 %v2203
      %2336 = vmatpush1.msra.mxu0 %v2202
      %2337 = vmatprep.subr.mxu0 %v2201
      %2338 = vmatpush1.msra.mxu0 %v2200
      %2339 = vmatprep.subr.mxu0 %v2199
      %2340 = vmatpush1.msra.mxu0 %v2198
      %2341 = vmatprep.subr.mxu0 %v2197
      %2342 = vmatpush1.msra.mxu0 %v2196
      %2343 = vmatprep.subr.mxu0 %v2195
      %2344 = vmatpush1.msra.mxu0 %v2194
      %2345 = vmatprep.subr.mxu0 %v2193
      %2346 = vmatpush1.msra.mxu0 %v2192
      %2347 = vmatprep.subr.mxu0 %v2191
      %2348 = vmatpush1.msra.mxu0 %v2190
      %2349 = vmatprep.subr.mxu0 %v2253
      %2350 = vmatpush2.msra.mxu0 %v2252
      %2351 = vmatprep.subr.mxu0 %v2251
      %2352 = vmatpush2.msra.mxu0 %v2250
      %2353 = vmatprep.subr.mxu0 %v2249
      %2354 = vmatpush2.msra.mxu0 %v2248
      %2355 = vmatprep.subr.mxu0 %v2247
      %2356 = vmatpush2.msra.mxu0 %v2246
      %2357 = vmatprep.subr.mxu0 %v2245
      %2358 = vmatpush2.msra.mxu0 %v2244
      %2359 = vmatprep.subr.mxu0 %v2243
      %2360 = vmatpush2.msra.mxu0 %v2242
      %2361 = vmatprep.subr.mxu0 %v2241
      %2362 = vmatpush2.msra.mxu0 %v2240
      %2363 = vmatprep.subr.mxu0 %v2239
      %2364 = vmatpush2.msra.mxu0 %v2238
      %2365 = vmatprep.subr.mxu0 %v2237
      %2366 = vmatpush2.msra.mxu0 %v2236
      %2367 = vmatprep.subr.mxu0 %v2235
      %2368 = vmatpush2.msra.mxu0 %v2234
      %2369 = vmatprep.subr.mxu0 %v2233
      %2370 = vmatpush2.msra.mxu0 %v2232
      %2371 = vmatprep.subr.mxu0 %v2231
      %2372 = vmatpush2.msra.mxu0 %v2230
      %2373 = vmatprep.subr.mxu0 %v2229
      %2374 = vmatpush2.msra.mxu0 %v2228
      %2375 = vmatprep.subr.mxu0 %v2227
      %2376 = vmatpush2.msra.mxu0 %v2226
      %2377 = vmatprep.subr.mxu0 %v2225
      %2378 = vmatpush2.msra.mxu0 %v2224
      %2379 = vmatprep.subr.mxu0 %v2223
      %2380 = vmatpush2.msra.mxu0 %v2222
      %2381 = vmatprep.mubr.f32.mxu0 %v2260
      %2382 = vmatmul.mubr.f32.gmra.mxu0 %v2257
      %v2383 = vpop.f32.mrf.mxu0
      %v2384 = vadd.f32 0.0, %v2383
      %v2385 = vpop.f32.mrf.mxu0
      %v2386 = vadd.f32 0.0, %v2385
      %2387 = vmatprep.mubr.f32.mxu0 %v2264
      %2388 = vmatmul.mubr.f32.gmra.mxu0 %v2262
      %v2389 = vpop.f32.mrf.mxu0
      %v2390 = vadd.f32 0.0, %v2389
      %v2391 = vpop.f32.mrf.mxu0
      %v2392 = vadd.f32 0.0, %v2391
      %2393 = vmatprep.mubr.f32.mxu0 %v2268
      %2394 = vmatmul.mubr.f32.gmra.mxu0 %v2266
      %v2395 = vpop.f32.mrf.mxu0
      %v2396 = vadd.f32 0.0, %v2395
      %v2397 = vpop.f32.mrf.mxu0
      %v2398 = vadd.f32 0.0, %v2397
      %2399 = vmatprep.mubr.f32.mxu0 %v2272
      %2400 = vmatmul.mubr.f32.gmra.mxu0 %v2270
      %v2401 = vpop.f32.mrf.mxu0
      %v2402 = vadd.f32 0.0, %v2401
      %v2403 = vpop.f32.mrf.mxu0
      %v2404 = vadd.f32 0.0, %v2403
      %2405 = vmatprep.mubr.f32.mxu0 %v2276
      %2406 = vmatmul.mubr.f32.gmra.mxu0 %v2274
      %v2407 = vpop.f32.mrf.mxu0
      %v2408 = vadd.f32 0.0, %v2407
      %v2409 = vpop.f32.mrf.mxu0
      %v2410 = vadd.f32 0.0, %v2409
      %2411 = vmatprep.mubr.f32.mxu0 %v2280
      %2412 = vmatmul.mubr.f32.gmra.mxu0 %v2278
      %v2413 = vpop.f32.mrf.mxu0
      %v2414 = vadd.f32 0.0, %v2413
      %v2415 = vpop.f32.mrf.mxu0
      %v2416 = vadd.f32 0.0, %v2415
      %2417 = vmatprep.mubr.f32.mxu0 %v2284
      %2418 = vmatmul.mubr.f32.gmra.mxu0 %v2282
      %v2419 = vpop.f32.mrf.mxu0
      %v2420 = vadd.f32 0.0, %v2419
      %v2421 = vpop.f32.mrf.mxu0
      %v2422 = vadd.f32 0.0, %v2421
      %2423 = vmatprep.mubr.f32.mxu0 %v2288
      %2424 = vmatmul.mubr.f32.gmra.mxu0 %v2286
      %v2425 = vpop.f32.mrf.mxu0
      %v2426 = vadd.f32 0.0, %v2425
      %v2427 = vpop.f32.mrf.mxu0
      %v2428 = vadd.f32 0.0, %v2427
      %2429 = vmatprep.mubr.f32.mxu0 %v2292
      %2430 = vmatmul.mubr.f32.gmra.mxu0 %v2290
      %v2431 = vpop.f32.mrf.mxu0
      %v2432 = vadd.f32 0.0, %v2431
      %v2433 = vpop.f32.mrf.mxu0
      %v2434 = vadd.f32 0.0, %v2433
      %2435 = vmatprep.mubr.f32.mxu0 %v2296
      %2436 = vmatmul.mubr.f32.gmra.mxu0 %v2294
      %v2437 = vpop.f32.mrf.mxu0
      %v2438 = vadd.f32 0.0, %v2437
      %v2439 = vpop.f32.mrf.mxu0
      %v2440 = vadd.f32 0.0, %v2439
      %2441 = vdwg.mxu0
      %v2442 = vadd.f32 %v2169, %v2384
      %v2443 = vadd.f32 %v2170, %v2386
      %v2444 = vadd.f32 %v2171, %v2390
      %v2445 = vadd.f32 %v2172, %v2392
      %v2446 = vadd.f32 %v2173, %v2396
      %v2447 = vadd.f32 %v2174, %v2398
      %v2448 = vadd.f32 %v2175, %v2402
      %v2449 = vadd.f32 %v2176, %v2404
      %v2450 = vadd.f32 %v2177, %v2408
      %v2451 = vadd.f32 %v2178, %v2410
      %v2452 = vadd.f32 %v2179, %v2414
      %v2453 = vadd.f32 %v2180, %v2416
      %v2454 = vadd.f32 %v2181, %v2420
      %v2455 = vadd.f32 %v2182, %v2422
      %v2456 = vadd.f32 %v2183, %v2426
      %v2457 = vadd.f32 %v2184, %v2428
      %v2458 = vadd.f32 %v2185, %v2432
      %v2459 = vadd.f32 %v2186, %v2434
      %v2460 = vadd.f32 %v2187, %v2438
      %v2461 = vadd.f32 %v2188, %v2440
      %v2462 = vld [vmem:[%s2] sm:$0x3]
      %v2464 = vlaneseq
      %v2465 = vshrl.u32 %v2464, 7
      %v2466 = vsub.s32 0, %v2465
      %v2467 = vrot.slane %v2462, %v2466
      %v2468 = vlaneseq
      %v2469 = vshrl.u32 %v2468, 7
      %v2470 = vsub.s32 1, %v2469
      %v2471 = vrot.slane %v2462, %v2470
      %v2474 = vadd.f32 %v2442, %v2467
      %v2475 = vadd.f32 %v2443, %v2471
      %v2476 = vadd.f32 %v2444, %v2467
      %v2477 = vadd.f32 %v2445, %v2471
      %v2478 = vadd.f32 %v2446, %v2467
      %v2479 = vadd.f32 %v2447, %v2471
      %v2480 = vadd.f32 %v2448, %v2467
      %v2481 = vadd.f32 %v2449, %v2471
      %v2482 = vadd.f32 %v2450, %v2467
      %v2483 = vadd.f32 %v2451, %v2471
      %v2484 = vadd.f32 %v2452, %v2467
      %v2485 = vadd.f32 %v2453, %v2471
      %v2486 = vadd.f32 %v2454, %v2467
      %v2487 = vadd.f32 %v2455, %v2471
      %v2488 = vadd.f32 %v2456, %v2467
      %v2489 = vadd.f32 %v2457, %v2471
      %v2490 = vadd.f32 %v2458, %v2467
      %v2491 = vadd.f32 %v2459, %v2471
      %v2492 = vadd.f32 %v2460, %v2467
      %v2493 = vadd.f32 %v2461, %v2471
      %v2494 = vmax.f32 %v2474, 0.0
      %v2495 = vmax.f32 %v2475, 0.0
      %v2496 = vmax.f32 %v2476, 0.0
      %v2497 = vmax.f32 %v2477, 0.0
      %v2498 = vmax.f32 %v2478, 0.0
      %v2499 = vmax.f32 %v2479, 0.0
      %v2500 = vmax.f32 %v2480, 0.0
      %v2501 = vmax.f32 %v2481, 0.0
      %v2502 = vmax.f32 %v2482, 0.0
      %v2503 = vmax.f32 %v2483, 0.0
      %v2504 = vmax.f32 %v2484, 0.0
      %v2505 = vmax.f32 %v2485, 0.0
      %v2506 = vmax.f32 %v2486, 0.0
      %v2507 = vmax.f32 %v2487, 0.0
      %v2508 = vmax.f32 %v2488, 0.0
      %v2509 = vmax.f32 %v2489, 0.0
      %v2510 = vmax.f32 %v2490, 0.0
      %v2511 = vmax.f32 %v2491, 0.0
      %v2512 = vmax.f32 %v2492, 0.0
      %v2513 = vmax.f32 %v2493, 0.0
      %2514 = vst [vmem:[%s170] sm:$0xff] %v2494
      %2515 = vst [vmem:[%s170 + $0x8] sm:$0xff] %v2495
      %2516 = vst [vmem:[%s170 + $0x10] sm:$0xff] %v2496
      %2517 = vst [vmem:[%s170 + $0x18] sm:$0xff] %v2497
      %2518 = vst [vmem:[%s170 + $0x20] sm:$0xff] %v2498
      %2519 = vst [vmem:[%s170 + $0x28] sm:$0xff] %v2499
      %2520 = vst [vmem:[%s170 + $0x30] sm:$0xff] %v2500
      %2521 = vst [vmem:[%s170 + $0x38] sm:$0xff] %v2501
      %2522 = vst [vmem:[%s170 + $0x40] sm:$0xff] %v2502
      %2523 = vst [vmem:[%s170 + $0x48] sm:$0xff] %v2503
      %2524 = vst [vmem:[%s170 + $0x50] sm:$0xff] %v2504
      %2525 = vst [vmem:[%s170 + $0x58] sm:$0xff] %v2505
      %2526 = vst [vmem:[%s170 + $0x60] sm:$0xff] %v2506
      %2527 = vst [vmem:[%s170 + $0x68] sm:$0xff] %v2507
      %2528 = vst [vmem:[%s170 + $0x70] sm:$0xff] %v2508
      %2529 = vst [vmem:[%s170 + $0x78] sm:$0xff] %v2509
      %2530 = vst [vmem:[%s170 + $0x80] sm:$0xff] %v2510
      %2531 = vst [vmem:[%s170 + $0x88] sm:$0xff] %v2511
      %2532 = vst [vmem:[%s170 + $0x90] sm:$0xff] %v2512
      %2533 = vst [vmem:[%s170 + $0x98] sm:$0xff] %v2513
      %p2534 = scmp.lt.s32.totalorder %s14, 1
      %s2535 = scalar_select %p2534, %s14, 1
      %s2536 = smul.addr %s2535, 20
      %s2537 = smul.addr %s2536, 8
      %s2538 = scalar_lea.vmem %s3, %s2537
      // Predicated region
      $region33: #{res50_layer4_forward.21} parent=31 // pred_check
        %p2539 = pneg %p100
      $region34: #{res50_layer4_forward.21} parent=31 // pred_check_branch
        %2541 = sbr.rel (%p2539) target = $region36
      $region35: #{res50_layer4_forward.21} parent=31 // pred_region
        _
      $region36: #{res50_layer4_forward.21} parent=31 // pred_fallthru
        _
    $region32: #{res50_layer4_forward.21} parent=5 // pred_fallthru
      _
    %p2542 = scmp.le.s32.totalorder 2, %s9
    // Predicated region
    $region37: #{res50_layer4_forward.21} parent=5 // pred_check
      %p2543 = pneg %p2542
    $region38: #{res50_layer4_forward.21} parent=5 // pred_check_branch
      %2545 = sbr.rel (%p2543) target = $region40
    $region39: #{res50_layer4_forward.21} parent=5 // pred_region
      %s2546 = ssub.s32 %s9, 2
      // Predicated region
      $region41: #{res50_layer4_forward.21} parent=39 // pred_check
        %p2547 = pneg %p106
      $region42: #{res50_layer4_forward.21} parent=39 // pred_check_branch
        %2549 = sbr.rel (%p2547) target = $region44
      $region43: #{res50_layer4_forward.21} parent=39 // pred_region
        %p2550 = scmp.lt.s32.totalorder %s15, 1
        %s2551 = scalar_select %p2550, %s15, 1
        %s2552 = smul.addr %s2551, 20
        %s2553 = smul.addr %s2552, 8
        %s2554 = scalar_lea.vmem %s3, %s2553
      $region44: #{res50_layer4_forward.21} parent=39 // pred_fallthru
        _
    $region40: #{res50_layer4_forward.21} parent=5 // pred_fallthru
      _
  $region6: #{res50_layer4_forward.21} parent=0 // loop_footer
    %s13 = sadd.s32 1, %s9
  $region7: #{res50_layer4_forward.21} parent=0 // loop_footer_branch
    %8 = sbr.rel target = $region3
  $region8: #{res50_layer4_forward.21} parent=0 // loop_exit
    _

// kernel: res50_layer4_forward.19
$region0: #{res50_layer4_forward.19}
  #allocation0 [shape = 'u32[]', space=smem, size = 0x4, offset = 0x4, fixed_abs, tag = 'smem constant byte address 0x4 - core index']
  #allocation1 [shape = 'u32[144,128]{1,0:T(1,128)}', space=vmem, size = 0x12000, scoped, tag = 'internal scratch']
  %s0 = inlined_call_operand.vmem [shape: f32[128,512], index: 0, kind: input, shape index: {}]
  %s1 = inlined_call_operand.vmem [shape: f32[512,1024], index: 1, kind: input, shape index: {}]
  %s2 = inlined_call_operand.vmem [shape: f32[1,1024], index: 2, kind: input, shape index: {}]
  %s3 = inlined_call_operand.vmem [shape: f32[128,1024], index: 3, kind: output, shape index: {}]
  %s4 = sld [smem:[#allocation0]]
  $region22: #{res50_layer4_forward.19} parent=0
    _
  %s6 = ssub.s32 1, %s4
  %s7 = scalar_select 0, %s6, %s4
  // Predicated region
  $region2: #{res50_layer4_forward.19} parent=0 // pred_check
    _
  $region3: #{res50_layer4_forward.19} parent=0 // pred_check_branch
    %9 = sbr.rel (0) target = $region5
  $region4: #{res50_layer4_forward.19} parent=0 // pred_region
    _
  $region5: #{res50_layer4_forward.19} parent=0 // pred_fallthru
    _
  // Predicated region
  $region6: #{res50_layer4_forward.19} parent=0 // pred_check
    _
  $region7: #{res50_layer4_forward.19} parent=0 // pred_check_branch
    %11 = sbr.rel (0) target = $region9
  $region8: #{res50_layer4_forward.19} parent=0 // pred_region
    _
  $region9: #{res50_layer4_forward.19} parent=0 // pred_fallthru
    _
  // Predicated region
  $region10: #{res50_layer4_forward.19} parent=0 // pred_check
    _
  $region11: #{res50_layer4_forward.19} parent=0 // pred_check_branch
    %13 = sbr.rel (0) target = $region13
  $region12: #{res50_layer4_forward.19} parent=0 // pred_region
    _
  $region13: #{res50_layer4_forward.19} parent=0 // pred_fallthru
    _
  %v14 = vld [vmem:[%s0] sm:$0xff]
  %v15 = vld [vmem:[%s0 + $0x8] sm:$0xff]
  %v16 = vld [vmem:[%s0 + $0x10] sm:$0xff]
  %v17 = vld [vmem:[%s0 + $0x18] sm:$0xff]
  %v18 = vld [vmem:[%s0 + $0x20] sm:$0xff]
  %v19 = vld [vmem:[%s0 + $0x28] sm:$0xff]
  %v20 = vld [vmem:[%s0 + $0x30] sm:$0xff]
  %v21 = vld [vmem:[%s0 + $0x38] sm:$0xff]
  %v22 = vld [vmem:[%s0 + $0x40] sm:$0xff]
  %v23 = vld [vmem:[%s0 + $0x48] sm:$0xff]
  %v24 = vld [vmem:[%s0 + $0x50] sm:$0xff]
  %v25 = vld [vmem:[%s0 + $0x58] sm:$0xff]
  %v26 = vld [vmem:[%s0 + $0x60] sm:$0xff]
  %v27 = vld [vmem:[%s0 + $0x68] sm:$0xff]
  %v28 = vld [vmem:[%s0 + $0x70] sm:$0xff]
  %v29 = vld [vmem:[%s0 + $0x78] sm:$0xff]
  %v30 = vld [vmem:[%s0 + $0x80] sm:$0xff]
  %v31 = vld [vmem:[%s0 + $0x88] sm:$0xff]
  %v32 = vld [vmem:[%s0 + $0x90] sm:$0xff]
  %v33 = vld [vmem:[%s0 + $0x98] sm:$0xff]
  %v34 = vld [vmem:[%s0 + $0xa0] sm:$0xff]
  %v35 = vld [vmem:[%s0 + $0xa8] sm:$0xff]
  %v36 = vld [vmem:[%s0 + $0xb0] sm:$0xff]
  %v37 = vld [vmem:[%s0 + $0xb8] sm:$0xff]
  %v38 = vld [vmem:[%s0 + $0xc0] sm:$0xff]
  %v39 = vld [vmem:[%s0 + $0xc8] sm:$0xff]
  %v40 = vld [vmem:[%s0 + $0xd0] sm:$0xff]
  %v41 = vld [vmem:[%s0 + $0xd8] sm:$0xff]
  %v42 = vld [vmem:[%s0 + $0xe0] sm:$0xff]
  %v43 = vld [vmem:[%s0 + $0xe8] sm:$0xff]
  %v44 = vld [vmem:[%s0 + $0xf0] sm:$0xff]
  %v45 = vld [vmem:[%s0 + $0xf8] sm:$0xff]
  %v46 = vld [vmem:[%s0 + $0x100] sm:$0xff]
  %v47 = vld [vmem:[%s0 + $0x108] sm:$0xff]
  %v48 = vld [vmem:[%s0 + $0x110] sm:$0xff]
  %v49 = vld [vmem:[%s0 + $0x118] sm:$0xff]
  %v50 = vld [vmem:[%s0 + $0x120] sm:$0xff]
  %v51 = vld [vmem:[%s0 + $0x128] sm:$0xff]
  %v52 = vld [vmem:[%s0 + $0x130] sm:$0xff]
  %v53 = vld [vmem:[%s0 + $0x138] sm:$0xff]
  %v54 = vld [vmem:[%s0 + $0x140] sm:$0xff]
  %v55 = vld [vmem:[%s0 + $0x148] sm:$0xff]
  %v56 = vld [vmem:[%s0 + $0x150] sm:$0xff]
  %v57 = vld [vmem:[%s0 + $0x158] sm:$0xff]
  %v58 = vld [vmem:[%s0 + $0x160] sm:$0xff]
  %v59 = vld [vmem:[%s0 + $0x168] sm:$0xff]
  %v60 = vld [vmem:[%s0 + $0x170] sm:$0xff]
  %v61 = vld [vmem:[%s0 + $0x178] sm:$0xff]
  %v62 = vld [vmem:[%s0 + $0x180] sm:$0xff]
  %v63 = vld [vmem:[%s0 + $0x188] sm:$0xff]
  %v64 = vld [vmem:[%s0 + $0x190] sm:$0xff]
  %v65 = vld [vmem:[%s0 + $0x198] sm:$0xff]
  %v66 = vld [vmem:[%s0 + $0x1a0] sm:$0xff]
  %v67 = vld [vmem:[%s0 + $0x1a8] sm:$0xff]
  %v68 = vld [vmem:[%s0 + $0x1b0] sm:$0xff]
  %v69 = vld [vmem:[%s0 + $0x1b8] sm:$0xff]
  %v70 = vld [vmem:[%s0 + $0x1c0] sm:$0xff]
  %v71 = vld [vmem:[%s0 + $0x1c8] sm:$0xff]
  %v72 = vld [vmem:[%s0 + $0x1d0] sm:$0xff]
  %v73 = vld [vmem:[%s0 + $0x1d8] sm:$0xff]
  %v74 = vld [vmem:[%s0 + $0x1e0] sm:$0xff]
  %v75 = vld [vmem:[%s0 + $0x1e8] sm:$0xff]
  %v76 = vld [vmem:[%s0 + $0x1f0] sm:$0xff]
  %v77 = vld [vmem:[%s0 + $0x1f8] sm:$0xff]
  %v78 = vld [vmem:[%s1] sm:$0xff]
  %v79 = vld [vmem:[%s1 + $0x8] sm:$0xff]
  %v80 = vld [vmem:[%s1 + $0x10] sm:$0xff]
  %v81 = vld [vmem:[%s1 + $0x18] sm:$0xff]
  %v82 = vld [vmem:[%s1 + $0x20] sm:$0xff]
  %v83 = vld [vmem:[%s1 + $0x28] sm:$0xff]
  %v84 = vld [vmem:[%s1 + $0x30] sm:$0xff]
  %v85 = vld [vmem:[%s1 + $0x38] sm:$0xff]
  %v86 = vld [vmem:[%s1 + $0x40] sm:$0xff]
  %v87 = vld [vmem:[%s1 + $0x48] sm:$0xff]
  %v88 = vld [vmem:[%s1 + $0x50] sm:$0xff]
  %v89 = vld [vmem:[%s1 + $0x58] sm:$0xff]
  %v90 = vld [vmem:[%s1 + $0x60] sm:$0xff]
  %v91 = vld [vmem:[%s1 + $0x68] sm:$0xff]
  %v92 = vld [vmem:[%s1 + $0x70] sm:$0xff]
  %v93 = vld [vmem:[%s1 + $0x78] sm:$0xff]
  %v94 = vld [vmem:[%s1 + $0x80] sm:$0xff]
  %v95 = vld [vmem:[%s1 + $0x88] sm:$0xff]
  %v96 = vld [vmem:[%s1 + $0x90] sm:$0xff]
  %v97 = vld [vmem:[%s1 + $0x98] sm:$0xff]
  %v98 = vld [vmem:[%s1 + $0xa0] sm:$0xff]
  %v99 = vld [vmem:[%s1 + $0xa8] sm:$0xff]
  %v100 = vld [vmem:[%s1 + $0xb0] sm:$0xff]
  %v101 = vld [vmem:[%s1 + $0xb8] sm:$0xff]
  %v102 = vld [vmem:[%s1 + $0xc0] sm:$0xff]
  %v103 = vld [vmem:[%s1 + $0xc8] sm:$0xff]
  %v104 = vld [vmem:[%s1 + $0xd0] sm:$0xff]
  %v105 = vld [vmem:[%s1 + $0xd8] sm:$0xff]
  %v106 = vld [vmem:[%s1 + $0xe0] sm:$0xff]
  %v107 = vld [vmem:[%s1 + $0xe8] sm:$0xff]
  %v108 = vld [vmem:[%s1 + $0xf0] sm:$0xff]
  %v109 = vld [vmem:[%s1 + $0xf8] sm:$0xff]
  %v110 = vld [vmem:[%s1 + $0x100] sm:$0xff]
  %v111 = vld [vmem:[%s1 + $0x108] sm:$0xff]
  %v112 = vld [vmem:[%s1 + $0x110] sm:$0xff]
  %v113 = vld [vmem:[%s1 + $0x118] sm:$0xff]
  %v114 = vld [vmem:[%s1 + $0x120] sm:$0xff]
  %v115 = vld [vmem:[%s1 + $0x128] sm:$0xff]
  %v116 = vld [vmem:[%s1 + $0x130] sm:$0xff]
  %v117 = vld [vmem:[%s1 + $0x138] sm:$0xff]
  %v118 = vld [vmem:[%s1 + $0x140] sm:$0xff]
  %v119 = vld [vmem:[%s1 + $0x148] sm:$0xff]
  %v120 = vld [vmem:[%s1 + $0x150] sm:$0xff]
  %v121 = vld [vmem:[%s1 + $0x158] sm:$0xff]
  %v122 = vld [vmem:[%s1 + $0x160] sm:$0xff]
  %v123 = vld [vmem:[%s1 + $0x168] sm:$0xff]
  %v124 = vld [vmem:[%s1 + $0x170] sm:$0xff]
  %v125 = vld [vmem:[%s1 + $0x178] sm:$0xff]
  %v126 = vld [vmem:[%s1 + $0x180] sm:$0xff]
  %v127 = vld [vmem:[%s1 + $0x188] sm:$0xff]
  %v128 = vld [vmem:[%s1 + $0x190] sm:$0xff]
  %v129 = vld [vmem:[%s1 + $0x198] sm:$0xff]
  %v130 = vld [vmem:[%s1 + $0x1a0] sm:$0xff]
  %v131 = vld [vmem:[%s1 + $0x1a8] sm:$0xff]
  %v132 = vld [vmem:[%s1 + $0x1b0] sm:$0xff]
  %v133 = vld [vmem:[%s1 + $0x1b8] sm:$0xff]
  %v134 = vld [vmem:[%s1 + $0x1c0] sm:$0xff]
  %v135 = vld [vmem:[%s1 + $0x1c8] sm:$0xff]
  %v136 = vld [vmem:[%s1 + $0x1d0] sm:$0xff]
  %v137 = vld [vmem:[%s1 + $0x1d8] sm:$0xff]
  %v138 = vld [vmem:[%s1 + $0x1e0] sm:$0xff]
  %v139 = vld [vmem:[%s1 + $0x1e8] sm:$0xff]
  %v140 = vld [vmem:[%s1 + $0x1f0] sm:$0xff]
  %v141 = vld [vmem:[%s1 + $0x1f8] sm:$0xff]
  %v142 = vld [vmem:[%s1 + $0x200] sm:$0xff]
  %v143 = vld [vmem:[%s1 + $0x208] sm:$0xff]
  %v144 = vld [vmem:[%s1 + $0x210] sm:$0xff]
  %v145 = vld [vmem:[%s1 + $0x218] sm:$0xff]
  %v146 = vld [vmem:[%s1 + $0x220] sm:$0xff]
  %v147 = vld [vmem:[%s1 + $0x228] sm:$0xff]
  %v148 = vld [vmem:[%s1 + $0x230] sm:$0xff]
  %v149 = vld [vmem:[%s1 + $0x238] sm:$0xff]
  %v150 = vld [vmem:[%s1 + $0x240] sm:$0xff]
  %v151 = vld [vmem:[%s1 + $0x248] sm:$0xff]
  %v152 = vld [vmem:[%s1 + $0x250] sm:$0xff]
  %v153 = vld [vmem:[%s1 + $0x258] sm:$0xff]
  %v154 = vld [vmem:[%s1 + $0x260] sm:$0xff]
  %v155 = vld [vmem:[%s1 + $0x268] sm:$0xff]
  %v156 = vld [vmem:[%s1 + $0x270] sm:$0xff]
  %v157 = vld [vmem:[%s1 + $0x278] sm:$0xff]
  %v158 = vld [vmem:[%s1 + $0x280] sm:$0xff]
  %v159 = vld [vmem:[%s1 + $0x288] sm:$0xff]
  %v160 = vld [vmem:[%s1 + $0x290] sm:$0xff]
  %v161 = vld [vmem:[%s1 + $0x298] sm:$0xff]
  %v162 = vld [vmem:[%s1 + $0x2a0] sm:$0xff]
  %v163 = vld [vmem:[%s1 + $0x2a8] sm:$0xff]
  %v164 = vld [vmem:[%s1 + $0x2b0] sm:$0xff]
  %v165 = vld [vmem:[%s1 + $0x2b8] sm:$0xff]
  %v166 = vld [vmem:[%s1 + $0x2c0] sm:$0xff]
  %v167 = vld [vmem:[%s1 + $0x2c8] sm:$0xff]
  %v168 = vld [vmem:[%s1 + $0x2d0] sm:$0xff]
  %v169 = vld [vmem:[%s1 + $0x2d8] sm:$0xff]
  %v170 = vld [vmem:[%s1 + $0x2e0] sm:$0xff]
  %v171 = vld [vmem:[%s1 + $0x2e8] sm:$0xff]
  %v172 = vld [vmem:[%s1 + $0x2f0] sm:$0xff]
  %v173 = vld [vmem:[%s1 + $0x2f8] sm:$0xff]
  %v174 = vld [vmem:[%s1 + $0x300] sm:$0xff]
  %v175 = vld [vmem:[%s1 + $0x308] sm:$0xff]
  %v176 = vld [vmem:[%s1 + $0x310] sm:$0xff]
  %v177 = vld [vmem:[%s1 + $0x318] sm:$0xff]
  %v178 = vld [vmem:[%s1 + $0x320] sm:$0xff]
  %v179 = vld [vmem:[%s1 + $0x328] sm:$0xff]
  %v180 = vld [vmem:[%s1 + $0x330] sm:$0xff]
  %v181 = vld [vmem:[%s1 + $0x338] sm:$0xff]
  %v182 = vld [vmem:[%s1 + $0x340] sm:$0xff]
  %v183 = vld [vmem:[%s1 + $0x348] sm:$0xff]
  %v184 = vld [vmem:[%s1 + $0x350] sm:$0xff]
  %v185 = vld [vmem:[%s1 + $0x358] sm:$0xff]
  %v186 = vld [vmem:[%s1 + $0x360] sm:$0xff]
  %v187 = vld [vmem:[%s1 + $0x368] sm:$0xff]
  %v188 = vld [vmem:[%s1 + $0x370] sm:$0xff]
  %v189 = vld [vmem:[%s1 + $0x378] sm:$0xff]
  %v190 = vld [vmem:[%s1 + $0x380] sm:$0xff]
  %v191 = vld [vmem:[%s1 + $0x388] sm:$0xff]
  %v192 = vld [vmem:[%s1 + $0x390] sm:$0xff]
  %v193 = vld [vmem:[%s1 + $0x398] sm:$0xff]
  %v194 = vld [vmem:[%s1 + $0x3a0] sm:$0xff]
  %v195 = vld [vmem:[%s1 + $0x3a8] sm:$0xff]
  %v196 = vld [vmem:[%s1 + $0x3b0] sm:$0xff]
  %v197 = vld [vmem:[%s1 + $0x3b8] sm:$0xff]
  %v198 = vld [vmem:[%s1 + $0x3c0] sm:$0xff]
  %v199 = vld [vmem:[%s1 + $0x3c8] sm:$0xff]
  %v200 = vld [vmem:[%s1 + $0x3d0] sm:$0xff]
  %v201 = vld [vmem:[%s1 + $0x3d8] sm:$0xff]
  %v202 = vld [vmem:[%s1 + $0x3e0] sm:$0xff]
  %v203 = vld [vmem:[%s1 + $0x3e8] sm:$0xff]
  %v204 = vld [vmem:[%s1 + $0x3f0] sm:$0xff]
  %v205 = vld [vmem:[%s1 + $0x3f8] sm:$0xff]
  %v206 = vld [vmem:[%s1 + $0x400] sm:$0xff]
  %v207 = vld [vmem:[%s1 + $0x408] sm:$0xff]
  %v208 = vld [vmem:[%s1 + $0x410] sm:$0xff]
  %v209 = vld [vmem:[%s1 + $0x418] sm:$0xff]
  %v210 = vld [vmem:[%s1 + $0x420] sm:$0xff]
  %v211 = vld [vmem:[%s1 + $0x428] sm:$0xff]
  %v212 = vld [vmem:[%s1 + $0x430] sm:$0xff]
  %v213 = vld [vmem:[%s1 + $0x438] sm:$0xff]
  %v214 = vld [vmem:[%s1 + $0x440] sm:$0xff]
  %v215 = vld [vmem:[%s1 + $0x448] sm:$0xff]
  %v216 = vld [vmem:[%s1 + $0x450] sm:$0xff]
  %v217 = vld [vmem:[%s1 + $0x458] sm:$0xff]
  %v218 = vld [vmem:[%s1 + $0x460] sm:$0xff]
  %v219 = vld [vmem:[%s1 + $0x468] sm:$0xff]
  %v220 = vld [vmem:[%s1 + $0x470] sm:$0xff]
  %v221 = vld [vmem:[%s1 + $0x478] sm:$0xff]
  %v222 = vld [vmem:[%s1 + $0x480] sm:$0xff]
  %v223 = vld [vmem:[%s1 + $0x488] sm:$0xff]
  %v224 = vld [vmem:[%s1 + $0x490] sm:$0xff]
  %v225 = vld [vmem:[%s1 + $0x498] sm:$0xff]
  %v226 = vld [vmem:[%s1 + $0x4a0] sm:$0xff]
  %v227 = vld [vmem:[%s1 + $0x4a8] sm:$0xff]
  %v228 = vld [vmem:[%s1 + $0x4b0] sm:$0xff]
  %v229 = vld [vmem:[%s1 + $0x4b8] sm:$0xff]
  %v230 = vld [vmem:[%s1 + $0x4c0] sm:$0xff]
  %v231 = vld [vmem:[%s1 + $0x4c8] sm:$0xff]
  %v232 = vld [vmem:[%s1 + $0x4d0] sm:$0xff]
  %v233 = vld [vmem:[%s1 + $0x4d8] sm:$0xff]
  %v234 = vld [vmem:[%s1 + $0x4e0] sm:$0xff]
  %v235 = vld [vmem:[%s1 + $0x4e8] sm:$0xff]
  %v236 = vld [vmem:[%s1 + $0x4f0] sm:$0xff]
  %v237 = vld [vmem:[%s1 + $0x4f8] sm:$0xff]
  %v238 = vld [vmem:[%s1 + $0x500] sm:$0xff]
  %v239 = vld [vmem:[%s1 + $0x508] sm:$0xff]
  %v240 = vld [vmem:[%s1 + $0x510] sm:$0xff]
  %v241 = vld [vmem:[%s1 + $0x518] sm:$0xff]
  %v242 = vld [vmem:[%s1 + $0x520] sm:$0xff]
  %v243 = vld [vmem:[%s1 + $0x528] sm:$0xff]
  %v244 = vld [vmem:[%s1 + $0x530] sm:$0xff]
  %v245 = vld [vmem:[%s1 + $0x538] sm:$0xff]
  %v246 = vld [vmem:[%s1 + $0x540] sm:$0xff]
  %v247 = vld [vmem:[%s1 + $0x548] sm:$0xff]
  %v248 = vld [vmem:[%s1 + $0x550] sm:$0xff]
  %v249 = vld [vmem:[%s1 + $0x558] sm:$0xff]
  %v250 = vld [vmem:[%s1 + $0x560] sm:$0xff]
  %v251 = vld [vmem:[%s1 + $0x568] sm:$0xff]
  %v252 = vld [vmem:[%s1 + $0x570] sm:$0xff]
  %v253 = vld [vmem:[%s1 + $0x578] sm:$0xff]
  %v254 = vld [vmem:[%s1 + $0x580] sm:$0xff]
  %v255 = vld [vmem:[%s1 + $0x588] sm:$0xff]
  %v256 = vld [vmem:[%s1 + $0x590] sm:$0xff]
  %v257 = vld [vmem:[%s1 + $0x598] sm:$0xff]
  %v258 = vld [vmem:[%s1 + $0x5a0] sm:$0xff]
  %v259 = vld [vmem:[%s1 + $0x5a8] sm:$0xff]
  %v260 = vld [vmem:[%s1 + $0x5b0] sm:$0xff]
  %v261 = vld [vmem:[%s1 + $0x5b8] sm:$0xff]
  %v262 = vld [vmem:[%s1 + $0x5c0] sm:$0xff]
  %v263 = vld [vmem:[%s1 + $0x5c8] sm:$0xff]
  %v264 = vld [vmem:[%s1 + $0x5d0] sm:$0xff]
  %v265 = vld [vmem:[%s1 + $0x5d8] sm:$0xff]
  %v266 = vld [vmem:[%s1 + $0x5e0] sm:$0xff]
  %v267 = vld [vmem:[%s1 + $0x5e8] sm:$0xff]
  %v268 = vld [vmem:[%s1 + $0x5f0] sm:$0xff]
  %v269 = vld [vmem:[%s1 + $0x5f8] sm:$0xff]
  %v270 = vld [vmem:[%s1 + $0x600] sm:$0xff]
  %v271 = vld [vmem:[%s1 + $0x608] sm:$0xff]
  %v272 = vld [vmem:[%s1 + $0x610] sm:$0xff]
  %v273 = vld [vmem:[%s1 + $0x618] sm:$0xff]
  %v274 = vld [vmem:[%s1 + $0x620] sm:$0xff]
  %v275 = vld [vmem:[%s1 + $0x628] sm:$0xff]
  %v276 = vld [vmem:[%s1 + $0x630] sm:$0xff]
  %v277 = vld [vmem:[%s1 + $0x638] sm:$0xff]
  %v278 = vld [vmem:[%s1 + $0x640] sm:$0xff]
  %v279 = vld [vmem:[%s1 + $0x648] sm:$0xff]
  %v280 = vld [vmem:[%s1 + $0x650] sm:$0xff]
  %v281 = vld [vmem:[%s1 + $0x658] sm:$0xff]
  %v282 = vld [vmem:[%s1 + $0x660] sm:$0xff]
  %v283 = vld [vmem:[%s1 + $0x668] sm:$0xff]
  %v284 = vld [vmem:[%s1 + $0x670] sm:$0xff]
  %v285 = vld [vmem:[%s1 + $0x678] sm:$0xff]
  %v286 = vld [vmem:[%s1 + $0x680] sm:$0xff]
  %v287 = vld [vmem:[%s1 + $0x688] sm:$0xff]
  %v288 = vld [vmem:[%s1 + $0x690] sm:$0xff]
  %v289 = vld [vmem:[%s1 + $0x698] sm:$0xff]
  %v290 = vld [vmem:[%s1 + $0x6a0] sm:$0xff]
  %v291 = vld [vmem:[%s1 + $0x6a8] sm:$0xff]
  %v292 = vld [vmem:[%s1 + $0x6b0] sm:$0xff]
  %v293 = vld [vmem:[%s1 + $0x6b8] sm:$0xff]
  %v294 = vld [vmem:[%s1 + $0x6c0] sm:$0xff]
  %v295 = vld [vmem:[%s1 + $0x6c8] sm:$0xff]
  %v296 = vld [vmem:[%s1 + $0x6d0] sm:$0xff]
  %v297 = vld [vmem:[%s1 + $0x6d8] sm:$0xff]
  %v298 = vld [vmem:[%s1 + $0x6e0] sm:$0xff]
  %v299 = vld [vmem:[%s1 + $0x6e8] sm:$0xff]
  %v300 = vld [vmem:[%s1 + $0x6f0] sm:$0xff]
  %v301 = vld [vmem:[%s1 + $0x6f8] sm:$0xff]
  %v302 = vld [vmem:[%s1 + $0x700] sm:$0xff]
  %v303 = vld [vmem:[%s1 + $0x708] sm:$0xff]
  %v304 = vld [vmem:[%s1 + $0x710] sm:$0xff]
  %v305 = vld [vmem:[%s1 + $0x718] sm:$0xff]
  %v306 = vld [vmem:[%s1 + $0x720] sm:$0xff]
  %v307 = vld [vmem:[%s1 + $0x728] sm:$0xff]
  %v308 = vld [vmem:[%s1 + $0x730] sm:$0xff]
  %v309 = vld [vmem:[%s1 + $0x738] sm:$0xff]
  %v310 = vld [vmem:[%s1 + $0x740] sm:$0xff]
  %v311 = vld [vmem:[%s1 + $0x748] sm:$0xff]
  %v312 = vld [vmem:[%s1 + $0x750] sm:$0xff]
  %v313 = vld [vmem:[%s1 + $0x758] sm:$0xff]
  %v314 = vld [vmem:[%s1 + $0x760] sm:$0xff]
  %v315 = vld [vmem:[%s1 + $0x768] sm:$0xff]
  %v316 = vld [vmem:[%s1 + $0x770] sm:$0xff]
  %v317 = vld [vmem:[%s1 + $0x778] sm:$0xff]
  %v318 = vld [vmem:[%s1 + $0x780] sm:$0xff]
  %v319 = vld [vmem:[%s1 + $0x788] sm:$0xff]
  %v320 = vld [vmem:[%s1 + $0x790] sm:$0xff]
  %v321 = vld [vmem:[%s1 + $0x798] sm:$0xff]
  %v322 = vld [vmem:[%s1 + $0x7a0] sm:$0xff]
  %v323 = vld [vmem:[%s1 + $0x7a8] sm:$0xff]
  %v324 = vld [vmem:[%s1 + $0x7b0] sm:$0xff]
  %v325 = vld [vmem:[%s1 + $0x7b8] sm:$0xff]
  %v326 = vld [vmem:[%s1 + $0x7c0] sm:$0xff]
  %v327 = vld [vmem:[%s1 + $0x7c8] sm:$0xff]
  %v328 = vld [vmem:[%s1 + $0x7d0] sm:$0xff]
  %v329 = vld [vmem:[%s1 + $0x7d8] sm:$0xff]
  %v330 = vld [vmem:[%s1 + $0x7e0] sm:$0xff]
  %v331 = vld [vmem:[%s1 + $0x7e8] sm:$0xff]
  %v332 = vld [vmem:[%s1 + $0x7f0] sm:$0xff]
  %v333 = vld [vmem:[%s1 + $0x7f8] sm:$0xff]
  %v334 = vld [vmem:[%s1 + $0x800] sm:$0xff]
  %v335 = vld [vmem:[%s1 + $0x808] sm:$0xff]
  %v336 = vld [vmem:[%s1 + $0x810] sm:$0xff]
  %v337 = vld [vmem:[%s1 + $0x818] sm:$0xff]
  %v338 = vld [vmem:[%s1 + $0x820] sm:$0xff]
  %v339 = vld [vmem:[%s1 + $0x828] sm:$0xff]
  %v340 = vld [vmem:[%s1 + $0x830] sm:$0xff]
  %v341 = vld [vmem:[%s1 + $0x838] sm:$0xff]
  %v342 = vld [vmem:[%s1 + $0x840] sm:$0xff]
  %v343 = vld [vmem:[%s1 + $0x848] sm:$0xff]
  %v344 = vld [vmem:[%s1 + $0x850] sm:$0xff]
  %v345 = vld [vmem:[%s1 + $0x858] sm:$0xff]
  %v346 = vld [vmem:[%s1 + $0x860] sm:$0xff]
  %v347 = vld [vmem:[%s1 + $0x868] sm:$0xff]
  %v348 = vld [vmem:[%s1 + $0x870] sm:$0xff]
  %v349 = vld [vmem:[%s1 + $0x878] sm:$0xff]
  %v350 = vld [vmem:[%s1 + $0x880] sm:$0xff]
  %v351 = vld [vmem:[%s1 + $0x888] sm:$0xff]
  %v352 = vld [vmem:[%s1 + $0x890] sm:$0xff]
  %v353 = vld [vmem:[%s1 + $0x898] sm:$0xff]
  %v354 = vld [vmem:[%s1 + $0x8a0] sm:$0xff]
  %v355 = vld [vmem:[%s1 + $0x8a8] sm:$0xff]
  %v356 = vld [vmem:[%s1 + $0x8b0] sm:$0xff]
  %v357 = vld [vmem:[%s1 + $0x8b8] sm:$0xff]
  %v358 = vld [vmem:[%s1 + $0x8c0] sm:$0xff]
  %v359 = vld [vmem:[%s1 + $0x8c8] sm:$0xff]
  %v360 = vld [vmem:[%s1 + $0x8d0] sm:$0xff]
  %v361 = vld [vmem:[%s1 + $0x8d8] sm:$0xff]
  %v362 = vld [vmem:[%s1 + $0x8e0] sm:$0xff]
  %v363 = vld [vmem:[%s1 + $0x8e8] sm:$0xff]
  %v364 = vld [vmem:[%s1 + $0x8f0] sm:$0xff]
  %v365 = vld [vmem:[%s1 + $0x8f8] sm:$0xff]
  %v366 = vld [vmem:[%s1 + $0x900] sm:$0xff]
  %v367 = vld [vmem:[%s1 + $0x908] sm:$0xff]
  %v368 = vld [vmem:[%s1 + $0x910] sm:$0xff]
  %v369 = vld [vmem:[%s1 + $0x918] sm:$0xff]
  %v370 = vld [vmem:[%s1 + $0x920] sm:$0xff]
  %v371 = vld [vmem:[%s1 + $0x928] sm:$0xff]
  %v372 = vld [vmem:[%s1 + $0x930] sm:$0xff]
  %v373 = vld [vmem:[%s1 + $0x938] sm:$0xff]
  %v374 = vld [vmem:[%s1 + $0x940] sm:$0xff]
  %v375 = vld [vmem:[%s1 + $0x948] sm:$0xff]
  %v376 = vld [vmem:[%s1 + $0x950] sm:$0xff]
  %v377 = vld [vmem:[%s1 + $0x958] sm:$0xff]
  %v378 = vld [vmem:[%s1 + $0x960] sm:$0xff]
  %v379 = vld [vmem:[%s1 + $0x968] sm:$0xff]
  %v380 = vld [vmem:[%s1 + $0x970] sm:$0xff]
  %v381 = vld [vmem:[%s1 + $0x978] sm:$0xff]
  %v382 = vld [vmem:[%s1 + $0x980] sm:$0xff]
  %v383 = vld [vmem:[%s1 + $0x988] sm:$0xff]
  %v384 = vld [vmem:[%s1 + $0x990] sm:$0xff]
  %v385 = vld [vmem:[%s1 + $0x998] sm:$0xff]
  %v386 = vld [vmem:[%s1 + $0x9a0] sm:$0xff]
  %v387 = vld [vmem:[%s1 + $0x9a8] sm:$0xff]
  %v388 = vld [vmem:[%s1 + $0x9b0] sm:$0xff]
  %v389 = vld [vmem:[%s1 + $0x9b8] sm:$0xff]
  %v390 = vld [vmem:[%s1 + $0x9c0] sm:$0xff]
  %v391 = vld [vmem:[%s1 + $0x9c8] sm:$0xff]
  %v392 = vld [vmem:[%s1 + $0x9d0] sm:$0xff]
  %v393 = vld [vmem:[%s1 + $0x9d8] sm:$0xff]
  %v394 = vld [vmem:[%s1 + $0x9e0] sm:$0xff]
  %v395 = vld [vmem:[%s1 + $0x9e8] sm:$0xff]
  %v396 = vld [vmem:[%s1 + $0x9f0] sm:$0xff]
  %v397 = vld [vmem:[%s1 + $0x9f8] sm:$0xff]
  %v398 = vld [vmem:[%s1 + $0xa00] sm:$0xff]
  %v399 = vld [vmem:[%s1 + $0xa08] sm:$0xff]
  %v400 = vld [vmem:[%s1 + $0xa10] sm:$0xff]
  %v401 = vld [vmem:[%s1 + $0xa18] sm:$0xff]
  %v402 = vld [vmem:[%s1 + $0xa20] sm:$0xff]
  %v403 = vld [vmem:[%s1 + $0xa28] sm:$0xff]
  %v404 = vld [vmem:[%s1 + $0xa30] sm:$0xff]
  %v405 = vld [vmem:[%s1 + $0xa38] sm:$0xff]
  %v406 = vld [vmem:[%s1 + $0xa40] sm:$0xff]
  %v407 = vld [vmem:[%s1 + $0xa48] sm:$0xff]
  %v408 = vld [vmem:[%s1 + $0xa50] sm:$0xff]
  %v409 = vld [vmem:[%s1 + $0xa58] sm:$0xff]
  %v410 = vld [vmem:[%s1 + $0xa60] sm:$0xff]
  %v411 = vld [vmem:[%s1 + $0xa68] sm:$0xff]
  %v412 = vld [vmem:[%s1 + $0xa70] sm:$0xff]
  %v413 = vld [vmem:[%s1 + $0xa78] sm:$0xff]
  %v414 = vld [vmem:[%s1 + $0xa80] sm:$0xff]
  %v415 = vld [vmem:[%s1 + $0xa88] sm:$0xff]
  %v416 = vld [vmem:[%s1 + $0xa90] sm:$0xff]
  %v417 = vld [vmem:[%s1 + $0xa98] sm:$0xff]
  %v418 = vld [vmem:[%s1 + $0xaa0] sm:$0xff]
  %v419 = vld [vmem:[%s1 + $0xaa8] sm:$0xff]
  %v420 = vld [vmem:[%s1 + $0xab0] sm:$0xff]
  %v421 = vld [vmem:[%s1 + $0xab8] sm:$0xff]
  %v422 = vld [vmem:[%s1 + $0xac0] sm:$0xff]
  %v423 = vld [vmem:[%s1 + $0xac8] sm:$0xff]
  %v424 = vld [vmem:[%s1 + $0xad0] sm:$0xff]
  %v425 = vld [vmem:[%s1 + $0xad8] sm:$0xff]
  %v426 = vld [vmem:[%s1 + $0xae0] sm:$0xff]
  %v427 = vld [vmem:[%s1 + $0xae8] sm:$0xff]
  %v428 = vld [vmem:[%s1 + $0xaf0] sm:$0xff]
  %v429 = vld [vmem:[%s1 + $0xaf8] sm:$0xff]
  %v430 = vld [vmem:[%s1 + $0xb00] sm:$0xff]
  %v431 = vld [vmem:[%s1 + $0xb08] sm:$0xff]
  %v432 = vld [vmem:[%s1 + $0xb10] sm:$0xff]
  %v433 = vld [vmem:[%s1 + $0xb18] sm:$0xff]
  %v434 = vld [vmem:[%s1 + $0xb20] sm:$0xff]
  %v435 = vld [vmem:[%s1 + $0xb28] sm:$0xff]
  %v436 = vld [vmem:[%s1 + $0xb30] sm:$0xff]
  %v437 = vld [vmem:[%s1 + $0xb38] sm:$0xff]
  %v438 = vld [vmem:[%s1 + $0xb40] sm:$0xff]
  %v439 = vld [vmem:[%s1 + $0xb48] sm:$0xff]
  %v440 = vld [vmem:[%s1 + $0xb50] sm:$0xff]
  %v441 = vld [vmem:[%s1 + $0xb58] sm:$0xff]
  %v442 = vld [vmem:[%s1 + $0xb60] sm:$0xff]
  %v443 = vld [vmem:[%s1 + $0xb68] sm:$0xff]
  %v444 = vld [vmem:[%s1 + $0xb70] sm:$0xff]
  %v445 = vld [vmem:[%s1 + $0xb78] sm:$0xff]
  %v446 = vld [vmem:[%s1 + $0xb80] sm:$0xff]
  %v447 = vld [vmem:[%s1 + $0xb88] sm:$0xff]
  %v448 = vld [vmem:[%s1 + $0xb90] sm:$0xff]
  %v449 = vld [vmem:[%s1 + $0xb98] sm:$0xff]
  %v450 = vld [vmem:[%s1 + $0xba0] sm:$0xff]
  %v451 = vld [vmem:[%s1 + $0xba8] sm:$0xff]
  %v452 = vld [vmem:[%s1 + $0xbb0] sm:$0xff]
  %v453 = vld [vmem:[%s1 + $0xbb8] sm:$0xff]
  %v454 = vld [vmem:[%s1 + $0xbc0] sm:$0xff]
  %v455 = vld [vmem:[%s1 + $0xbc8] sm:$0xff]
  %v456 = vld [vmem:[%s1 + $0xbd0] sm:$0xff]
  %v457 = vld [vmem:[%s1 + $0xbd8] sm:$0xff]
  %v458 = vld [vmem:[%s1 + $0xbe0] sm:$0xff]
  %v459 = vld [vmem:[%s1 + $0xbe8] sm:$0xff]
  %v460 = vld [vmem:[%s1 + $0xbf0] sm:$0xff]
  %v461 = vld [vmem:[%s1 + $0xbf8] sm:$0xff]
  %v462 = vld [vmem:[%s1 + $0xc00] sm:$0xff]
  %v463 = vld [vmem:[%s1 + $0xc08] sm:$0xff]
  %v464 = vld [vmem:[%s1 + $0xc10] sm:$0xff]
  %v465 = vld [vmem:[%s1 + $0xc18] sm:$0xff]
  %v466 = vld [vmem:[%s1 + $0xc20] sm:$0xff]
  %v467 = vld [vmem:[%s1 + $0xc28] sm:$0xff]
  %v468 = vld [vmem:[%s1 + $0xc30] sm:$0xff]
  %v469 = vld [vmem:[%s1 + $0xc38] sm:$0xff]
  %v470 = vld [vmem:[%s1 + $0xc40] sm:$0xff]
  %v471 = vld [vmem:[%s1 + $0xc48] sm:$0xff]
  %v472 = vld [vmem:[%s1 + $0xc50] sm:$0xff]
  %v473 = vld [vmem:[%s1 + $0xc58] sm:$0xff]
  %v474 = vld [vmem:[%s1 + $0xc60] sm:$0xff]
  %v475 = vld [vmem:[%s1 + $0xc68] sm:$0xff]
  %v476 = vld [vmem:[%s1 + $0xc70] sm:$0xff]
  %v477 = vld [vmem:[%s1 + $0xc78] sm:$0xff]
  %v478 = vld [vmem:[%s1 + $0xc80] sm:$0xff]
  %v479 = vld [vmem:[%s1 + $0xc88] sm:$0xff]
  %v480 = vld [vmem:[%s1 + $0xc90] sm:$0xff]
  %v481 = vld [vmem:[%s1 + $0xc98] sm:$0xff]
  %v482 = vld [vmem:[%s1 + $0xca0] sm:$0xff]
  %v483 = vld [vmem:[%s1 + $0xca8] sm:$0xff]
  %v484 = vld [vmem:[%s1 + $0xcb0] sm:$0xff]
  %v485 = vld [vmem:[%s1 + $0xcb8] sm:$0xff]
  %v486 = vld [vmem:[%s1 + $0xcc0] sm:$0xff]
  %v487 = vld [vmem:[%s1 + $0xcc8] sm:$0xff]
  %v488 = vld [vmem:[%s1 + $0xcd0] sm:$0xff]
  %v489 = vld [vmem:[%s1 + $0xcd8] sm:$0xff]
  %v490 = vld [vmem:[%s1 + $0xce0] sm:$0xff]
  %v491 = vld [vmem:[%s1 + $0xce8] sm:$0xff]
  %v492 = vld [vmem:[%s1 + $0xcf0] sm:$0xff]
  %v493 = vld [vmem:[%s1 + $0xcf8] sm:$0xff]
  %v494 = vld [vmem:[%s1 + $0xd00] sm:$0xff]
  %v495 = vld [vmem:[%s1 + $0xd08] sm:$0xff]
  %v496 = vld [vmem:[%s1 + $0xd10] sm:$0xff]
  %v497 = vld [vmem:[%s1 + $0xd18] sm:$0xff]
  %v498 = vld [vmem:[%s1 + $0xd20] sm:$0xff]
  %v499 = vld [vmem:[%s1 + $0xd28] sm:$0xff]
  %v500 = vld [vmem:[%s1 + $0xd30] sm:$0xff]
  %v501 = vld [vmem:[%s1 + $0xd38] sm:$0xff]
  %v502 = vld [vmem:[%s1 + $0xd40] sm:$0xff]
  %v503 = vld [vmem:[%s1 + $0xd48] sm:$0xff]
  %v504 = vld [vmem:[%s1 + $0xd50] sm:$0xff]
  %v505 = vld [vmem:[%s1 + $0xd58] sm:$0xff]
  %v506 = vld [vmem:[%s1 + $0xd60] sm:$0xff]
  %v507 = vld [vmem:[%s1 + $0xd68] sm:$0xff]
  %v508 = vld [vmem:[%s1 + $0xd70] sm:$0xff]
  %v509 = vld [vmem:[%s1 + $0xd78] sm:$0xff]
  %v510 = vld [vmem:[%s1 + $0xd80] sm:$0xff]
  %v511 = vld [vmem:[%s1 + $0xd88] sm:$0xff]
  %v512 = vld [vmem:[%s1 + $0xd90] sm:$0xff]
  %v513 = vld [vmem:[%s1 + $0xd98] sm:$0xff]
  %v514 = vld [vmem:[%s1 + $0xda0] sm:$0xff]
  %v515 = vld [vmem:[%s1 + $0xda8] sm:$0xff]
  %v516 = vld [vmem:[%s1 + $0xdb0] sm:$0xff]
  %v517 = vld [vmem:[%s1 + $0xdb8] sm:$0xff]
  %v518 = vld [vmem:[%s1 + $0xdc0] sm:$0xff]
  %v519 = vld [vmem:[%s1 + $0xdc8] sm:$0xff]
  %v520 = vld [vmem:[%s1 + $0xdd0] sm:$0xff]
  %v521 = vld [vmem:[%s1 + $0xdd8] sm:$0xff]
  %v522 = vld [vmem:[%s1 + $0xde0] sm:$0xff]
  %v523 = vld [vmem:[%s1 + $0xde8] sm:$0xff]
  %v524 = vld [vmem:[%s1 + $0xdf0] sm:$0xff]
  %v525 = vld [vmem:[%s1 + $0xdf8] sm:$0xff]
  %v526 = vld [vmem:[%s1 + $0xe00] sm:$0xff]
  %v527 = vld [vmem:[%s1 + $0xe08] sm:$0xff]
  %v528 = vld [vmem:[%s1 + $0xe10] sm:$0xff]
  %v529 = vld [vmem:[%s1 + $0xe18] sm:$0xff]
  %v530 = vld [vmem:[%s1 + $0xe20] sm:$0xff]
  %v531 = vld [vmem:[%s1 + $0xe28] sm:$0xff]
  %v532 = vld [vmem:[%s1 + $0xe30] sm:$0xff]
  %v533 = vld [vmem:[%s1 + $0xe38] sm:$0xff]
  %v534 = vld [vmem:[%s1 + $0xe40] sm:$0xff]
  %v535 = vld [vmem:[%s1 + $0xe48] sm:$0xff]
  %v536 = vld [vmem:[%s1 + $0xe50] sm:$0xff]
  %v537 = vld [vmem:[%s1 + $0xe58] sm:$0xff]
  %v538 = vld [vmem:[%s1 + $0xe60] sm:$0xff]
  %v539 = vld [vmem:[%s1 + $0xe68] sm:$0xff]
  %v540 = vld [vmem:[%s1 + $0xe70] sm:$0xff]
  %v541 = vld [vmem:[%s1 + $0xe78] sm:$0xff]
  %v542 = vld [vmem:[%s1 + $0xe80] sm:$0xff]
  %v543 = vld [vmem:[%s1 + $0xe88] sm:$0xff]
  %v544 = vld [vmem:[%s1 + $0xe90] sm:$0xff]
  %v545 = vld [vmem:[%s1 + $0xe98] sm:$0xff]
  %v546 = vld [vmem:[%s1 + $0xea0] sm:$0xff]
  %v547 = vld [vmem:[%s1 + $0xea8] sm:$0xff]
  %v548 = vld [vmem:[%s1 + $0xeb0] sm:$0xff]
  %v549 = vld [vmem:[%s1 + $0xeb8] sm:$0xff]
  %v550 = vld [vmem:[%s1 + $0xec0] sm:$0xff]
  %v551 = vld [vmem:[%s1 + $0xec8] sm:$0xff]
  %v552 = vld [vmem:[%s1 + $0xed0] sm:$0xff]
  %v553 = vld [vmem:[%s1 + $0xed8] sm:$0xff]
  %v554 = vld [vmem:[%s1 + $0xee0] sm:$0xff]
  %v555 = vld [vmem:[%s1 + $0xee8] sm:$0xff]
  %v556 = vld [vmem:[%s1 + $0xef0] sm:$0xff]
  %v557 = vld [vmem:[%s1 + $0xef8] sm:$0xff]
  %v558 = vld [vmem:[%s1 + $0xf00] sm:$0xff]
  %v559 = vld [vmem:[%s1 + $0xf08] sm:$0xff]
  %v560 = vld [vmem:[%s1 + $0xf10] sm:$0xff]
  %v561 = vld [vmem:[%s1 + $0xf18] sm:$0xff]
  %v562 = vld [vmem:[%s1 + $0xf20] sm:$0xff]
  %v563 = vld [vmem:[%s1 + $0xf28] sm:$0xff]
  %v564 = vld [vmem:[%s1 + $0xf30] sm:$0xff]
  %v565 = vld [vmem:[%s1 + $0xf38] sm:$0xff]
  %v566 = vld [vmem:[%s1 + $0xf40] sm:$0xff]
  %v567 = vld [vmem:[%s1 + $0xf48] sm:$0xff]
  %v568 = vld [vmem:[%s1 + $0xf50] sm:$0xff]
  %v569 = vld [vmem:[%s1 + $0xf58] sm:$0xff]
  %v570 = vld [vmem:[%s1 + $0xf60] sm:$0xff]
  %v571 = vld [vmem:[%s1 + $0xf68] sm:$0xff]
  %v572 = vld [vmem:[%s1 + $0xf70] sm:$0xff]
  %v573 = vld [vmem:[%s1 + $0xf78] sm:$0xff]
  %v574 = vld [vmem:[%s1 + $0xf80] sm:$0xff]
  %v575 = vld [vmem:[%s1 + $0xf88] sm:$0xff]
  %v576 = vld [vmem:[%s1 + $0xf90] sm:$0xff]
  %v577 = vld [vmem:[%s1 + $0xf98] sm:$0xff]
  %v578 = vld [vmem:[%s1 + $0xfa0] sm:$0xff]
  %v579 = vld [vmem:[%s1 + $0xfa8] sm:$0xff]
  %v580 = vld [vmem:[%s1 + $0xfb0] sm:$0xff]
  %v581 = vld [vmem:[%s1 + $0xfb8] sm:$0xff]
  %v582 = vld [vmem:[%s1 + $0xfc0] sm:$0xff]
  %v583 = vld [vmem:[%s1 + $0xfc8] sm:$0xff]
  %v584 = vld [vmem:[%s1 + $0xfd0] sm:$0xff]
  %v585 = vld [vmem:[%s1 + $0xfd8] sm:$0xff]
  %v586 = vld [vmem:[%s1 + $0xfe0] sm:$0xff]
  %v587 = vld [vmem:[%s1 + $0xfe8] sm:$0xff]
  %v588 = vld [vmem:[%s1 + $0xff0] sm:$0xff]
  %v589 = vld [vmem:[%s1 + $0xff8] sm:$0xff]
  %v590 = vld [vmem:[%s2] sm:$0xff]
  %v592 = vlaneseq
  %v593 = vshrl.u32 %v592, 7
  %v594 = vsub.s32 0, %v593
  %v595 = vrot.slane %v590, %v594
  %v596 = vlaneseq
  %v597 = vshrl.u32 %v596, 7
  %v598 = vsub.s32 1, %v597
  %v599 = vrot.slane %v590, %v598
  %v600 = vlaneseq
  %v601 = vshrl.u32 %v600, 7
  %v602 = vsub.s32 2, %v601
  %v603 = vrot.slane %v590, %v602
  %v604 = vlaneseq
  %v605 = vshrl.u32 %v604, 7
  %v606 = vsub.s32 3, %v605
  %v607 = vrot.slane %v590, %v606
  %v608 = vlaneseq
  %v609 = vshrl.u32 %v608, 7
  %v610 = vsub.s32 4, %v609
  %v611 = vrot.slane %v590, %v610
  %v612 = vlaneseq
  %v613 = vshrl.u32 %v612, 7
  %v614 = vsub.s32 5, %v613
  %v615 = vrot.slane %v590, %v614
  %v616 = vlaneseq
  %v617 = vshrl.u32 %v616, 7
  %v618 = vsub.s32 6, %v617
  %v619 = vrot.slane %v590, %v618
  %v620 = vlaneseq
  %v621 = vshrl.u32 %v620, 7
  %v622 = vsub.s32 7, %v621
  %v623 = vrot.slane %v590, %v622
  %632 = vmatprep.subr.mxu0 %v199
  %633 = vmatpush1.msra.mxu0 %v198
  %634 = vmatprep.subr.mxu0 %v191
  %635 = vmatpush1.msra.mxu0 %v190
  %636 = vmatprep.subr.mxu0 %v183
  %637 = vmatpush1.msra.mxu0 %v182
  %638 = vmatprep.subr.mxu0 %v175
  %639 = vmatpush1.msra.mxu0 %v174
  %640 = vmatprep.subr.mxu0 %v167
  %641 = vmatpush1.msra.mxu0 %v166
  %642 = vmatprep.subr.mxu0 %v159
  %643 = vmatpush1.msra.mxu0 %v158
  %644 = vmatprep.subr.mxu0 %v151
  %645 = vmatpush1.msra.mxu0 %v150
  %646 = vmatprep.subr.mxu0 %v143
  %647 = vmatpush1.msra.mxu0 %v142
  %648 = vmatprep.subr.mxu0 %v135
  %649 = vmatpush1.msra.mxu0 %v134
  %650 = vmatprep.subr.mxu0 %v127
  %651 = vmatpush1.msra.mxu0 %v126
  %652 = vmatprep.subr.mxu0 %v119
  %653 = vmatpush1.msra.mxu0 %v118
  %654 = vmatprep.subr.mxu0 %v111
  %655 = vmatpush1.msra.mxu0 %v110
  %656 = vmatprep.subr.mxu0 %v103
  %657 = vmatpush1.msra.mxu0 %v102
  %658 = vmatprep.subr.mxu0 %v95
  %659 = vmatpush1.msra.mxu0 %v94
  %660 = vmatprep.subr.mxu0 %v87
  %661 = vmatpush1.msra.mxu0 %v86
  %662 = vmatprep.subr.mxu0 %v79
  %663 = vmatpush1.msra.mxu0 %v78
  %664 = vmatprep.subr.mxu0 %v327
  %665 = vmatpush2.msra.mxu0 %v326
  %666 = vmatprep.subr.mxu0 %v319
  %667 = vmatpush2.msra.mxu0 %v318
  %668 = vmatprep.subr.mxu0 %v311
  %669 = vmatpush2.msra.mxu0 %v310
  %670 = vmatprep.subr.mxu0 %v303
  %671 = vmatpush2.msra.mxu0 %v302
  %672 = vmatprep.subr.mxu0 %v295
  %673 = vmatpush2.msra.mxu0 %v294
  %674 = vmatprep.subr.mxu0 %v287
  %675 = vmatpush2.msra.mxu0 %v286
  %676 = vmatprep.subr.mxu0 %v279
  %677 = vmatpush2.msra.mxu0 %v278
  %678 = vmatprep.subr.mxu0 %v271
  %679 = vmatpush2.msra.mxu0 %v270
  %680 = vmatprep.subr.mxu0 %v263
  %681 = vmatpush2.msra.mxu0 %v262
  %682 = vmatprep.subr.mxu0 %v255
  %683 = vmatpush2.msra.mxu0 %v254
  %684 = vmatprep.subr.mxu0 %v247
  %685 = vmatpush2.msra.mxu0 %v246
  %686 = vmatprep.subr.mxu0 %v239
  %687 = vmatpush2.msra.mxu0 %v238
  %688 = vmatprep.subr.mxu0 %v231
  %689 = vmatpush2.msra.mxu0 %v230
  %690 = vmatprep.subr.mxu0 %v223
  %691 = vmatpush2.msra.mxu0 %v222
  %692 = vmatprep.subr.mxu0 %v215
  %693 = vmatpush2.msra.mxu0 %v214
  %694 = vmatprep.subr.mxu0 %v207
  %695 = vmatpush2.msra.mxu0 %v206
  %696 = vmatprep.mubr.f32.mxu0 %v15
  %697 = vmatmul.mubr.f32.gmra.mxu0 %v14
  %v698 = vpop.f32.mrf.mxu0
  %v699 = vadd.f32 %v595, %v698
  %v700 = vpop.f32.mrf.mxu0
  %v701 = vadd.f32 %v599, %v700
  %702 = vmatprep.mubr.f32.mxu0 %v19
  %703 = vmatmul.mubr.f32.gmra.mxu0 %v18
  %v704 = vpop.f32.mrf.mxu0
  %v705 = vadd.f32 %v595, %v704
  %v706 = vpop.f32.mrf.mxu0
  %v707 = vadd.f32 %v599, %v706
  %708 = vmatprep.mubr.f32.mxu0 %v23
  %709 = vmatmul.mubr.f32.gmra.mxu0 %v22
  %v710 = vpop.f32.mrf.mxu0
  %v711 = vadd.f32 %v595, %v710
  %v712 = vpop.f32.mrf.mxu0
  %v713 = vadd.f32 %v599, %v712
  %714 = vmatprep.mubr.f32.mxu0 %v27
  %715 = vmatmul.mubr.f32.gmra.mxu0 %v26
  %v716 = vpop.f32.mrf.mxu0
  %v717 = vadd.f32 %v595, %v716
  %v718 = vpop.f32.mrf.mxu0
  %v719 = vadd.f32 %v599, %v718
  %720 = vmatprep.mubr.f32.mxu0 %v31
  %721 = vmatmul.mubr.f32.gmra.mxu0 %v30
  %v722 = vpop.f32.mrf.mxu0
  %v723 = vadd.f32 %v595, %v722
  %v724 = vpop.f32.mrf.mxu0
  %v725 = vadd.f32 %v599, %v724
  %726 = vmatprep.mubr.f32.mxu0 %v35
  %727 = vmatmul.mubr.f32.gmra.mxu0 %v34
  %v728 = vpop.f32.mrf.mxu0
  %v729 = vadd.f32 %v595, %v728
  %v730 = vpop.f32.mrf.mxu0
  %v731 = vadd.f32 %v599, %v730
  %732 = vmatprep.mubr.f32.mxu0 %v39
  %733 = vmatmul.mubr.f32.gmra.mxu0 %v38
  %v734 = vpop.f32.mrf.mxu0
  %v735 = vadd.f32 %v595, %v734
  %v736 = vpop.f32.mrf.mxu0
  %v737 = vadd.f32 %v599, %v736
  %738 = vmatprep.mubr.f32.mxu0 %v43
  %739 = vmatmul.mubr.f32.gmra.mxu0 %v42
  %v740 = vpop.f32.mrf.mxu0
  %v741 = vadd.f32 %v595, %v740
  %v742 = vpop.f32.mrf.mxu0
  %v743 = vadd.f32 %v599, %v742
  %744 = vmatprep.mubr.f32.mxu0 %v47
  %745 = vmatmul.mubr.f32.gmra.mxu0 %v46
  %v746 = vpop.f32.mrf.mxu0
  %v747 = vadd.f32 %v595, %v746
  %v748 = vpop.f32.mrf.mxu0
  %v749 = vadd.f32 %v599, %v748
  %750 = vmatprep.mubr.f32.mxu0 %v51
  %751 = vmatmul.mubr.f32.gmra.mxu0 %v50
  %v752 = vpop.f32.mrf.mxu0
  %v753 = vadd.f32 %v595, %v752
  %v754 = vpop.f32.mrf.mxu0
  %v755 = vadd.f32 %v599, %v754
  %756 = vmatprep.mubr.f32.mxu0 %v55
  %757 = vmatmul.mubr.f32.gmra.mxu0 %v54
  %v758 = vpop.f32.mrf.mxu0
  %v759 = vadd.f32 %v595, %v758
  %v760 = vpop.f32.mrf.mxu0
  %v761 = vadd.f32 %v599, %v760
  %762 = vmatprep.mubr.f32.mxu0 %v59
  %763 = vmatmul.mubr.f32.gmra.mxu0 %v58
  %v764 = vpop.f32.mrf.mxu0
  %v765 = vadd.f32 %v595, %v764
  %v766 = vpop.f32.mrf.mxu0
  %v767 = vadd.f32 %v599, %v766
  %768 = vmatprep.mubr.f32.mxu0 %v63
  %769 = vmatmul.mubr.f32.gmra.mxu0 %v62
  %v770 = vpop.f32.mrf.mxu0
  %v771 = vadd.f32 %v595, %v770
  %v772 = vpop.f32.mrf.mxu0
  %v773 = vadd.f32 %v599, %v772
  %774 = vmatprep.mubr.f32.mxu0 %v67
  %775 = vmatmul.mubr.f32.gmra.mxu0 %v66
  %v776 = vpop.f32.mrf.mxu0
  %v777 = vadd.f32 %v595, %v776
  %v778 = vpop.f32.mrf.mxu0
  %v779 = vadd.f32 %v599, %v778
  %780 = vmatprep.mubr.f32.mxu0 %v71
  %781 = vmatmul.mubr.f32.gmra.mxu0 %v70
  %v782 = vpop.f32.mrf.mxu0
  %v783 = vadd.f32 %v595, %v782
  %v784 = vpop.f32.mrf.mxu0
  %v785 = vadd.f32 %v599, %v784
  %786 = vmatprep.mubr.f32.mxu0 %v75
  %787 = vmatmul.mubr.f32.gmra.mxu0 %v74
  %v788 = vpop.f32.mrf.mxu0
  %v789 = vadd.f32 %v595, %v788
  %v790 = vpop.f32.mrf.mxu0
  %v791 = vadd.f32 %v599, %v790
  %792 = vdwg.mxu0
  %793 = vmatprep.subr.mxu0 %v455
  %794 = vmatpush1.msra.mxu0 %v454
  %795 = vmatprep.subr.mxu0 %v447
  %796 = vmatpush1.msra.mxu0 %v446
  %797 = vmatprep.subr.mxu0 %v439
  %798 = vmatpush1.msra.mxu0 %v438
  %799 = vmatprep.subr.mxu0 %v431
  %800 = vmatpush1.msra.mxu0 %v430
  %801 = vmatprep.subr.mxu0 %v423
  %802 = vmatpush1.msra.mxu0 %v422
  %803 = vmatprep.subr.mxu0 %v415
  %804 = vmatpush1.msra.mxu0 %v414
  %805 = vmatprep.subr.mxu0 %v407
  %806 = vmatpush1.msra.mxu0 %v406
  %807 = vmatprep.subr.mxu0 %v399
  %808 = vmatpush1.msra.mxu0 %v398
  %809 = vmatprep.subr.mxu0 %v391
  %810 = vmatpush1.msra.mxu0 %v390
  %811 = vmatprep.subr.mxu0 %v383
  %812 = vmatpush1.msra.mxu0 %v382
  %813 = vmatprep.subr.mxu0 %v375
  %814 = vmatpush1.msra.mxu0 %v374
  %815 = vmatprep.subr.mxu0 %v367
  %816 = vmatpush1.msra.mxu0 %v366
  %817 = vmatprep.subr.mxu0 %v359
  %818 = vmatpush1.msra.mxu0 %v358
  %819 = vmatprep.subr.mxu0 %v351
  %820 = vmatpush1.msra.mxu0 %v350
  %821 = vmatprep.subr.mxu0 %v343
  %822 = vmatpush1.msra.mxu0 %v342
  %823 = vmatprep.subr.mxu0 %v335
  %824 = vmatpush1.msra.mxu0 %v334
  %825 = vmatprep.subr.mxu0 %v583
  %826 = vmatpush2.msra.mxu0 %v582
  %827 = vmatprep.subr.mxu0 %v575
  %828 = vmatpush2.msra.mxu0 %v574
  %829 = vmatprep.subr.mxu0 %v567
  %830 = vmatpush2.msra.mxu0 %v566
  %831 = vmatprep.subr.mxu0 %v559
  %832 = vmatpush2.msra.mxu0 %v558
  %833 = vmatprep.subr.mxu0 %v551
  %834 = vmatpush2.msra.mxu0 %v550
  %835 = vmatprep.subr.mxu0 %v543
  %836 = vmatpush2.msra.mxu0 %v542
  %837 = vmatprep.subr.mxu0 %v535
  %838 = vmatpush2.msra.mxu0 %v534
  %839 = vmatprep.subr.mxu0 %v527
  %840 = vmatpush2.msra.mxu0 %v526
  %841 = vmatprep.subr.mxu0 %v519
  %842 = vmatpush2.msra.mxu0 %v518
  %843 = vmatprep.subr.mxu0 %v511
  %844 = vmatpush2.msra.mxu0 %v510
  %845 = vmatprep.subr.mxu0 %v503
  %846 = vmatpush2.msra.mxu0 %v502
  %847 = vmatprep.subr.mxu0 %v495
  %848 = vmatpush2.msra.mxu0 %v494
  %849 = vmatprep.subr.mxu0 %v487
  %850 = vmatpush2.msra.mxu0 %v486
  %851 = vmatprep.subr.mxu0 %v479
  %852 = vmatpush2.msra.mxu0 %v478
  %853 = vmatprep.subr.mxu0 %v471
  %854 = vmatpush2.msra.mxu0 %v470
  %855 = vmatprep.subr.mxu0 %v463
  %856 = vmatpush2.msra.mxu0 %v462
  %857 = vmatprep.mubr.f32.mxu0 %v17
  %858 = vmatmul.mubr.f32.gmra.mxu0 %v16
  %v859 = vpop.f32.mrf.mxu0
  %v860 = vadd.f32 %v699, %v859
  %v861 = vpop.f32.mrf.mxu0
  %v862 = vadd.f32 %v701, %v861
  %863 = vmatprep.mubr.f32.mxu0 %v21
  %864 = vmatmul.mubr.f32.gmra.mxu0 %v20
  %v865 = vpop.f32.mrf.mxu0
  %v866 = vadd.f32 %v705, %v865
  %v867 = vpop.f32.mrf.mxu0
  %v868 = vadd.f32 %v707, %v867
  %869 = vmatprep.mubr.f32.mxu0 %v25
  %870 = vmatmul.mubr.f32.gmra.mxu0 %v24
  %v871 = vpop.f32.mrf.mxu0
  %v872 = vadd.f32 %v711, %v871
  %v873 = vpop.f32.mrf.mxu0
  %v874 = vadd.f32 %v713, %v873
  %875 = vmatprep.mubr.f32.mxu0 %v29
  %876 = vmatmul.mubr.f32.gmra.mxu0 %v28
  %v877 = vpop.f32.mrf.mxu0
  %v878 = vadd.f32 %v717, %v877
  %v879 = vpop.f32.mrf.mxu0
  %v880 = vadd.f32 %v719, %v879
  %881 = vmatprep.mubr.f32.mxu0 %v33
  %882 = vmatmul.mubr.f32.gmra.mxu0 %v32
  %v883 = vpop.f32.mrf.mxu0
  %v884 = vadd.f32 %v723, %v883
  %v885 = vpop.f32.mrf.mxu0
  %v886 = vadd.f32 %v725, %v885
  %887 = vmatprep.mubr.f32.mxu0 %v37
  %888 = vmatmul.mubr.f32.gmra.mxu0 %v36
  %v889 = vpop.f32.mrf.mxu0
  %v890 = vadd.f32 %v729, %v889
  %v891 = vpop.f32.mrf.mxu0
  %v892 = vadd.f32 %v731, %v891
  %893 = vmatprep.mubr.f32.mxu0 %v41
  %894 = vmatmul.mubr.f32.gmra.mxu0 %v40
  %v895 = vpop.f32.mrf.mxu0
  %v896 = vadd.f32 %v735, %v895
  %v897 = vpop.f32.mrf.mxu0
  %v898 = vadd.f32 %v737, %v897
  %899 = vmatprep.mubr.f32.mxu0 %v45
  %900 = vmatmul.mubr.f32.gmra.mxu0 %v44
  %v901 = vpop.f32.mrf.mxu0
  %v902 = vadd.f32 %v741, %v901
  %v903 = vpop.f32.mrf.mxu0
  %v904 = vadd.f32 %v743, %v903
  %905 = vmatprep.mubr.f32.mxu0 %v49
  %906 = vmatmul.mubr.f32.gmra.mxu0 %v48
  %v907 = vpop.f32.mrf.mxu0
  %v908 = vadd.f32 %v747, %v907
  %v909 = vpop.f32.mrf.mxu0
  %v910 = vadd.f32 %v749, %v909
  %911 = vmatprep.mubr.f32.mxu0 %v53
  %912 = vmatmul.mubr.f32.gmra.mxu0 %v52
  %v913 = vpop.f32.mrf.mxu0
  %v914 = vadd.f32 %v753, %v913
  %v915 = vpop.f32.mrf.mxu0
  %v916 = vadd.f32 %v755, %v915
  %917 = vmatprep.mubr.f32.mxu0 %v57
  %918 = vmatmul.mubr.f32.gmra.mxu0 %v56
  %v919 = vpop.f32.mrf.mxu0
  %v920 = vadd.f32 %v759, %v919
  %v921 = vpop.f32.mrf.mxu0
  %v922 = vadd.f32 %v761, %v921
  %923 = vmatprep.mubr.f32.mxu0 %v61
  %924 = vmatmul.mubr.f32.gmra.mxu0 %v60
  %v925 = vpop.f32.mrf.mxu0
  %v926 = vadd.f32 %v765, %v925
  %v927 = vpop.f32.mrf.mxu0
  %v928 = vadd.f32 %v767, %v927
  %929 = vmatprep.mubr.f32.mxu0 %v65
  %930 = vmatmul.mubr.f32.gmra.mxu0 %v64
  %v931 = vpop.f32.mrf.mxu0
  %v932 = vadd.f32 %v771, %v931
  %v933 = vpop.f32.mrf.mxu0
  %v934 = vadd.f32 %v773, %v933
  %935 = vmatprep.mubr.f32.mxu0 %v69
  %936 = vmatmul.mubr.f32.gmra.mxu0 %v68
  %v937 = vpop.f32.mrf.mxu0
  %v938 = vadd.f32 %v777, %v937
  %v939 = vpop.f32.mrf.mxu0
  %v940 = vadd.f32 %v779, %v939
  %941 = vmatprep.mubr.f32.mxu0 %v73
  %942 = vmatmul.mubr.f32.gmra.mxu0 %v72
  %v943 = vpop.f32.mrf.mxu0
  %v944 = vadd.f32 %v783, %v943
  %v945 = vpop.f32.mrf.mxu0
  %v946 = vadd.f32 %v785, %v945
  %947 = vmatprep.mubr.f32.mxu0 %v77
  %948 = vmatmul.mubr.f32.gmra.mxu0 %v76
  %v949 = vpop.f32.mrf.mxu0
  %v950 = vadd.f32 %v789, %v949
  %v951 = vpop.f32.mrf.mxu0
  %v952 = vadd.f32 %v791, %v951
  %953 = vdwg.mxu0
  %954 = vmatprep.subr.mxu0 %v201
  %955 = vmatpush1.msra.mxu0 %v200
  %956 = vmatprep.subr.mxu0 %v193
  %957 = vmatpush1.msra.mxu0 %v192
  %958 = vmatprep.subr.mxu0 %v185
  %959 = vmatpush1.msra.mxu0 %v184
  %960 = vmatprep.subr.mxu0 %v177
  %961 = vmatpush1.msra.mxu0 %v176
  %962 = vmatprep.subr.mxu0 %v169
  %963 = vmatpush1.msra.mxu0 %v168
  %964 = vmatprep.subr.mxu0 %v161
  %965 = vmatpush1.msra.mxu0 %v160
  %966 = vmatprep.subr.mxu0 %v153
  %967 = vmatpush1.msra.mxu0 %v152
  %968 = vmatprep.subr.mxu0 %v145
  %969 = vmatpush1.msra.mxu0 %v144
  %970 = vmatprep.subr.mxu0 %v137
  %971 = vmatpush1.msra.mxu0 %v136
  %972 = vmatprep.subr.mxu0 %v129
  %973 = vmatpush1.msra.mxu0 %v128
  %974 = vmatprep.subr.mxu0 %v121
  %975 = vmatpush1.msra.mxu0 %v120
  %976 = vmatprep.subr.mxu0 %v113
  %977 = vmatpush1.msra.mxu0 %v112
  %978 = vmatprep.subr.mxu0 %v105
  %979 = vmatpush1.msra.mxu0 %v104
  %980 = vmatprep.subr.mxu0 %v97
  %981 = vmatpush1.msra.mxu0 %v96
  %982 = vmatprep.subr.mxu0 %v89
  %983 = vmatpush1.msra.mxu0 %v88
  %984 = vmatprep.subr.mxu0 %v81
  %985 = vmatpush1.msra.mxu0 %v80
  %986 = vmatprep.subr.mxu0 %v329
  %987 = vmatpush2.msra.mxu0 %v328
  %988 = vmatprep.subr.mxu0 %v321
  %989 = vmatpush2.msra.mxu0 %v320
  %990 = vmatprep.subr.mxu0 %v313
  %991 = vmatpush2.msra.mxu0 %v312
  %992 = vmatprep.subr.mxu0 %v305
  %993 = vmatpush2.msra.mxu0 %v304
  %994 = vmatprep.subr.mxu0 %v297
  %995 = vmatpush2.msra.mxu0 %v296
  %996 = vmatprep.subr.mxu0 %v289
  %997 = vmatpush2.msra.mxu0 %v288
  %998 = vmatprep.subr.mxu0 %v281
  %999 = vmatpush2.msra.mxu0 %v280
  %1000 = vmatprep.subr.mxu0 %v273
  %1001 = vmatpush2.msra.mxu0 %v272
  %1002 = vmatprep.subr.mxu0 %v265
  %1003 = vmatpush2.msra.mxu0 %v264
  %1004 = vmatprep.subr.mxu0 %v257
  %1005 = vmatpush2.msra.mxu0 %v256
  %1006 = vmatprep.subr.mxu0 %v249
  %1007 = vmatpush2.msra.mxu0 %v248
  %1008 = vmatprep.subr.mxu0 %v241
  %1009 = vmatpush2.msra.mxu0 %v240
  %1010 = vmatprep.subr.mxu0 %v233
  %1011 = vmatpush2.msra.mxu0 %v232
  %1012 = vmatprep.subr.mxu0 %v225
  %1013 = vmatpush2.msra.mxu0 %v224
  %1014 = vmatprep.subr.mxu0 %v217
  %1015 = vmatpush2.msra.mxu0 %v216
  %1016 = vmatprep.subr.mxu0 %v209
  %1017 = vmatpush2.msra.mxu0 %v208
  %1018 = vmatprep.mubr.f32.mxu0 %v15
  %1019 = vmatmul.mubr.f32.gmra.mxu0 %v14
  %v1020 = vpop.f32.mrf.mxu0
  %v1021 = vadd.f32 %v603, %v1020
  %v1022 = vpop.f32.mrf.mxu0
  %v1023 = vadd.f32 %v607, %v1022
  %1024 = vmatprep.mubr.f32.mxu0 %v19
  %1025 = vmatmul.mubr.f32.gmra.mxu0 %v18
  %v1026 = vpop.f32.mrf.mxu0
  %v1027 = vadd.f32 %v603, %v1026
  %v1028 = vpop.f32.mrf.mxu0
  %v1029 = vadd.f32 %v607, %v1028
  %1030 = vmatprep.mubr.f32.mxu0 %v23
  %1031 = vmatmul.mubr.f32.gmra.mxu0 %v22
  %v1032 = vpop.f32.mrf.mxu0
  %v1033 = vadd.f32 %v603, %v1032
  %v1034 = vpop.f32.mrf.mxu0
  %v1035 = vadd.f32 %v607, %v1034
  %1036 = vmatprep.mubr.f32.mxu0 %v27
  %1037 = vmatmul.mubr.f32.gmra.mxu0 %v26
  %v1038 = vpop.f32.mrf.mxu0
  %v1039 = vadd.f32 %v603, %v1038
  %v1040 = vpop.f32.mrf.mxu0
  %v1041 = vadd.f32 %v607, %v1040
  %1042 = vmatprep.mubr.f32.mxu0 %v31
  %1043 = vmatmul.mubr.f32.gmra.mxu0 %v30
  %v1044 = vpop.f32.mrf.mxu0
  %v1045 = vadd.f32 %v603, %v1044
  %v1046 = vpop.f32.mrf.mxu0
  %v1047 = vadd.f32 %v607, %v1046
  %1048 = vmatprep.mubr.f32.mxu0 %v35
  %1049 = vmatmul.mubr.f32.gmra.mxu0 %v34
  %v1050 = vpop.f32.mrf.mxu0
  %v1051 = vadd.f32 %v603, %v1050
  %v1052 = vpop.f32.mrf.mxu0
  %v1053 = vadd.f32 %v607, %v1052
  %1054 = vmatprep.mubr.f32.mxu0 %v39
  %1055 = vmatmul.mubr.f32.gmra.mxu0 %v38
  %v1056 = vpop.f32.mrf.mxu0
  %v1057 = vadd.f32 %v603, %v1056
  %v1058 = vpop.f32.mrf.mxu0
  %v1059 = vadd.f32 %v607, %v1058
  %1060 = vmatprep.mubr.f32.mxu0 %v43
  %1061 = vmatmul.mubr.f32.gmra.mxu0 %v42
  %v1062 = vpop.f32.mrf.mxu0
  %v1063 = vadd.f32 %v603, %v1062
  %v1064 = vpop.f32.mrf.mxu0
  %v1065 = vadd.f32 %v607, %v1064
  %1066 = vmatprep.mubr.f32.mxu0 %v47
  %1067 = vmatmul.mubr.f32.gmra.mxu0 %v46
  %v1068 = vpop.f32.mrf.mxu0
  %v1069 = vadd.f32 %v603, %v1068
  %v1070 = vpop.f32.mrf.mxu0
  %v1071 = vadd.f32 %v607, %v1070
  %1072 = vmatprep.mubr.f32.mxu0 %v51
  %1073 = vmatmul.mubr.f32.gmra.mxu0 %v50
  %v1074 = vpop.f32.mrf.mxu0
  %v1075 = vadd.f32 %v603, %v1074
  %v1076 = vpop.f32.mrf.mxu0
  %v1077 = vadd.f32 %v607, %v1076
  %1078 = vmatprep.mubr.f32.mxu0 %v55
  %1079 = vmatmul.mubr.f32.gmra.mxu0 %v54
  %v1080 = vpop.f32.mrf.mxu0
  %v1081 = vadd.f32 %v603, %v1080
  %v1082 = vpop.f32.mrf.mxu0
  %v1083 = vadd.f32 %v607, %v1082
  %1084 = vmatprep.mubr.f32.mxu0 %v59
  %1085 = vmatmul.mubr.f32.gmra.mxu0 %v58
  %v1086 = vpop.f32.mrf.mxu0
  %v1087 = vadd.f32 %v603, %v1086
  %v1088 = vpop.f32.mrf.mxu0
  %v1089 = vadd.f32 %v607, %v1088
  %1090 = vmatprep.mubr.f32.mxu0 %v63
  %1091 = vmatmul.mubr.f32.gmra.mxu0 %v62
  %v1092 = vpop.f32.mrf.mxu0
  %v1093 = vadd.f32 %v603, %v1092
  %v1094 = vpop.f32.mrf.mxu0
  %v1095 = vadd.f32 %v607, %v1094
  %1096 = vmatprep.mubr.f32.mxu0 %v67
  %1097 = vmatmul.mubr.f32.gmra.mxu0 %v66
  %v1098 = vpop.f32.mrf.mxu0
  %v1099 = vadd.f32 %v603, %v1098
  %v1100 = vpop.f32.mrf.mxu0
  %v1101 = vadd.f32 %v607, %v1100
  %1102 = vmatprep.mubr.f32.mxu0 %v71
  %1103 = vmatmul.mubr.f32.gmra.mxu0 %v70
  %v1104 = vpop.f32.mrf.mxu0
  %v1105 = vadd.f32 %v603, %v1104
  %v1106 = vpop.f32.mrf.mxu0
  %v1107 = vadd.f32 %v607, %v1106
  %1108 = vmatprep.mubr.f32.mxu0 %v75
  %1109 = vmatmul.mubr.f32.gmra.mxu0 %v74
  %v1110 = vpop.f32.mrf.mxu0
  %v1111 = vadd.f32 %v603, %v1110
  %v1112 = vpop.f32.mrf.mxu0
  %v1113 = vadd.f32 %v607, %v1112
  %1114 = vdwg.mxu0
  %1115 = vmatprep.subr.mxu0 %v457
  %1116 = vmatpush1.msra.mxu0 %v456
  %1117 = vmatprep.subr.mxu0 %v449
  %1118 = vmatpush1.msra.mxu0 %v448
  %1119 = vmatprep.subr.mxu0 %v441
  %1120 = vmatpush1.msra.mxu0 %v440
  %1121 = vmatprep.subr.mxu0 %v433
  %1122 = vmatpush1.msra.mxu0 %v432
  %1123 = vmatprep.subr.mxu0 %v425
  %1124 = vmatpush1.msra.mxu0 %v424
  %1125 = vmatprep.subr.mxu0 %v417
  %1126 = vmatpush1.msra.mxu0 %v416
  %1127 = vmatprep.subr.mxu0 %v409
  %1128 = vmatpush1.msra.mxu0 %v408
  %1129 = vmatprep.subr.mxu0 %v401
  %1130 = vmatpush1.msra.mxu0 %v400
  %1131 = vmatprep.subr.mxu0 %v393
  %1132 = vmatpush1.msra.mxu0 %v392
  %1133 = vmatprep.subr.mxu0 %v385
  %1134 = vmatpush1.msra.mxu0 %v384
  %1135 = vmatprep.subr.mxu0 %v377
  %1136 = vmatpush1.msra.mxu0 %v376
  %1137 = vmatprep.subr.mxu0 %v369
  %1138 = vmatpush1.msra.mxu0 %v368
  %1139 = vmatprep.subr.mxu0 %v361
  %1140 = vmatpush1.msra.mxu0 %v360
  %1141 = vmatprep.subr.mxu0 %v353
  %1142 = vmatpush1.msra.mxu0 %v352
  %1143 = vmatprep.subr.mxu0 %v345
  %1144 = vmatpush1.msra.mxu0 %v344
  %1145 = vmatprep.subr.mxu0 %v337
  %1146 = vmatpush1.msra.mxu0 %v336
  %1147 = vmatprep.subr.mxu0 %v585
  %1148 = vmatpush2.msra.mxu0 %v584
  %1149 = vmatprep.subr.mxu0 %v577
  %1150 = vmatpush2.msra.mxu0 %v576
  %1151 = vmatprep.subr.mxu0 %v569
  %1152 = vmatpush2.msra.mxu0 %v568
  %1153 = vmatprep.subr.mxu0 %v561
  %1154 = vmatpush2.msra.mxu0 %v560
  %1155 = vmatprep.subr.mxu0 %v553
  %1156 = vmatpush2.msra.mxu0 %v552
  %1157 = vmatprep.subr.mxu0 %v545
  %1158 = vmatpush2.msra.mxu0 %v544
  %1159 = vmatprep.subr.mxu0 %v537
  %1160 = vmatpush2.msra.mxu0 %v536
  %1161 = vmatprep.subr.mxu0 %v529
  %1162 = vmatpush2.msra.mxu0 %v528
  %1163 = vmatprep.subr.mxu0 %v521
  %1164 = vmatpush2.msra.mxu0 %v520
  %1165 = vmatprep.subr.mxu0 %v513
  %1166 = vmatpush2.msra.mxu0 %v512
  %1167 = vmatprep.subr.mxu0 %v505
  %1168 = vmatpush2.msra.mxu0 %v504
  %1169 = vmatprep.subr.mxu0 %v497
  %1170 = vmatpush2.msra.mxu0 %v496
  %1171 = vmatprep.subr.mxu0 %v489
  %1172 = vmatpush2.msra.mxu0 %v488
  %1173 = vmatprep.subr.mxu0 %v481
  %1174 = vmatpush2.msra.mxu0 %v480
  %1175 = vmatprep.subr.mxu0 %v473
  %1176 = vmatpush2.msra.mxu0 %v472
  %1177 = vmatprep.subr.mxu0 %v465
  %1178 = vmatpush2.msra.mxu0 %v464
  %1179 = vmatprep.mubr.f32.mxu0 %v17
  %1180 = vmatmul.mubr.f32.gmra.mxu0 %v16
  %v1181 = vpop.f32.mrf.mxu0
  %v1182 = vadd.f32 %v1021, %v1181
  %v1183 = vpop.f32.mrf.mxu0
  %v1184 = vadd.f32 %v1023, %v1183
  %1185 = vmatprep.mubr.f32.mxu0 %v21
  %1186 = vmatmul.mubr.f32.gmra.mxu0 %v20
  %v1187 = vpop.f32.mrf.mxu0
  %v1188 = vadd.f32 %v1027, %v1187
  %v1189 = vpop.f32.mrf.mxu0
  %v1190 = vadd.f32 %v1029, %v1189
  %1191 = vmatprep.mubr.f32.mxu0 %v25
  %1192 = vmatmul.mubr.f32.gmra.mxu0 %v24
  %v1193 = vpop.f32.mrf.mxu0
  %v1194 = vadd.f32 %v1033, %v1193
  %v1195 = vpop.f32.mrf.mxu0
  %v1196 = vadd.f32 %v1035, %v1195
  %1197 = vmatprep.mubr.f32.mxu0 %v29
  %1198 = vmatmul.mubr.f32.gmra.mxu0 %v28
  %v1199 = vpop.f32.mrf.mxu0
  %v1200 = vadd.f32 %v1039, %v1199
  %v1201 = vpop.f32.mrf.mxu0
  %v1202 = vadd.f32 %v1041, %v1201
  %1203 = vmatprep.mubr.f32.mxu0 %v33
  %1204 = vmatmul.mubr.f32.gmra.mxu0 %v32
  %v1205 = vpop.f32.mrf.mxu0
  %v1206 = vadd.f32 %v1045, %v1205
  %v1207 = vpop.f32.mrf.mxu0
  %v1208 = vadd.f32 %v1047, %v1207
  %1209 = vmatprep.mubr.f32.mxu0 %v37
  %1210 = vmatmul.mubr.f32.gmra.mxu0 %v36
  %v1211 = vpop.f32.mrf.mxu0
  %v1212 = vadd.f32 %v1051, %v1211
  %v1213 = vpop.f32.mrf.mxu0
  %v1214 = vadd.f32 %v1053, %v1213
  %1215 = vmatprep.mubr.f32.mxu0 %v41
  %1216 = vmatmul.mubr.f32.gmra.mxu0 %v40
  %v1217 = vpop.f32.mrf.mxu0
  %v1218 = vadd.f32 %v1057, %v1217
  %v1219 = vpop.f32.mrf.mxu0
  %v1220 = vadd.f32 %v1059, %v1219
  %1221 = vmatprep.mubr.f32.mxu0 %v45
  %1222 = vmatmul.mubr.f32.gmra.mxu0 %v44
  %v1223 = vpop.f32.mrf.mxu0
  %v1224 = vadd.f32 %v1063, %v1223
  %v1225 = vpop.f32.mrf.mxu0
  %v1226 = vadd.f32 %v1065, %v1225
  %1227 = vmatprep.mubr.f32.mxu0 %v49
  %1228 = vmatmul.mubr.f32.gmra.mxu0 %v48
  %v1229 = vpop.f32.mrf.mxu0
  %v1230 = vadd.f32 %v1069, %v1229
  %v1231 = vpop.f32.mrf.mxu0
  %v1232 = vadd.f32 %v1071, %v1231
  %1233 = vmatprep.mubr.f32.mxu0 %v53
  %1234 = vmatmul.mubr.f32.gmra.mxu0 %v52
  %v1235 = vpop.f32.mrf.mxu0
  %v1236 = vadd.f32 %v1075, %v1235
  %v1237 = vpop.f32.mrf.mxu0
  %v1238 = vadd.f32 %v1077, %v1237
  %1239 = vmatprep.mubr.f32.mxu0 %v57
  %1240 = vmatmul.mubr.f32.gmra.mxu0 %v56
  %v1241 = vpop.f32.mrf.mxu0
  %v1242 = vadd.f32 %v1081, %v1241
  %v1243 = vpop.f32.mrf.mxu0
  %v1244 = vadd.f32 %v1083, %v1243
  %1245 = vmatprep.mubr.f32.mxu0 %v61
  %1246 = vmatmul.mubr.f32.gmra.mxu0 %v60
  %v1247 = vpop.f32.mrf.mxu0
  %v1248 = vadd.f32 %v1087, %v1247
  %v1249 = vpop.f32.mrf.mxu0
  %v1250 = vadd.f32 %v1089, %v1249
  %1251 = vmatprep.mubr.f32.mxu0 %v65
  %1252 = vmatmul.mubr.f32.gmra.mxu0 %v64
  %v1253 = vpop.f32.mrf.mxu0
  %v1254 = vadd.f32 %v1093, %v1253
  %v1255 = vpop.f32.mrf.mxu0
  %v1256 = vadd.f32 %v1095, %v1255
  %1257 = vmatprep.mubr.f32.mxu0 %v69
  %1258 = vmatmul.mubr.f32.gmra.mxu0 %v68
  %v1259 = vpop.f32.mrf.mxu0
  %v1260 = vadd.f32 %v1099, %v1259
  %v1261 = vpop.f32.mrf.mxu0
  %v1262 = vadd.f32 %v1101, %v1261
  %1263 = vmatprep.mubr.f32.mxu0 %v73
  %1264 = vmatmul.mubr.f32.gmra.mxu0 %v72
  %v1265 = vpop.f32.mrf.mxu0
  %v1266 = vadd.f32 %v1105, %v1265
  %v1267 = vpop.f32.mrf.mxu0
  %v1268 = vadd.f32 %v1107, %v1267
  %1269 = vmatprep.mubr.f32.mxu0 %v77
  %1270 = vmatmul.mubr.f32.gmra.mxu0 %v76
  %v1271 = vpop.f32.mrf.mxu0
  %v1272 = vadd.f32 %v1111, %v1271
  %v1273 = vpop.f32.mrf.mxu0
  %v1274 = vadd.f32 %v1113, %v1273
  %1275 = vdwg.mxu0
  %1276 = vmatprep.subr.mxu0 %v203
  %1277 = vmatpush1.msra.mxu0 %v202
  %1278 = vmatprep.subr.mxu0 %v195
  %1279 = vmatpush1.msra.mxu0 %v194
  %1280 = vmatprep.subr.mxu0 %v187
  %1281 = vmatpush1.msra.mxu0 %v186
  %1282 = vmatprep.subr.mxu0 %v179
  %1283 = vmatpush1.msra.mxu0 %v178
  %1284 = vmatprep.subr.mxu0 %v171
  %1285 = vmatpush1.msra.mxu0 %v170
  %1286 = vmatprep.subr.mxu0 %v163
  %1287 = vmatpush1.msra.mxu0 %v162
  %1288 = vmatprep.subr.mxu0 %v155
  %1289 = vmatpush1.msra.mxu0 %v154
  %1290 = vmatprep.subr.mxu0 %v147
  %1291 = vmatpush1.msra.mxu0 %v146
  %1292 = vmatprep.subr.mxu0 %v139
  %1293 = vmatpush1.msra.mxu0 %v138
  %1294 = vmatprep.subr.mxu0 %v131
  %1295 = vmatpush1.msra.mxu0 %v130
  %1296 = vmatprep.subr.mxu0 %v123
  %1297 = vmatpush1.msra.mxu0 %v122
  %1298 = vmatprep.subr.mxu0 %v115
  %1299 = vmatpush1.msra.mxu0 %v114
  %1300 = vmatprep.subr.mxu0 %v107
  %1301 = vmatpush1.msra.mxu0 %v106
  %1302 = vmatprep.subr.mxu0 %v99
  %1303 = vmatpush1.msra.mxu0 %v98
  %1304 = vmatprep.subr.mxu0 %v91
  %1305 = vmatpush1.msra.mxu0 %v90
  %1306 = vmatprep.subr.mxu0 %v83
  %1307 = vmatpush1.msra.mxu0 %v82
  %1308 = vmatprep.subr.mxu0 %v331
  %1309 = vmatpush2.msra.mxu0 %v330
  %1310 = vmatprep.subr.mxu0 %v323
  %1311 = vmatpush2.msra.mxu0 %v322
  %1312 = vmatprep.subr.mxu0 %v315
  %1313 = vmatpush2.msra.mxu0 %v314
  %1314 = vmatprep.subr.mxu0 %v307
  %1315 = vmatpush2.msra.mxu0 %v306
  %1316 = vmatprep.subr.mxu0 %v299
  %1317 = vmatpush2.msra.mxu0 %v298
  %1318 = vmatprep.subr.mxu0 %v291
  %1319 = vmatpush2.msra.mxu0 %v290
  %1320 = vmatprep.subr.mxu0 %v283
  %1321 = vmatpush2.msra.mxu0 %v282
  %1322 = vmatprep.subr.mxu0 %v275
  %1323 = vmatpush2.msra.mxu0 %v274
  %1324 = vmatprep.subr.mxu0 %v267
  %1325 = vmatpush2.msra.mxu0 %v266
  %1326 = vmatprep.subr.mxu0 %v259
  %1327 = vmatpush2.msra.mxu0 %v258
  %1328 = vmatprep.subr.mxu0 %v251
  %1329 = vmatpush2.msra.mxu0 %v250
  %1330 = vmatprep.subr.mxu0 %v243
  %1331 = vmatpush2.msra.mxu0 %v242
  %1332 = vmatprep.subr.mxu0 %v235
  %1333 = vmatpush2.msra.mxu0 %v234
  %1334 = vmatprep.subr.mxu0 %v227
  %1335 = vmatpush2.msra.mxu0 %v226
  %1336 = vmatprep.subr.mxu0 %v219
  %1337 = vmatpush2.msra.mxu0 %v218
  %1338 = vmatprep.subr.mxu0 %v211
  %1339 = vmatpush2.msra.mxu0 %v210
  %1340 = vmatprep.mubr.f32.mxu0 %v15
  %1341 = vmatmul.mubr.f32.gmra.mxu0 %v14
  %v1342 = vpop.f32.mrf.mxu0
  %v1343 = vadd.f32 %v611, %v1342
  %v1344 = vpop.f32.mrf.mxu0
  %v1345 = vadd.f32 %v615, %v1344
  %1346 = vmatprep.mubr.f32.mxu0 %v19
  %1347 = vmatmul.mubr.f32.gmra.mxu0 %v18
  %v1348 = vpop.f32.mrf.mxu0
  %v1349 = vadd.f32 %v611, %v1348
  %v1350 = vpop.f32.mrf.mxu0
  %v1351 = vadd.f32 %v615, %v1350
  %1352 = vmatprep.mubr.f32.mxu0 %v23
  %1353 = vmatmul.mubr.f32.gmra.mxu0 %v22
  %v1354 = vpop.f32.mrf.mxu0
  %v1355 = vadd.f32 %v611, %v1354
  %v1356 = vpop.f32.mrf.mxu0
  %v1357 = vadd.f32 %v615, %v1356
  %1358 = vmatprep.mubr.f32.mxu0 %v27
  %1359 = vmatmul.mubr.f32.gmra.mxu0 %v26
  %v1360 = vpop.f32.mrf.mxu0
  %v1361 = vadd.f32 %v611, %v1360
  %v1362 = vpop.f32.mrf.mxu0
  %v1363 = vadd.f32 %v615, %v1362
  %1364 = vmatprep.mubr.f32.mxu0 %v31
  %1365 = vmatmul.mubr.f32.gmra.mxu0 %v30
  %v1366 = vpop.f32.mrf.mxu0
  %v1367 = vadd.f32 %v611, %v1366
  %v1368 = vpop.f32.mrf.mxu0
  %v1369 = vadd.f32 %v615, %v1368
  %1370 = vmatprep.mubr.f32.mxu0 %v35
  %1371 = vmatmul.mubr.f32.gmra.mxu0 %v34
  %v1372 = vpop.f32.mrf.mxu0
  %v1373 = vadd.f32 %v611, %v1372
  %v1374 = vpop.f32.mrf.mxu0
  %v1375 = vadd.f32 %v615, %v1374
  %1376 = vmatprep.mubr.f32.mxu0 %v39
  %1377 = vmatmul.mubr.f32.gmra.mxu0 %v38
  %v1378 = vpop.f32.mrf.mxu0
  %v1379 = vadd.f32 %v611, %v1378
  %v1380 = vpop.f32.mrf.mxu0
  %v1381 = vadd.f32 %v615, %v1380
  %1382 = vmatprep.mubr.f32.mxu0 %v43
  %1383 = vmatmul.mubr.f32.gmra.mxu0 %v42
  %v1384 = vpop.f32.mrf.mxu0
  %v1385 = vadd.f32 %v611, %v1384
  %v1386 = vpop.f32.mrf.mxu0
  %v1387 = vadd.f32 %v615, %v1386
  %1388 = vmatprep.mubr.f32.mxu0 %v47
  %1389 = vmatmul.mubr.f32.gmra.mxu0 %v46
  %v1390 = vpop.f32.mrf.mxu0
  %v1391 = vadd.f32 %v611, %v1390
  %v1392 = vpop.f32.mrf.mxu0
  %v1393 = vadd.f32 %v615, %v1392
  %1394 = vmatprep.mubr.f32.mxu0 %v51
  %1395 = vmatmul.mubr.f32.gmra.mxu0 %v50
  %v1396 = vpop.f32.mrf.mxu0
  %v1397 = vadd.f32 %v611, %v1396
  %v1398 = vpop.f32.mrf.mxu0
  %v1399 = vadd.f32 %v615, %v1398
  %1400 = vmatprep.mubr.f32.mxu0 %v55
  %1401 = vmatmul.mubr.f32.gmra.mxu0 %v54
  %v1402 = vpop.f32.mrf.mxu0
  %v1403 = vadd.f32 %v611, %v1402
  %v1404 = vpop.f32.mrf.mxu0
  %v1405 = vadd.f32 %v615, %v1404
  %1406 = vmatprep.mubr.f32.mxu0 %v59
  %1407 = vmatmul.mubr.f32.gmra.mxu0 %v58
  %v1408 = vpop.f32.mrf.mxu0
  %v1409 = vadd.f32 %v611, %v1408
  %v1410 = vpop.f32.mrf.mxu0
  %v1411 = vadd.f32 %v615, %v1410
  %1412 = vmatprep.mubr.f32.mxu0 %v63
  %1413 = vmatmul.mubr.f32.gmra.mxu0 %v62
  %v1414 = vpop.f32.mrf.mxu0
  %v1415 = vadd.f32 %v611, %v1414
  %v1416 = vpop.f32.mrf.mxu0
  %v1417 = vadd.f32 %v615, %v1416
  %1418 = vmatprep.mubr.f32.mxu0 %v67
  %1419 = vmatmul.mubr.f32.gmra.mxu0 %v66
  %v1420 = vpop.f32.mrf.mxu0
  %v1421 = vadd.f32 %v611, %v1420
  %v1422 = vpop.f32.mrf.mxu0
  %v1423 = vadd.f32 %v615, %v1422
  %1424 = vmatprep.mubr.f32.mxu0 %v71
  %1425 = vmatmul.mubr.f32.gmra.mxu0 %v70
  %v1426 = vpop.f32.mrf.mxu0
  %v1427 = vadd.f32 %v611, %v1426
  %v1428 = vpop.f32.mrf.mxu0
  %v1429 = vadd.f32 %v615, %v1428
  %1430 = vmatprep.mubr.f32.mxu0 %v75
  %1431 = vmatmul.mubr.f32.gmra.mxu0 %v74
  %v1432 = vpop.f32.mrf.mxu0
  %v1433 = vadd.f32 %v611, %v1432
  %v1434 = vpop.f32.mrf.mxu0
  %v1435 = vadd.f32 %v615, %v1434
  %1436 = vdwg.mxu0
  %1437 = vmatprep.subr.mxu0 %v459
  %1438 = vmatpush1.msra.mxu0 %v458
  %1439 = vmatprep.subr.mxu0 %v451
  %1440 = vmatpush1.msra.mxu0 %v450
  %1441 = vmatprep.subr.mxu0 %v443
  %1442 = vmatpush1.msra.mxu0 %v442
  %1443 = vmatprep.subr.mxu0 %v435
  %1444 = vmatpush1.msra.mxu0 %v434
  %1445 = vmatprep.subr.mxu0 %v427
  %1446 = vmatpush1.msra.mxu0 %v426
  %1447 = vmatprep.subr.mxu0 %v419
  %1448 = vmatpush1.msra.mxu0 %v418
  %1449 = vmatprep.subr.mxu0 %v411
  %1450 = vmatpush1.msra.mxu0 %v410
  %1451 = vmatprep.subr.mxu0 %v403
  %1452 = vmatpush1.msra.mxu0 %v402
  %1453 = vmatprep.subr.mxu0 %v395
  %1454 = vmatpush1.msra.mxu0 %v394
  %1455 = vmatprep.subr.mxu0 %v387
  %1456 = vmatpush1.msra.mxu0 %v386
  %1457 = vmatprep.subr.mxu0 %v379
  %1458 = vmatpush1.msra.mxu0 %v378
  %1459 = vmatprep.subr.mxu0 %v371
  %1460 = vmatpush1.msra.mxu0 %v370
  %1461 = vmatprep.subr.mxu0 %v363
  %1462 = vmatpush1.msra.mxu0 %v362
  %1463 = vmatprep.subr.mxu0 %v355
  %1464 = vmatpush1.msra.mxu0 %v354
  %1465 = vmatprep.subr.mxu0 %v347
  %1466 = vmatpush1.msra.mxu0 %v346
  %1467 = vmatprep.subr.mxu0 %v339
  %1468 = vmatpush1.msra.mxu0 %v338
  %1469 = vmatprep.subr.mxu0 %v587
  %1470 = vmatpush2.msra.mxu0 %v586
  %1471 = vmatprep.subr.mxu0 %v579
  %1472 = vmatpush2.msra.mxu0 %v578
  %1473 = vmatprep.subr.mxu0 %v571
  %1474 = vmatpush2.msra.mxu0 %v570
  %1475 = vmatprep.subr.mxu0 %v563
  %1476 = vmatpush2.msra.mxu0 %v562
  %1477 = vmatprep.subr.mxu0 %v555
  %1478 = vmatpush2.msra.mxu0 %v554
  %1479 = vmatprep.subr.mxu0 %v547
  %1480 = vmatpush2.msra.mxu0 %v546
  %1481 = vmatprep.subr.mxu0 %v539
  %1482 = vmatpush2.msra.mxu0 %v538
  %1483 = vmatprep.subr.mxu0 %v531
  %1484 = vmatpush2.msra.mxu0 %v530
  %1485 = vmatprep.subr.mxu0 %v523
  %1486 = vmatpush2.msra.mxu0 %v522
  %1487 = vmatprep.subr.mxu0 %v515
  %1488 = vmatpush2.msra.mxu0 %v514
  %1489 = vmatprep.subr.mxu0 %v507
  %1490 = vmatpush2.msra.mxu0 %v506
  %1491 = vmatprep.subr.mxu0 %v499
  %1492 = vmatpush2.msra.mxu0 %v498
  %1493 = vmatprep.subr.mxu0 %v491
  %1494 = vmatpush2.msra.mxu0 %v490
  %1495 = vmatprep.subr.mxu0 %v483
  %1496 = vmatpush2.msra.mxu0 %v482
  %1497 = vmatprep.subr.mxu0 %v475
  %1498 = vmatpush2.msra.mxu0 %v474
  %1499 = vmatprep.subr.mxu0 %v467
  %1500 = vmatpush2.msra.mxu0 %v466
  %1501 = vmatprep.mubr.f32.mxu0 %v17
  %1502 = vmatmul.mubr.f32.gmra.mxu0 %v16
  %v1503 = vpop.f32.mrf.mxu0
  %v1504 = vadd.f32 %v1343, %v1503
  %v1505 = vpop.f32.mrf.mxu0
  %v1506 = vadd.f32 %v1345, %v1505
  %1507 = vmatprep.mubr.f32.mxu0 %v21
  %1508 = vmatmul.mubr.f32.gmra.mxu0 %v20
  %v1509 = vpop.f32.mrf.mxu0
  %v1510 = vadd.f32 %v1349, %v1509
  %v1511 = vpop.f32.mrf.mxu0
  %v1512 = vadd.f32 %v1351, %v1511
  %1513 = vmatprep.mubr.f32.mxu0 %v25
  %1514 = vmatmul.mubr.f32.gmra.mxu0 %v24
  %v1515 = vpop.f32.mrf.mxu0
  %v1516 = vadd.f32 %v1355, %v1515
  %v1517 = vpop.f32.mrf.mxu0
  %v1518 = vadd.f32 %v1357, %v1517
  %1519 = vmatprep.mubr.f32.mxu0 %v29
  %1520 = vmatmul.mubr.f32.gmra.mxu0 %v28
  %v1521 = vpop.f32.mrf.mxu0
  %v1522 = vadd.f32 %v1361, %v1521
  %v1523 = vpop.f32.mrf.mxu0
  %v1524 = vadd.f32 %v1363, %v1523
  %1525 = vmatprep.mubr.f32.mxu0 %v33
  %1526 = vmatmul.mubr.f32.gmra.mxu0 %v32
  %v1527 = vpop.f32.mrf.mxu0
  %v1528 = vadd.f32 %v1367, %v1527
  %v1529 = vpop.f32.mrf.mxu0
  %v1530 = vadd.f32 %v1369, %v1529
  %1531 = vmatprep.mubr.f32.mxu0 %v37
  %1532 = vmatmul.mubr.f32.gmra.mxu0 %v36
  %v1533 = vpop.f32.mrf.mxu0
  %v1534 = vadd.f32 %v1373, %v1533
  %v1535 = vpop.f32.mrf.mxu0
  %v1536 = vadd.f32 %v1375, %v1535
  %1537 = vmatprep.mubr.f32.mxu0 %v41
  %1538 = vmatmul.mubr.f32.gmra.mxu0 %v40
  %v1539 = vpop.f32.mrf.mxu0
  %v1540 = vadd.f32 %v1379, %v1539
  %v1541 = vpop.f32.mrf.mxu0
  %v1542 = vadd.f32 %v1381, %v1541
  %1543 = vmatprep.mubr.f32.mxu0 %v45
  %1544 = vmatmul.mubr.f32.gmra.mxu0 %v44
  %v1545 = vpop.f32.mrf.mxu0
  %v1546 = vadd.f32 %v1385, %v1545
  %v1547 = vpop.f32.mrf.mxu0
  %v1548 = vadd.f32 %v1387, %v1547
  %1549 = vmatprep.mubr.f32.mxu0 %v49
  %1550 = vmatmul.mubr.f32.gmra.mxu0 %v48
  %v1551 = vpop.f32.mrf.mxu0
  %v1552 = vadd.f32 %v1391, %v1551
  %v1553 = vpop.f32.mrf.mxu0
  %v1554 = vadd.f32 %v1393, %v1553
  %1555 = vmatprep.mubr.f32.mxu0 %v53
  %1556 = vmatmul.mubr.f32.gmra.mxu0 %v52
  %v1557 = vpop.f32.mrf.mxu0
  %v1558 = vadd.f32 %v1397, %v1557
  %v1559 = vpop.f32.mrf.mxu0
  %v1560 = vadd.f32 %v1399, %v1559
  %1561 = vmatprep.mubr.f32.mxu0 %v57
  %1562 = vmatmul.mubr.f32.gmra.mxu0 %v56
  %v1563 = vpop.f32.mrf.mxu0
  %v1564 = vadd.f32 %v1403, %v1563
  %v1565 = vpop.f32.mrf.mxu0
  %v1566 = vadd.f32 %v1405, %v1565
  %1567 = vmatprep.mubr.f32.mxu0 %v61
  %1568 = vmatmul.mubr.f32.gmra.mxu0 %v60
  %v1569 = vpop.f32.mrf.mxu0
  %v1570 = vadd.f32 %v1409, %v1569
  %v1571 = vpop.f32.mrf.mxu0
  %v1572 = vadd.f32 %v1411, %v1571
  %1573 = vmatprep.mubr.f32.mxu0 %v65
  %1574 = vmatmul.mubr.f32.gmra.mxu0 %v64
  %v1575 = vpop.f32.mrf.mxu0
  %v1576 = vadd.f32 %v1415, %v1575
  %v1577 = vpop.f32.mrf.mxu0
  %v1578 = vadd.f32 %v1417, %v1577
  %1579 = vmatprep.mubr.f32.mxu0 %v69
  %1580 = vmatmul.mubr.f32.gmra.mxu0 %v68
  %v1581 = vpop.f32.mrf.mxu0
  %v1582 = vadd.f32 %v1421, %v1581
  %v1583 = vpop.f32.mrf.mxu0
  %v1584 = vadd.f32 %v1423, %v1583
  %1585 = vmatprep.mubr.f32.mxu0 %v73
  %1586 = vmatmul.mubr.f32.gmra.mxu0 %v72
  %v1587 = vpop.f32.mrf.mxu0
  %v1588 = vadd.f32 %v1427, %v1587
  %v1589 = vpop.f32.mrf.mxu0
  %v1590 = vadd.f32 %v1429, %v1589
  %1591 = vmatprep.mubr.f32.mxu0 %v77
  %1592 = vmatmul.mubr.f32.gmra.mxu0 %v76
  %v1593 = vpop.f32.mrf.mxu0
  %v1594 = vadd.f32 %v1433, %v1593
  %v1595 = vpop.f32.mrf.mxu0
  %v1596 = vadd.f32 %v1435, %v1595
  %1597 = vdwg.mxu0
  %1598 = vmatprep.subr.mxu0 %v205
  %1599 = vmatpush1.msra.mxu0 %v204
  %1600 = vmatprep.subr.mxu0 %v197
  %1601 = vmatpush1.msra.mxu0 %v196
  %1602 = vmatprep.subr.mxu0 %v189
  %1603 = vmatpush1.msra.mxu0 %v188
  %1604 = vmatprep.subr.mxu0 %v181
  %1605 = vmatpush1.msra.mxu0 %v180
  %1606 = vmatprep.subr.mxu0 %v173
  %1607 = vmatpush1.msra.mxu0 %v172
  %1608 = vmatprep.subr.mxu0 %v165
  %1609 = vmatpush1.msra.mxu0 %v164
  %1610 = vmatprep.subr.mxu0 %v157
  %1611 = vmatpush1.msra.mxu0 %v156
  %1612 = vmatprep.subr.mxu0 %v149
  %1613 = vmatpush1.msra.mxu0 %v148
  %1614 = vmatprep.subr.mxu0 %v141
  %1615 = vmatpush1.msra.mxu0 %v140
  %1616 = vmatprep.subr.mxu0 %v133
  %1617 = vmatpush1.msra.mxu0 %v132
  %1618 = vmatprep.subr.mxu0 %v125
  %1619 = vmatpush1.msra.mxu0 %v124
  %1620 = vmatprep.subr.mxu0 %v117
  %1621 = vmatpush1.msra.mxu0 %v116
  %1622 = vmatprep.subr.mxu0 %v109
  %1623 = vmatpush1.msra.mxu0 %v108
  %1624 = vmatprep.subr.mxu0 %v101
  %1625 = vmatpush1.msra.mxu0 %v100
  %1626 = vmatprep.subr.mxu0 %v93
  %1627 = vmatpush1.msra.mxu0 %v92
  %1628 = vmatprep.subr.mxu0 %v85
  %1629 = vmatpush1.msra.mxu0 %v84
  %1630 = vmatprep.subr.mxu0 %v333
  %1631 = vmatpush2.msra.mxu0 %v332
  %1632 = vmatprep.subr.mxu0 %v325
  %1633 = vmatpush2.msra.mxu0 %v324
  %1634 = vmatprep.subr.mxu0 %v317
  %1635 = vmatpush2.msra.mxu0 %v316
  %1636 = vmatprep.subr.mxu0 %v309
  %1637 = vmatpush2.msra.mxu0 %v308
  %1638 = vmatprep.subr.mxu0 %v301
  %1639 = vmatpush2.msra.mxu0 %v300
  %1640 = vmatprep.subr.mxu0 %v293
  %1641 = vmatpush2.msra.mxu0 %v292
  %1642 = vmatprep.subr.mxu0 %v285
  %1643 = vmatpush2.msra.mxu0 %v284
  %1644 = vmatprep.subr.mxu0 %v277
  %1645 = vmatpush2.msra.mxu0 %v276
  %1646 = vmatprep.subr.mxu0 %v269
  %1647 = vmatpush2.msra.mxu0 %v268
  %1648 = vmatprep.subr.mxu0 %v261
  %1649 = vmatpush2.msra.mxu0 %v260
  %1650 = vmatprep.subr.mxu0 %v253
  %1651 = vmatpush2.msra.mxu0 %v252
  %1652 = vmatprep.subr.mxu0 %v245
  %1653 = vmatpush2.msra.mxu0 %v244
  %1654 = vmatprep.subr.mxu0 %v237
  %1655 = vmatpush2.msra.mxu0 %v236
  %1656 = vmatprep.subr.mxu0 %v229
  %1657 = vmatpush2.msra.mxu0 %v228
  %1658 = vmatprep.subr.mxu0 %v221
  %1659 = vmatpush2.msra.mxu0 %v220
  %1660 = vmatprep.subr.mxu0 %v213
  %1661 = vmatpush2.msra.mxu0 %v212
  %1662 = vmatprep.mubr.f32.mxu0 %v15
  %1663 = vmatmul.mubr.f32.gmra.mxu0 %v14
  %v1664 = vpop.f32.mrf.mxu0
  %v1665 = vadd.f32 %v619, %v1664
  %v1666 = vpop.f32.mrf.mxu0
  %v1667 = vadd.f32 %v623, %v1666
  %1668 = vmatprep.mubr.f32.mxu0 %v19
  %1669 = vmatmul.mubr.f32.gmra.mxu0 %v18
  %v1670 = vpop.f32.mrf.mxu0
  %v1671 = vadd.f32 %v619, %v1670
  %v1672 = vpop.f32.mrf.mxu0
  %v1673 = vadd.f32 %v623, %v1672
  %1674 = vmatprep.mubr.f32.mxu0 %v23
  %1675 = vmatmul.mubr.f32.gmra.mxu0 %v22
  %v1676 = vpop.f32.mrf.mxu0
  %v1677 = vadd.f32 %v619, %v1676
  %v1678 = vpop.f32.mrf.mxu0
  %v1679 = vadd.f32 %v623, %v1678
  %1680 = vmatprep.mubr.f32.mxu0 %v27
  %1681 = vmatmul.mubr.f32.gmra.mxu0 %v26
  %v1682 = vpop.f32.mrf.mxu0
  %v1683 = vadd.f32 %v619, %v1682
  %v1684 = vpop.f32.mrf.mxu0
  %v1685 = vadd.f32 %v623, %v1684
  %1686 = vmatprep.mubr.f32.mxu0 %v31
  %1687 = vmatmul.mubr.f32.gmra.mxu0 %v30
  %v1688 = vpop.f32.mrf.mxu0
  %v1689 = vadd.f32 %v619, %v1688
  %v1690 = vpop.f32.mrf.mxu0
  %v1691 = vadd.f32 %v623, %v1690
  %1692 = vmatprep.mubr.f32.mxu0 %v35
  %1693 = vmatmul.mubr.f32.gmra.mxu0 %v34
  %v1694 = vpop.f32.mrf.mxu0
  %v1695 = vadd.f32 %v619, %v1694
  %v1696 = vpop.f32.mrf.mxu0
  %v1697 = vadd.f32 %v623, %v1696
  %1698 = vmatprep.mubr.f32.mxu0 %v39
  %1699 = vmatmul.mubr.f32.gmra.mxu0 %v38
  %v1700 = vpop.f32.mrf.mxu0
  %v1701 = vadd.f32 %v619, %v1700
  %v1702 = vpop.f32.mrf.mxu0
  %v1703 = vadd.f32 %v623, %v1702
  %1704 = vmatprep.mubr.f32.mxu0 %v43
  %1705 = vmatmul.mubr.f32.gmra.mxu0 %v42
  %v1706 = vpop.f32.mrf.mxu0
  %v1707 = vadd.f32 %v619, %v1706
  %v1708 = vpop.f32.mrf.mxu0
  %v1709 = vadd.f32 %v623, %v1708
  %1710 = vmatprep.mubr.f32.mxu0 %v47
  %1711 = vmatmul.mubr.f32.gmra.mxu0 %v46
  %v1712 = vpop.f32.mrf.mxu0
  %v1713 = vadd.f32 %v619, %v1712
  %v1714 = vpop.f32.mrf.mxu0
  %v1715 = vadd.f32 %v623, %v1714
  %1716 = vmatprep.mubr.f32.mxu0 %v51
  %1717 = vmatmul.mubr.f32.gmra.mxu0 %v50
  %v1718 = vpop.f32.mrf.mxu0
  %v1719 = vadd.f32 %v619, %v1718
  %v1720 = vpop.f32.mrf.mxu0
  %v1721 = vadd.f32 %v623, %v1720
  %1722 = vmatprep.mubr.f32.mxu0 %v55
  %1723 = vmatmul.mubr.f32.gmra.mxu0 %v54
  %v1724 = vpop.f32.mrf.mxu0
  %v1725 = vadd.f32 %v619, %v1724
  %v1726 = vpop.f32.mrf.mxu0
  %v1727 = vadd.f32 %v623, %v1726
  %1728 = vmatprep.mubr.f32.mxu0 %v59
  %1729 = vmatmul.mubr.f32.gmra.mxu0 %v58
  %v1730 = vpop.f32.mrf.mxu0
  %v1731 = vadd.f32 %v619, %v1730
  %v1732 = vpop.f32.mrf.mxu0
  %v1733 = vadd.f32 %v623, %v1732
  %1734 = vmatprep.mubr.f32.mxu0 %v63
  %1735 = vmatmul.mubr.f32.gmra.mxu0 %v62
  %v1736 = vpop.f32.mrf.mxu0
  %v1737 = vadd.f32 %v619, %v1736
  %v1738 = vpop.f32.mrf.mxu0
  %v1739 = vadd.f32 %v623, %v1738
  %1740 = vmatprep.mubr.f32.mxu0 %v67
  %1741 = vmatmul.mubr.f32.gmra.mxu0 %v66
  %v1742 = vpop.f32.mrf.mxu0
  %v1743 = vadd.f32 %v619, %v1742
  %v1744 = vpop.f32.mrf.mxu0
  %v1745 = vadd.f32 %v623, %v1744
  %1746 = vmatprep.mubr.f32.mxu0 %v71
  %1747 = vmatmul.mubr.f32.gmra.mxu0 %v70
  %v1748 = vpop.f32.mrf.mxu0
  %v1749 = vadd.f32 %v619, %v1748
  %v1750 = vpop.f32.mrf.mxu0
  %v1751 = vadd.f32 %v623, %v1750
  %1752 = vmatprep.mubr.f32.mxu0 %v75
  %1753 = vmatmul.mubr.f32.gmra.mxu0 %v74
  %v1754 = vpop.f32.mrf.mxu0
  %v1755 = vadd.f32 %v619, %v1754
  %v1756 = vpop.f32.mrf.mxu0
  %v1757 = vadd.f32 %v623, %v1756
  %1758 = vdwg.mxu0
  %1759 = vmatprep.subr.mxu0 %v461
  %1760 = vmatpush1.msra.mxu0 %v460
  %1761 = vmatprep.subr.mxu0 %v453
  %1762 = vmatpush1.msra.mxu0 %v452
  %1763 = vmatprep.subr.mxu0 %v445
  %1764 = vmatpush1.msra.mxu0 %v444
  %1765 = vmatprep.subr.mxu0 %v437
  %1766 = vmatpush1.msra.mxu0 %v436
  %1767 = vmatprep.subr.mxu0 %v429
  %1768 = vmatpush1.msra.mxu0 %v428
  %1769 = vmatprep.subr.mxu0 %v421
  %1770 = vmatpush1.msra.mxu0 %v420
  %1771 = vmatprep.subr.mxu0 %v413
  %1772 = vmatpush1.msra.mxu0 %v412
  %1773 = vmatprep.subr.mxu0 %v405
  %1774 = vmatpush1.msra.mxu0 %v404
  %1775 = vmatprep.subr.mxu0 %v397
  %1776 = vmatpush1.msra.mxu0 %v396
  %1777 = vmatprep.subr.mxu0 %v389
  %1778 = vmatpush1.msra.mxu0 %v388
  %1779 = vmatprep.subr.mxu0 %v381
  %1780 = vmatpush1.msra.mxu0 %v380
  %1781 = vmatprep.subr.mxu0 %v373
  %1782 = vmatpush1.msra.mxu0 %v372
  %1783 = vmatprep.subr.mxu0 %v365
  %1784 = vmatpush1.msra.mxu0 %v364
  %1785 = vmatprep.subr.mxu0 %v357
  %1786 = vmatpush1.msra.mxu0 %v356
  %1787 = vmatprep.subr.mxu0 %v349
  %1788 = vmatpush1.msra.mxu0 %v348
  %1789 = vmatprep.subr.mxu0 %v341
  %1790 = vmatpush1.msra.mxu0 %v340
  %1791 = vmatprep.subr.mxu0 %v589
  %1792 = vmatpush2.msra.mxu0 %v588
  %1793 = vmatprep.subr.mxu0 %v581
  %1794 = vmatpush2.msra.mxu0 %v580
  %1795 = vmatprep.subr.mxu0 %v573
  %1796 = vmatpush2.msra.mxu0 %v572
  %1797 = vmatprep.subr.mxu0 %v565
  %1798 = vmatpush2.msra.mxu0 %v564
  %1799 = vmatprep.subr.mxu0 %v557
  %1800 = vmatpush2.msra.mxu0 %v556
  %1801 = vmatprep.subr.mxu0 %v549
  %1802 = vmatpush2.msra.mxu0 %v548
  %1803 = vmatprep.subr.mxu0 %v541
  %1804 = vmatpush2.msra.mxu0 %v540
  %1805 = vmatprep.subr.mxu0 %v533
  %1806 = vmatpush2.msra.mxu0 %v532
  %1807 = vmatprep.subr.mxu0 %v525
  %1808 = vmatpush2.msra.mxu0 %v524
  %1809 = vmatprep.subr.mxu0 %v517
  %1810 = vmatpush2.msra.mxu0 %v516
  %1811 = vmatprep.subr.mxu0 %v509
  %1812 = vmatpush2.msra.mxu0 %v508
  %1813 = vmatprep.subr.mxu0 %v501
  %1814 = vmatpush2.msra.mxu0 %v500
  %1815 = vmatprep.subr.mxu0 %v493
  %1816 = vmatpush2.msra.mxu0 %v492
  %1817 = vmatprep.subr.mxu0 %v485
  %1818 = vmatpush2.msra.mxu0 %v484
  %1819 = vmatprep.subr.mxu0 %v477
  %1820 = vmatpush2.msra.mxu0 %v476
  %1821 = vmatprep.subr.mxu0 %v469
  %1822 = vmatpush2.msra.mxu0 %v468
  %1823 = vmatprep.mubr.f32.mxu0 %v17
  %1824 = vmatmul.mubr.f32.gmra.mxu0 %v16
  %v1825 = vpop.f32.mrf.mxu0
  %v1826 = vadd.f32 %v1665, %v1825
  %v1827 = vpop.f32.mrf.mxu0
  %v1828 = vadd.f32 %v1667, %v1827
  %1829 = vmatprep.mubr.f32.mxu0 %v21
  %1830 = vmatmul.mubr.f32.gmra.mxu0 %v20
  %v1831 = vpop.f32.mrf.mxu0
  %v1832 = vadd.f32 %v1671, %v1831
  %v1833 = vpop.f32.mrf.mxu0
  %v1834 = vadd.f32 %v1673, %v1833
  %1835 = vmatprep.mubr.f32.mxu0 %v25
  %1836 = vmatmul.mubr.f32.gmra.mxu0 %v24
  %v1837 = vpop.f32.mrf.mxu0
  %v1838 = vadd.f32 %v1677, %v1837
  %v1839 = vpop.f32.mrf.mxu0
  %v1840 = vadd.f32 %v1679, %v1839
  %1841 = vmatprep.mubr.f32.mxu0 %v29
  %1842 = vmatmul.mubr.f32.gmra.mxu0 %v28
  %v1843 = vpop.f32.mrf.mxu0
  %v1844 = vadd.f32 %v1683, %v1843
  %v1845 = vpop.f32.mrf.mxu0
  %v1846 = vadd.f32 %v1685, %v1845
  %1847 = vmatprep.mubr.f32.mxu0 %v33
  %1848 = vmatmul.mubr.f32.gmra.mxu0 %v32
  %v1849 = vpop.f32.mrf.mxu0
  %v1850 = vadd.f32 %v1689, %v1849
  %v1851 = vpop.f32.mrf.mxu0
  %v1852 = vadd.f32 %v1691, %v1851
  %1853 = vmatprep.mubr.f32.mxu0 %v37
  %1854 = vmatmul.mubr.f32.gmra.mxu0 %v36
  %v1855 = vpop.f32.mrf.mxu0
  %v1856 = vadd.f32 %v1695, %v1855
  %v1857 = vpop.f32.mrf.mxu0
  %v1858 = vadd.f32 %v1697, %v1857
  %1859 = vmatprep.mubr.f32.mxu0 %v41
  %1860 = vmatmul.mubr.f32.gmra.mxu0 %v40
  %v1861 = vpop.f32.mrf.mxu0
  %v1862 = vadd.f32 %v1701, %v1861
  %v1863 = vpop.f32.mrf.mxu0
  %v1864 = vadd.f32 %v1703, %v1863
  %1865 = vmatprep.mubr.f32.mxu0 %v45
  %1866 = vmatmul.mubr.f32.gmra.mxu0 %v44
  %v1867 = vpop.f32.mrf.mxu0
  %v1868 = vadd.f32 %v1707, %v1867
  %v1869 = vpop.f32.mrf.mxu0
  %v1870 = vadd.f32 %v1709, %v1869
  %1871 = vmatprep.mubr.f32.mxu0 %v49
  %1872 = vmatmul.mubr.f32.gmra.mxu0 %v48
  %v1873 = vpop.f32.mrf.mxu0
  %v1874 = vadd.f32 %v1713, %v1873
  %v1875 = vpop.f32.mrf.mxu0
  %v1876 = vadd.f32 %v1715, %v1875
  %1877 = vmatprep.mubr.f32.mxu0 %v53
  %1878 = vmatmul.mubr.f32.gmra.mxu0 %v52
  %v1879 = vpop.f32.mrf.mxu0
  %v1880 = vadd.f32 %v1719, %v1879
  %v1881 = vpop.f32.mrf.mxu0
  %v1882 = vadd.f32 %v1721, %v1881
  %1883 = vmatprep.mubr.f32.mxu0 %v57
  %1884 = vmatmul.mubr.f32.gmra.mxu0 %v56
  %v1885 = vpop.f32.mrf.mxu0
  %v1886 = vadd.f32 %v1725, %v1885
  %v1887 = vpop.f32.mrf.mxu0
  %v1888 = vadd.f32 %v1727, %v1887
  %1889 = vmatprep.mubr.f32.mxu0 %v61
  %1890 = vmatmul.mubr.f32.gmra.mxu0 %v60
  %v1891 = vpop.f32.mrf.mxu0
  %v1892 = vadd.f32 %v1731, %v1891
  %v1893 = vpop.f32.mrf.mxu0
  %v1894 = vadd.f32 %v1733, %v1893
  %1895 = vmatprep.mubr.f32.mxu0 %v65
  %1896 = vmatmul.mubr.f32.gmra.mxu0 %v64
  %v1897 = vpop.f32.mrf.mxu0
  %v1898 = vadd.f32 %v1737, %v1897
  %v1899 = vpop.f32.mrf.mxu0
  %v1900 = vadd.f32 %v1739, %v1899
  %1901 = vmatprep.mubr.f32.mxu0 %v69
  %1902 = vmatmul.mubr.f32.gmra.mxu0 %v68
  %v1903 = vpop.f32.mrf.mxu0
  %v1904 = vadd.f32 %v1743, %v1903
  %v1905 = vpop.f32.mrf.mxu0
  %v1906 = vadd.f32 %v1745, %v1905
  %1907 = vmatprep.mubr.f32.mxu0 %v73
  %1908 = vmatmul.mubr.f32.gmra.mxu0 %v72
  %v1909 = vpop.f32.mrf.mxu0
  %v1910 = vadd.f32 %v1749, %v1909
  %v1911 = vpop.f32.mrf.mxu0
  %v1912 = vadd.f32 %v1751, %v1911
  %1913 = vmatprep.mubr.f32.mxu0 %v77
  %1914 = vmatmul.mubr.f32.gmra.mxu0 %v76
  %v1915 = vpop.f32.mrf.mxu0
  %v1916 = vadd.f32 %v1755, %v1915
  %v1917 = vpop.f32.mrf.mxu0
  %v1918 = vadd.f32 %v1757, %v1917
  %1919 = vdwg.mxu0
  %1920 = vst [vmem:[%s3] sm:$0xff] %v860
  %1921 = vst [vmem:[%s3 + $0x8] sm:$0xff] %v862
  %1922 = vst [vmem:[%s3 + $0x10] sm:$0xff] %v1182
  %1923 = vst [vmem:[%s3 + $0x18] sm:$0xff] %v1184
  %1924 = vst [vmem:[%s3 + $0x20] sm:$0xff] %v1504
  %1925 = vst [vmem:[%s3 + $0x28] sm:$0xff] %v1506
  %1926 = vst [vmem:[%s3 + $0x30] sm:$0xff] %v1826
  %1927 = vst [vmem:[%s3 + $0x38] sm:$0xff] %v1828
  %1928 = vst [vmem:[%s3 + $0x40] sm:$0xff] %v866
  %1929 = vst [vmem:[%s3 + $0x48] sm:$0xff] %v868
  %1930 = vst [vmem:[%s3 + $0x50] sm:$0xff] %v1188
  %1931 = vst [vmem:[%s3 + $0x58] sm:$0xff] %v1190
  %1932 = vst [vmem:[%s3 + $0x60] sm:$0xff] %v1510
  %1933 = vst [vmem:[%s3 + $0x68] sm:$0xff] %v1512
  %1934 = vst [vmem:[%s3 + $0x70] sm:$0xff] %v1832
  %1935 = vst [vmem:[%s3 + $0x78] sm:$0xff] %v1834
  %1936 = vst [vmem:[%s3 + $0x80] sm:$0xff] %v872
  %1937 = vst [vmem:[%s3 + $0x88] sm:$0xff] %v874
  %1938 = vst [vmem:[%s3 + $0x90] sm:$0xff] %v1194
  %1939 = vst [vmem:[%s3 + $0x98] sm:$0xff] %v1196
  %1940 = vst [vmem:[%s3 + $0xa0] sm:$0xff] %v1516
  %1941 = vst [vmem:[%s3 + $0xa8] sm:$0xff] %v1518
  %1942 = vst [vmem:[%s3 + $0xb0] sm:$0xff] %v1838
  %1943 = vst [vmem:[%s3 + $0xb8] sm:$0xff] %v1840
  %1944 = vst [vmem:[%s3 + $0xc0] sm:$0xff] %v878
  %1945 = vst [vmem:[%s3 + $0xc8] sm:$0xff] %v880
  %1946 = vst [vmem:[%s3 + $0xd0] sm:$0xff] %v1200
  %1947 = vst [vmem:[%s3 + $0xd8] sm:$0xff] %v1202
  %1948 = vst [vmem:[%s3 + $0xe0] sm:$0xff] %v1522
  %1949 = vst [vmem:[%s3 + $0xe8] sm:$0xff] %v1524
  %1950 = vst [vmem:[%s3 + $0xf0] sm:$0xff] %v1844
  %1951 = vst [vmem:[%s3 + $0xf8] sm:$0xff] %v1846
  %1952 = vst [vmem:[%s3 + $0x100] sm:$0xff] %v884
  %1953 = vst [vmem:[%s3 + $0x108] sm:$0xff] %v886
  %1954 = vst [vmem:[%s3 + $0x110] sm:$0xff] %v1206
  %1955 = vst [vmem:[%s3 + $0x118] sm:$0xff] %v1208
  %1956 = vst [vmem:[%s3 + $0x120] sm:$0xff] %v1528
  %1957 = vst [vmem:[%s3 + $0x128] sm:$0xff] %v1530
  %1958 = vst [vmem:[%s3 + $0x130] sm:$0xff] %v1850
  %1959 = vst [vmem:[%s3 + $0x138] sm:$0xff] %v1852
  %1960 = vst [vmem:[%s3 + $0x140] sm:$0xff] %v890
  %1961 = vst [vmem:[%s3 + $0x148] sm:$0xff] %v892
  %1962 = vst [vmem:[%s3 + $0x150] sm:$0xff] %v1212
  %1963 = vst [vmem:[%s3 + $0x158] sm:$0xff] %v1214
  %1964 = vst [vmem:[%s3 + $0x160] sm:$0xff] %v1534
  %1965 = vst [vmem:[%s3 + $0x168] sm:$0xff] %v1536
  %1966 = vst [vmem:[%s3 + $0x170] sm:$0xff] %v1856
  %1967 = vst [vmem:[%s3 + $0x178] sm:$0xff] %v1858
  %1968 = vst [vmem:[%s3 + $0x180] sm:$0xff] %v896
  %1969 = vst [vmem:[%s3 + $0x188] sm:$0xff] %v898
  %1970 = vst [vmem:[%s3 + $0x190] sm:$0xff] %v1218
  %1971 = vst [vmem:[%s3 + $0x198] sm:$0xff] %v1220
  %1972 = vst [vmem:[%s3 + $0x1a0] sm:$0xff] %v1540
  %1973 = vst [vmem:[%s3 + $0x1a8] sm:$0xff] %v1542
  %1974 = vst [vmem:[%s3 + $0x1b0] sm:$0xff] %v1862
  %1975 = vst [vmem:[%s3 + $0x1b8] sm:$0xff] %v1864
  %1976 = vst [vmem:[%s3 + $0x1c0] sm:$0xff] %v902
  %1977 = vst [vmem:[%s3 + $0x1c8] sm:$0xff] %v904
  %1978 = vst [vmem:[%s3 + $0x1d0] sm:$0xff] %v1224
  %1979 = vst [vmem:[%s3 + $0x1d8] sm:$0xff] %v1226
  %1980 = vst [vmem:[%s3 + $0x1e0] sm:$0xff] %v1546
  %1981 = vst [vmem:[%s3 + $0x1e8] sm:$0xff] %v1548
  %1982 = vst [vmem:[%s3 + $0x1f0] sm:$0xff] %v1868
  %1983 = vst [vmem:[%s3 + $0x1f8] sm:$0xff] %v1870
  %1984 = vst [vmem:[%s3 + $0x200] sm:$0xff] %v908
  %1985 = vst [vmem:[%s3 + $0x208] sm:$0xff] %v910
  %1986 = vst [vmem:[%s3 + $0x210] sm:$0xff] %v1230
  %1987 = vst [vmem:[%s3 + $0x218] sm:$0xff] %v1232
  %1988 = vst [vmem:[%s3 + $0x220] sm:$0xff] %v1552
  %1989 = vst [vmem:[%s3 + $0x228] sm:$0xff] %v1554
  %1990 = vst [vmem:[%s3 + $0x230] sm:$0xff] %v1874
  %1991 = vst [vmem:[%s3 + $0x238] sm:$0xff] %v1876
  %1992 = vst [vmem:[%s3 + $0x240] sm:$0xff] %v914
  %1993 = vst [vmem:[%s3 + $0x248] sm:$0xff] %v916
  %1994 = vst [vmem:[%s3 + $0x250] sm:$0xff] %v1236
  %1995 = vst [vmem:[%s3 + $0x258] sm:$0xff] %v1238
  %1996 = vst [vmem:[%s3 + $0x260] sm:$0xff] %v1558
  %1997 = vst [vmem:[%s3 + $0x268] sm:$0xff] %v1560
  %1998 = vst [vmem:[%s3 + $0x270] sm:$0xff] %v1880
  %1999 = vst [vmem:[%s3 + $0x278] sm:$0xff] %v1882
  %2000 = vst [vmem:[%s3 + $0x280] sm:$0xff] %v920
  %2001 = vst [vmem:[%s3 + $0x288] sm:$0xff] %v922
  %2002 = vst [vmem:[%s3 + $0x290] sm:$0xff] %v1242
  %2003 = vst [vmem:[%s3 + $0x298] sm:$0xff] %v1244
  %2004 = vst [vmem:[%s3 + $0x2a0] sm:$0xff] %v1564
  %2005 = vst [vmem:[%s3 + $0x2a8] sm:$0xff] %v1566
  %2006 = vst [vmem:[%s3 + $0x2b0] sm:$0xff] %v1886
  %2007 = vst [vmem:[%s3 + $0x2b8] sm:$0xff] %v1888
  %2008 = vst [vmem:[%s3 + $0x2c0] sm:$0xff] %v926
  %2009 = vst [vmem:[%s3 + $0x2c8] sm:$0xff] %v928
  %2010 = vst [vmem:[%s3 + $0x2d0] sm:$0xff] %v1248
  %2011 = vst [vmem:[%s3 + $0x2d8] sm:$0xff] %v1250
  %2012 = vst [vmem:[%s3 + $0x2e0] sm:$0xff] %v1570
  %2013 = vst [vmem:[%s3 + $0x2e8] sm:$0xff] %v1572
  %2014 = vst [vmem:[%s3 + $0x2f0] sm:$0xff] %v1892
  %2015 = vst [vmem:[%s3 + $0x2f8] sm:$0xff] %v1894
  %2016 = vst [vmem:[%s3 + $0x300] sm:$0xff] %v932
  %2017 = vst [vmem:[%s3 + $0x308] sm:$0xff] %v934
  %2018 = vst [vmem:[%s3 + $0x310] sm:$0xff] %v1254
  %2019 = vst [vmem:[%s3 + $0x318] sm:$0xff] %v1256
  %2020 = vst [vmem:[%s3 + $0x320] sm:$0xff] %v1576
  %2021 = vst [vmem:[%s3 + $0x328] sm:$0xff] %v1578
  %2022 = vst [vmem:[%s3 + $0x330] sm:$0xff] %v1898
  %2023 = vst [vmem:[%s3 + $0x338] sm:$0xff] %v1900
  %2024 = vst [vmem:[%s3 + $0x340] sm:$0xff] %v938
  %2025 = vst [vmem:[%s3 + $0x348] sm:$0xff] %v940
  %2026 = vst [vmem:[%s3 + $0x350] sm:$0xff] %v1260
  %2027 = vst [vmem:[%s3 + $0x358] sm:$0xff] %v1262
  %2028 = vst [vmem:[%s3 + $0x360] sm:$0xff] %v1582
  %2029 = vst [vmem:[%s3 + $0x368] sm:$0xff] %v1584
  %2030 = vst [vmem:[%s3 + $0x370] sm:$0xff] %v1904
  %2031 = vst [vmem:[%s3 + $0x378] sm:$0xff] %v1906
  %2032 = vst [vmem:[%s3 + $0x380] sm:$0xff] %v944
  %2033 = vst [vmem:[%s3 + $0x388] sm:$0xff] %v946
  %2034 = vst [vmem:[%s3 + $0x390] sm:$0xff] %v1266
  %2035 = vst [vmem:[%s3 + $0x398] sm:$0xff] %v1268
  %2036 = vst [vmem:[%s3 + $0x3a0] sm:$0xff] %v1588
  %2037 = vst [vmem:[%s3 + $0x3a8] sm:$0xff] %v1590
  %2038 = vst [vmem:[%s3 + $0x3b0] sm:$0xff] %v1910
  %2039 = vst [vmem:[%s3 + $0x3b8] sm:$0xff] %v1912
  %2040 = vst [vmem:[%s3 + $0x3c0] sm:$0xff] %v950
  %2041 = vst [vmem:[%s3 + $0x3c8] sm:$0xff] %v952
  %2042 = vst [vmem:[%s3 + $0x3d0] sm:$0xff] %v1272
  %2043 = vst [vmem:[%s3 + $0x3d8] sm:$0xff] %v1274
  %2044 = vst [vmem:[%s3 + $0x3e0] sm:$0xff] %v1594
  %2045 = vst [vmem:[%s3 + $0x3e8] sm:$0xff] %v1596
  %2046 = vst [vmem:[%s3 + $0x3f0] sm:$0xff] %v1916
  %2047 = vst [vmem:[%s3 + $0x3f8] sm:$0xff] %v1918
  // Predicated region
  $region14: #{res50_layer4_forward.19} parent=0 // pred_check
    _
  $region15: #{res50_layer4_forward.19} parent=0 // pred_check_branch
    %2049 = sbr.rel (0) target = $region17
  $region16: #{res50_layer4_forward.19} parent=0 // pred_region
    _
  $region17: #{res50_layer4_forward.19} parent=0 // pred_fallthru
    _
  // Predicated region
  $region18: #{res50_layer4_forward.19} parent=0 // pred_check
    _
  $region19: #{res50_layer4_forward.19} parent=0 // pred_check_branch
    %2051 = sbr.rel (0) target = $region21
  $region20: #{res50_layer4_forward.19} parent=0 // pred_region
    _
  $region21: #{res50_layer4_forward.19} parent=0 // pred_fallthru
    _

// kernel: res50_layer4_forward.22
$region0: #{res50_layer4_forward.22}
  #allocation0 [shape = 'u32[]', space=smem, size = 0x4, offset = 0x4, fixed_abs, tag = 'smem constant byte address 0x4 - core index']
  #allocation1 [shape = 'u32[144,128]{1,0:T(1,128)}', space=vmem, size = 0x12000, scoped, tag = 'internal scratch']
  %s0 = inlined_call_operand.vmem [shape: f32[128,256], index: 0, kind: input, shape index: {}]
  %s1 = inlined_call_operand.vmem [shape: f32[256,1024], index: 1, kind: input, shape index: {}]
  %s2 = inlined_call_operand.vmem [shape: f32[1,1024], index: 2, kind: input, shape index: {}]
  %s3 = inlined_call_operand.vmem [shape: f32[128,1024], index: 3, kind: input, shape index: {}]
  %s4 = inlined_call_operand.vmem [shape: f32[128,1024], index: 4, kind: output, shape index: {}]
  %s5 = sld [smem:[#allocation0]]
  $region26: #{res50_layer4_forward.22} parent=0
    _
  %s7 = ssub.s32 1, %s5
  %s8 = scalar_select 0, %s7, %s5
  // Predicated region
  $region2: #{res50_layer4_forward.22} parent=0 // pred_check
    _
  $region3: #{res50_layer4_forward.22} parent=0 // pred_check_branch
    %10 = sbr.rel (0) target = $region5
  $region4: #{res50_layer4_forward.22} parent=0 // pred_region
    _
  $region5: #{res50_layer4_forward.22} parent=0 // pred_fallthru
    _
  // Predicated region
  $region6: #{res50_layer4_forward.22} parent=0 // pred_check
    _
  $region7: #{res50_layer4_forward.22} parent=0 // pred_check_branch
    %12 = sbr.rel (0) target = $region9
  $region8: #{res50_layer4_forward.22} parent=0 // pred_region
    _
  $region9: #{res50_layer4_forward.22} parent=0 // pred_fallthru
    _
  // Predicated region
  $region10: #{res50_layer4_forward.22} parent=0 // pred_check
    _
  $region11: #{res50_layer4_forward.22} parent=0 // pred_check_branch
    %14 = sbr.rel (0) target = $region13
  $region12: #{res50_layer4_forward.22} parent=0 // pred_region
    _
  $region13: #{res50_layer4_forward.22} parent=0 // pred_fallthru
    _
  // Predicated region
  $region14: #{res50_layer4_forward.22} parent=0 // pred_check
    _
  $region15: #{res50_layer4_forward.22} parent=0 // pred_check_branch
    %16 = sbr.rel (0) target = $region17
  $region16: #{res50_layer4_forward.22} parent=0 // pred_region
    _
  $region17: #{res50_layer4_forward.22} parent=0 // pred_fallthru
    _
  %v17 = vld [vmem:[%s0] sm:$0xff]
  %v18 = vld [vmem:[%s0 + $0x8] sm:$0xff]
  %v19 = vld [vmem:[%s0 + $0x10] sm:$0xff]
  %v20 = vld [vmem:[%s0 + $0x18] sm:$0xff]
  %v21 = vld [vmem:[%s0 + $0x20] sm:$0xff]
  %v22 = vld [vmem:[%s0 + $0x28] sm:$0xff]
  %v23 = vld [vmem:[%s0 + $0x30] sm:$0xff]
  %v24 = vld [vmem:[%s0 + $0x38] sm:$0xff]
  %v25 = vld [vmem:[%s0 + $0x40] sm:$0xff]
  %v26 = vld [vmem:[%s0 + $0x48] sm:$0xff]
  %v27 = vld [vmem:[%s0 + $0x50] sm:$0xff]
  %v28 = vld [vmem:[%s0 + $0x58] sm:$0xff]
  %v29 = vld [vmem:[%s0 + $0x60] sm:$0xff]
  %v30 = vld [vmem:[%s0 + $0x68] sm:$0xff]
  %v31 = vld [vmem:[%s0 + $0x70] sm:$0xff]
  %v32 = vld [vmem:[%s0 + $0x78] sm:$0xff]
  %v33 = vld [vmem:[%s0 + $0x80] sm:$0xff]
  %v34 = vld [vmem:[%s0 + $0x88] sm:$0xff]
  %v35 = vld [vmem:[%s0 + $0x90] sm:$0xff]
  %v36 = vld [vmem:[%s0 + $0x98] sm:$0xff]
  %v37 = vld [vmem:[%s0 + $0xa0] sm:$0xff]
  %v38 = vld [vmem:[%s0 + $0xa8] sm:$0xff]
  %v39 = vld [vmem:[%s0 + $0xb0] sm:$0xff]
  %v40 = vld [vmem:[%s0 + $0xb8] sm:$0xff]
  %v41 = vld [vmem:[%s0 + $0xc0] sm:$0xff]
  %v42 = vld [vmem:[%s0 + $0xc8] sm:$0xff]
  %v43 = vld [vmem:[%s0 + $0xd0] sm:$0xff]
  %v44 = vld [vmem:[%s0 + $0xd8] sm:$0xff]
  %v45 = vld [vmem:[%s0 + $0xe0] sm:$0xff]
  %v46 = vld [vmem:[%s0 + $0xe8] sm:$0xff]
  %v47 = vld [vmem:[%s0 + $0xf0] sm:$0xff]
  %v48 = vld [vmem:[%s0 + $0xf8] sm:$0xff]
  %v49 = vld [vmem:[%s1] sm:$0xff]
  %v50 = vld [vmem:[%s1 + $0x8] sm:$0xff]
  %v51 = vld [vmem:[%s1 + $0x10] sm:$0xff]
  %v52 = vld [vmem:[%s1 + $0x18] sm:$0xff]
  %v53 = vld [vmem:[%s1 + $0x20] sm:$0xff]
  %v54 = vld [vmem:[%s1 + $0x28] sm:$0xff]
  %v55 = vld [vmem:[%s1 + $0x30] sm:$0xff]
  %v56 = vld [vmem:[%s1 + $0x38] sm:$0xff]
  %v57 = vld [vmem:[%s1 + $0x40] sm:$0xff]
  %v58 = vld [vmem:[%s1 + $0x48] sm:$0xff]
  %v59 = vld [vmem:[%s1 + $0x50] sm:$0xff]
  %v60 = vld [vmem:[%s1 + $0x58] sm:$0xff]
  %v61 = vld [vmem:[%s1 + $0x60] sm:$0xff]
  %v62 = vld [vmem:[%s1 + $0x68] sm:$0xff]
  %v63 = vld [vmem:[%s1 + $0x70] sm:$0xff]
  %v64 = vld [vmem:[%s1 + $0x78] sm:$0xff]
  %v65 = vld [vmem:[%s1 + $0x80] sm:$0xff]
  %v66 = vld [vmem:[%s1 + $0x88] sm:$0xff]
  %v67 = vld [vmem:[%s1 + $0x90] sm:$0xff]
  %v68 = vld [vmem:[%s1 + $0x98] sm:$0xff]
  %v69 = vld [vmem:[%s1 + $0xa0] sm:$0xff]
  %v70 = vld [vmem:[%s1 + $0xa8] sm:$0xff]
  %v71 = vld [vmem:[%s1 + $0xb0] sm:$0xff]
  %v72 = vld [vmem:[%s1 + $0xb8] sm:$0xff]
  %v73 = vld [vmem:[%s1 + $0xc0] sm:$0xff]
  %v74 = vld [vmem:[%s1 + $0xc8] sm:$0xff]
  %v75 = vld [vmem:[%s1 + $0xd0] sm:$0xff]
  %v76 = vld [vmem:[%s1 + $0xd8] sm:$0xff]
  %v77 = vld [vmem:[%s1 + $0xe0] sm:$0xff]
  %v78 = vld [vmem:[%s1 + $0xe8] sm:$0xff]
  %v79 = vld [vmem:[%s1 + $0xf0] sm:$0xff]
  %v80 = vld [vmem:[%s1 + $0xf8] sm:$0xff]
  %v81 = vld [vmem:[%s1 + $0x100] sm:$0xff]
  %v82 = vld [vmem:[%s1 + $0x108] sm:$0xff]
  %v83 = vld [vmem:[%s1 + $0x110] sm:$0xff]
  %v84 = vld [vmem:[%s1 + $0x118] sm:$0xff]
  %v85 = vld [vmem:[%s1 + $0x120] sm:$0xff]
  %v86 = vld [vmem:[%s1 + $0x128] sm:$0xff]
  %v87 = vld [vmem:[%s1 + $0x130] sm:$0xff]
  %v88 = vld [vmem:[%s1 + $0x138] sm:$0xff]
  %v89 = vld [vmem:[%s1 + $0x140] sm:$0xff]
  %v90 = vld [vmem:[%s1 + $0x148] sm:$0xff]
  %v91 = vld [vmem:[%s1 + $0x150] sm:$0xff]
  %v92 = vld [vmem:[%s1 + $0x158] sm:$0xff]
  %v93 = vld [vmem:[%s1 + $0x160] sm:$0xff]
  %v94 = vld [vmem:[%s1 + $0x168] sm:$0xff]
  %v95 = vld [vmem:[%s1 + $0x170] sm:$0xff]
  %v96 = vld [vmem:[%s1 + $0x178] sm:$0xff]
  %v97 = vld [vmem:[%s1 + $0x180] sm:$0xff]
  %v98 = vld [vmem:[%s1 + $0x188] sm:$0xff]
  %v99 = vld [vmem:[%s1 + $0x190] sm:$0xff]
  %v100 = vld [vmem:[%s1 + $0x198] sm:$0xff]
  %v101 = vld [vmem:[%s1 + $0x1a0] sm:$0xff]
  %v102 = vld [vmem:[%s1 + $0x1a8] sm:$0xff]
  %v103 = vld [vmem:[%s1 + $0x1b0] sm:$0xff]
  %v104 = vld [vmem:[%s1 + $0x1b8] sm:$0xff]
  %v105 = vld [vmem:[%s1 + $0x1c0] sm:$0xff]
  %v106 = vld [vmem:[%s1 + $0x1c8] sm:$0xff]
  %v107 = vld [vmem:[%s1 + $0x1d0] sm:$0xff]
  %v108 = vld [vmem:[%s1 + $0x1d8] sm:$0xff]
  %v109 = vld [vmem:[%s1 + $0x1e0] sm:$0xff]
  %v110 = vld [vmem:[%s1 + $0x1e8] sm:$0xff]
  %v111 = vld [vmem:[%s1 + $0x1f0] sm:$0xff]
  %v112 = vld [vmem:[%s1 + $0x1f8] sm:$0xff]
  %v113 = vld [vmem:[%s1 + $0x200] sm:$0xff]
  %v114 = vld [vmem:[%s1 + $0x208] sm:$0xff]
  %v115 = vld [vmem:[%s1 + $0x210] sm:$0xff]
  %v116 = vld [vmem:[%s1 + $0x218] sm:$0xff]
  %v117 = vld [vmem:[%s1 + $0x220] sm:$0xff]
  %v118 = vld [vmem:[%s1 + $0x228] sm:$0xff]
  %v119 = vld [vmem:[%s1 + $0x230] sm:$0xff]
  %v120 = vld [vmem:[%s1 + $0x238] sm:$0xff]
  %v121 = vld [vmem:[%s1 + $0x240] sm:$0xff]
  %v122 = vld [vmem:[%s1 + $0x248] sm:$0xff]
  %v123 = vld [vmem:[%s1 + $0x250] sm:$0xff]
  %v124 = vld [vmem:[%s1 + $0x258] sm:$0xff]
  %v125 = vld [vmem:[%s1 + $0x260] sm:$0xff]
  %v126 = vld [vmem:[%s1 + $0x268] sm:$0xff]
  %v127 = vld [vmem:[%s1 + $0x270] sm:$0xff]
  %v128 = vld [vmem:[%s1 + $0x278] sm:$0xff]
  %v129 = vld [vmem:[%s1 + $0x280] sm:$0xff]
  %v130 = vld [vmem:[%s1 + $0x288] sm:$0xff]
  %v131 = vld [vmem:[%s1 + $0x290] sm:$0xff]
  %v132 = vld [vmem:[%s1 + $0x298] sm:$0xff]
  %v133 = vld [vmem:[%s1 + $0x2a0] sm:$0xff]
  %v134 = vld [vmem:[%s1 + $0x2a8] sm:$0xff]
  %v135 = vld [vmem:[%s1 + $0x2b0] sm:$0xff]
  %v136 = vld [vmem:[%s1 + $0x2b8] sm:$0xff]
  %v137 = vld [vmem:[%s1 + $0x2c0] sm:$0xff]
  %v138 = vld [vmem:[%s1 + $0x2c8] sm:$0xff]
  %v139 = vld [vmem:[%s1 + $0x2d0] sm:$0xff]
  %v140 = vld [vmem:[%s1 + $0x2d8] sm:$0xff]
  %v141 = vld [vmem:[%s1 + $0x2e0] sm:$0xff]
  %v142 = vld [vmem:[%s1 + $0x2e8] sm:$0xff]
  %v143 = vld [vmem:[%s1 + $0x2f0] sm:$0xff]
  %v144 = vld [vmem:[%s1 + $0x2f8] sm:$0xff]
  %v145 = vld [vmem:[%s1 + $0x300] sm:$0xff]
  %v146 = vld [vmem:[%s1 + $0x308] sm:$0xff]
  %v147 = vld [vmem:[%s1 + $0x310] sm:$0xff]
  %v148 = vld [vmem:[%s1 + $0x318] sm:$0xff]
  %v149 = vld [vmem:[%s1 + $0x320] sm:$0xff]
  %v150 = vld [vmem:[%s1 + $0x328] sm:$0xff]
  %v151 = vld [vmem:[%s1 + $0x330] sm:$0xff]
  %v152 = vld [vmem:[%s1 + $0x338] sm:$0xff]
  %v153 = vld [vmem:[%s1 + $0x340] sm:$0xff]
  %v154 = vld [vmem:[%s1 + $0x348] sm:$0xff]
  %v155 = vld [vmem:[%s1 + $0x350] sm:$0xff]
  %v156 = vld [vmem:[%s1 + $0x358] sm:$0xff]
  %v157 = vld [vmem:[%s1 + $0x360] sm:$0xff]
  %v158 = vld [vmem:[%s1 + $0x368] sm:$0xff]
  %v159 = vld [vmem:[%s1 + $0x370] sm:$0xff]
  %v160 = vld [vmem:[%s1 + $0x378] sm:$0xff]
  %v161 = vld [vmem:[%s1 + $0x380] sm:$0xff]
  %v162 = vld [vmem:[%s1 + $0x388] sm:$0xff]
  %v163 = vld [vmem:[%s1 + $0x390] sm:$0xff]
  %v164 = vld [vmem:[%s1 + $0x398] sm:$0xff]
  %v165 = vld [vmem:[%s1 + $0x3a0] sm:$0xff]
  %v166 = vld [vmem:[%s1 + $0x3a8] sm:$0xff]
  %v167 = vld [vmem:[%s1 + $0x3b0] sm:$0xff]
  %v168 = vld [vmem:[%s1 + $0x3b8] sm:$0xff]
  %v169 = vld [vmem:[%s1 + $0x3c0] sm:$0xff]
  %v170 = vld [vmem:[%s1 + $0x3c8] sm:$0xff]
  %v171 = vld [vmem:[%s1 + $0x3d0] sm:$0xff]
  %v172 = vld [vmem:[%s1 + $0x3d8] sm:$0xff]
  %v173 = vld [vmem:[%s1 + $0x3e0] sm:$0xff]
  %v174 = vld [vmem:[%s1 + $0x3e8] sm:$0xff]
  %v175 = vld [vmem:[%s1 + $0x3f0] sm:$0xff]
  %v176 = vld [vmem:[%s1 + $0x3f8] sm:$0xff]
  %v177 = vld [vmem:[%s1 + $0x400] sm:$0xff]
  %v178 = vld [vmem:[%s1 + $0x408] sm:$0xff]
  %v179 = vld [vmem:[%s1 + $0x410] sm:$0xff]
  %v180 = vld [vmem:[%s1 + $0x418] sm:$0xff]
  %v181 = vld [vmem:[%s1 + $0x420] sm:$0xff]
  %v182 = vld [vmem:[%s1 + $0x428] sm:$0xff]
  %v183 = vld [vmem:[%s1 + $0x430] sm:$0xff]
  %v184 = vld [vmem:[%s1 + $0x438] sm:$0xff]
  %v185 = vld [vmem:[%s1 + $0x440] sm:$0xff]
  %v186 = vld [vmem:[%s1 + $0x448] sm:$0xff]
  %v187 = vld [vmem:[%s1 + $0x450] sm:$0xff]
  %v188 = vld [vmem:[%s1 + $0x458] sm:$0xff]
  %v189 = vld [vmem:[%s1 + $0x460] sm:$0xff]
  %v190 = vld [vmem:[%s1 + $0x468] sm:$0xff]
  %v191 = vld [vmem:[%s1 + $0x470] sm:$0xff]
  %v192 = vld [vmem:[%s1 + $0x478] sm:$0xff]
  %v193 = vld [vmem:[%s1 + $0x480] sm:$0xff]
  %v194 = vld [vmem:[%s1 + $0x488] sm:$0xff]
  %v195 = vld [vmem:[%s1 + $0x490] sm:$0xff]
  %v196 = vld [vmem:[%s1 + $0x498] sm:$0xff]
  %v197 = vld [vmem:[%s1 + $0x4a0] sm:$0xff]
  %v198 = vld [vmem:[%s1 + $0x4a8] sm:$0xff]
  %v199 = vld [vmem:[%s1 + $0x4b0] sm:$0xff]
  %v200 = vld [vmem:[%s1 + $0x4b8] sm:$0xff]
  %v201 = vld [vmem:[%s1 + $0x4c0] sm:$0xff]
  %v202 = vld [vmem:[%s1 + $0x4c8] sm:$0xff]
  %v203 = vld [vmem:[%s1 + $0x4d0] sm:$0xff]
  %v204 = vld [vmem:[%s1 + $0x4d8] sm:$0xff]
  %v205 = vld [vmem:[%s1 + $0x4e0] sm:$0xff]
  %v206 = vld [vmem:[%s1 + $0x4e8] sm:$0xff]
  %v207 = vld [vmem:[%s1 + $0x4f0] sm:$0xff]
  %v208 = vld [vmem:[%s1 + $0x4f8] sm:$0xff]
  %v209 = vld [vmem:[%s1 + $0x500] sm:$0xff]
  %v210 = vld [vmem:[%s1 + $0x508] sm:$0xff]
  %v211 = vld [vmem:[%s1 + $0x510] sm:$0xff]
  %v212 = vld [vmem:[%s1 + $0x518] sm:$0xff]
  %v213 = vld [vmem:[%s1 + $0x520] sm:$0xff]
  %v214 = vld [vmem:[%s1 + $0x528] sm:$0xff]
  %v215 = vld [vmem:[%s1 + $0x530] sm:$0xff]
  %v216 = vld [vmem:[%s1 + $0x538] sm:$0xff]
  %v217 = vld [vmem:[%s1 + $0x540] sm:$0xff]
  %v218 = vld [vmem:[%s1 + $0x548] sm:$0xff]
  %v219 = vld [vmem:[%s1 + $0x550] sm:$0xff]
  %v220 = vld [vmem:[%s1 + $0x558] sm:$0xff]
  %v221 = vld [vmem:[%s1 + $0x560] sm:$0xff]
  %v222 = vld [vmem:[%s1 + $0x568] sm:$0xff]
  %v223 = vld [vmem:[%s1 + $0x570] sm:$0xff]
  %v224 = vld [vmem:[%s1 + $0x578] sm:$0xff]
  %v225 = vld [vmem:[%s1 + $0x580] sm:$0xff]
  %v226 = vld [vmem:[%s1 + $0x588] sm:$0xff]
  %v227 = vld [vmem:[%s1 + $0x590] sm:$0xff]
  %v228 = vld [vmem:[%s1 + $0x598] sm:$0xff]
  %v229 = vld [vmem:[%s1 + $0x5a0] sm:$0xff]
  %v230 = vld [vmem:[%s1 + $0x5a8] sm:$0xff]
  %v231 = vld [vmem:[%s1 + $0x5b0] sm:$0xff]
  %v232 = vld [vmem:[%s1 + $0x5b8] sm:$0xff]
  %v233 = vld [vmem:[%s1 + $0x5c0] sm:$0xff]
  %v234 = vld [vmem:[%s1 + $0x5c8] sm:$0xff]
  %v235 = vld [vmem:[%s1 + $0x5d0] sm:$0xff]
  %v236 = vld [vmem:[%s1 + $0x5d8] sm:$0xff]
  %v237 = vld [vmem:[%s1 + $0x5e0] sm:$0xff]
  %v238 = vld [vmem:[%s1 + $0x5e8] sm:$0xff]
  %v239 = vld [vmem:[%s1 + $0x5f0] sm:$0xff]
  %v240 = vld [vmem:[%s1 + $0x5f8] sm:$0xff]
  %v241 = vld [vmem:[%s1 + $0x600] sm:$0xff]
  %v242 = vld [vmem:[%s1 + $0x608] sm:$0xff]
  %v243 = vld [vmem:[%s1 + $0x610] sm:$0xff]
  %v244 = vld [vmem:[%s1 + $0x618] sm:$0xff]
  %v245 = vld [vmem:[%s1 + $0x620] sm:$0xff]
  %v246 = vld [vmem:[%s1 + $0x628] sm:$0xff]
  %v247 = vld [vmem:[%s1 + $0x630] sm:$0xff]
  %v248 = vld [vmem:[%s1 + $0x638] sm:$0xff]
  %v249 = vld [vmem:[%s1 + $0x640] sm:$0xff]
  %v250 = vld [vmem:[%s1 + $0x648] sm:$0xff]
  %v251 = vld [vmem:[%s1 + $0x650] sm:$0xff]
  %v252 = vld [vmem:[%s1 + $0x658] sm:$0xff]
  %v253 = vld [vmem:[%s1 + $0x660] sm:$0xff]
  %v254 = vld [vmem:[%s1 + $0x668] sm:$0xff]
  %v255 = vld [vmem:[%s1 + $0x670] sm:$0xff]
  %v256 = vld [vmem:[%s1 + $0x678] sm:$0xff]
  %v257 = vld [vmem:[%s1 + $0x680] sm:$0xff]
  %v258 = vld [vmem:[%s1 + $0x688] sm:$0xff]
  %v259 = vld [vmem:[%s1 + $0x690] sm:$0xff]
  %v260 = vld [vmem:[%s1 + $0x698] sm:$0xff]
  %v261 = vld [vmem:[%s1 + $0x6a0] sm:$0xff]
  %v262 = vld [vmem:[%s1 + $0x6a8] sm:$0xff]
  %v263 = vld [vmem:[%s1 + $0x6b0] sm:$0xff]
  %v264 = vld [vmem:[%s1 + $0x6b8] sm:$0xff]
  %v265 = vld [vmem:[%s1 + $0x6c0] sm:$0xff]
  %v266 = vld [vmem:[%s1 + $0x6c8] sm:$0xff]
  %v267 = vld [vmem:[%s1 + $0x6d0] sm:$0xff]
  %v268 = vld [vmem:[%s1 + $0x6d8] sm:$0xff]
  %v269 = vld [vmem:[%s1 + $0x6e0] sm:$0xff]
  %v270 = vld [vmem:[%s1 + $0x6e8] sm:$0xff]
  %v271 = vld [vmem:[%s1 + $0x6f0] sm:$0xff]
  %v272 = vld [vmem:[%s1 + $0x6f8] sm:$0xff]
  %v273 = vld [vmem:[%s1 + $0x700] sm:$0xff]
  %v274 = vld [vmem:[%s1 + $0x708] sm:$0xff]
  %v275 = vld [vmem:[%s1 + $0x710] sm:$0xff]
  %v276 = vld [vmem:[%s1 + $0x718] sm:$0xff]
  %v277 = vld [vmem:[%s1 + $0x720] sm:$0xff]
  %v278 = vld [vmem:[%s1 + $0x728] sm:$0xff]
  %v279 = vld [vmem:[%s1 + $0x730] sm:$0xff]
  %v280 = vld [vmem:[%s1 + $0x738] sm:$0xff]
  %v281 = vld [vmem:[%s1 + $0x740] sm:$0xff]
  %v282 = vld [vmem:[%s1 + $0x748] sm:$0xff]
  %v283 = vld [vmem:[%s1 + $0x750] sm:$0xff]
  %v284 = vld [vmem:[%s1 + $0x758] sm:$0xff]
  %v285 = vld [vmem:[%s1 + $0x760] sm:$0xff]
  %v286 = vld [vmem:[%s1 + $0x768] sm:$0xff]
  %v287 = vld [vmem:[%s1 + $0x770] sm:$0xff]
  %v288 = vld [vmem:[%s1 + $0x778] sm:$0xff]
  %v289 = vld [vmem:[%s1 + $0x780] sm:$0xff]
  %v290 = vld [vmem:[%s1 + $0x788] sm:$0xff]
  %v291 = vld [vmem:[%s1 + $0x790] sm:$0xff]
  %v292 = vld [vmem:[%s1 + $0x798] sm:$0xff]
  %v293 = vld [vmem:[%s1 + $0x7a0] sm:$0xff]
  %v294 = vld [vmem:[%s1 + $0x7a8] sm:$0xff]
  %v295 = vld [vmem:[%s1 + $0x7b0] sm:$0xff]
  %v296 = vld [vmem:[%s1 + $0x7b8] sm:$0xff]
  %v297 = vld [vmem:[%s1 + $0x7c0] sm:$0xff]
  %v298 = vld [vmem:[%s1 + $0x7c8] sm:$0xff]
  %v299 = vld [vmem:[%s1 + $0x7d0] sm:$0xff]
  %v300 = vld [vmem:[%s1 + $0x7d8] sm:$0xff]
  %v301 = vld [vmem:[%s1 + $0x7e0] sm:$0xff]
  %v302 = vld [vmem:[%s1 + $0x7e8] sm:$0xff]
  %v303 = vld [vmem:[%s1 + $0x7f0] sm:$0xff]
  %v304 = vld [vmem:[%s1 + $0x7f8] sm:$0xff]
  %v305 = vld [vmem:[%s2] sm:$0xff]
  %v307 = vlaneseq
  %v308 = vshrl.u32 %v307, 7
  %v309 = vsub.s32 0, %v308
  %v310 = vrot.slane %v305, %v309
  %v311 = vlaneseq
  %v312 = vshrl.u32 %v311, 7
  %v313 = vsub.s32 1, %v312
  %v314 = vrot.slane %v305, %v313
  %v315 = vlaneseq
  %v316 = vshrl.u32 %v315, 7
  %v317 = vsub.s32 2, %v316
  %v318 = vrot.slane %v305, %v317
  %v319 = vlaneseq
  %v320 = vshrl.u32 %v319, 7
  %v321 = vsub.s32 3, %v320
  %v322 = vrot.slane %v305, %v321
  %v323 = vlaneseq
  %v324 = vshrl.u32 %v323, 7
  %v325 = vsub.s32 4, %v324
  %v326 = vrot.slane %v305, %v325
  %v327 = vlaneseq
  %v328 = vshrl.u32 %v327, 7
  %v329 = vsub.s32 5, %v328
  %v330 = vrot.slane %v305, %v329
  %v331 = vlaneseq
  %v332 = vshrl.u32 %v331, 7
  %v333 = vsub.s32 6, %v332
  %v334 = vrot.slane %v305, %v333
  %v335 = vlaneseq
  %v336 = vshrl.u32 %v335, 7
  %v337 = vsub.s32 7, %v336
  %v338 = vrot.slane %v305, %v337
  %347 = vmatprep.subr.mxu0 %v170
  %348 = vmatpush1.msra.mxu0 %v169
  %349 = vmatprep.subr.mxu0 %v162
  %350 = vmatpush1.msra.mxu0 %v161
  %351 = vmatprep.subr.mxu0 %v154
  %352 = vmatpush1.msra.mxu0 %v153
  %353 = vmatprep.subr.mxu0 %v146
  %354 = vmatpush1.msra.mxu0 %v145
  %355 = vmatprep.subr.mxu0 %v138
  %356 = vmatpush1.msra.mxu0 %v137
  %357 = vmatprep.subr.mxu0 %v130
  %358 = vmatpush1.msra.mxu0 %v129
  %359 = vmatprep.subr.mxu0 %v122
  %360 = vmatpush1.msra.mxu0 %v121
  %361 = vmatprep.subr.mxu0 %v114
  %362 = vmatpush1.msra.mxu0 %v113
  %363 = vmatprep.subr.mxu0 %v106
  %364 = vmatpush1.msra.mxu0 %v105
  %365 = vmatprep.subr.mxu0 %v98
  %366 = vmatpush1.msra.mxu0 %v97
  %367 = vmatprep.subr.mxu0 %v90
  %368 = vmatpush1.msra.mxu0 %v89
  %369 = vmatprep.subr.mxu0 %v82
  %370 = vmatpush1.msra.mxu0 %v81
  %371 = vmatprep.subr.mxu0 %v74
  %372 = vmatpush1.msra.mxu0 %v73
  %373 = vmatprep.subr.mxu0 %v66
  %374 = vmatpush1.msra.mxu0 %v65
  %375 = vmatprep.subr.mxu0 %v58
  %376 = vmatpush1.msra.mxu0 %v57
  %377 = vmatprep.subr.mxu0 %v50
  %378 = vmatpush1.msra.mxu0 %v49
  %379 = vmatprep.subr.mxu0 %v298
  %380 = vmatpush2.msra.mxu0 %v297
  %381 = vmatprep.subr.mxu0 %v290
  %382 = vmatpush2.msra.mxu0 %v289
  %383 = vmatprep.subr.mxu0 %v282
  %384 = vmatpush2.msra.mxu0 %v281
  %385 = vmatprep.subr.mxu0 %v274
  %386 = vmatpush2.msra.mxu0 %v273
  %387 = vmatprep.subr.mxu0 %v266
  %388 = vmatpush2.msra.mxu0 %v265
  %389 = vmatprep.subr.mxu0 %v258
  %390 = vmatpush2.msra.mxu0 %v257
  %391 = vmatprep.subr.mxu0 %v250
  %392 = vmatpush2.msra.mxu0 %v249
  %393 = vmatprep.subr.mxu0 %v242
  %394 = vmatpush2.msra.mxu0 %v241
  %395 = vmatprep.subr.mxu0 %v234
  %396 = vmatpush2.msra.mxu0 %v233
  %397 = vmatprep.subr.mxu0 %v226
  %398 = vmatpush2.msra.mxu0 %v225
  %399 = vmatprep.subr.mxu0 %v218
  %400 = vmatpush2.msra.mxu0 %v217
  %401 = vmatprep.subr.mxu0 %v210
  %402 = vmatpush2.msra.mxu0 %v209
  %403 = vmatprep.subr.mxu0 %v202
  %404 = vmatpush2.msra.mxu0 %v201
  %405 = vmatprep.subr.mxu0 %v194
  %406 = vmatpush2.msra.mxu0 %v193
  %407 = vmatprep.subr.mxu0 %v186
  %408 = vmatpush2.msra.mxu0 %v185
  %409 = vmatprep.subr.mxu0 %v178
  %410 = vmatpush2.msra.mxu0 %v177
  %411 = vmatprep.mubr.f32.mxu0 %v18
  %412 = vmatmul.mubr.f32.gmra.mxu0 %v17
  %v413 = vpop.f32.mrf.mxu0
  %v414 = vadd.f32 %v310, %v413
  %v415 = vpop.f32.mrf.mxu0
  %v416 = vadd.f32 %v314, %v415
  %417 = vmatprep.mubr.f32.mxu0 %v20
  %418 = vmatmul.mubr.f32.gmra.mxu0 %v19
  %v419 = vpop.f32.mrf.mxu0
  %v420 = vadd.f32 %v310, %v419
  %v421 = vpop.f32.mrf.mxu0
  %v422 = vadd.f32 %v314, %v421
  %423 = vmatprep.mubr.f32.mxu0 %v22
  %424 = vmatmul.mubr.f32.gmra.mxu0 %v21
  %v425 = vpop.f32.mrf.mxu0
  %v426 = vadd.f32 %v310, %v425
  %v427 = vpop.f32.mrf.mxu0
  %v428 = vadd.f32 %v314, %v427
  %429 = vmatprep.mubr.f32.mxu0 %v24
  %430 = vmatmul.mubr.f32.gmra.mxu0 %v23
  %v431 = vpop.f32.mrf.mxu0
  %v432 = vadd.f32 %v310, %v431
  %v433 = vpop.f32.mrf.mxu0
  %v434 = vadd.f32 %v314, %v433
  %435 = vmatprep.mubr.f32.mxu0 %v26
  %436 = vmatmul.mubr.f32.gmra.mxu0 %v25
  %v437 = vpop.f32.mrf.mxu0
  %v438 = vadd.f32 %v310, %v437
  %v439 = vpop.f32.mrf.mxu0
  %v440 = vadd.f32 %v314, %v439
  %441 = vmatprep.mubr.f32.mxu0 %v28
  %442 = vmatmul.mubr.f32.gmra.mxu0 %v27
  %v443 = vpop.f32.mrf.mxu0
  %v444 = vadd.f32 %v310, %v443
  %v445 = vpop.f32.mrf.mxu0
  %v446 = vadd.f32 %v314, %v445
  %447 = vmatprep.mubr.f32.mxu0 %v30
  %448 = vmatmul.mubr.f32.gmra.mxu0 %v29
  %v449 = vpop.f32.mrf.mxu0
  %v450 = vadd.f32 %v310, %v449
  %v451 = vpop.f32.mrf.mxu0
  %v452 = vadd.f32 %v314, %v451
  %453 = vmatprep.mubr.f32.mxu0 %v32
  %454 = vmatmul.mubr.f32.gmra.mxu0 %v31
  %v455 = vpop.f32.mrf.mxu0
  %v456 = vadd.f32 %v310, %v455
  %v457 = vpop.f32.mrf.mxu0
  %v458 = vadd.f32 %v314, %v457
  %459 = vmatprep.mubr.f32.mxu0 %v34
  %460 = vmatmul.mubr.f32.gmra.mxu0 %v33
  %v461 = vpop.f32.mrf.mxu0
  %v462 = vadd.f32 %v310, %v461
  %v463 = vpop.f32.mrf.mxu0
  %v464 = vadd.f32 %v314, %v463
  %465 = vmatprep.mubr.f32.mxu0 %v36
  %466 = vmatmul.mubr.f32.gmra.mxu0 %v35
  %v467 = vpop.f32.mrf.mxu0
  %v468 = vadd.f32 %v310, %v467
  %v469 = vpop.f32.mrf.mxu0
  %v470 = vadd.f32 %v314, %v469
  %471 = vmatprep.mubr.f32.mxu0 %v38
  %472 = vmatmul.mubr.f32.gmra.mxu0 %v37
  %v473 = vpop.f32.mrf.mxu0
  %v474 = vadd.f32 %v310, %v473
  %v475 = vpop.f32.mrf.mxu0
  %v476 = vadd.f32 %v314, %v475
  %477 = vmatprep.mubr.f32.mxu0 %v40
  %478 = vmatmul.mubr.f32.gmra.mxu0 %v39
  %v479 = vpop.f32.mrf.mxu0
  %v480 = vadd.f32 %v310, %v479
  %v481 = vpop.f32.mrf.mxu0
  %v482 = vadd.f32 %v314, %v481
  %483 = vmatprep.mubr.f32.mxu0 %v42
  %484 = vmatmul.mubr.f32.gmra.mxu0 %v41
  %v485 = vpop.f32.mrf.mxu0
  %v486 = vadd.f32 %v310, %v485
  %v487 = vpop.f32.mrf.mxu0
  %v488 = vadd.f32 %v314, %v487
  %489 = vmatprep.mubr.f32.mxu0 %v44
  %490 = vmatmul.mubr.f32.gmra.mxu0 %v43
  %v491 = vpop.f32.mrf.mxu0
  %v492 = vadd.f32 %v310, %v491
  %v493 = vpop.f32.mrf.mxu0
  %v494 = vadd.f32 %v314, %v493
  %495 = vmatprep.mubr.f32.mxu0 %v46
  %496 = vmatmul.mubr.f32.gmra.mxu0 %v45
  %v497 = vpop.f32.mrf.mxu0
  %v498 = vadd.f32 %v310, %v497
  %v499 = vpop.f32.mrf.mxu0
  %v500 = vadd.f32 %v314, %v499
  %501 = vmatprep.mubr.f32.mxu0 %v48
  %502 = vmatmul.mubr.f32.gmra.mxu0 %v47
  %v503 = vpop.f32.mrf.mxu0
  %v504 = vadd.f32 %v310, %v503
  %v505 = vpop.f32.mrf.mxu0
  %v506 = vadd.f32 %v314, %v505
  %507 = vdwg.mxu0
  %508 = vmatprep.subr.mxu0 %v172
  %509 = vmatpush1.msra.mxu0 %v171
  %510 = vmatprep.subr.mxu0 %v164
  %511 = vmatpush1.msra.mxu0 %v163
  %512 = vmatprep.subr.mxu0 %v156
  %513 = vmatpush1.msra.mxu0 %v155
  %514 = vmatprep.subr.mxu0 %v148
  %515 = vmatpush1.msra.mxu0 %v147
  %516 = vmatprep.subr.mxu0 %v140
  %517 = vmatpush1.msra.mxu0 %v139
  %518 = vmatprep.subr.mxu0 %v132
  %519 = vmatpush1.msra.mxu0 %v131
  %520 = vmatprep.subr.mxu0 %v124
  %521 = vmatpush1.msra.mxu0 %v123
  %522 = vmatprep.subr.mxu0 %v116
  %523 = vmatpush1.msra.mxu0 %v115
  %524 = vmatprep.subr.mxu0 %v108
  %525 = vmatpush1.msra.mxu0 %v107
  %526 = vmatprep.subr.mxu0 %v100
  %527 = vmatpush1.msra.mxu0 %v99
  %528 = vmatprep.subr.mxu0 %v92
  %529 = vmatpush1.msra.mxu0 %v91
  %530 = vmatprep.subr.mxu0 %v84
  %531 = vmatpush1.msra.mxu0 %v83
  %532 = vmatprep.subr.mxu0 %v76
  %533 = vmatpush1.msra.mxu0 %v75
  %534 = vmatprep.subr.mxu0 %v68
  %535 = vmatpush1.msra.mxu0 %v67
  %536 = vmatprep.subr.mxu0 %v60
  %537 = vmatpush1.msra.mxu0 %v59
  %538 = vmatprep.subr.mxu0 %v52
  %539 = vmatpush1.msra.mxu0 %v51
  %540 = vmatprep.subr.mxu0 %v300
  %541 = vmatpush2.msra.mxu0 %v299
  %542 = vmatprep.subr.mxu0 %v292
  %543 = vmatpush2.msra.mxu0 %v291
  %544 = vmatprep.subr.mxu0 %v284
  %545 = vmatpush2.msra.mxu0 %v283
  %546 = vmatprep.subr.mxu0 %v276
  %547 = vmatpush2.msra.mxu0 %v275
  %548 = vmatprep.subr.mxu0 %v268
  %549 = vmatpush2.msra.mxu0 %v267
  %550 = vmatprep.subr.mxu0 %v260
  %551 = vmatpush2.msra.mxu0 %v259
  %552 = vmatprep.subr.mxu0 %v252
  %553 = vmatpush2.msra.mxu0 %v251
  %554 = vmatprep.subr.mxu0 %v244
  %555 = vmatpush2.msra.mxu0 %v243
  %556 = vmatprep.subr.mxu0 %v236
  %557 = vmatpush2.msra.mxu0 %v235
  %558 = vmatprep.subr.mxu0 %v228
  %559 = vmatpush2.msra.mxu0 %v227
  %560 = vmatprep.subr.mxu0 %v220
  %561 = vmatpush2.msra.mxu0 %v219
  %562 = vmatprep.subr.mxu0 %v212
  %563 = vmatpush2.msra.mxu0 %v211
  %564 = vmatprep.subr.mxu0 %v204
  %565 = vmatpush2.msra.mxu0 %v203
  %566 = vmatprep.subr.mxu0 %v196
  %567 = vmatpush2.msra.mxu0 %v195
  %568 = vmatprep.subr.mxu0 %v188
  %569 = vmatpush2.msra.mxu0 %v187
  %570 = vmatprep.subr.mxu0 %v180
  %571 = vmatpush2.msra.mxu0 %v179
  %572 = vmatprep.mubr.f32.mxu0 %v18
  %573 = vmatmul.mubr.f32.gmra.mxu0 %v17
  %v574 = vpop.f32.mrf.mxu0
  %v575 = vadd.f32 %v318, %v574
  %v576 = vpop.f32.mrf.mxu0
  %v577 = vadd.f32 %v322, %v576
  %578 = vmatprep.mubr.f32.mxu0 %v20
  %579 = vmatmul.mubr.f32.gmra.mxu0 %v19
  %v580 = vpop.f32.mrf.mxu0
  %v581 = vadd.f32 %v318, %v580
  %v582 = vpop.f32.mrf.mxu0
  %v583 = vadd.f32 %v322, %v582
  %584 = vmatprep.mubr.f32.mxu0 %v22
  %585 = vmatmul.mubr.f32.gmra.mxu0 %v21
  %v586 = vpop.f32.mrf.mxu0
  %v587 = vadd.f32 %v318, %v586
  %v588 = vpop.f32.mrf.mxu0
  %v589 = vadd.f32 %v322, %v588
  %590 = vmatprep.mubr.f32.mxu0 %v24
  %591 = vmatmul.mubr.f32.gmra.mxu0 %v23
  %v592 = vpop.f32.mrf.mxu0
  %v593 = vadd.f32 %v318, %v592
  %v594 = vpop.f32.mrf.mxu0
  %v595 = vadd.f32 %v322, %v594
  %596 = vmatprep.mubr.f32.mxu0 %v26
  %597 = vmatmul.mubr.f32.gmra.mxu0 %v25
  %v598 = vpop.f32.mrf.mxu0
  %v599 = vadd.f32 %v318, %v598
  %v600 = vpop.f32.mrf.mxu0
  %v601 = vadd.f32 %v322, %v600
  %602 = vmatprep.mubr.f32.mxu0 %v28
  %603 = vmatmul.mubr.f32.gmra.mxu0 %v27
  %v604 = vpop.f32.mrf.mxu0
  %v605 = vadd.f32 %v318, %v604
  %v606 = vpop.f32.mrf.mxu0
  %v607 = vadd.f32 %v322, %v606
  %608 = vmatprep.mubr.f32.mxu0 %v30
  %609 = vmatmul.mubr.f32.gmra.mxu0 %v29
  %v610 = vpop.f32.mrf.mxu0
  %v611 = vadd.f32 %v318, %v610
  %v612 = vpop.f32.mrf.mxu0
  %v613 = vadd.f32 %v322, %v612
  %614 = vmatprep.mubr.f32.mxu0 %v32
  %615 = vmatmul.mubr.f32.gmra.mxu0 %v31
  %v616 = vpop.f32.mrf.mxu0
  %v617 = vadd.f32 %v318, %v616
  %v618 = vpop.f32.mrf.mxu0
  %v619 = vadd.f32 %v322, %v618
  %620 = vmatprep.mubr.f32.mxu0 %v34
  %621 = vmatmul.mubr.f32.gmra.mxu0 %v33
  %v622 = vpop.f32.mrf.mxu0
  %v623 = vadd.f32 %v318, %v622
  %v624 = vpop.f32.mrf.mxu0
  %v625 = vadd.f32 %v322, %v624
  %626 = vmatprep.mubr.f32.mxu0 %v36
  %627 = vmatmul.mubr.f32.gmra.mxu0 %v35
  %v628 = vpop.f32.mrf.mxu0
  %v629 = vadd.f32 %v318, %v628
  %v630 = vpop.f32.mrf.mxu0
  %v631 = vadd.f32 %v322, %v630
  %632 = vmatprep.mubr.f32.mxu0 %v38
  %633 = vmatmul.mubr.f32.gmra.mxu0 %v37
  %v634 = vpop.f32.mrf.mxu0
  %v635 = vadd.f32 %v318, %v634
  %v636 = vpop.f32.mrf.mxu0
  %v637 = vadd.f32 %v322, %v636
  %638 = vmatprep.mubr.f32.mxu0 %v40
  %639 = vmatmul.mubr.f32.gmra.mxu0 %v39
  %v640 = vpop.f32.mrf.mxu0
  %v641 = vadd.f32 %v318, %v640
  %v642 = vpop.f32.mrf.mxu0
  %v643 = vadd.f32 %v322, %v642
  %644 = vmatprep.mubr.f32.mxu0 %v42
  %645 = vmatmul.mubr.f32.gmra.mxu0 %v41
  %v646 = vpop.f32.mrf.mxu0
  %v647 = vadd.f32 %v318, %v646
  %v648 = vpop.f32.mrf.mxu0
  %v649 = vadd.f32 %v322, %v648
  %650 = vmatprep.mubr.f32.mxu0 %v44
  %651 = vmatmul.mubr.f32.gmra.mxu0 %v43
  %v652 = vpop.f32.mrf.mxu0
  %v653 = vadd.f32 %v318, %v652
  %v654 = vpop.f32.mrf.mxu0
  %v655 = vadd.f32 %v322, %v654
  %656 = vmatprep.mubr.f32.mxu0 %v46
  %657 = vmatmul.mubr.f32.gmra.mxu0 %v45
  %v658 = vpop.f32.mrf.mxu0
  %v659 = vadd.f32 %v318, %v658
  %v660 = vpop.f32.mrf.mxu0
  %v661 = vadd.f32 %v322, %v660
  %662 = vmatprep.mubr.f32.mxu0 %v48
  %663 = vmatmul.mubr.f32.gmra.mxu0 %v47
  %v664 = vpop.f32.mrf.mxu0
  %v665 = vadd.f32 %v318, %v664
  %v666 = vpop.f32.mrf.mxu0
  %v667 = vadd.f32 %v322, %v666
  %668 = vdwg.mxu0
  %669 = vmatprep.subr.mxu0 %v174
  %670 = vmatpush1.msra.mxu0 %v173
  %671 = vmatprep.subr.mxu0 %v166
  %672 = vmatpush1.msra.mxu0 %v165
  %673 = vmatprep.subr.mxu0 %v158
  %674 = vmatpush1.msra.mxu0 %v157
  %675 = vmatprep.subr.mxu0 %v150
  %676 = vmatpush1.msra.mxu0 %v149
  %677 = vmatprep.subr.mxu0 %v142
  %678 = vmatpush1.msra.mxu0 %v141
  %679 = vmatprep.subr.mxu0 %v134
  %680 = vmatpush1.msra.mxu0 %v133
  %681 = vmatprep.subr.mxu0 %v126
  %682 = vmatpush1.msra.mxu0 %v125
  %683 = vmatprep.subr.mxu0 %v118
  %684 = vmatpush1.msra.mxu0 %v117
  %685 = vmatprep.subr.mxu0 %v110
  %686 = vmatpush1.msra.mxu0 %v109
  %687 = vmatprep.subr.mxu0 %v102
  %688 = vmatpush1.msra.mxu0 %v101
  %689 = vmatprep.subr.mxu0 %v94
  %690 = vmatpush1.msra.mxu0 %v93
  %691 = vmatprep.subr.mxu0 %v86
  %692 = vmatpush1.msra.mxu0 %v85
  %693 = vmatprep.subr.mxu0 %v78
  %694 = vmatpush1.msra.mxu0 %v77
  %695 = vmatprep.subr.mxu0 %v70
  %696 = vmatpush1.msra.mxu0 %v69
  %697 = vmatprep.subr.mxu0 %v62
  %698 = vmatpush1.msra.mxu0 %v61
  %699 = vmatprep.subr.mxu0 %v54
  %700 = vmatpush1.msra.mxu0 %v53
  %701 = vmatprep.subr.mxu0 %v302
  %702 = vmatpush2.msra.mxu0 %v301
  %703 = vmatprep.subr.mxu0 %v294
  %704 = vmatpush2.msra.mxu0 %v293
  %705 = vmatprep.subr.mxu0 %v286
  %706 = vmatpush2.msra.mxu0 %v285
  %707 = vmatprep.subr.mxu0 %v278
  %708 = vmatpush2.msra.mxu0 %v277
  %709 = vmatprep.subr.mxu0 %v270
  %710 = vmatpush2.msra.mxu0 %v269
  %711 = vmatprep.subr.mxu0 %v262
  %712 = vmatpush2.msra.mxu0 %v261
  %713 = vmatprep.subr.mxu0 %v254
  %714 = vmatpush2.msra.mxu0 %v253
  %715 = vmatprep.subr.mxu0 %v246
  %716 = vmatpush2.msra.mxu0 %v245
  %717 = vmatprep.subr.mxu0 %v238
  %718 = vmatpush2.msra.mxu0 %v237
  %719 = vmatprep.subr.mxu0 %v230
  %720 = vmatpush2.msra.mxu0 %v229
  %721 = vmatprep.subr.mxu0 %v222
  %722 = vmatpush2.msra.mxu0 %v221
  %723 = vmatprep.subr.mxu0 %v214
  %724 = vmatpush2.msra.mxu0 %v213
  %725 = vmatprep.subr.mxu0 %v206
  %726 = vmatpush2.msra.mxu0 %v205
  %727 = vmatprep.subr.mxu0 %v198
  %728 = vmatpush2.msra.mxu0 %v197
  %729 = vmatprep.subr.mxu0 %v190
  %730 = vmatpush2.msra.mxu0 %v189
  %731 = vmatprep.subr.mxu0 %v182
  %732 = vmatpush2.msra.mxu0 %v181
  %733 = vmatprep.mubr.f32.mxu0 %v18
  %734 = vmatmul.mubr.f32.gmra.mxu0 %v17
  %v735 = vpop.f32.mrf.mxu0
  %v736 = vadd.f32 %v326, %v735
  %v737 = vpop.f32.mrf.mxu0
  %v738 = vadd.f32 %v330, %v737
  %739 = vmatprep.mubr.f32.mxu0 %v20
  %740 = vmatmul.mubr.f32.gmra.mxu0 %v19
  %v741 = vpop.f32.mrf.mxu0
  %v742 = vadd.f32 %v326, %v741
  %v743 = vpop.f32.mrf.mxu0
  %v744 = vadd.f32 %v330, %v743
  %745 = vmatprep.mubr.f32.mxu0 %v22
  %746 = vmatmul.mubr.f32.gmra.mxu0 %v21
  %v747 = vpop.f32.mrf.mxu0
  %v748 = vadd.f32 %v326, %v747
  %v749 = vpop.f32.mrf.mxu0
  %v750 = vadd.f32 %v330, %v749
  %751 = vmatprep.mubr.f32.mxu0 %v24
  %752 = vmatmul.mubr.f32.gmra.mxu0 %v23
  %v753 = vpop.f32.mrf.mxu0
  %v754 = vadd.f32 %v326, %v753
  %v755 = vpop.f32.mrf.mxu0
  %v756 = vadd.f32 %v330, %v755
  %757 = vmatprep.mubr.f32.mxu0 %v26
  %758 = vmatmul.mubr.f32.gmra.mxu0 %v25
  %v759 = vpop.f32.mrf.mxu0
  %v760 = vadd.f32 %v326, %v759
  %v761 = vpop.f32.mrf.mxu0
  %v762 = vadd.f32 %v330, %v761
  %763 = vmatprep.mubr.f32.mxu0 %v28
  %764 = vmatmul.mubr.f32.gmra.mxu0 %v27
  %v765 = vpop.f32.mrf.mxu0
  %v766 = vadd.f32 %v326, %v765
  %v767 = vpop.f32.mrf.mxu0
  %v768 = vadd.f32 %v330, %v767
  %769 = vmatprep.mubr.f32.mxu0 %v30
  %770 = vmatmul.mubr.f32.gmra.mxu0 %v29
  %v771 = vpop.f32.mrf.mxu0
  %v772 = vadd.f32 %v326, %v771
  %v773 = vpop.f32.mrf.mxu0
  %v774 = vadd.f32 %v330, %v773
  %775 = vmatprep.mubr.f32.mxu0 %v32
  %776 = vmatmul.mubr.f32.gmra.mxu0 %v31
  %v777 = vpop.f32.mrf.mxu0
  %v778 = vadd.f32 %v326, %v777
  %v779 = vpop.f32.mrf.mxu0
  %v780 = vadd.f32 %v330, %v779
  %781 = vmatprep.mubr.f32.mxu0 %v34
  %782 = vmatmul.mubr.f32.gmra.mxu0 %v33
  %v783 = vpop.f32.mrf.mxu0
  %v784 = vadd.f32 %v326, %v783
  %v785 = vpop.f32.mrf.mxu0
  %v786 = vadd.f32 %v330, %v785
  %787 = vmatprep.mubr.f32.mxu0 %v36
  %788 = vmatmul.mubr.f32.gmra.mxu0 %v35
  %v789 = vpop.f32.mrf.mxu0
  %v790 = vadd.f32 %v326, %v789
  %v791 = vpop.f32.mrf.mxu0
  %v792 = vadd.f32 %v330, %v791
  %793 = vmatprep.mubr.f32.mxu0 %v38
  %794 = vmatmul.mubr.f32.gmra.mxu0 %v37
  %v795 = vpop.f32.mrf.mxu0
  %v796 = vadd.f32 %v326, %v795
  %v797 = vpop.f32.mrf.mxu0
  %v798 = vadd.f32 %v330, %v797
  %799 = vmatprep.mubr.f32.mxu0 %v40
  %800 = vmatmul.mubr.f32.gmra.mxu0 %v39
  %v801 = vpop.f32.mrf.mxu0
  %v802 = vadd.f32 %v326, %v801
  %v803 = vpop.f32.mrf.mxu0
  %v804 = vadd.f32 %v330, %v803
  %805 = vmatprep.mubr.f32.mxu0 %v42
  %806 = vmatmul.mubr.f32.gmra.mxu0 %v41
  %v807 = vpop.f32.mrf.mxu0
  %v808 = vadd.f32 %v326, %v807
  %v809 = vpop.f32.mrf.mxu0
  %v810 = vadd.f32 %v330, %v809
  %811 = vmatprep.mubr.f32.mxu0 %v44
  %812 = vmatmul.mubr.f32.gmra.mxu0 %v43
  %v813 = vpop.f32.mrf.mxu0
  %v814 = vadd.f32 %v326, %v813
  %v815 = vpop.f32.mrf.mxu0
  %v816 = vadd.f32 %v330, %v815
  %817 = vmatprep.mubr.f32.mxu0 %v46
  %818 = vmatmul.mubr.f32.gmra.mxu0 %v45
  %v819 = vpop.f32.mrf.mxu0
  %v820 = vadd.f32 %v326, %v819
  %v821 = vpop.f32.mrf.mxu0
  %v822 = vadd.f32 %v330, %v821
  %823 = vmatprep.mubr.f32.mxu0 %v48
  %824 = vmatmul.mubr.f32.gmra.mxu0 %v47
  %v825 = vpop.f32.mrf.mxu0
  %v826 = vadd.f32 %v326, %v825
  %v827 = vpop.f32.mrf.mxu0
  %v828 = vadd.f32 %v330, %v827
  %829 = vdwg.mxu0
  %830 = vmatprep.subr.mxu0 %v176
  %831 = vmatpush1.msra.mxu0 %v175
  %832 = vmatprep.subr.mxu0 %v168
  %833 = vmatpush1.msra.mxu0 %v167
  %834 = vmatprep.subr.mxu0 %v160
  %835 = vmatpush1.msra.mxu0 %v159
  %836 = vmatprep.subr.mxu0 %v152
  %837 = vmatpush1.msra.mxu0 %v151
  %838 = vmatprep.subr.mxu0 %v144
  %839 = vmatpush1.msra.mxu0 %v143
  %840 = vmatprep.subr.mxu0 %v136
  %841 = vmatpush1.msra.mxu0 %v135
  %842 = vmatprep.subr.mxu0 %v128
  %843 = vmatpush1.msra.mxu0 %v127
  %844 = vmatprep.subr.mxu0 %v120
  %845 = vmatpush1.msra.mxu0 %v119
  %846 = vmatprep.subr.mxu0 %v112
  %847 = vmatpush1.msra.mxu0 %v111
  %848 = vmatprep.subr.mxu0 %v104
  %849 = vmatpush1.msra.mxu0 %v103
  %850 = vmatprep.subr.mxu0 %v96
  %851 = vmatpush1.msra.mxu0 %v95
  %852 = vmatprep.subr.mxu0 %v88
  %853 = vmatpush1.msra.mxu0 %v87
  %854 = vmatprep.subr.mxu0 %v80
  %855 = vmatpush1.msra.mxu0 %v79
  %856 = vmatprep.subr.mxu0 %v72
  %857 = vmatpush1.msra.mxu0 %v71
  %858 = vmatprep.subr.mxu0 %v64
  %859 = vmatpush1.msra.mxu0 %v63
  %860 = vmatprep.subr.mxu0 %v56
  %861 = vmatpush1.msra.mxu0 %v55
  %862 = vmatprep.subr.mxu0 %v304
  %863 = vmatpush2.msra.mxu0 %v303
  %864 = vmatprep.subr.mxu0 %v296
  %865 = vmatpush2.msra.mxu0 %v295
  %866 = vmatprep.subr.mxu0 %v288
  %867 = vmatpush2.msra.mxu0 %v287
  %868 = vmatprep.subr.mxu0 %v280
  %869 = vmatpush2.msra.mxu0 %v279
  %870 = vmatprep.subr.mxu0 %v272
  %871 = vmatpush2.msra.mxu0 %v271
  %872 = vmatprep.subr.mxu0 %v264
  %873 = vmatpush2.msra.mxu0 %v263
  %874 = vmatprep.subr.mxu0 %v256
  %875 = vmatpush2.msra.mxu0 %v255
  %876 = vmatprep.subr.mxu0 %v248
  %877 = vmatpush2.msra.mxu0 %v247
  %878 = vmatprep.subr.mxu0 %v240
  %879 = vmatpush2.msra.mxu0 %v239
  %880 = vmatprep.subr.mxu0 %v232
  %881 = vmatpush2.msra.mxu0 %v231
  %882 = vmatprep.subr.mxu0 %v224
  %883 = vmatpush2.msra.mxu0 %v223
  %884 = vmatprep.subr.mxu0 %v216
  %885 = vmatpush2.msra.mxu0 %v215
  %886 = vmatprep.subr.mxu0 %v208
  %887 = vmatpush2.msra.mxu0 %v207
  %888 = vmatprep.subr.mxu0 %v200
  %889 = vmatpush2.msra.mxu0 %v199
  %890 = vmatprep.subr.mxu0 %v192
  %891 = vmatpush2.msra.mxu0 %v191
  %892 = vmatprep.subr.mxu0 %v184
  %893 = vmatpush2.msra.mxu0 %v183
  %894 = vmatprep.mubr.f32.mxu0 %v18
  %895 = vmatmul.mubr.f32.gmra.mxu0 %v17
  %v896 = vpop.f32.mrf.mxu0
  %v897 = vadd.f32 %v334, %v896
  %v898 = vpop.f32.mrf.mxu0
  %v899 = vadd.f32 %v338, %v898
  %900 = vmatprep.mubr.f32.mxu0 %v20
  %901 = vmatmul.mubr.f32.gmra.mxu0 %v19
  %v902 = vpop.f32.mrf.mxu0
  %v903 = vadd.f32 %v334, %v902
  %v904 = vpop.f32.mrf.mxu0
  %v905 = vadd.f32 %v338, %v904
  %906 = vmatprep.mubr.f32.mxu0 %v22
  %907 = vmatmul.mubr.f32.gmra.mxu0 %v21
  %v908 = vpop.f32.mrf.mxu0
  %v909 = vadd.f32 %v334, %v908
  %v910 = vpop.f32.mrf.mxu0
  %v911 = vadd.f32 %v338, %v910
  %912 = vmatprep.mubr.f32.mxu0 %v24
  %913 = vmatmul.mubr.f32.gmra.mxu0 %v23
  %v914 = vpop.f32.mrf.mxu0
  %v915 = vadd.f32 %v334, %v914
  %v916 = vpop.f32.mrf.mxu0
  %v917 = vadd.f32 %v338, %v916
  %918 = vmatprep.mubr.f32.mxu0 %v26
  %919 = vmatmul.mubr.f32.gmra.mxu0 %v25
  %v920 = vpop.f32.mrf.mxu0
  %v921 = vadd.f32 %v334, %v920
  %v922 = vpop.f32.mrf.mxu0
  %v923 = vadd.f32 %v338, %v922
  %924 = vmatprep.mubr.f32.mxu0 %v28
  %925 = vmatmul.mubr.f32.gmra.mxu0 %v27
  %v926 = vpop.f32.mrf.mxu0
  %v927 = vadd.f32 %v334, %v926
  %v928 = vpop.f32.mrf.mxu0
  %v929 = vadd.f32 %v338, %v928
  %930 = vmatprep.mubr.f32.mxu0 %v30
  %931 = vmatmul.mubr.f32.gmra.mxu0 %v29
  %v932 = vpop.f32.mrf.mxu0
  %v933 = vadd.f32 %v334, %v932
  %v934 = vpop.f32.mrf.mxu0
  %v935 = vadd.f32 %v338, %v934
  %936 = vmatprep.mubr.f32.mxu0 %v32
  %937 = vmatmul.mubr.f32.gmra.mxu0 %v31
  %v938 = vpop.f32.mrf.mxu0
  %v939 = vadd.f32 %v334, %v938
  %v940 = vpop.f32.mrf.mxu0
  %v941 = vadd.f32 %v338, %v940
  %942 = vmatprep.mubr.f32.mxu0 %v34
  %943 = vmatmul.mubr.f32.gmra.mxu0 %v33
  %v944 = vpop.f32.mrf.mxu0
  %v945 = vadd.f32 %v334, %v944
  %v946 = vpop.f32.mrf.mxu0
  %v947 = vadd.f32 %v338, %v946
  %948 = vmatprep.mubr.f32.mxu0 %v36
  %949 = vmatmul.mubr.f32.gmra.mxu0 %v35
  %v950 = vpop.f32.mrf.mxu0
  %v951 = vadd.f32 %v334, %v950
  %v952 = vpop.f32.mrf.mxu0
  %v953 = vadd.f32 %v338, %v952
  %954 = vmatprep.mubr.f32.mxu0 %v38
  %955 = vmatmul.mubr.f32.gmra.mxu0 %v37
  %v956 = vpop.f32.mrf.mxu0
  %v957 = vadd.f32 %v334, %v956
  %v958 = vpop.f32.mrf.mxu0
  %v959 = vadd.f32 %v338, %v958
  %960 = vmatprep.mubr.f32.mxu0 %v40
  %961 = vmatmul.mubr.f32.gmra.mxu0 %v39
  %v962 = vpop.f32.mrf.mxu0
  %v963 = vadd.f32 %v334, %v962
  %v964 = vpop.f32.mrf.mxu0
  %v965 = vadd.f32 %v338, %v964
  %966 = vmatprep.mubr.f32.mxu0 %v42
  %967 = vmatmul.mubr.f32.gmra.mxu0 %v41
  %v968 = vpop.f32.mrf.mxu0
  %v969 = vadd.f32 %v334, %v968
  %v970 = vpop.f32.mrf.mxu0
  %v971 = vadd.f32 %v338, %v970
  %972 = vmatprep.mubr.f32.mxu0 %v44
  %973 = vmatmul.mubr.f32.gmra.mxu0 %v43
  %v974 = vpop.f32.mrf.mxu0
  %v975 = vadd.f32 %v334, %v974
  %v976 = vpop.f32.mrf.mxu0
  %v977 = vadd.f32 %v338, %v976
  %978 = vmatprep.mubr.f32.mxu0 %v46
  %979 = vmatmul.mubr.f32.gmra.mxu0 %v45
  %v980 = vpop.f32.mrf.mxu0
  %v981 = vadd.f32 %v334, %v980
  %v982 = vpop.f32.mrf.mxu0
  %v983 = vadd.f32 %v338, %v982
  %984 = vmatprep.mubr.f32.mxu0 %v48
  %985 = vmatmul.mubr.f32.gmra.mxu0 %v47
  %v986 = vpop.f32.mrf.mxu0
  %v987 = vadd.f32 %v334, %v986
  %v988 = vpop.f32.mrf.mxu0
  %v989 = vadd.f32 %v338, %v988
  %990 = vdwg.mxu0
  %v991 = vld [vmem:[%s3] sm:$0xff]
  %v992 = vld [vmem:[%s3 + $0x8] sm:$0xff]
  %v993 = vld [vmem:[%s3 + $0x10] sm:$0xff]
  %v994 = vld [vmem:[%s3 + $0x18] sm:$0xff]
  %v995 = vld [vmem:[%s3 + $0x20] sm:$0xff]
  %v996 = vld [vmem:[%s3 + $0x28] sm:$0xff]
  %v997 = vld [vmem:[%s3 + $0x30] sm:$0xff]
  %v998 = vld [vmem:[%s3 + $0x38] sm:$0xff]
  %v999 = vld [vmem:[%s3 + $0x40] sm:$0xff]
  %v1000 = vld [vmem:[%s3 + $0x48] sm:$0xff]
  %v1001 = vld [vmem:[%s3 + $0x50] sm:$0xff]
  %v1002 = vld [vmem:[%s3 + $0x58] sm:$0xff]
  %v1003 = vld [vmem:[%s3 + $0x60] sm:$0xff]
  %v1004 = vld [vmem:[%s3 + $0x68] sm:$0xff]
  %v1005 = vld [vmem:[%s3 + $0x70] sm:$0xff]
  %v1006 = vld [vmem:[%s3 + $0x78] sm:$0xff]
  %v1007 = vld [vmem:[%s3 + $0x80] sm:$0xff]
  %v1008 = vld [vmem:[%s3 + $0x88] sm:$0xff]
  %v1009 = vld [vmem:[%s3 + $0x90] sm:$0xff]
  %v1010 = vld [vmem:[%s3 + $0x98] sm:$0xff]
  %v1011 = vld [vmem:[%s3 + $0xa0] sm:$0xff]
  %v1012 = vld [vmem:[%s3 + $0xa8] sm:$0xff]
  %v1013 = vld [vmem:[%s3 + $0xb0] sm:$0xff]
  %v1014 = vld [vmem:[%s3 + $0xb8] sm:$0xff]
  %v1015 = vld [vmem:[%s3 + $0xc0] sm:$0xff]
  %v1016 = vld [vmem:[%s3 + $0xc8] sm:$0xff]
  %v1017 = vld [vmem:[%s3 + $0xd0] sm:$0xff]
  %v1018 = vld [vmem:[%s3 + $0xd8] sm:$0xff]
  %v1019 = vld [vmem:[%s3 + $0xe0] sm:$0xff]
  %v1020 = vld [vmem:[%s3 + $0xe8] sm:$0xff]
  %v1021 = vld [vmem:[%s3 + $0xf0] sm:$0xff]
  %v1022 = vld [vmem:[%s3 + $0xf8] sm:$0xff]
  %v1023 = vld [vmem:[%s3 + $0x100] sm:$0xff]
  %v1024 = vld [vmem:[%s3 + $0x108] sm:$0xff]
  %v1025 = vld [vmem:[%s3 + $0x110] sm:$0xff]
  %v1026 = vld [vmem:[%s3 + $0x118] sm:$0xff]
  %v1027 = vld [vmem:[%s3 + $0x120] sm:$0xff]
  %v1028 = vld [vmem:[%s3 + $0x128] sm:$0xff]
  %v1029 = vld [vmem:[%s3 + $0x130] sm:$0xff]
  %v1030 = vld [vmem:[%s3 + $0x138] sm:$0xff]
  %v1031 = vld [vmem:[%s3 + $0x140] sm:$0xff]
  %v1032 = vld [vmem:[%s3 + $0x148] sm:$0xff]
  %v1033 = vld [vmem:[%s3 + $0x150] sm:$0xff]
  %v1034 = vld [vmem:[%s3 + $0x158] sm:$0xff]
  %v1035 = vld [vmem:[%s3 + $0x160] sm:$0xff]
  %v1036 = vld [vmem:[%s3 + $0x168] sm:$0xff]
  %v1037 = vld [vmem:[%s3 + $0x170] sm:$0xff]
  %v1038 = vld [vmem:[%s3 + $0x178] sm:$0xff]
  %v1039 = vld [vmem:[%s3 + $0x180] sm:$0xff]
  %v1040 = vld [vmem:[%s3 + $0x188] sm:$0xff]
  %v1041 = vld [vmem:[%s3 + $0x190] sm:$0xff]
  %v1042 = vld [vmem:[%s3 + $0x198] sm:$0xff]
  %v1043 = vld [vmem:[%s3 + $0x1a0] sm:$0xff]
  %v1044 = vld [vmem:[%s3 + $0x1a8] sm:$0xff]
  %v1045 = vld [vmem:[%s3 + $0x1b0] sm:$0xff]
  %v1046 = vld [vmem:[%s3 + $0x1b8] sm:$0xff]
  %v1047 = vld [vmem:[%s3 + $0x1c0] sm:$0xff]
  %v1048 = vld [vmem:[%s3 + $0x1c8] sm:$0xff]
  %v1049 = vld [vmem:[%s3 + $0x1d0] sm:$0xff]
  %v1050 = vld [vmem:[%s3 + $0x1d8] sm:$0xff]
  %v1051 = vld [vmem:[%s3 + $0x1e0] sm:$0xff]
  %v1052 = vld [vmem:[%s3 + $0x1e8] sm:$0xff]
  %v1053 = vld [vmem:[%s3 + $0x1f0] sm:$0xff]
  %v1054 = vld [vmem:[%s3 + $0x1f8] sm:$0xff]
  %v1055 = vld [vmem:[%s3 + $0x200] sm:$0xff]
  %v1056 = vld [vmem:[%s3 + $0x208] sm:$0xff]
  %v1057 = vld [vmem:[%s3 + $0x210] sm:$0xff]
  %v1058 = vld [vmem:[%s3 + $0x218] sm:$0xff]
  %v1059 = vld [vmem:[%s3 + $0x220] sm:$0xff]
  %v1060 = vld [vmem:[%s3 + $0x228] sm:$0xff]
  %v1061 = vld [vmem:[%s3 + $0x230] sm:$0xff]
  %v1062 = vld [vmem:[%s3 + $0x238] sm:$0xff]
  %v1063 = vld [vmem:[%s3 + $0x240] sm:$0xff]
  %v1064 = vld [vmem:[%s3 + $0x248] sm:$0xff]
  %v1065 = vld [vmem:[%s3 + $0x250] sm:$0xff]
  %v1066 = vld [vmem:[%s3 + $0x258] sm:$0xff]
  %v1067 = vld [vmem:[%s3 + $0x260] sm:$0xff]
  %v1068 = vld [vmem:[%s3 + $0x268] sm:$0xff]
  %v1069 = vld [vmem:[%s3 + $0x270] sm:$0xff]
  %v1070 = vld [vmem:[%s3 + $0x278] sm:$0xff]
  %v1071 = vld [vmem:[%s3 + $0x280] sm:$0xff]
  %v1072 = vld [vmem:[%s3 + $0x288] sm:$0xff]
  %v1073 = vld [vmem:[%s3 + $0x290] sm:$0xff]
  %v1074 = vld [vmem:[%s3 + $0x298] sm:$0xff]
  %v1075 = vld [vmem:[%s3 + $0x2a0] sm:$0xff]
  %v1076 = vld [vmem:[%s3 + $0x2a8] sm:$0xff]
  %v1077 = vld [vmem:[%s3 + $0x2b0] sm:$0xff]
  %v1078 = vld [vmem:[%s3 + $0x2b8] sm:$0xff]
  %v1079 = vld [vmem:[%s3 + $0x2c0] sm:$0xff]
  %v1080 = vld [vmem:[%s3 + $0x2c8] sm:$0xff]
  %v1081 = vld [vmem:[%s3 + $0x2d0] sm:$0xff]
  %v1082 = vld [vmem:[%s3 + $0x2d8] sm:$0xff]
  %v1083 = vld [vmem:[%s3 + $0x2e0] sm:$0xff]
  %v1084 = vld [vmem:[%s3 + $0x2e8] sm:$0xff]
  %v1085 = vld [vmem:[%s3 + $0x2f0] sm:$0xff]
  %v1086 = vld [vmem:[%s3 + $0x2f8] sm:$0xff]
  %v1087 = vld [vmem:[%s3 + $0x300] sm:$0xff]
  %v1088 = vld [vmem:[%s3 + $0x308] sm:$0xff]
  %v1089 = vld [vmem:[%s3 + $0x310] sm:$0xff]
  %v1090 = vld [vmem:[%s3 + $0x318] sm:$0xff]
  %v1091 = vld [vmem:[%s3 + $0x320] sm:$0xff]
  %v1092 = vld [vmem:[%s3 + $0x328] sm:$0xff]
  %v1093 = vld [vmem:[%s3 + $0x330] sm:$0xff]
  %v1094 = vld [vmem:[%s3 + $0x338] sm:$0xff]
  %v1095 = vld [vmem:[%s3 + $0x340] sm:$0xff]
  %v1096 = vld [vmem:[%s3 + $0x348] sm:$0xff]
  %v1097 = vld [vmem:[%s3 + $0x350] sm:$0xff]
  %v1098 = vld [vmem:[%s3 + $0x358] sm:$0xff]
  %v1099 = vld [vmem:[%s3 + $0x360] sm:$0xff]
  %v1100 = vld [vmem:[%s3 + $0x368] sm:$0xff]
  %v1101 = vld [vmem:[%s3 + $0x370] sm:$0xff]
  %v1102 = vld [vmem:[%s3 + $0x378] sm:$0xff]
  %v1103 = vld [vmem:[%s3 + $0x380] sm:$0xff]
  %v1104 = vld [vmem:[%s3 + $0x388] sm:$0xff]
  %v1105 = vld [vmem:[%s3 + $0x390] sm:$0xff]
  %v1106 = vld [vmem:[%s3 + $0x398] sm:$0xff]
  %v1107 = vld [vmem:[%s3 + $0x3a0] sm:$0xff]
  %v1108 = vld [vmem:[%s3 + $0x3a8] sm:$0xff]
  %v1109 = vld [vmem:[%s3 + $0x3b0] sm:$0xff]
  %v1110 = vld [vmem:[%s3 + $0x3b8] sm:$0xff]
  %v1111 = vld [vmem:[%s3 + $0x3c0] sm:$0xff]
  %v1112 = vld [vmem:[%s3 + $0x3c8] sm:$0xff]
  %v1113 = vld [vmem:[%s3 + $0x3d0] sm:$0xff]
  %v1114 = vld [vmem:[%s3 + $0x3d8] sm:$0xff]
  %v1115 = vld [vmem:[%s3 + $0x3e0] sm:$0xff]
  %v1116 = vld [vmem:[%s3 + $0x3e8] sm:$0xff]
  %v1117 = vld [vmem:[%s3 + $0x3f0] sm:$0xff]
  %v1118 = vld [vmem:[%s3 + $0x3f8] sm:$0xff]
  %v1119 = vadd.f32 %v414, %v991
  %v1120 = vadd.f32 %v416, %v992
  %v1121 = vadd.f32 %v575, %v993
  %v1122 = vadd.f32 %v577, %v994
  %v1123 = vadd.f32 %v736, %v995
  %v1124 = vadd.f32 %v738, %v996
  %v1125 = vadd.f32 %v897, %v997
  %v1126 = vadd.f32 %v899, %v998
  %v1127 = vadd.f32 %v420, %v999
  %v1128 = vadd.f32 %v422, %v1000
  %v1129 = vadd.f32 %v581, %v1001
  %v1130 = vadd.f32 %v583, %v1002
  %v1131 = vadd.f32 %v742, %v1003
  %v1132 = vadd.f32 %v744, %v1004
  %v1133 = vadd.f32 %v903, %v1005
  %v1134 = vadd.f32 %v905, %v1006
  %v1135 = vadd.f32 %v426, %v1007
  %v1136 = vadd.f32 %v428, %v1008
  %v1137 = vadd.f32 %v587, %v1009
  %v1138 = vadd.f32 %v589, %v1010
  %v1139 = vadd.f32 %v748, %v1011
  %v1140 = vadd.f32 %v750, %v1012
  %v1141 = vadd.f32 %v909, %v1013
  %v1142 = vadd.f32 %v911, %v1014
  %v1143 = vadd.f32 %v432, %v1015
  %v1144 = vadd.f32 %v434, %v1016
  %v1145 = vadd.f32 %v593, %v1017
  %v1146 = vadd.f32 %v595, %v1018
  %v1147 = vadd.f32 %v754, %v1019
  %v1148 = vadd.f32 %v756, %v1020
  %v1149 = vadd.f32 %v915, %v1021
  %v1150 = vadd.f32 %v917, %v1022
  %v1151 = vadd.f32 %v438, %v1023
  %v1152 = vadd.f32 %v440, %v1024
  %v1153 = vadd.f32 %v599, %v1025
  %v1154 = vadd.f32 %v601, %v1026
  %v1155 = vadd.f32 %v760, %v1027
  %v1156 = vadd.f32 %v762, %v1028
  %v1157 = vadd.f32 %v921, %v1029
  %v1158 = vadd.f32 %v923, %v1030
  %v1159 = vadd.f32 %v444, %v1031
  %v1160 = vadd.f32 %v446, %v1032
  %v1161 = vadd.f32 %v605, %v1033
  %v1162 = vadd.f32 %v607, %v1034
  %v1163 = vadd.f32 %v766, %v1035
  %v1164 = vadd.f32 %v768, %v1036
  %v1165 = vadd.f32 %v927, %v1037
  %v1166 = vadd.f32 %v929, %v1038
  %v1167 = vadd.f32 %v450, %v1039
  %v1168 = vadd.f32 %v452, %v1040
  %v1169 = vadd.f32 %v611, %v1041
  %v1170 = vadd.f32 %v613, %v1042
  %v1171 = vadd.f32 %v772, %v1043
  %v1172 = vadd.f32 %v774, %v1044
  %v1173 = vadd.f32 %v933, %v1045
  %v1174 = vadd.f32 %v935, %v1046
  %v1175 = vadd.f32 %v456, %v1047
  %v1176 = vadd.f32 %v458, %v1048
  %v1177 = vadd.f32 %v617, %v1049
  %v1178 = vadd.f32 %v619, %v1050
  %v1179 = vadd.f32 %v778, %v1051
  %v1180 = vadd.f32 %v780, %v1052
  %v1181 = vadd.f32 %v939, %v1053
  %v1182 = vadd.f32 %v941, %v1054
  %v1183 = vadd.f32 %v462, %v1055
  %v1184 = vadd.f32 %v464, %v1056
  %v1185 = vadd.f32 %v623, %v1057
  %v1186 = vadd.f32 %v625, %v1058
  %v1187 = vadd.f32 %v784, %v1059
  %v1188 = vadd.f32 %v786, %v1060
  %v1189 = vadd.f32 %v945, %v1061
  %v1190 = vadd.f32 %v947, %v1062
  %v1191 = vadd.f32 %v468, %v1063
  %v1192 = vadd.f32 %v470, %v1064
  %v1193 = vadd.f32 %v629, %v1065
  %v1194 = vadd.f32 %v631, %v1066
  %v1195 = vadd.f32 %v790, %v1067
  %v1196 = vadd.f32 %v792, %v1068
  %v1197 = vadd.f32 %v951, %v1069
  %v1198 = vadd.f32 %v953, %v1070
  %v1199 = vadd.f32 %v474, %v1071
  %v1200 = vadd.f32 %v476, %v1072
  %v1201 = vadd.f32 %v635, %v1073
  %v1202 = vadd.f32 %v637, %v1074
  %v1203 = vadd.f32 %v796, %v1075
  %v1204 = vadd.f32 %v798, %v1076
  %v1205 = vadd.f32 %v957, %v1077
  %v1206 = vadd.f32 %v959, %v1078
  %v1207 = vadd.f32 %v480, %v1079
  %v1208 = vadd.f32 %v482, %v1080
  %v1209 = vadd.f32 %v641, %v1081
  %v1210 = vadd.f32 %v643, %v1082
  %v1211 = vadd.f32 %v802, %v1083
  %v1212 = vadd.f32 %v804, %v1084
  %v1213 = vadd.f32 %v963, %v1085
  %v1214 = vadd.f32 %v965, %v1086
  %v1215 = vadd.f32 %v486, %v1087
  %v1216 = vadd.f32 %v488, %v1088
  %v1217 = vadd.f32 %v647, %v1089
  %v1218 = vadd.f32 %v649, %v1090
  %v1219 = vadd.f32 %v808, %v1091
  %v1220 = vadd.f32 %v810, %v1092
  %v1221 = vadd.f32 %v969, %v1093
  %v1222 = vadd.f32 %v971, %v1094
  %v1223 = vadd.f32 %v492, %v1095
  %v1224 = vadd.f32 %v494, %v1096
  %v1225 = vadd.f32 %v653, %v1097
  %v1226 = vadd.f32 %v655, %v1098
  %v1227 = vadd.f32 %v814, %v1099
  %v1228 = vadd.f32 %v816, %v1100
  %v1229 = vadd.f32 %v975, %v1101
  %v1230 = vadd.f32 %v977, %v1102
  %v1231 = vadd.f32 %v498, %v1103
  %v1232 = vadd.f32 %v500, %v1104
  %v1233 = vadd.f32 %v659, %v1105
  %v1234 = vadd.f32 %v661, %v1106
  %v1235 = vadd.f32 %v820, %v1107
  %v1236 = vadd.f32 %v822, %v1108
  %v1237 = vadd.f32 %v981, %v1109
  %v1238 = vadd.f32 %v983, %v1110
  %v1239 = vadd.f32 %v504, %v1111
  %v1240 = vadd.f32 %v506, %v1112
  %v1241 = vadd.f32 %v665, %v1113
  %v1242 = vadd.f32 %v667, %v1114
  %v1243 = vadd.f32 %v826, %v1115
  %v1244 = vadd.f32 %v828, %v1116
  %v1245 = vadd.f32 %v987, %v1117
  %v1246 = vadd.f32 %v989, %v1118
  %v1247 = vmax.f32 %v1119, 0.0
  %v1248 = vmax.f32 %v1120, 0.0
  %v1249 = vmax.f32 %v1121, 0.0
  %v1250 = vmax.f32 %v1122, 0.0
  %v1251 = vmax.f32 %v1123, 0.0
  %v1252 = vmax.f32 %v1124, 0.0
  %v1253 = vmax.f32 %v1125, 0.0
  %v1254 = vmax.f32 %v1126, 0.0
  %v1255 = vmax.f32 %v1127, 0.0
  %v1256 = vmax.f32 %v1128, 0.0
  %v1257 = vmax.f32 %v1129, 0.0
  %v1258 = vmax.f32 %v1130, 0.0
  %v1259 = vmax.f32 %v1131, 0.0
  %v1260 = vmax.f32 %v1132, 0.0
  %v1261 = vmax.f32 %v1133, 0.0
  %v1262 = vmax.f32 %v1134, 0.0
  %v1263 = vmax.f32 %v1135, 0.0
  %v1264 = vmax.f32 %v1136, 0.0
  %v1265 = vmax.f32 %v1137, 0.0
  %v1266 = vmax.f32 %v1138, 0.0
  %v1267 = vmax.f32 %v1139, 0.0
  %v1268 = vmax.f32 %v1140, 0.0
  %v1269 = vmax.f32 %v1141, 0.0
  %v1270 = vmax.f32 %v1142, 0.0
  %v1271 = vmax.f32 %v1143, 0.0
  %v1272 = vmax.f32 %v1144, 0.0
  %v1273 = vmax.f32 %v1145, 0.0
  %v1274 = vmax.f32 %v1146, 0.0
  %v1275 = vmax.f32 %v1147, 0.0
  %v1276 = vmax.f32 %v1148, 0.0
  %v1277 = vmax.f32 %v1149, 0.0
  %v1278 = vmax.f32 %v1150, 0.0
  %v1279 = vmax.f32 %v1151, 0.0
  %v1280 = vmax.f32 %v1152, 0.0
  %v1281 = vmax.f32 %v1153, 0.0
  %v1282 = vmax.f32 %v1154, 0.0
  %v1283 = vmax.f32 %v1155, 0.0
  %v1284 = vmax.f32 %v1156, 0.0
  %v1285 = vmax.f32 %v1157, 0.0
  %v1286 = vmax.f32 %v1158, 0.0
  %v1287 = vmax.f32 %v1159, 0.0
  %v1288 = vmax.f32 %v1160, 0.0
  %v1289 = vmax.f32 %v1161, 0.0
  %v1290 = vmax.f32 %v1162, 0.0
  %v1291 = vmax.f32 %v1163, 0.0
  %v1292 = vmax.f32 %v1164, 0.0
  %v1293 = vmax.f32 %v1165, 0.0
  %v1294 = vmax.f32 %v1166, 0.0
  %v1295 = vmax.f32 %v1167, 0.0
  %v1296 = vmax.f32 %v1168, 0.0
  %v1297 = vmax.f32 %v1169, 0.0
  %v1298 = vmax.f32 %v1170, 0.0
  %v1299 = vmax.f32 %v1171, 0.0
  %v1300 = vmax.f32 %v1172, 0.0
  %v1301 = vmax.f32 %v1173, 0.0
  %v1302 = vmax.f32 %v1174, 0.0
  %v1303 = vmax.f32 %v1175, 0.0
  %v1304 = vmax.f32 %v1176, 0.0
  %v1305 = vmax.f32 %v1177, 0.0
  %v1306 = vmax.f32 %v1178, 0.0
  %v1307 = vmax.f32 %v1179, 0.0
  %v1308 = vmax.f32 %v1180, 0.0
  %v1309 = vmax.f32 %v1181, 0.0
  %v1310 = vmax.f32 %v1182, 0.0
  %v1311 = vmax.f32 %v1183, 0.0
  %v1312 = vmax.f32 %v1184, 0.0
  %v1313 = vmax.f32 %v1185, 0.0
  %v1314 = vmax.f32 %v1186, 0.0
  %v1315 = vmax.f32 %v1187, 0.0
  %v1316 = vmax.f32 %v1188, 0.0
  %v1317 = vmax.f32 %v1189, 0.0
  %v1318 = vmax.f32 %v1190, 0.0
  %v1319 = vmax.f32 %v1191, 0.0
  %v1320 = vmax.f32 %v1192, 0.0
  %v1321 = vmax.f32 %v1193, 0.0
  %v1322 = vmax.f32 %v1194, 0.0
  %v1323 = vmax.f32 %v1195, 0.0
  %v1324 = vmax.f32 %v1196, 0.0
  %v1325 = vmax.f32 %v1197, 0.0
  %v1326 = vmax.f32 %v1198, 0.0
  %v1327 = vmax.f32 %v1199, 0.0
  %v1328 = vmax.f32 %v1200, 0.0
  %v1329 = vmax.f32 %v1201, 0.0
  %v1330 = vmax.f32 %v1202, 0.0
  %v1331 = vmax.f32 %v1203, 0.0
  %v1332 = vmax.f32 %v1204, 0.0
  %v1333 = vmax.f32 %v1205, 0.0
  %v1334 = vmax.f32 %v1206, 0.0
  %v1335 = vmax.f32 %v1207, 0.0
  %v1336 = vmax.f32 %v1208, 0.0
  %v1337 = vmax.f32 %v1209, 0.0
  %v1338 = vmax.f32 %v1210, 0.0
  %v1339 = vmax.f32 %v1211, 0.0
  %v1340 = vmax.f32 %v1212, 0.0
  %v1341 = vmax.f32 %v1213, 0.0
  %v1342 = vmax.f32 %v1214, 0.0
  %v1343 = vmax.f32 %v1215, 0.0
  %v1344 = vmax.f32 %v1216, 0.0
  %v1345 = vmax.f32 %v1217, 0.0
  %v1346 = vmax.f32 %v1218, 0.0
  %v1347 = vmax.f32 %v1219, 0.0
  %v1348 = vmax.f32 %v1220, 0.0
  %v1349 = vmax.f32 %v1221, 0.0
  %v1350 = vmax.f32 %v1222, 0.0
  %v1351 = vmax.f32 %v1223, 0.0
  %v1352 = vmax.f32 %v1224, 0.0
  %v1353 = vmax.f32 %v1225, 0.0
  %v1354 = vmax.f32 %v1226, 0.0
  %v1355 = vmax.f32 %v1227, 0.0
  %v1356 = vmax.f32 %v1228, 0.0
  %v1357 = vmax.f32 %v1229, 0.0
  %v1358 = vmax.f32 %v1230, 0.0
  %v1359 = vmax.f32 %v1231, 0.0
  %v1360 = vmax.f32 %v1232, 0.0
  %v1361 = vmax.f32 %v1233, 0.0
  %v1362 = vmax.f32 %v1234, 0.0
  %v1363 = vmax.f32 %v1235, 0.0
  %v1364 = vmax.f32 %v1236, 0.0
  %v1365 = vmax.f32 %v1237, 0.0
  %v1366 = vmax.f32 %v1238, 0.0
  %v1367 = vmax.f32 %v1239, 0.0
  %v1368 = vmax.f32 %v1240, 0.0
  %v1369 = vmax.f32 %v1241, 0.0
  %v1370 = vmax.f32 %v1242, 0.0
  %v1371 = vmax.f32 %v1243, 0.0
  %v1372 = vmax.f32 %v1244, 0.0
  %v1373 = vmax.f32 %v1245, 0.0
  %v1374 = vmax.f32 %v1246, 0.0
  %1375 = vst [vmem:[%s4] sm:$0xff] %v1247
  %1376 = vst [vmem:[%s4 + $0x8] sm:$0xff] %v1248
  %1377 = vst [vmem:[%s4 + $0x10] sm:$0xff] %v1249
  %1378 = vst [vmem:[%s4 + $0x18] sm:$0xff] %v1250
  %1379 = vst [vmem:[%s4 + $0x20] sm:$0xff] %v1251
  %1380 = vst [vmem:[%s4 + $0x28] sm:$0xff] %v1252
  %1381 = vst [vmem:[%s4 + $0x30] sm:$0xff] %v1253
  %1382 = vst [vmem:[%s4 + $0x38] sm:$0xff] %v1254
  %1383 = vst [vmem:[%s4 + $0x40] sm:$0xff] %v1255
  %1384 = vst [vmem:[%s4 + $0x48] sm:$0xff] %v1256
  %1385 = vst [vmem:[%s4 + $0x50] sm:$0xff] %v1257
  %1386 = vst [vmem:[%s4 + $0x58] sm:$0xff] %v1258
  %1387 = vst [vmem:[%s4 + $0x60] sm:$0xff] %v1259
  %1388 = vst [vmem:[%s4 + $0x68] sm:$0xff] %v1260
  %1389 = vst [vmem:[%s4 + $0x70] sm:$0xff] %v1261
  %1390 = vst [vmem:[%s4 + $0x78] sm:$0xff] %v1262
  %1391 = vst [vmem:[%s4 + $0x80] sm:$0xff] %v1263
  %1392 = vst [vmem:[%s4 + $0x88] sm:$0xff] %v1264
  %1393 = vst [vmem:[%s4 + $0x90] sm:$0xff] %v1265
  %1394 = vst [vmem:[%s4 + $0x98] sm:$0xff] %v1266
  %1395 = vst [vmem:[%s4 + $0xa0] sm:$0xff] %v1267
  %1396 = vst [vmem:[%s4 + $0xa8] sm:$0xff] %v1268
  %1397 = vst [vmem:[%s4 + $0xb0] sm:$0xff] %v1269
  %1398 = vst [vmem:[%s4 + $0xb8] sm:$0xff] %v1270
  %1399 = vst [vmem:[%s4 + $0xc0] sm:$0xff] %v1271
  %1400 = vst [vmem:[%s4 + $0xc8] sm:$0xff] %v1272
  %1401 = vst [vmem:[%s4 + $0xd0] sm:$0xff] %v1273
  %1402 = vst [vmem:[%s4 + $0xd8] sm:$0xff] %v1274
  %1403 = vst [vmem:[%s4 + $0xe0] sm:$0xff] %v1275
  %1404 = vst [vmem:[%s4 + $0xe8] sm:$0xff] %v1276
  %1405 = vst [vmem:[%s4 + $0xf0] sm:$0xff] %v1277
  %1406 = vst [vmem:[%s4 + $0xf8] sm:$0xff] %v1278
  %1407 = vst [vmem:[%s4 + $0x100] sm:$0xff] %v1279
  %1408 = vst [vmem:[%s4 + $0x108] sm:$0xff] %v1280
  %1409 = vst [vmem:[%s4 + $0x110] sm:$0xff] %v1281
  %1410 = vst [vmem:[%s4 + $0x118] sm:$0xff] %v1282
  %1411 = vst [vmem:[%s4 + $0x120] sm:$0xff] %v1283
  %1412 = vst [vmem:[%s4 + $0x128] sm:$0xff] %v1284
  %1413 = vst [vmem:[%s4 + $0x130] sm:$0xff] %v1285
  %1414 = vst [vmem:[%s4 + $0x138] sm:$0xff] %v1286
  %1415 = vst [vmem:[%s4 + $0x140] sm:$0xff] %v1287
  %1416 = vst [vmem:[%s4 + $0x148] sm:$0xff] %v1288
  %1417 = vst [vmem:[%s4 + $0x150] sm:$0xff] %v1289
  %1418 = vst [vmem:[%s4 + $0x158] sm:$0xff] %v1290
  %1419 = vst [vmem:[%s4 + $0x160] sm:$0xff] %v1291
  %1420 = vst [vmem:[%s4 + $0x168] sm:$0xff] %v1292
  %1421 = vst [vmem:[%s4 + $0x170] sm:$0xff] %v1293
  %1422 = vst [vmem:[%s4 + $0x178] sm:$0xff] %v1294
  %1423 = vst [vmem:[%s4 + $0x180] sm:$0xff] %v1295
  %1424 = vst [vmem:[%s4 + $0x188] sm:$0xff] %v1296
  %1425 = vst [vmem:[%s4 + $0x190] sm:$0xff] %v1297
  %1426 = vst [vmem:[%s4 + $0x198] sm:$0xff] %v1298
  %1427 = vst [vmem:[%s4 + $0x1a0] sm:$0xff] %v1299
  %1428 = vst [vmem:[%s4 + $0x1a8] sm:$0xff] %v1300
  %1429 = vst [vmem:[%s4 + $0x1b0] sm:$0xff] %v1301
  %1430 = vst [vmem:[%s4 + $0x1b8] sm:$0xff] %v1302
  %1431 = vst [vmem:[%s4 + $0x1c0] sm:$0xff] %v1303
  %1432 = vst [vmem:[%s4 + $0x1c8] sm:$0xff] %v1304
  %1433 = vst [vmem:[%s4 + $0x1d0] sm:$0xff] %v1305
  %1434 = vst [vmem:[%s4 + $0x1d8] sm:$0xff] %v1306
  %1435 = vst [vmem:[%s4 + $0x1e0] sm:$0xff] %v1307
  %1436 = vst [vmem:[%s4 + $0x1e8] sm:$0xff] %v1308
  %1437 = vst [vmem:[%s4 + $0x1f0] sm:$0xff] %v1309
  %1438 = vst [vmem:[%s4 + $0x1f8] sm:$0xff] %v1310
  %1439 = vst [vmem:[%s4 + $0x200] sm:$0xff] %v1311
  %1440 = vst [vmem:[%s4 + $0x208] sm:$0xff] %v1312
  %1441 = vst [vmem:[%s4 + $0x210] sm:$0xff] %v1313
  %1442 = vst [vmem:[%s4 + $0x218] sm:$0xff] %v1314
  %1443 = vst [vmem:[%s4 + $0x220] sm:$0xff] %v1315
  %1444 = vst [vmem:[%s4 + $0x228] sm:$0xff] %v1316
  %1445 = vst [vmem:[%s4 + $0x230] sm:$0xff] %v1317
  %1446 = vst [vmem:[%s4 + $0x238] sm:$0xff] %v1318
  %1447 = vst [vmem:[%s4 + $0x240] sm:$0xff] %v1319
  %1448 = vst [vmem:[%s4 + $0x248] sm:$0xff] %v1320
  %1449 = vst [vmem:[%s4 + $0x250] sm:$0xff] %v1321
  %1450 = vst [vmem:[%s4 + $0x258] sm:$0xff] %v1322
  %1451 = vst [vmem:[%s4 + $0x260] sm:$0xff] %v1323
  %1452 = vst [vmem:[%s4 + $0x268] sm:$0xff] %v1324
  %1453 = vst [vmem:[%s4 + $0x270] sm:$0xff] %v1325
  %1454 = vst [vmem:[%s4 + $0x278] sm:$0xff] %v1326
  %1455 = vst [vmem:[%s4 + $0x280] sm:$0xff] %v1327
  %1456 = vst [vmem:[%s4 + $0x288] sm:$0xff] %v1328
  %1457 = vst [vmem:[%s4 + $0x290] sm:$0xff] %v1329
  %1458 = vst [vmem:[%s4 + $0x298] sm:$0xff] %v1330
  %1459 = vst [vmem:[%s4 + $0x2a0] sm:$0xff] %v1331
  %1460 = vst [vmem:[%s4 + $0x2a8] sm:$0xff] %v1332
  %1461 = vst [vmem:[%s4 + $0x2b0] sm:$0xff] %v1333
  %1462 = vst [vmem:[%s4 + $0x2b8] sm:$0xff] %v1334
  %1463 = vst [vmem:[%s4 + $0x2c0] sm:$0xff] %v1335
  %1464 = vst [vmem:[%s4 + $0x2c8] sm:$0xff] %v1336
  %1465 = vst [vmem:[%s4 + $0x2d0] sm:$0xff] %v1337
  %1466 = vst [vmem:[%s4 + $0x2d8] sm:$0xff] %v1338
  %1467 = vst [vmem:[%s4 + $0x2e0] sm:$0xff] %v1339
  %1468 = vst [vmem:[%s4 + $0x2e8] sm:$0xff] %v1340
  %1469 = vst [vmem:[%s4 + $0x2f0] sm:$0xff] %v1341
  %1470 = vst [vmem:[%s4 + $0x2f8] sm:$0xff] %v1342
  %1471 = vst [vmem:[%s4 + $0x300] sm:$0xff] %v1343
  %1472 = vst [vmem:[%s4 + $0x308] sm:$0xff] %v1344
  %1473 = vst [vmem:[%s4 + $0x310] sm:$0xff] %v1345
  %1474 = vst [vmem:[%s4 + $0x318] sm:$0xff] %v1346
  %1475 = vst [vmem:[%s4 + $0x320] sm:$0xff] %v1347
  %1476 = vst [vmem:[%s4 + $0x328] sm:$0xff] %v1348
  %1477 = vst [vmem:[%s4 + $0x330] sm:$0xff] %v1349
  %1478 = vst [vmem:[%s4 + $0x338] sm:$0xff] %v1350
  %1479 = vst [vmem:[%s4 + $0x340] sm:$0xff] %v1351
  %1480 = vst [vmem:[%s4 + $0x348] sm:$0xff] %v1352
  %1481 = vst [vmem:[%s4 + $0x350] sm:$0xff] %v1353
  %1482 = vst [vmem:[%s4 + $0x358] sm:$0xff] %v1354
  %1483 = vst [vmem:[%s4 + $0x360] sm:$0xff] %v1355
  %1484 = vst [vmem:[%s4 + $0x368] sm:$0xff] %v1356
  %1485 = vst [vmem:[%s4 + $0x370] sm:$0xff] %v1357
  %1486 = vst [vmem:[%s4 + $0x378] sm:$0xff] %v1358
  %1487 = vst [vmem:[%s4 + $0x380] sm:$0xff] %v1359
  %1488 = vst [vmem:[%s4 + $0x388] sm:$0xff] %v1360
  %1489 = vst [vmem:[%s4 + $0x390] sm:$0xff] %v1361
  %1490 = vst [vmem:[%s4 + $0x398] sm:$0xff] %v1362
  %1491 = vst [vmem:[%s4 + $0x3a0] sm:$0xff] %v1363
  %1492 = vst [vmem:[%s4 + $0x3a8] sm:$0xff] %v1364
  %1493 = vst [vmem:[%s4 + $0x3b0] sm:$0xff] %v1365
  %1494 = vst [vmem:[%s4 + $0x3b8] sm:$0xff] %v1366
  %1495 = vst [vmem:[%s4 + $0x3c0] sm:$0xff] %v1367
  %1496 = vst [vmem:[%s4 + $0x3c8] sm:$0xff] %v1368
  %1497 = vst [vmem:[%s4 + $0x3d0] sm:$0xff] %v1369
  %1498 = vst [vmem:[%s4 + $0x3d8] sm:$0xff] %v1370
  %1499 = vst [vmem:[%s4 + $0x3e0] sm:$0xff] %v1371
  %1500 = vst [vmem:[%s4 + $0x3e8] sm:$0xff] %v1372
  %1501 = vst [vmem:[%s4 + $0x3f0] sm:$0xff] %v1373
  %1502 = vst [vmem:[%s4 + $0x3f8] sm:$0xff] %v1374
  // Predicated region
  $region18: #{res50_layer4_forward.22} parent=0 // pred_check
    _
  $region19: #{res50_layer4_forward.22} parent=0 // pred_check_branch
    %1504 = sbr.rel (0) target = $region21
  $region20: #{res50_layer4_forward.22} parent=0 // pred_region
    _
  $region21: #{res50_layer4_forward.22} parent=0 // pred_fallthru
    _
  // Predicated region
  $region22: #{res50_layer4_forward.22} parent=0 // pred_check
    _
  $region23: #{res50_layer4_forward.22} parent=0 // pred_check_branch
    %1506 = sbr.rel (0) target = $region25
  $region24: #{res50_layer4_forward.22} parent=0 // pred_region
    _
  $region25: #{res50_layer4_forward.22} parent=0 // pred_fallthru
    _

// kernel: res50_layer4_forward.23
$region0: #{res50_layer4_forward.23}
  #allocation0 [shape = 'u32[]', space=smem, size = 0x4, offset = 0x4, fixed_abs, tag = 'smem constant byte address 0x4 - core index']
  #allocation1 [shape = 'u32[144,128]{1,0:T(1,128)}', space=vmem, size = 0x12000, scoped, tag = 'internal scratch']
  %s0 = inlined_call_operand.vmem [shape: f32[128,1024], index: 0, kind: input, shape index: {}]
  %s1 = inlined_call_operand.vmem [shape: f32[1024,256], index: 1, kind: input, shape index: {}]
  %s2 = inlined_call_operand.vmem [shape: f32[1,256], index: 2, kind: input, shape index: {}]
  %s3 = inlined_call_operand.vmem [shape: f32[128,256], index: 3, kind: output, shape index: {}]
  %s4 = sld [smem:[#allocation0]]
  $region22: #{res50_layer4_forward.23} parent=0
    _
  %s6 = ssub.s32 1, %s4
  %s7 = scalar_select 0, %s6, %s4
  // Predicated region
  $region2: #{res50_layer4_forward.23} parent=0 // pred_check
    _
  $region3: #{res50_layer4_forward.23} parent=0 // pred_check_branch
    %9 = sbr.rel (0) target = $region5
  $region4: #{res50_layer4_forward.23} parent=0 // pred_region
    _
  $region5: #{res50_layer4_forward.23} parent=0 // pred_fallthru
    _
  // Predicated region
  $region6: #{res50_layer4_forward.23} parent=0 // pred_check
    _
  $region7: #{res50_layer4_forward.23} parent=0 // pred_check_branch
    %11 = sbr.rel (0) target = $region9
  $region8: #{res50_layer4_forward.23} parent=0 // pred_region
    _
  $region9: #{res50_layer4_forward.23} parent=0 // pred_fallthru
    _
  // Predicated region
  $region10: #{res50_layer4_forward.23} parent=0 // pred_check
    _
  $region11: #{res50_layer4_forward.23} parent=0 // pred_check_branch
    %13 = sbr.rel (0) target = $region13
  $region12: #{res50_layer4_forward.23} parent=0 // pred_region
    _
  $region13: #{res50_layer4_forward.23} parent=0 // pred_fallthru
    _
  %v14 = vld [vmem:[%s0] sm:$0xff]
  %v15 = vld [vmem:[%s0 + $0x8] sm:$0xff]
  %v16 = vld [vmem:[%s0 + $0x10] sm:$0xff]
  %v17 = vld [vmem:[%s0 + $0x18] sm:$0xff]
  %v18 = vld [vmem:[%s0 + $0x20] sm:$0xff]
  %v19 = vld [vmem:[%s0 + $0x28] sm:$0xff]
  %v20 = vld [vmem:[%s0 + $0x30] sm:$0xff]
  %v21 = vld [vmem:[%s0 + $0x38] sm:$0xff]
  %v22 = vld [vmem:[%s0 + $0x40] sm:$0xff]
  %v23 = vld [vmem:[%s0 + $0x48] sm:$0xff]
  %v24 = vld [vmem:[%s0 + $0x50] sm:$0xff]
  %v25 = vld [vmem:[%s0 + $0x58] sm:$0xff]
  %v26 = vld [vmem:[%s0 + $0x60] sm:$0xff]
  %v27 = vld [vmem:[%s0 + $0x68] sm:$0xff]
  %v28 = vld [vmem:[%s0 + $0x70] sm:$0xff]
  %v29 = vld [vmem:[%s0 + $0x78] sm:$0xff]
  %v30 = vld [vmem:[%s0 + $0x80] sm:$0xff]
  %v31 = vld [vmem:[%s0 + $0x88] sm:$0xff]
  %v32 = vld [vmem:[%s0 + $0x90] sm:$0xff]
  %v33 = vld [vmem:[%s0 + $0x98] sm:$0xff]
  %v34 = vld [vmem:[%s0 + $0xa0] sm:$0xff]
  %v35 = vld [vmem:[%s0 + $0xa8] sm:$0xff]
  %v36 = vld [vmem:[%s0 + $0xb0] sm:$0xff]
  %v37 = vld [vmem:[%s0 + $0xb8] sm:$0xff]
  %v38 = vld [vmem:[%s0 + $0xc0] sm:$0xff]
  %v39 = vld [vmem:[%s0 + $0xc8] sm:$0xff]
  %v40 = vld [vmem:[%s0 + $0xd0] sm:$0xff]
  %v41 = vld [vmem:[%s0 + $0xd8] sm:$0xff]
  %v42 = vld [vmem:[%s0 + $0xe0] sm:$0xff]
  %v43 = vld [vmem:[%s0 + $0xe8] sm:$0xff]
  %v44 = vld [vmem:[%s0 + $0xf0] sm:$0xff]
  %v45 = vld [vmem:[%s0 + $0xf8] sm:$0xff]
  %v46 = vld [vmem:[%s0 + $0x100] sm:$0xff]
  %v47 = vld [vmem:[%s0 + $0x108] sm:$0xff]
  %v48 = vld [vmem:[%s0 + $0x110] sm:$0xff]
  %v49 = vld [vmem:[%s0 + $0x118] sm:$0xff]
  %v50 = vld [vmem:[%s0 + $0x120] sm:$0xff]
  %v51 = vld [vmem:[%s0 + $0x128] sm:$0xff]
  %v52 = vld [vmem:[%s0 + $0x130] sm:$0xff]
  %v53 = vld [vmem:[%s0 + $0x138] sm:$0xff]
  %v54 = vld [vmem:[%s0 + $0x140] sm:$0xff]
  %v55 = vld [vmem:[%s0 + $0x148] sm:$0xff]
  %v56 = vld [vmem:[%s0 + $0x150] sm:$0xff]
  %v57 = vld [vmem:[%s0 + $0x158] sm:$0xff]
  %v58 = vld [vmem:[%s0 + $0x160] sm:$0xff]
  %v59 = vld [vmem:[%s0 + $0x168] sm:$0xff]
  %v60 = vld [vmem:[%s0 + $0x170] sm:$0xff]
  %v61 = vld [vmem:[%s0 + $0x178] sm:$0xff]
  %v62 = vld [vmem:[%s0 + $0x180] sm:$0xff]
  %v63 = vld [vmem:[%s0 + $0x188] sm:$0xff]
  %v64 = vld [vmem:[%s0 + $0x190] sm:$0xff]
  %v65 = vld [vmem:[%s0 + $0x198] sm:$0xff]
  %v66 = vld [vmem:[%s0 + $0x1a0] sm:$0xff]
  %v67 = vld [vmem:[%s0 + $0x1a8] sm:$0xff]
  %v68 = vld [vmem:[%s0 + $0x1b0] sm:$0xff]
  %v69 = vld [vmem:[%s0 + $0x1b8] sm:$0xff]
  %v70 = vld [vmem:[%s0 + $0x1c0] sm:$0xff]
  %v71 = vld [vmem:[%s0 + $0x1c8] sm:$0xff]
  %v72 = vld [vmem:[%s0 + $0x1d0] sm:$0xff]
  %v73 = vld [vmem:[%s0 + $0x1d8] sm:$0xff]
  %v74 = vld [vmem:[%s0 + $0x1e0] sm:$0xff]
  %v75 = vld [vmem:[%s0 + $0x1e8] sm:$0xff]
  %v76 = vld [vmem:[%s0 + $0x1f0] sm:$0xff]
  %v77 = vld [vmem:[%s0 + $0x1f8] sm:$0xff]
  %v78 = vld [vmem:[%s0 + $0x200] sm:$0xff]
  %v79 = vld [vmem:[%s0 + $0x208] sm:$0xff]
  %v80 = vld [vmem:[%s0 + $0x210] sm:$0xff]
  %v81 = vld [vmem:[%s0 + $0x218] sm:$0xff]
  %v82 = vld [vmem:[%s0 + $0x220] sm:$0xff]
  %v83 = vld [vmem:[%s0 + $0x228] sm:$0xff]
  %v84 = vld [vmem:[%s0 + $0x230] sm:$0xff]
  %v85 = vld [vmem:[%s0 + $0x238] sm:$0xff]
  %v86 = vld [vmem:[%s0 + $0x240] sm:$0xff]
  %v87 = vld [vmem:[%s0 + $0x248] sm:$0xff]
  %v88 = vld [vmem:[%s0 + $0x250] sm:$0xff]
  %v89 = vld [vmem:[%s0 + $0x258] sm:$0xff]
  %v90 = vld [vmem:[%s0 + $0x260] sm:$0xff]
  %v91 = vld [vmem:[%s0 + $0x268] sm:$0xff]
  %v92 = vld [vmem:[%s0 + $0x270] sm:$0xff]
  %v93 = vld [vmem:[%s0 + $0x278] sm:$0xff]
  %v94 = vld [vmem:[%s0 + $0x280] sm:$0xff]
  %v95 = vld [vmem:[%s0 + $0x288] sm:$0xff]
  %v96 = vld [vmem:[%s0 + $0x290] sm:$0xff]
  %v97 = vld [vmem:[%s0 + $0x298] sm:$0xff]
  %v98 = vld [vmem:[%s0 + $0x2a0] sm:$0xff]
  %v99 = vld [vmem:[%s0 + $0x2a8] sm:$0xff]
  %v100 = vld [vmem:[%s0 + $0x2b0] sm:$0xff]
  %v101 = vld [vmem:[%s0 + $0x2b8] sm:$0xff]
  %v102 = vld [vmem:[%s0 + $0x2c0] sm:$0xff]
  %v103 = vld [vmem:[%s0 + $0x2c8] sm:$0xff]
  %v104 = vld [vmem:[%s0 + $0x2d0] sm:$0xff]
  %v105 = vld [vmem:[%s0 + $0x2d8] sm:$0xff]
  %v106 = vld [vmem:[%s0 + $0x2e0] sm:$0xff]
  %v107 = vld [vmem:[%s0 + $0x2e8] sm:$0xff]
  %v108 = vld [vmem:[%s0 + $0x2f0] sm:$0xff]
  %v109 = vld [vmem:[%s0 + $0x2f8] sm:$0xff]
  %v110 = vld [vmem:[%s0 + $0x300] sm:$0xff]
  %v111 = vld [vmem:[%s0 + $0x308] sm:$0xff]
  %v112 = vld [vmem:[%s0 + $0x310] sm:$0xff]
  %v113 = vld [vmem:[%s0 + $0x318] sm:$0xff]
  %v114 = vld [vmem:[%s0 + $0x320] sm:$0xff]
  %v115 = vld [vmem:[%s0 + $0x328] sm:$0xff]
  %v116 = vld [vmem:[%s0 + $0x330] sm:$0xff]
  %v117 = vld [vmem:[%s0 + $0x338] sm:$0xff]
  %v118 = vld [vmem:[%s0 + $0x340] sm:$0xff]
  %v119 = vld [vmem:[%s0 + $0x348] sm:$0xff]
  %v120 = vld [vmem:[%s0 + $0x350] sm:$0xff]
  %v121 = vld [vmem:[%s0 + $0x358] sm:$0xff]
  %v122 = vld [vmem:[%s0 + $0x360] sm:$0xff]
  %v123 = vld [vmem:[%s0 + $0x368] sm:$0xff]
  %v124 = vld [vmem:[%s0 + $0x370] sm:$0xff]
  %v125 = vld [vmem:[%s0 + $0x378] sm:$0xff]
  %v126 = vld [vmem:[%s0 + $0x380] sm:$0xff]
  %v127 = vld [vmem:[%s0 + $0x388] sm:$0xff]
  %v128 = vld [vmem:[%s0 + $0x390] sm:$0xff]
  %v129 = vld [vmem:[%s0 + $0x398] sm:$0xff]
  %v130 = vld [vmem:[%s0 + $0x3a0] sm:$0xff]
  %v131 = vld [vmem:[%s0 + $0x3a8] sm:$0xff]
  %v132 = vld [vmem:[%s0 + $0x3b0] sm:$0xff]
  %v133 = vld [vmem:[%s0 + $0x3b8] sm:$0xff]
  %v134 = vld [vmem:[%s0 + $0x3c0] sm:$0xff]
  %v135 = vld [vmem:[%s0 + $0x3c8] sm:$0xff]
  %v136 = vld [vmem:[%s0 + $0x3d0] sm:$0xff]
  %v137 = vld [vmem:[%s0 + $0x3d8] sm:$0xff]
  %v138 = vld [vmem:[%s0 + $0x3e0] sm:$0xff]
  %v139 = vld [vmem:[%s0 + $0x3e8] sm:$0xff]
  %v140 = vld [vmem:[%s0 + $0x3f0] sm:$0xff]
  %v141 = vld [vmem:[%s0 + $0x3f8] sm:$0xff]
  %v142 = vld [vmem:[%s1] sm:$0xff]
  %v143 = vld [vmem:[%s1 + $0x8] sm:$0xff]
  %v144 = vld [vmem:[%s1 + $0x10] sm:$0xff]
  %v145 = vld [vmem:[%s1 + $0x18] sm:$0xff]
  %v146 = vld [vmem:[%s1 + $0x20] sm:$0xff]
  %v147 = vld [vmem:[%s1 + $0x28] sm:$0xff]
  %v148 = vld [vmem:[%s1 + $0x30] sm:$0xff]
  %v149 = vld [vmem:[%s1 + $0x38] sm:$0xff]
  %v150 = vld [vmem:[%s1 + $0x40] sm:$0xff]
  %v151 = vld [vmem:[%s1 + $0x48] sm:$0xff]
  %v152 = vld [vmem:[%s1 + $0x50] sm:$0xff]
  %v153 = vld [vmem:[%s1 + $0x58] sm:$0xff]
  %v154 = vld [vmem:[%s1 + $0x60] sm:$0xff]
  %v155 = vld [vmem:[%s1 + $0x68] sm:$0xff]
  %v156 = vld [vmem:[%s1 + $0x70] sm:$0xff]
  %v157 = vld [vmem:[%s1 + $0x78] sm:$0xff]
  %v158 = vld [vmem:[%s1 + $0x80] sm:$0xff]
  %v159 = vld [vmem:[%s1 + $0x88] sm:$0xff]
  %v160 = vld [vmem:[%s1 + $0x90] sm:$0xff]
  %v161 = vld [vmem:[%s1 + $0x98] sm:$0xff]
  %v162 = vld [vmem:[%s1 + $0xa0] sm:$0xff]
  %v163 = vld [vmem:[%s1 + $0xa8] sm:$0xff]
  %v164 = vld [vmem:[%s1 + $0xb0] sm:$0xff]
  %v165 = vld [vmem:[%s1 + $0xb8] sm:$0xff]
  %v166 = vld [vmem:[%s1 + $0xc0] sm:$0xff]
  %v167 = vld [vmem:[%s1 + $0xc8] sm:$0xff]
  %v168 = vld [vmem:[%s1 + $0xd0] sm:$0xff]
  %v169 = vld [vmem:[%s1 + $0xd8] sm:$0xff]
  %v170 = vld [vmem:[%s1 + $0xe0] sm:$0xff]
  %v171 = vld [vmem:[%s1 + $0xe8] sm:$0xff]
  %v172 = vld [vmem:[%s1 + $0xf0] sm:$0xff]
  %v173 = vld [vmem:[%s1 + $0xf8] sm:$0xff]
  %v174 = vld [vmem:[%s1 + $0x100] sm:$0xff]
  %v175 = vld [vmem:[%s1 + $0x108] sm:$0xff]
  %v176 = vld [vmem:[%s1 + $0x110] sm:$0xff]
  %v177 = vld [vmem:[%s1 + $0x118] sm:$0xff]
  %v178 = vld [vmem:[%s1 + $0x120] sm:$0xff]
  %v179 = vld [vmem:[%s1 + $0x128] sm:$0xff]
  %v180 = vld [vmem:[%s1 + $0x130] sm:$0xff]
  %v181 = vld [vmem:[%s1 + $0x138] sm:$0xff]
  %v182 = vld [vmem:[%s1 + $0x140] sm:$0xff]
  %v183 = vld [vmem:[%s1 + $0x148] sm:$0xff]
  %v184 = vld [vmem:[%s1 + $0x150] sm:$0xff]
  %v185 = vld [vmem:[%s1 + $0x158] sm:$0xff]
  %v186 = vld [vmem:[%s1 + $0x160] sm:$0xff]
  %v187 = vld [vmem:[%s1 + $0x168] sm:$0xff]
  %v188 = vld [vmem:[%s1 + $0x170] sm:$0xff]
  %v189 = vld [vmem:[%s1 + $0x178] sm:$0xff]
  %v190 = vld [vmem:[%s1 + $0x180] sm:$0xff]
  %v191 = vld [vmem:[%s1 + $0x188] sm:$0xff]
  %v192 = vld [vmem:[%s1 + $0x190] sm:$0xff]
  %v193 = vld [vmem:[%s1 + $0x198] sm:$0xff]
  %v194 = vld [vmem:[%s1 + $0x1a0] sm:$0xff]
  %v195 = vld [vmem:[%s1 + $0x1a8] sm:$0xff]
  %v196 = vld [vmem:[%s1 + $0x1b0] sm:$0xff]
  %v197 = vld [vmem:[%s1 + $0x1b8] sm:$0xff]
  %v198 = vld [vmem:[%s1 + $0x1c0] sm:$0xff]
  %v199 = vld [vmem:[%s1 + $0x1c8] sm:$0xff]
  %v200 = vld [vmem:[%s1 + $0x1d0] sm:$0xff]
  %v201 = vld [vmem:[%s1 + $0x1d8] sm:$0xff]
  %v202 = vld [vmem:[%s1 + $0x1e0] sm:$0xff]
  %v203 = vld [vmem:[%s1 + $0x1e8] sm:$0xff]
  %v204 = vld [vmem:[%s1 + $0x1f0] sm:$0xff]
  %v205 = vld [vmem:[%s1 + $0x1f8] sm:$0xff]
  %v206 = vld [vmem:[%s1 + $0x200] sm:$0xff]
  %v207 = vld [vmem:[%s1 + $0x208] sm:$0xff]
  %v208 = vld [vmem:[%s1 + $0x210] sm:$0xff]
  %v209 = vld [vmem:[%s1 + $0x218] sm:$0xff]
  %v210 = vld [vmem:[%s1 + $0x220] sm:$0xff]
  %v211 = vld [vmem:[%s1 + $0x228] sm:$0xff]
  %v212 = vld [vmem:[%s1 + $0x230] sm:$0xff]
  %v213 = vld [vmem:[%s1 + $0x238] sm:$0xff]
  %v214 = vld [vmem:[%s1 + $0x240] sm:$0xff]
  %v215 = vld [vmem:[%s1 + $0x248] sm:$0xff]
  %v216 = vld [vmem:[%s1 + $0x250] sm:$0xff]
  %v217 = vld [vmem:[%s1 + $0x258] sm:$0xff]
  %v218 = vld [vmem:[%s1 + $0x260] sm:$0xff]
  %v219 = vld [vmem:[%s1 + $0x268] sm:$0xff]
  %v220 = vld [vmem:[%s1 + $0x270] sm:$0xff]
  %v221 = vld [vmem:[%s1 + $0x278] sm:$0xff]
  %v222 = vld [vmem:[%s1 + $0x280] sm:$0xff]
  %v223 = vld [vmem:[%s1 + $0x288] sm:$0xff]
  %v224 = vld [vmem:[%s1 + $0x290] sm:$0xff]
  %v225 = vld [vmem:[%s1 + $0x298] sm:$0xff]
  %v226 = vld [vmem:[%s1 + $0x2a0] sm:$0xff]
  %v227 = vld [vmem:[%s1 + $0x2a8] sm:$0xff]
  %v228 = vld [vmem:[%s1 + $0x2b0] sm:$0xff]
  %v229 = vld [vmem:[%s1 + $0x2b8] sm:$0xff]
  %v230 = vld [vmem:[%s1 + $0x2c0] sm:$0xff]
  %v231 = vld [vmem:[%s1 + $0x2c8] sm:$0xff]
  %v232 = vld [vmem:[%s1 + $0x2d0] sm:$0xff]
  %v233 = vld [vmem:[%s1 + $0x2d8] sm:$0xff]
  %v234 = vld [vmem:[%s1 + $0x2e0] sm:$0xff]
  %v235 = vld [vmem:[%s1 + $0x2e8] sm:$0xff]
  %v236 = vld [vmem:[%s1 + $0x2f0] sm:$0xff]
  %v237 = vld [vmem:[%s1 + $0x2f8] sm:$0xff]
  %v238 = vld [vmem:[%s1 + $0x300] sm:$0xff]
  %v239 = vld [vmem:[%s1 + $0x308] sm:$0xff]
  %v240 = vld [vmem:[%s1 + $0x310] sm:$0xff]
  %v241 = vld [vmem:[%s1 + $0x318] sm:$0xff]
  %v242 = vld [vmem:[%s1 + $0x320] sm:$0xff]
  %v243 = vld [vmem:[%s1 + $0x328] sm:$0xff]
  %v244 = vld [vmem:[%s1 + $0x330] sm:$0xff]
  %v245 = vld [vmem:[%s1 + $0x338] sm:$0xff]
  %v246 = vld [vmem:[%s1 + $0x340] sm:$0xff]
  %v247 = vld [vmem:[%s1 + $0x348] sm:$0xff]
  %v248 = vld [vmem:[%s1 + $0x350] sm:$0xff]
  %v249 = vld [vmem:[%s1 + $0x358] sm:$0xff]
  %v250 = vld [vmem:[%s1 + $0x360] sm:$0xff]
  %v251 = vld [vmem:[%s1 + $0x368] sm:$0xff]
  %v252 = vld [vmem:[%s1 + $0x370] sm:$0xff]
  %v253 = vld [vmem:[%s1 + $0x378] sm:$0xff]
  %v254 = vld [vmem:[%s1 + $0x380] sm:$0xff]
  %v255 = vld [vmem:[%s1 + $0x388] sm:$0xff]
  %v256 = vld [vmem:[%s1 + $0x390] sm:$0xff]
  %v257 = vld [vmem:[%s1 + $0x398] sm:$0xff]
  %v258 = vld [vmem:[%s1 + $0x3a0] sm:$0xff]
  %v259 = vld [vmem:[%s1 + $0x3a8] sm:$0xff]
  %v260 = vld [vmem:[%s1 + $0x3b0] sm:$0xff]
  %v261 = vld [vmem:[%s1 + $0x3b8] sm:$0xff]
  %v262 = vld [vmem:[%s1 + $0x3c0] sm:$0xff]
  %v263 = vld [vmem:[%s1 + $0x3c8] sm:$0xff]
  %v264 = vld [vmem:[%s1 + $0x3d0] sm:$0xff]
  %v265 = vld [vmem:[%s1 + $0x3d8] sm:$0xff]
  %v266 = vld [vmem:[%s1 + $0x3e0] sm:$0xff]
  %v267 = vld [vmem:[%s1 + $0x3e8] sm:$0xff]
  %v268 = vld [vmem:[%s1 + $0x3f0] sm:$0xff]
  %v269 = vld [vmem:[%s1 + $0x3f8] sm:$0xff]
  %v270 = vld [vmem:[%s1 + $0x400] sm:$0xff]
  %v271 = vld [vmem:[%s1 + $0x408] sm:$0xff]
  %v272 = vld [vmem:[%s1 + $0x410] sm:$0xff]
  %v273 = vld [vmem:[%s1 + $0x418] sm:$0xff]
  %v274 = vld [vmem:[%s1 + $0x420] sm:$0xff]
  %v275 = vld [vmem:[%s1 + $0x428] sm:$0xff]
  %v276 = vld [vmem:[%s1 + $0x430] sm:$0xff]
  %v277 = vld [vmem:[%s1 + $0x438] sm:$0xff]
  %v278 = vld [vmem:[%s1 + $0x440] sm:$0xff]
  %v279 = vld [vmem:[%s1 + $0x448] sm:$0xff]
  %v280 = vld [vmem:[%s1 + $0x450] sm:$0xff]
  %v281 = vld [vmem:[%s1 + $0x458] sm:$0xff]
  %v282 = vld [vmem:[%s1 + $0x460] sm:$0xff]
  %v283 = vld [vmem:[%s1 + $0x468] sm:$0xff]
  %v284 = vld [vmem:[%s1 + $0x470] sm:$0xff]
  %v285 = vld [vmem:[%s1 + $0x478] sm:$0xff]
  %v286 = vld [vmem:[%s1 + $0x480] sm:$0xff]
  %v287 = vld [vmem:[%s1 + $0x488] sm:$0xff]
  %v288 = vld [vmem:[%s1 + $0x490] sm:$0xff]
  %v289 = vld [vmem:[%s1 + $0x498] sm:$0xff]
  %v290 = vld [vmem:[%s1 + $0x4a0] sm:$0xff]
  %v291 = vld [vmem:[%s1 + $0x4a8] sm:$0xff]
  %v292 = vld [vmem:[%s1 + $0x4b0] sm:$0xff]
  %v293 = vld [vmem:[%s1 + $0x4b8] sm:$0xff]
  %v294 = vld [vmem:[%s1 + $0x4c0] sm:$0xff]
  %v295 = vld [vmem:[%s1 + $0x4c8] sm:$0xff]
  %v296 = vld [vmem:[%s1 + $0x4d0] sm:$0xff]
  %v297 = vld [vmem:[%s1 + $0x4d8] sm:$0xff]
  %v298 = vld [vmem:[%s1 + $0x4e0] sm:$0xff]
  %v299 = vld [vmem:[%s1 + $0x4e8] sm:$0xff]
  %v300 = vld [vmem:[%s1 + $0x4f0] sm:$0xff]
  %v301 = vld [vmem:[%s1 + $0x4f8] sm:$0xff]
  %v302 = vld [vmem:[%s1 + $0x500] sm:$0xff]
  %v303 = vld [vmem:[%s1 + $0x508] sm:$0xff]
  %v304 = vld [vmem:[%s1 + $0x510] sm:$0xff]
  %v305 = vld [vmem:[%s1 + $0x518] sm:$0xff]
  %v306 = vld [vmem:[%s1 + $0x520] sm:$0xff]
  %v307 = vld [vmem:[%s1 + $0x528] sm:$0xff]
  %v308 = vld [vmem:[%s1 + $0x530] sm:$0xff]
  %v309 = vld [vmem:[%s1 + $0x538] sm:$0xff]
  %v310 = vld [vmem:[%s1 + $0x540] sm:$0xff]
  %v311 = vld [vmem:[%s1 + $0x548] sm:$0xff]
  %v312 = vld [vmem:[%s1 + $0x550] sm:$0xff]
  %v313 = vld [vmem:[%s1 + $0x558] sm:$0xff]
  %v314 = vld [vmem:[%s1 + $0x560] sm:$0xff]
  %v315 = vld [vmem:[%s1 + $0x568] sm:$0xff]
  %v316 = vld [vmem:[%s1 + $0x570] sm:$0xff]
  %v317 = vld [vmem:[%s1 + $0x578] sm:$0xff]
  %v318 = vld [vmem:[%s1 + $0x580] sm:$0xff]
  %v319 = vld [vmem:[%s1 + $0x588] sm:$0xff]
  %v320 = vld [vmem:[%s1 + $0x590] sm:$0xff]
  %v321 = vld [vmem:[%s1 + $0x598] sm:$0xff]
  %v322 = vld [vmem:[%s1 + $0x5a0] sm:$0xff]
  %v323 = vld [vmem:[%s1 + $0x5a8] sm:$0xff]
  %v324 = vld [vmem:[%s1 + $0x5b0] sm:$0xff]
  %v325 = vld [vmem:[%s1 + $0x5b8] sm:$0xff]
  %v326 = vld [vmem:[%s1 + $0x5c0] sm:$0xff]
  %v327 = vld [vmem:[%s1 + $0x5c8] sm:$0xff]
  %v328 = vld [vmem:[%s1 + $0x5d0] sm:$0xff]
  %v329 = vld [vmem:[%s1 + $0x5d8] sm:$0xff]
  %v330 = vld [vmem:[%s1 + $0x5e0] sm:$0xff]
  %v331 = vld [vmem:[%s1 + $0x5e8] sm:$0xff]
  %v332 = vld [vmem:[%s1 + $0x5f0] sm:$0xff]
  %v333 = vld [vmem:[%s1 + $0x5f8] sm:$0xff]
  %v334 = vld [vmem:[%s1 + $0x600] sm:$0xff]
  %v335 = vld [vmem:[%s1 + $0x608] sm:$0xff]
  %v336 = vld [vmem:[%s1 + $0x610] sm:$0xff]
  %v337 = vld [vmem:[%s1 + $0x618] sm:$0xff]
  %v338 = vld [vmem:[%s1 + $0x620] sm:$0xff]
  %v339 = vld [vmem:[%s1 + $0x628] sm:$0xff]
  %v340 = vld [vmem:[%s1 + $0x630] sm:$0xff]
  %v341 = vld [vmem:[%s1 + $0x638] sm:$0xff]
  %v342 = vld [vmem:[%s1 + $0x640] sm:$0xff]
  %v343 = vld [vmem:[%s1 + $0x648] sm:$0xff]
  %v344 = vld [vmem:[%s1 + $0x650] sm:$0xff]
  %v345 = vld [vmem:[%s1 + $0x658] sm:$0xff]
  %v346 = vld [vmem:[%s1 + $0x660] sm:$0xff]
  %v347 = vld [vmem:[%s1 + $0x668] sm:$0xff]
  %v348 = vld [vmem:[%s1 + $0x670] sm:$0xff]
  %v349 = vld [vmem:[%s1 + $0x678] sm:$0xff]
  %v350 = vld [vmem:[%s1 + $0x680] sm:$0xff]
  %v351 = vld [vmem:[%s1 + $0x688] sm:$0xff]
  %v352 = vld [vmem:[%s1 + $0x690] sm:$0xff]
  %v353 = vld [vmem:[%s1 + $0x698] sm:$0xff]
  %v354 = vld [vmem:[%s1 + $0x6a0] sm:$0xff]
  %v355 = vld [vmem:[%s1 + $0x6a8] sm:$0xff]
  %v356 = vld [vmem:[%s1 + $0x6b0] sm:$0xff]
  %v357 = vld [vmem:[%s1 + $0x6b8] sm:$0xff]
  %v358 = vld [vmem:[%s1 + $0x6c0] sm:$0xff]
  %v359 = vld [vmem:[%s1 + $0x6c8] sm:$0xff]
  %v360 = vld [vmem:[%s1 + $0x6d0] sm:$0xff]
  %v361 = vld [vmem:[%s1 + $0x6d8] sm:$0xff]
  %v362 = vld [vmem:[%s1 + $0x6e0] sm:$0xff]
  %v363 = vld [vmem:[%s1 + $0x6e8] sm:$0xff]
  %v364 = vld [vmem:[%s1 + $0x6f0] sm:$0xff]
  %v365 = vld [vmem:[%s1 + $0x6f8] sm:$0xff]
  %v366 = vld [vmem:[%s1 + $0x700] sm:$0xff]
  %v367 = vld [vmem:[%s1 + $0x708] sm:$0xff]
  %v368 = vld [vmem:[%s1 + $0x710] sm:$0xff]
  %v369 = vld [vmem:[%s1 + $0x718] sm:$0xff]
  %v370 = vld [vmem:[%s1 + $0x720] sm:$0xff]
  %v371 = vld [vmem:[%s1 + $0x728] sm:$0xff]
  %v372 = vld [vmem:[%s1 + $0x730] sm:$0xff]
  %v373 = vld [vmem:[%s1 + $0x738] sm:$0xff]
  %v374 = vld [vmem:[%s1 + $0x740] sm:$0xff]
  %v375 = vld [vmem:[%s1 + $0x748] sm:$0xff]
  %v376 = vld [vmem:[%s1 + $0x750] sm:$0xff]
  %v377 = vld [vmem:[%s1 + $0x758] sm:$0xff]
  %v378 = vld [vmem:[%s1 + $0x760] sm:$0xff]
  %v379 = vld [vmem:[%s1 + $0x768] sm:$0xff]
  %v380 = vld [vmem:[%s1 + $0x770] sm:$0xff]
  %v381 = vld [vmem:[%s1 + $0x778] sm:$0xff]
  %v382 = vld [vmem:[%s1 + $0x780] sm:$0xff]
  %v383 = vld [vmem:[%s1 + $0x788] sm:$0xff]
  %v384 = vld [vmem:[%s1 + $0x790] sm:$0xff]
  %v385 = vld [vmem:[%s1 + $0x798] sm:$0xff]
  %v386 = vld [vmem:[%s1 + $0x7a0] sm:$0xff]
  %v387 = vld [vmem:[%s1 + $0x7a8] sm:$0xff]
  %v388 = vld [vmem:[%s1 + $0x7b0] sm:$0xff]
  %v389 = vld [vmem:[%s1 + $0x7b8] sm:$0xff]
  %v390 = vld [vmem:[%s1 + $0x7c0] sm:$0xff]
  %v391 = vld [vmem:[%s1 + $0x7c8] sm:$0xff]
  %v392 = vld [vmem:[%s1 + $0x7d0] sm:$0xff]
  %v393 = vld [vmem:[%s1 + $0x7d8] sm:$0xff]
  %v394 = vld [vmem:[%s1 + $0x7e0] sm:$0xff]
  %v395 = vld [vmem:[%s1 + $0x7e8] sm:$0xff]
  %v396 = vld [vmem:[%s1 + $0x7f0] sm:$0xff]
  %v397 = vld [vmem:[%s1 + $0x7f8] sm:$0xff]
  %v398 = vld [vmem:[%s2] sm:$0x3]
  %v400 = vlaneseq
  %v401 = vshrl.u32 %v400, 7
  %v402 = vsub.s32 0, %v401
  %v403 = vrot.slane %v398, %v402
  %v404 = vlaneseq
  %v405 = vshrl.u32 %v404, 7
  %v406 = vsub.s32 1, %v405
  %v407 = vrot.slane %v398, %v406
  %410 = vmatprep.subr.mxu0 %v173
  %411 = vmatpush1.msra.mxu0 %v172
  %412 = vmatprep.subr.mxu0 %v171
  %413 = vmatpush1.msra.mxu0 %v170
  %414 = vmatprep.subr.mxu0 %v169
  %415 = vmatpush1.msra.mxu0 %v168
  %416 = vmatprep.subr.mxu0 %v167
  %417 = vmatpush1.msra.mxu0 %v166
  %418 = vmatprep.subr.mxu0 %v165
  %419 = vmatpush1.msra.mxu0 %v164
  %420 = vmatprep.subr.mxu0 %v163
  %421 = vmatpush1.msra.mxu0 %v162
  %422 = vmatprep.subr.mxu0 %v161
  %423 = vmatpush1.msra.mxu0 %v160
  %424 = vmatprep.subr.mxu0 %v159
  %425 = vmatpush1.msra.mxu0 %v158
  %426 = vmatprep.subr.mxu0 %v157
  %427 = vmatpush1.msra.mxu0 %v156
  %428 = vmatprep.subr.mxu0 %v155
  %429 = vmatpush1.msra.mxu0 %v154
  %430 = vmatprep.subr.mxu0 %v153
  %431 = vmatpush1.msra.mxu0 %v152
  %432 = vmatprep.subr.mxu0 %v151
  %433 = vmatpush1.msra.mxu0 %v150
  %434 = vmatprep.subr.mxu0 %v149
  %435 = vmatpush1.msra.mxu0 %v148
  %436 = vmatprep.subr.mxu0 %v147
  %437 = vmatpush1.msra.mxu0 %v146
  %438 = vmatprep.subr.mxu0 %v145
  %439 = vmatpush1.msra.mxu0 %v144
  %440 = vmatprep.subr.mxu0 %v143
  %441 = vmatpush1.msra.mxu0 %v142
  %442 = vmatprep.subr.mxu0 %v205
  %443 = vmatpush2.msra.mxu0 %v204
  %444 = vmatprep.subr.mxu0 %v203
  %445 = vmatpush2.msra.mxu0 %v202
  %446 = vmatprep.subr.mxu0 %v201
  %447 = vmatpush2.msra.mxu0 %v200
  %448 = vmatprep.subr.mxu0 %v199
  %449 = vmatpush2.msra.mxu0 %v198
  %450 = vmatprep.subr.mxu0 %v197
  %451 = vmatpush2.msra.mxu0 %v196
  %452 = vmatprep.subr.mxu0 %v195
  %453 = vmatpush2.msra.mxu0 %v194
  %454 = vmatprep.subr.mxu0 %v193
  %455 = vmatpush2.msra.mxu0 %v192
  %456 = vmatprep.subr.mxu0 %v191
  %457 = vmatpush2.msra.mxu0 %v190
  %458 = vmatprep.subr.mxu0 %v189
  %459 = vmatpush2.msra.mxu0 %v188
  %460 = vmatprep.subr.mxu0 %v187
  %461 = vmatpush2.msra.mxu0 %v186
  %462 = vmatprep.subr.mxu0 %v185
  %463 = vmatpush2.msra.mxu0 %v184
  %464 = vmatprep.subr.mxu0 %v183
  %465 = vmatpush2.msra.mxu0 %v182
  %466 = vmatprep.subr.mxu0 %v181
  %467 = vmatpush2.msra.mxu0 %v180
  %468 = vmatprep.subr.mxu0 %v179
  %469 = vmatpush2.msra.mxu0 %v178
  %470 = vmatprep.subr.mxu0 %v177
  %471 = vmatpush2.msra.mxu0 %v176
  %472 = vmatprep.subr.mxu0 %v175
  %473 = vmatpush2.msra.mxu0 %v174
  %474 = vmatprep.mubr.f32.mxu0 %v15
  %475 = vmatmul.mubr.f32.gmra.mxu0 %v14
  %v476 = vpop.f32.mrf.mxu0
  %v477 = vadd.f32 %v403, %v476
  %v478 = vpop.f32.mrf.mxu0
  %v479 = vadd.f32 %v407, %v478
  %480 = vmatprep.mubr.f32.mxu0 %v23
  %481 = vmatmul.mubr.f32.gmra.mxu0 %v22
  %v482 = vpop.f32.mrf.mxu0
  %v483 = vadd.f32 %v403, %v482
  %v484 = vpop.f32.mrf.mxu0
  %v485 = vadd.f32 %v407, %v484
  %486 = vmatprep.mubr.f32.mxu0 %v31
  %487 = vmatmul.mubr.f32.gmra.mxu0 %v30
  %v488 = vpop.f32.mrf.mxu0
  %v489 = vadd.f32 %v403, %v488
  %v490 = vpop.f32.mrf.mxu0
  %v491 = vadd.f32 %v407, %v490
  %492 = vmatprep.mubr.f32.mxu0 %v39
  %493 = vmatmul.mubr.f32.gmra.mxu0 %v38
  %v494 = vpop.f32.mrf.mxu0
  %v495 = vadd.f32 %v403, %v494
  %v496 = vpop.f32.mrf.mxu0
  %v497 = vadd.f32 %v407, %v496
  %498 = vmatprep.mubr.f32.mxu0 %v47
  %499 = vmatmul.mubr.f32.gmra.mxu0 %v46
  %v500 = vpop.f32.mrf.mxu0
  %v501 = vadd.f32 %v403, %v500
  %v502 = vpop.f32.mrf.mxu0
  %v503 = vadd.f32 %v407, %v502
  %504 = vmatprep.mubr.f32.mxu0 %v55
  %505 = vmatmul.mubr.f32.gmra.mxu0 %v54
  %v506 = vpop.f32.mrf.mxu0
  %v507 = vadd.f32 %v403, %v506
  %v508 = vpop.f32.mrf.mxu0
  %v509 = vadd.f32 %v407, %v508
  %510 = vmatprep.mubr.f32.mxu0 %v63
  %511 = vmatmul.mubr.f32.gmra.mxu0 %v62
  %v512 = vpop.f32.mrf.mxu0
  %v513 = vadd.f32 %v403, %v512
  %v514 = vpop.f32.mrf.mxu0
  %v515 = vadd.f32 %v407, %v514
  %516 = vmatprep.mubr.f32.mxu0 %v71
  %517 = vmatmul.mubr.f32.gmra.mxu0 %v70
  %v518 = vpop.f32.mrf.mxu0
  %v519 = vadd.f32 %v403, %v518
  %v520 = vpop.f32.mrf.mxu0
  %v521 = vadd.f32 %v407, %v520
  %522 = vmatprep.mubr.f32.mxu0 %v79
  %523 = vmatmul.mubr.f32.gmra.mxu0 %v78
  %v524 = vpop.f32.mrf.mxu0
  %v525 = vadd.f32 %v403, %v524
  %v526 = vpop.f32.mrf.mxu0
  %v527 = vadd.f32 %v407, %v526
  %528 = vmatprep.mubr.f32.mxu0 %v87
  %529 = vmatmul.mubr.f32.gmra.mxu0 %v86
  %v530 = vpop.f32.mrf.mxu0
  %v531 = vadd.f32 %v403, %v530
  %v532 = vpop.f32.mrf.mxu0
  %v533 = vadd.f32 %v407, %v532
  %534 = vmatprep.mubr.f32.mxu0 %v95
  %535 = vmatmul.mubr.f32.gmra.mxu0 %v94
  %v536 = vpop.f32.mrf.mxu0
  %v537 = vadd.f32 %v403, %v536
  %v538 = vpop.f32.mrf.mxu0
  %v539 = vadd.f32 %v407, %v538
  %540 = vmatprep.mubr.f32.mxu0 %v103
  %541 = vmatmul.mubr.f32.gmra.mxu0 %v102
  %v542 = vpop.f32.mrf.mxu0
  %v543 = vadd.f32 %v403, %v542
  %v544 = vpop.f32.mrf.mxu0
  %v545 = vadd.f32 %v407, %v544
  %546 = vmatprep.mubr.f32.mxu0 %v111
  %547 = vmatmul.mubr.f32.gmra.mxu0 %v110
  %v548 = vpop.f32.mrf.mxu0
  %v549 = vadd.f32 %v403, %v548
  %v550 = vpop.f32.mrf.mxu0
  %v551 = vadd.f32 %v407, %v550
  %552 = vmatprep.mubr.f32.mxu0 %v119
  %553 = vmatmul.mubr.f32.gmra.mxu0 %v118
  %v554 = vpop.f32.mrf.mxu0
  %v555 = vadd.f32 %v403, %v554
  %v556 = vpop.f32.mrf.mxu0
  %v557 = vadd.f32 %v407, %v556
  %558 = vmatprep.mubr.f32.mxu0 %v127
  %559 = vmatmul.mubr.f32.gmra.mxu0 %v126
  %v560 = vpop.f32.mrf.mxu0
  %v561 = vadd.f32 %v403, %v560
  %v562 = vpop.f32.mrf.mxu0
  %v563 = vadd.f32 %v407, %v562
  %564 = vmatprep.mubr.f32.mxu0 %v135
  %565 = vmatmul.mubr.f32.gmra.mxu0 %v134
  %v566 = vpop.f32.mrf.mxu0
  %v567 = vadd.f32 %v403, %v566
  %v568 = vpop.f32.mrf.mxu0
  %v569 = vadd.f32 %v407, %v568
  %570 = vdwg.mxu0
  %571 = vmatprep.subr.mxu0 %v237
  %572 = vmatpush1.msra.mxu0 %v236
  %573 = vmatprep.subr.mxu0 %v235
  %574 = vmatpush1.msra.mxu0 %v234
  %575 = vmatprep.subr.mxu0 %v233
  %576 = vmatpush1.msra.mxu0 %v232
  %577 = vmatprep.subr.mxu0 %v231
  %578 = vmatpush1.msra.mxu0 %v230
  %579 = vmatprep.subr.mxu0 %v229
  %580 = vmatpush1.msra.mxu0 %v228
  %581 = vmatprep.subr.mxu0 %v227
  %582 = vmatpush1.msra.mxu0 %v226
  %583 = vmatprep.subr.mxu0 %v225
  %584 = vmatpush1.msra.mxu0 %v224
  %585 = vmatprep.subr.mxu0 %v223
  %586 = vmatpush1.msra.mxu0 %v222
  %587 = vmatprep.subr.mxu0 %v221
  %588 = vmatpush1.msra.mxu0 %v220
  %589 = vmatprep.subr.mxu0 %v219
  %590 = vmatpush1.msra.mxu0 %v218
  %591 = vmatprep.subr.mxu0 %v217
  %592 = vmatpush1.msra.mxu0 %v216
  %593 = vmatprep.subr.mxu0 %v215
  %594 = vmatpush1.msra.mxu0 %v214
  %595 = vmatprep.subr.mxu0 %v213
  %596 = vmatpush1.msra.mxu0 %v212
  %597 = vmatprep.subr.mxu0 %v211
  %598 = vmatpush1.msra.mxu0 %v210
  %599 = vmatprep.subr.mxu0 %v209
  %600 = vmatpush1.msra.mxu0 %v208
  %601 = vmatprep.subr.mxu0 %v207
  %602 = vmatpush1.msra.mxu0 %v206
  %603 = vmatprep.subr.mxu0 %v269
  %604 = vmatpush2.msra.mxu0 %v268
  %605 = vmatprep.subr.mxu0 %v267
  %606 = vmatpush2.msra.mxu0 %v266
  %607 = vmatprep.subr.mxu0 %v265
  %608 = vmatpush2.msra.mxu0 %v264
  %609 = vmatprep.subr.mxu0 %v263
  %610 = vmatpush2.msra.mxu0 %v262
  %611 = vmatprep.subr.mxu0 %v261
  %612 = vmatpush2.msra.mxu0 %v260
  %613 = vmatprep.subr.mxu0 %v259
  %614 = vmatpush2.msra.mxu0 %v258
  %615 = vmatprep.subr.mxu0 %v257
  %616 = vmatpush2.msra.mxu0 %v256
  %617 = vmatprep.subr.mxu0 %v255
  %618 = vmatpush2.msra.mxu0 %v254
  %619 = vmatprep.subr.mxu0 %v253
  %620 = vmatpush2.msra.mxu0 %v252
  %621 = vmatprep.subr.mxu0 %v251
  %622 = vmatpush2.msra.mxu0 %v250
  %623 = vmatprep.subr.mxu0 %v249
  %624 = vmatpush2.msra.mxu0 %v248
  %625 = vmatprep.subr.mxu0 %v247
  %626 = vmatpush2.msra.mxu0 %v246
  %627 = vmatprep.subr.mxu0 %v245
  %628 = vmatpush2.msra.mxu0 %v244
  %629 = vmatprep.subr.mxu0 %v243
  %630 = vmatpush2.msra.mxu0 %v242
  %631 = vmatprep.subr.mxu0 %v241
  %632 = vmatpush2.msra.mxu0 %v240
  %633 = vmatprep.subr.mxu0 %v239
  %634 = vmatpush2.msra.mxu0 %v238
  %635 = vmatprep.mubr.f32.mxu0 %v17
  %636 = vmatmul.mubr.f32.gmra.mxu0 %v16
  %v637 = vpop.f32.mrf.mxu0
  %v638 = vadd.f32 %v477, %v637
  %v639 = vpop.f32.mrf.mxu0
  %v640 = vadd.f32 %v479, %v639
  %641 = vmatprep.mubr.f32.mxu0 %v25
  %642 = vmatmul.mubr.f32.gmra.mxu0 %v24
  %v643 = vpop.f32.mrf.mxu0
  %v644 = vadd.f32 %v483, %v643
  %v645 = vpop.f32.mrf.mxu0
  %v646 = vadd.f32 %v485, %v645
  %647 = vmatprep.mubr.f32.mxu0 %v33
  %648 = vmatmul.mubr.f32.gmra.mxu0 %v32
  %v649 = vpop.f32.mrf.mxu0
  %v650 = vadd.f32 %v489, %v649
  %v651 = vpop.f32.mrf.mxu0
  %v652 = vadd.f32 %v491, %v651
  %653 = vmatprep.mubr.f32.mxu0 %v41
  %654 = vmatmul.mubr.f32.gmra.mxu0 %v40
  %v655 = vpop.f32.mrf.mxu0
  %v656 = vadd.f32 %v495, %v655
  %v657 = vpop.f32.mrf.mxu0
  %v658 = vadd.f32 %v497, %v657
  %659 = vmatprep.mubr.f32.mxu0 %v49
  %660 = vmatmul.mubr.f32.gmra.mxu0 %v48
  %v661 = vpop.f32.mrf.mxu0
  %v662 = vadd.f32 %v501, %v661
  %v663 = vpop.f32.mrf.mxu0
  %v664 = vadd.f32 %v503, %v663
  %665 = vmatprep.mubr.f32.mxu0 %v57
  %666 = vmatmul.mubr.f32.gmra.mxu0 %v56
  %v667 = vpop.f32.mrf.mxu0
  %v668 = vadd.f32 %v507, %v667
  %v669 = vpop.f32.mrf.mxu0
  %v670 = vadd.f32 %v509, %v669
  %671 = vmatprep.mubr.f32.mxu0 %v65
  %672 = vmatmul.mubr.f32.gmra.mxu0 %v64
  %v673 = vpop.f32.mrf.mxu0
  %v674 = vadd.f32 %v513, %v673
  %v675 = vpop.f32.mrf.mxu0
  %v676 = vadd.f32 %v515, %v675
  %677 = vmatprep.mubr.f32.mxu0 %v73
  %678 = vmatmul.mubr.f32.gmra.mxu0 %v72
  %v679 = vpop.f32.mrf.mxu0
  %v680 = vadd.f32 %v519, %v679
  %v681 = vpop.f32.mrf.mxu0
  %v682 = vadd.f32 %v521, %v681
  %683 = vmatprep.mubr.f32.mxu0 %v81
  %684 = vmatmul.mubr.f32.gmra.mxu0 %v80
  %v685 = vpop.f32.mrf.mxu0
  %v686 = vadd.f32 %v525, %v685
  %v687 = vpop.f32.mrf.mxu0
  %v688 = vadd.f32 %v527, %v687
  %689 = vmatprep.mubr.f32.mxu0 %v89
  %690 = vmatmul.mubr.f32.gmra.mxu0 %v88
  %v691 = vpop.f32.mrf.mxu0
  %v692 = vadd.f32 %v531, %v691
  %v693 = vpop.f32.mrf.mxu0
  %v694 = vadd.f32 %v533, %v693
  %695 = vmatprep.mubr.f32.mxu0 %v97
  %696 = vmatmul.mubr.f32.gmra.mxu0 %v96
  %v697 = vpop.f32.mrf.mxu0
  %v698 = vadd.f32 %v537, %v697
  %v699 = vpop.f32.mrf.mxu0
  %v700 = vadd.f32 %v539, %v699
  %701 = vmatprep.mubr.f32.mxu0 %v105
  %702 = vmatmul.mubr.f32.gmra.mxu0 %v104
  %v703 = vpop.f32.mrf.mxu0
  %v704 = vadd.f32 %v543, %v703
  %v705 = vpop.f32.mrf.mxu0
  %v706 = vadd.f32 %v545, %v705
  %707 = vmatprep.mubr.f32.mxu0 %v113
  %708 = vmatmul.mubr.f32.gmra.mxu0 %v112
  %v709 = vpop.f32.mrf.mxu0
  %v710 = vadd.f32 %v549, %v709
  %v711 = vpop.f32.mrf.mxu0
  %v712 = vadd.f32 %v551, %v711
  %713 = vmatprep.mubr.f32.mxu0 %v121
  %714 = vmatmul.mubr.f32.gmra.mxu0 %v120
  %v715 = vpop.f32.mrf.mxu0
  %v716 = vadd.f32 %v555, %v715
  %v717 = vpop.f32.mrf.mxu0
  %v718 = vadd.f32 %v557, %v717
  %719 = vmatprep.mubr.f32.mxu0 %v129
  %720 = vmatmul.mubr.f32.gmra.mxu0 %v128
  %v721 = vpop.f32.mrf.mxu0
  %v722 = vadd.f32 %v561, %v721
  %v723 = vpop.f32.mrf.mxu0
  %v724 = vadd.f32 %v563, %v723
  %725 = vmatprep.mubr.f32.mxu0 %v137
  %726 = vmatmul.mubr.f32.gmra.mxu0 %v136
  %v727 = vpop.f32.mrf.mxu0
  %v728 = vadd.f32 %v567, %v727
  %v729 = vpop.f32.mrf.mxu0
  %v730 = vadd.f32 %v569, %v729
  %731 = vdwg.mxu0
  %732 = vmatprep.subr.mxu0 %v301
  %733 = vmatpush1.msra.mxu0 %v300
  %734 = vmatprep.subr.mxu0 %v299
  %735 = vmatpush1.msra.mxu0 %v298
  %736 = vmatprep.subr.mxu0 %v297
  %737 = vmatpush1.msra.mxu0 %v296
  %738 = vmatprep.subr.mxu0 %v295
  %739 = vmatpush1.msra.mxu0 %v294
  %740 = vmatprep.subr.mxu0 %v293
  %741 = vmatpush1.msra.mxu0 %v292
  %742 = vmatprep.subr.mxu0 %v291
  %743 = vmatpush1.msra.mxu0 %v290
  %744 = vmatprep.subr.mxu0 %v289
  %745 = vmatpush1.msra.mxu0 %v288
  %746 = vmatprep.subr.mxu0 %v287
  %747 = vmatpush1.msra.mxu0 %v286
  %748 = vmatprep.subr.mxu0 %v285
  %749 = vmatpush1.msra.mxu0 %v284
  %750 = vmatprep.subr.mxu0 %v283
  %751 = vmatpush1.msra.mxu0 %v282
  %752 = vmatprep.subr.mxu0 %v281
  %753 = vmatpush1.msra.mxu0 %v280
  %754 = vmatprep.subr.mxu0 %v279
  %755 = vmatpush1.msra.mxu0 %v278
  %756 = vmatprep.subr.mxu0 %v277
  %757 = vmatpush1.msra.mxu0 %v276
  %758 = vmatprep.subr.mxu0 %v275
  %759 = vmatpush1.msra.mxu0 %v274
  %760 = vmatprep.subr.mxu0 %v273
  %761 = vmatpush1.msra.mxu0 %v272
  %762 = vmatprep.subr.mxu0 %v271
  %763 = vmatpush1.msra.mxu0 %v270
  %764 = vmatprep.subr.mxu0 %v333
  %765 = vmatpush2.msra.mxu0 %v332
  %766 = vmatprep.subr.mxu0 %v331
  %767 = vmatpush2.msra.mxu0 %v330
  %768 = vmatprep.subr.mxu0 %v329
  %769 = vmatpush2.msra.mxu0 %v328
  %770 = vmatprep.subr.mxu0 %v327
  %771 = vmatpush2.msra.mxu0 %v326
  %772 = vmatprep.subr.mxu0 %v325
  %773 = vmatpush2.msra.mxu0 %v324
  %774 = vmatprep.subr.mxu0 %v323
  %775 = vmatpush2.msra.mxu0 %v322
  %776 = vmatprep.subr.mxu0 %v321
  %777 = vmatpush2.msra.mxu0 %v320
  %778 = vmatprep.subr.mxu0 %v319
  %779 = vmatpush2.msra.mxu0 %v318
  %780 = vmatprep.subr.mxu0 %v317
  %781 = vmatpush2.msra.mxu0 %v316
  %782 = vmatprep.subr.mxu0 %v315
  %783 = vmatpush2.msra.mxu0 %v314
  %784 = vmatprep.subr.mxu0 %v313
  %785 = vmatpush2.msra.mxu0 %v312
  %786 = vmatprep.subr.mxu0 %v311
  %787 = vmatpush2.msra.mxu0 %v310
  %788 = vmatprep.subr.mxu0 %v309
  %789 = vmatpush2.msra.mxu0 %v308
  %790 = vmatprep.subr.mxu0 %v307
  %791 = vmatpush2.msra.mxu0 %v306
  %792 = vmatprep.subr.mxu0 %v305
  %793 = vmatpush2.msra.mxu0 %v304
  %794 = vmatprep.subr.mxu0 %v303
  %795 = vmatpush2.msra.mxu0 %v302
  %796 = vmatprep.mubr.f32.mxu0 %v19
  %797 = vmatmul.mubr.f32.gmra.mxu0 %v18
  %v798 = vpop.f32.mrf.mxu0
  %v799 = vadd.f32 %v638, %v798
  %v800 = vpop.f32.mrf.mxu0
  %v801 = vadd.f32 %v640, %v800
  %802 = vmatprep.mubr.f32.mxu0 %v27
  %803 = vmatmul.mubr.f32.gmra.mxu0 %v26
  %v804 = vpop.f32.mrf.mxu0
  %v805 = vadd.f32 %v644, %v804
  %v806 = vpop.f32.mrf.mxu0
  %v807 = vadd.f32 %v646, %v806
  %808 = vmatprep.mubr.f32.mxu0 %v35
  %809 = vmatmul.mubr.f32.gmra.mxu0 %v34
  %v810 = vpop.f32.mrf.mxu0
  %v811 = vadd.f32 %v650, %v810
  %v812 = vpop.f32.mrf.mxu0
  %v813 = vadd.f32 %v652, %v812
  %814 = vmatprep.mubr.f32.mxu0 %v43
  %815 = vmatmul.mubr.f32.gmra.mxu0 %v42
  %v816 = vpop.f32.mrf.mxu0
  %v817 = vadd.f32 %v656, %v816
  %v818 = vpop.f32.mrf.mxu0
  %v819 = vadd.f32 %v658, %v818
  %820 = vmatprep.mubr.f32.mxu0 %v51
  %821 = vmatmul.mubr.f32.gmra.mxu0 %v50
  %v822 = vpop.f32.mrf.mxu0
  %v823 = vadd.f32 %v662, %v822
  %v824 = vpop.f32.mrf.mxu0
  %v825 = vadd.f32 %v664, %v824
  %826 = vmatprep.mubr.f32.mxu0 %v59
  %827 = vmatmul.mubr.f32.gmra.mxu0 %v58
  %v828 = vpop.f32.mrf.mxu0
  %v829 = vadd.f32 %v668, %v828
  %v830 = vpop.f32.mrf.mxu0
  %v831 = vadd.f32 %v670, %v830
  %832 = vmatprep.mubr.f32.mxu0 %v67
  %833 = vmatmul.mubr.f32.gmra.mxu0 %v66
  %v834 = vpop.f32.mrf.mxu0
  %v835 = vadd.f32 %v674, %v834
  %v836 = vpop.f32.mrf.mxu0
  %v837 = vadd.f32 %v676, %v836
  %838 = vmatprep.mubr.f32.mxu0 %v75
  %839 = vmatmul.mubr.f32.gmra.mxu0 %v74
  %v840 = vpop.f32.mrf.mxu0
  %v841 = vadd.f32 %v680, %v840
  %v842 = vpop.f32.mrf.mxu0
  %v843 = vadd.f32 %v682, %v842
  %844 = vmatprep.mubr.f32.mxu0 %v83
  %845 = vmatmul.mubr.f32.gmra.mxu0 %v82
  %v846 = vpop.f32.mrf.mxu0
  %v847 = vadd.f32 %v686, %v846
  %v848 = vpop.f32.mrf.mxu0
  %v849 = vadd.f32 %v688, %v848
  %850 = vmatprep.mubr.f32.mxu0 %v91
  %851 = vmatmul.mubr.f32.gmra.mxu0 %v90
  %v852 = vpop.f32.mrf.mxu0
  %v853 = vadd.f32 %v692, %v852
  %v854 = vpop.f32.mrf.mxu0
  %v855 = vadd.f32 %v694, %v854
  %856 = vmatprep.mubr.f32.mxu0 %v99
  %857 = vmatmul.mubr.f32.gmra.mxu0 %v98
  %v858 = vpop.f32.mrf.mxu0
  %v859 = vadd.f32 %v698, %v858
  %v860 = vpop.f32.mrf.mxu0
  %v861 = vadd.f32 %v700, %v860
  %862 = vmatprep.mubr.f32.mxu0 %v107
  %863 = vmatmul.mubr.f32.gmra.mxu0 %v106
  %v864 = vpop.f32.mrf.mxu0
  %v865 = vadd.f32 %v704, %v864
  %v866 = vpop.f32.mrf.mxu0
  %v867 = vadd.f32 %v706, %v866
  %868 = vmatprep.mubr.f32.mxu0 %v115
  %869 = vmatmul.mubr.f32.gmra.mxu0 %v114
  %v870 = vpop.f32.mrf.mxu0
  %v871 = vadd.f32 %v710, %v870
  %v872 = vpop.f32.mrf.mxu0
  %v873 = vadd.f32 %v712, %v872
  %874 = vmatprep.mubr.f32.mxu0 %v123
  %875 = vmatmul.mubr.f32.gmra.mxu0 %v122
  %v876 = vpop.f32.mrf.mxu0
  %v877 = vadd.f32 %v716, %v876
  %v878 = vpop.f32.mrf.mxu0
  %v879 = vadd.f32 %v718, %v878
  %880 = vmatprep.mubr.f32.mxu0 %v131
  %881 = vmatmul.mubr.f32.gmra.mxu0 %v130
  %v882 = vpop.f32.mrf.mxu0
  %v883 = vadd.f32 %v722, %v882
  %v884 = vpop.f32.mrf.mxu0
  %v885 = vadd.f32 %v724, %v884
  %886 = vmatprep.mubr.f32.mxu0 %v139
  %887 = vmatmul.mubr.f32.gmra.mxu0 %v138
  %v888 = vpop.f32.mrf.mxu0
  %v889 = vadd.f32 %v728, %v888
  %v890 = vpop.f32.mrf.mxu0
  %v891 = vadd.f32 %v730, %v890
  %892 = vdwg.mxu0
  %893 = vmatprep.subr.mxu0 %v365
  %894 = vmatpush1.msra.mxu0 %v364
  %895 = vmatprep.subr.mxu0 %v363
  %896 = vmatpush1.msra.mxu0 %v362
  %897 = vmatprep.subr.mxu0 %v361
  %898 = vmatpush1.msra.mxu0 %v360
  %899 = vmatprep.subr.mxu0 %v359
  %900 = vmatpush1.msra.mxu0 %v358
  %901 = vmatprep.subr.mxu0 %v357
  %902 = vmatpush1.msra.mxu0 %v356
  %903 = vmatprep.subr.mxu0 %v355
  %904 = vmatpush1.msra.mxu0 %v354
  %905 = vmatprep.subr.mxu0 %v353
  %906 = vmatpush1.msra.mxu0 %v352
  %907 = vmatprep.subr.mxu0 %v351
  %908 = vmatpush1.msra.mxu0 %v350
  %909 = vmatprep.subr.mxu0 %v349
  %910 = vmatpush1.msra.mxu0 %v348
  %911 = vmatprep.subr.mxu0 %v347
  %912 = vmatpush1.msra.mxu0 %v346
  %913 = vmatprep.subr.mxu0 %v345
  %914 = vmatpush1.msra.mxu0 %v344
  %915 = vmatprep.subr.mxu0 %v343
  %916 = vmatpush1.msra.mxu0 %v342
  %917 = vmatprep.subr.mxu0 %v341
  %918 = vmatpush1.msra.mxu0 %v340
  %919 = vmatprep.subr.mxu0 %v339
  %920 = vmatpush1.msra.mxu0 %v338
  %921 = vmatprep.subr.mxu0 %v337
  %922 = vmatpush1.msra.mxu0 %v336
  %923 = vmatprep.subr.mxu0 %v335
  %924 = vmatpush1.msra.mxu0 %v334
  %925 = vmatprep.subr.mxu0 %v397
  %926 = vmatpush2.msra.mxu0 %v396
  %927 = vmatprep.subr.mxu0 %v395
  %928 = vmatpush2.msra.mxu0 %v394
  %929 = vmatprep.subr.mxu0 %v393
  %930 = vmatpush2.msra.mxu0 %v392
  %931 = vmatprep.subr.mxu0 %v391
  %932 = vmatpush2.msra.mxu0 %v390
  %933 = vmatprep.subr.mxu0 %v389
  %934 = vmatpush2.msra.mxu0 %v388
  %935 = vmatprep.subr.mxu0 %v387
  %936 = vmatpush2.msra.mxu0 %v386
  %937 = vmatprep.subr.mxu0 %v385
  %938 = vmatpush2.msra.mxu0 %v384
  %939 = vmatprep.subr.mxu0 %v383
  %940 = vmatpush2.msra.mxu0 %v382
  %941 = vmatprep.subr.mxu0 %v381
  %942 = vmatpush2.msra.mxu0 %v380
  %943 = vmatprep.subr.mxu0 %v379
  %944 = vmatpush2.msra.mxu0 %v378
  %945 = vmatprep.subr.mxu0 %v377
  %946 = vmatpush2.msra.mxu0 %v376
  %947 = vmatprep.subr.mxu0 %v375
  %948 = vmatpush2.msra.mxu0 %v374
  %949 = vmatprep.subr.mxu0 %v373
  %950 = vmatpush2.msra.mxu0 %v372
  %951 = vmatprep.subr.mxu0 %v371
  %952 = vmatpush2.msra.mxu0 %v370
  %953 = vmatprep.subr.mxu0 %v369
  %954 = vmatpush2.msra.mxu0 %v368
  %955 = vmatprep.subr.mxu0 %v367
  %956 = vmatpush2.msra.mxu0 %v366
  %957 = vmatprep.mubr.f32.mxu0 %v21
  %958 = vmatmul.mubr.f32.gmra.mxu0 %v20
  %v959 = vpop.f32.mrf.mxu0
  %v960 = vadd.f32 %v799, %v959
  %v961 = vpop.f32.mrf.mxu0
  %v962 = vadd.f32 %v801, %v961
  %963 = vmatprep.mubr.f32.mxu0 %v29
  %964 = vmatmul.mubr.f32.gmra.mxu0 %v28
  %v965 = vpop.f32.mrf.mxu0
  %v966 = vadd.f32 %v805, %v965
  %v967 = vpop.f32.mrf.mxu0
  %v968 = vadd.f32 %v807, %v967
  %969 = vmatprep.mubr.f32.mxu0 %v37
  %970 = vmatmul.mubr.f32.gmra.mxu0 %v36
  %v971 = vpop.f32.mrf.mxu0
  %v972 = vadd.f32 %v811, %v971
  %v973 = vpop.f32.mrf.mxu0
  %v974 = vadd.f32 %v813, %v973
  %975 = vmatprep.mubr.f32.mxu0 %v45
  %976 = vmatmul.mubr.f32.gmra.mxu0 %v44
  %v977 = vpop.f32.mrf.mxu0
  %v978 = vadd.f32 %v817, %v977
  %v979 = vpop.f32.mrf.mxu0
  %v980 = vadd.f32 %v819, %v979
  %981 = vmatprep.mubr.f32.mxu0 %v53
  %982 = vmatmul.mubr.f32.gmra.mxu0 %v52
  %v983 = vpop.f32.mrf.mxu0
  %v984 = vadd.f32 %v823, %v983
  %v985 = vpop.f32.mrf.mxu0
  %v986 = vadd.f32 %v825, %v985
  %987 = vmatprep.mubr.f32.mxu0 %v61
  %988 = vmatmul.mubr.f32.gmra.mxu0 %v60
  %v989 = vpop.f32.mrf.mxu0
  %v990 = vadd.f32 %v829, %v989
  %v991 = vpop.f32.mrf.mxu0
  %v992 = vadd.f32 %v831, %v991
  %993 = vmatprep.mubr.f32.mxu0 %v69
  %994 = vmatmul.mubr.f32.gmra.mxu0 %v68
  %v995 = vpop.f32.mrf.mxu0
  %v996 = vadd.f32 %v835, %v995
  %v997 = vpop.f32.mrf.mxu0
  %v998 = vadd.f32 %v837, %v997
  %999 = vmatprep.mubr.f32.mxu0 %v77
  %1000 = vmatmul.mubr.f32.gmra.mxu0 %v76
  %v1001 = vpop.f32.mrf.mxu0
  %v1002 = vadd.f32 %v841, %v1001
  %v1003 = vpop.f32.mrf.mxu0
  %v1004 = vadd.f32 %v843, %v1003
  %1005 = vmatprep.mubr.f32.mxu0 %v85
  %1006 = vmatmul.mubr.f32.gmra.mxu0 %v84
  %v1007 = vpop.f32.mrf.mxu0
  %v1008 = vadd.f32 %v847, %v1007
  %v1009 = vpop.f32.mrf.mxu0
  %v1010 = vadd.f32 %v849, %v1009
  %1011 = vmatprep.mubr.f32.mxu0 %v93
  %1012 = vmatmul.mubr.f32.gmra.mxu0 %v92
  %v1013 = vpop.f32.mrf.mxu0
  %v1014 = vadd.f32 %v853, %v1013
  %v1015 = vpop.f32.mrf.mxu0
  %v1016 = vadd.f32 %v855, %v1015
  %1017 = vmatprep.mubr.f32.mxu0 %v101
  %1018 = vmatmul.mubr.f32.gmra.mxu0 %v100
  %v1019 = vpop.f32.mrf.mxu0
  %v1020 = vadd.f32 %v859, %v1019
  %v1021 = vpop.f32.mrf.mxu0
  %v1022 = vadd.f32 %v861, %v1021
  %1023 = vmatprep.mubr.f32.mxu0 %v109
  %1024 = vmatmul.mubr.f32.gmra.mxu0 %v108
  %v1025 = vpop.f32.mrf.mxu0
  %v1026 = vadd.f32 %v865, %v1025
  %v1027 = vpop.f32.mrf.mxu0
  %v1028 = vadd.f32 %v867, %v1027
  %1029 = vmatprep.mubr.f32.mxu0 %v117
  %1030 = vmatmul.mubr.f32.gmra.mxu0 %v116
  %v1031 = vpop.f32.mrf.mxu0
  %v1032 = vadd.f32 %v871, %v1031
  %v1033 = vpop.f32.mrf.mxu0
  %v1034 = vadd.f32 %v873, %v1033
  %1035 = vmatprep.mubr.f32.mxu0 %v125
  %1036 = vmatmul.mubr.f32.gmra.mxu0 %v124
  %v1037 = vpop.f32.mrf.mxu0
  %v1038 = vadd.f32 %v877, %v1037
  %v1039 = vpop.f32.mrf.mxu0
  %v1040 = vadd.f32 %v879, %v1039
  %1041 = vmatprep.mubr.f32.mxu0 %v133
  %1042 = vmatmul.mubr.f32.gmra.mxu0 %v132
  %v1043 = vpop.f32.mrf.mxu0
  %v1044 = vadd.f32 %v883, %v1043
  %v1045 = vpop.f32.mrf.mxu0
  %v1046 = vadd.f32 %v885, %v1045
  %1047 = vmatprep.mubr.f32.mxu0 %v141
  %1048 = vmatmul.mubr.f32.gmra.mxu0 %v140
  %v1049 = vpop.f32.mrf.mxu0
  %v1050 = vadd.f32 %v889, %v1049
  %v1051 = vpop.f32.mrf.mxu0
  %v1052 = vadd.f32 %v891, %v1051
  %1053 = vdwg.mxu0
  %v1054 = vmax.f32 %v960, 0.0
  %v1055 = vmax.f32 %v962, 0.0
  %v1056 = vmax.f32 %v966, 0.0
  %v1057 = vmax.f32 %v968, 0.0
  %v1058 = vmax.f32 %v972, 0.0
  %v1059 = vmax.f32 %v974, 0.0
  %v1060 = vmax.f32 %v978, 0.0
  %v1061 = vmax.f32 %v980, 0.0
  %v1062 = vmax.f32 %v984, 0.0
  %v1063 = vmax.f32 %v986, 0.0
  %v1064 = vmax.f32 %v990, 0.0
  %v1065 = vmax.f32 %v992, 0.0
  %v1066 = vmax.f32 %v996, 0.0
  %v1067 = vmax.f32 %v998, 0.0
  %v1068 = vmax.f32 %v1002, 0.0
  %v1069 = vmax.f32 %v1004, 0.0
  %v1070 = vmax.f32 %v1008, 0.0
  %v1071 = vmax.f32 %v1010, 0.0
  %v1072 = vmax.f32 %v1014, 0.0
  %v1073 = vmax.f32 %v1016, 0.0
  %v1074 = vmax.f32 %v1020, 0.0
  %v1075 = vmax.f32 %v1022, 0.0
  %v1076 = vmax.f32 %v1026, 0.0
  %v1077 = vmax.f32 %v1028, 0.0
  %v1078 = vmax.f32 %v1032, 0.0
  %v1079 = vmax.f32 %v1034, 0.0
  %v1080 = vmax.f32 %v1038, 0.0
  %v1081 = vmax.f32 %v1040, 0.0
  %v1082 = vmax.f32 %v1044, 0.0
  %v1083 = vmax.f32 %v1046, 0.0
  %v1084 = vmax.f32 %v1050, 0.0
  %v1085 = vmax.f32 %v1052, 0.0
  %1086 = vst [vmem:[%s3] sm:$0xff] %v1054
  %1087 = vst [vmem:[%s3 + $0x8] sm:$0xff] %v1055
  %1088 = vst [vmem:[%s3 + $0x10] sm:$0xff] %v1056
  %1089 = vst [vmem:[%s3 + $0x18] sm:$0xff] %v1057
  %1090 = vst [vmem:[%s3 + $0x20] sm:$0xff] %v1058
  %1091 = vst [vmem:[%s3 + $0x28] sm:$0xff] %v1059
  %1092 = vst [vmem:[%s3 + $0x30] sm:$0xff] %v1060
  %1093 = vst [vmem:[%s3 + $0x38] sm:$0xff] %v1061
  %1094 = vst [vmem:[%s3 + $0x40] sm:$0xff] %v1062
  %1095 = vst [vmem:[%s3 + $0x48] sm:$0xff] %v1063
  %1096 = vst [vmem:[%s3 + $0x50] sm:$0xff] %v1064
  %1097 = vst [vmem:[%s3 + $0x58] sm:$0xff] %v1065
  %1098 = vst [vmem:[%s3 + $0x60] sm:$0xff] %v1066
  %1099 = vst [vmem:[%s3 + $0x68] sm:$0xff] %v1067
  %1100 = vst [vmem:[%s3 + $0x70] sm:$0xff] %v1068
  %1101 = vst [vmem:[%s3 + $0x78] sm:$0xff] %v1069
  %1102 = vst [vmem:[%s3 + $0x80] sm:$0xff] %v1070
  %1103 = vst [vmem:[%s3 + $0x88] sm:$0xff] %v1071
  %1104 = vst [vmem:[%s3 + $0x90] sm:$0xff] %v1072
  %1105 = vst [vmem:[%s3 + $0x98] sm:$0xff] %v1073
  %1106 = vst [vmem:[%s3 + $0xa0] sm:$0xff] %v1074
  %1107 = vst [vmem:[%s3 + $0xa8] sm:$0xff] %v1075
  %1108 = vst [vmem:[%s3 + $0xb0] sm:$0xff] %v1076
  %1109 = vst [vmem:[%s3 + $0xb8] sm:$0xff] %v1077
  %1110 = vst [vmem:[%s3 + $0xc0] sm:$0xff] %v1078
  %1111 = vst [vmem:[%s3 + $0xc8] sm:$0xff] %v1079
  %1112 = vst [vmem:[%s3 + $0xd0] sm:$0xff] %v1080
  %1113 = vst [vmem:[%s3 + $0xd8] sm:$0xff] %v1081
  %1114 = vst [vmem:[%s3 + $0xe0] sm:$0xff] %v1082
  %1115 = vst [vmem:[%s3 + $0xe8] sm:$0xff] %v1083
  %1116 = vst [vmem:[%s3 + $0xf0] sm:$0xff] %v1084
  %1117 = vst [vmem:[%s3 + $0xf8] sm:$0xff] %v1085
  // Predicated region
  $region14: #{res50_layer4_forward.23} parent=0 // pred_check
    _
  $region15: #{res50_layer4_forward.23} parent=0 // pred_check_branch
    %1119 = sbr.rel (0) target = $region17
  $region16: #{res50_layer4_forward.23} parent=0 // pred_region
    _
  $region17: #{res50_layer4_forward.23} parent=0 // pred_fallthru
    _
  // Predicated region
  $region18: #{res50_layer4_forward.23} parent=0 // pred_check
    _
  $region19: #{res50_layer4_forward.23} parent=0 // pred_check_branch
    %1121 = sbr.rel (0) target = $region21
  $region20: #{res50_layer4_forward.23} parent=0 // pred_region
    _
  $region21: #{res50_layer4_forward.23} parent=0 // pred_fallthru
    _

// kernel: res50_layer4_forward.37
$region0: #{res50_layer4_forward.37}
  #allocation0 [shape = 'u32[]', space=smem, size = 0x4, offset = 0x4, fixed_abs, tag = 'smem constant byte address 0x4 - core index']
  #allocation1 [shape = 'u32[144,128]{1,0:T(1,128)}', space=vmem, size = 0x12000, scoped, tag = 'internal scratch']
  %s0 = inlined_call_operand.vmem [shape: f32[128,256], index: 0, kind: input, shape index: {}]
  %s1 = inlined_call_operand.vmem [shape: f32[256,1024], index: 1, kind: input, shape index: {}]
  %s2 = inlined_call_operand.vmem [shape: f32[1,1024], index: 2, kind: input, shape index: {}]
  %s3 = inlined_call_operand.vmem [shape: f32[128,1024], index: 3, kind: input, shape index: {}]
  %s4 = inlined_call_operand.hbm [shape: f32[128,1024], index: 4, kind: output, shape index: {}]
  %s5 = sld [smem:[#allocation0]]
  $region26: #{res50_layer4_forward.37} parent=0
    _
  %s7 = ssub.s32 1, %s5
  %s8 = scalar_select 0, %s7, %s5
  $region1: #{res50_layer4_forward.37} parent=0
    #allocation2 [shape = 'u8[524288]{0}', space=vmem, size = 0x80000, scoped, tag = 'output window, operand 0, single buffered']
    #allocation3 [shape = 's32[1]{0}', space=sflag, size = 0x4, scoped, tag = 'scoped memory for res50_layer4_forward.37']
    %9 = vsyncpa [#allocation3], 0
    // Predicated region
    $region2: #{res50_layer4_forward.37} parent=1 // pred_check
      _
    $region3: #{res50_layer4_forward.37} parent=1 // pred_check_branch
      %11 = sbr.rel (0) target = $region5
    $region4: #{res50_layer4_forward.37} parent=1 // pred_region
      _
    $region5: #{res50_layer4_forward.37} parent=1 // pred_fallthru
      _
    // Predicated region
    $region6: #{res50_layer4_forward.37} parent=1 // pred_check
      _
    $region7: #{res50_layer4_forward.37} parent=1 // pred_check_branch
      %13 = sbr.rel (0) target = $region9
    $region8: #{res50_layer4_forward.37} parent=1 // pred_region
      _
    $region9: #{res50_layer4_forward.37} parent=1 // pred_fallthru
      _
    // Predicated region
    $region10: #{res50_layer4_forward.37} parent=1 // pred_check
      _
    $region11: #{res50_layer4_forward.37} parent=1 // pred_check_branch
      %15 = sbr.rel (0) target = $region13
    $region12: #{res50_layer4_forward.37} parent=1 // pred_region
      _
    $region13: #{res50_layer4_forward.37} parent=1 // pred_fallthru
      _
    // Predicated region
    $region14: #{res50_layer4_forward.37} parent=1 // pred_check
      _
    $region15: #{res50_layer4_forward.37} parent=1 // pred_check_branch
      %17 = sbr.rel (0) target = $region17
    $region16: #{res50_layer4_forward.37} parent=1 // pred_region
      _
    $region17: #{res50_layer4_forward.37} parent=1 // pred_fallthru
      _
    %v18 = vld [vmem:[%s0] sm:$0xff]
    %v19 = vld [vmem:[%s0 + $0x8] sm:$0xff]
    %v20 = vld [vmem:[%s0 + $0x10] sm:$0xff]
    %v21 = vld [vmem:[%s0 + $0x18] sm:$0xff]
    %v22 = vld [vmem:[%s0 + $0x20] sm:$0xff]
    %v23 = vld [vmem:[%s0 + $0x28] sm:$0xff]
    %v24 = vld [vmem:[%s0 + $0x30] sm:$0xff]
    %v25 = vld [vmem:[%s0 + $0x38] sm:$0xff]
    %v26 = vld [vmem:[%s0 + $0x40] sm:$0xff]
    %v27 = vld [vmem:[%s0 + $0x48] sm:$0xff]
    %v28 = vld [vmem:[%s0 + $0x50] sm:$0xff]
    %v29 = vld [vmem:[%s0 + $0x58] sm:$0xff]
    %v30 = vld [vmem:[%s0 + $0x60] sm:$0xff]
    %v31 = vld [vmem:[%s0 + $0x68] sm:$0xff]
    %v32 = vld [vmem:[%s0 + $0x70] sm:$0xff]
    %v33 = vld [vmem:[%s0 + $0x78] sm:$0xff]
    %v34 = vld [vmem:[%s0 + $0x80] sm:$0xff]
    %v35 = vld [vmem:[%s0 + $0x88] sm:$0xff]
    %v36 = vld [vmem:[%s0 + $0x90] sm:$0xff]
    %v37 = vld [vmem:[%s0 + $0x98] sm:$0xff]
    %v38 = vld [vmem:[%s0 + $0xa0] sm:$0xff]
    %v39 = vld [vmem:[%s0 + $0xa8] sm:$0xff]
    %v40 = vld [vmem:[%s0 + $0xb0] sm:$0xff]
    %v41 = vld [vmem:[%s0 + $0xb8] sm:$0xff]
    %v42 = vld [vmem:[%s0 + $0xc0] sm:$0xff]
    %v43 = vld [vmem:[%s0 + $0xc8] sm:$0xff]
    %v44 = vld [vmem:[%s0 + $0xd0] sm:$0xff]
    %v45 = vld [vmem:[%s0 + $0xd8] sm:$0xff]
    %v46 = vld [vmem:[%s0 + $0xe0] sm:$0xff]
    %v47 = vld [vmem:[%s0 + $0xe8] sm:$0xff]
    %v48 = vld [vmem:[%s0 + $0xf0] sm:$0xff]
    %v49 = vld [vmem:[%s0 + $0xf8] sm:$0xff]
    %v50 = vld [vmem:[%s1] sm:$0xff]
    %v51 = vld [vmem:[%s1 + $0x8] sm:$0xff]
    %v52 = vld [vmem:[%s1 + $0x10] sm:$0xff]
    %v53 = vld [vmem:[%s1 + $0x18] sm:$0xff]
    %v54 = vld [vmem:[%s1 + $0x20] sm:$0xff]
    %v55 = vld [vmem:[%s1 + $0x28] sm:$0xff]
    %v56 = vld [vmem:[%s1 + $0x30] sm:$0xff]
    %v57 = vld [vmem:[%s1 + $0x38] sm:$0xff]
    %v58 = vld [vmem:[%s1 + $0x40] sm:$0xff]
    %v59 = vld [vmem:[%s1 + $0x48] sm:$0xff]
    %v60 = vld [vmem:[%s1 + $0x50] sm:$0xff]
    %v61 = vld [vmem:[%s1 + $0x58] sm:$0xff]
    %v62 = vld [vmem:[%s1 + $0x60] sm:$0xff]
    %v63 = vld [vmem:[%s1 + $0x68] sm:$0xff]
    %v64 = vld [vmem:[%s1 + $0x70] sm:$0xff]
    %v65 = vld [vmem:[%s1 + $0x78] sm:$0xff]
    %v66 = vld [vmem:[%s1 + $0x80] sm:$0xff]
    %v67 = vld [vmem:[%s1 + $0x88] sm:$0xff]
    %v68 = vld [vmem:[%s1 + $0x90] sm:$0xff]
    %v69 = vld [vmem:[%s1 + $0x98] sm:$0xff]
    %v70 = vld [vmem:[%s1 + $0xa0] sm:$0xff]
    %v71 = vld [vmem:[%s1 + $0xa8] sm:$0xff]
    %v72 = vld [vmem:[%s1 + $0xb0] sm:$0xff]
    %v73 = vld [vmem:[%s1 + $0xb8] sm:$0xff]
    %v74 = vld [vmem:[%s1 + $0xc0] sm:$0xff]
    %v75 = vld [vmem:[%s1 + $0xc8] sm:$0xff]
    %v76 = vld [vmem:[%s1 + $0xd0] sm:$0xff]
    %v77 = vld [vmem:[%s1 + $0xd8] sm:$0xff]
    %v78 = vld [vmem:[%s1 + $0xe0] sm:$0xff]
    %v79 = vld [vmem:[%s1 + $0xe8] sm:$0xff]
    %v80 = vld [vmem:[%s1 + $0xf0] sm:$0xff]
    %v81 = vld [vmem:[%s1 + $0xf8] sm:$0xff]
    %v82 = vld [vmem:[%s1 + $0x100] sm:$0xff]
    %v83 = vld [vmem:[%s1 + $0x108] sm:$0xff]
    %v84 = vld [vmem:[%s1 + $0x110] sm:$0xff]
    %v85 = vld [vmem:[%s1 + $0x118] sm:$0xff]
    %v86 = vld [vmem:[%s1 + $0x120] sm:$0xff]
    %v87 = vld [vmem:[%s1 + $0x128] sm:$0xff]
    %v88 = vld [vmem:[%s1 + $0x130] sm:$0xff]
    %v89 = vld [vmem:[%s1 + $0x138] sm:$0xff]
    %v90 = vld [vmem:[%s1 + $0x140] sm:$0xff]
    %v91 = vld [vmem:[%s1 + $0x148] sm:$0xff]
    %v92 = vld [vmem:[%s1 + $0x150] sm:$0xff]
    %v93 = vld [vmem:[%s1 + $0x158] sm:$0xff]
    %v94 = vld [vmem:[%s1 + $0x160] sm:$0xff]
    %v95 = vld [vmem:[%s1 + $0x168] sm:$0xff]
    %v96 = vld [vmem:[%s1 + $0x170] sm:$0xff]
    %v97 = vld [vmem:[%s1 + $0x178] sm:$0xff]
    %v98 = vld [vmem:[%s1 + $0x180] sm:$0xff]
    %v99 = vld [vmem:[%s1 + $0x188] sm:$0xff]
    %v100 = vld [vmem:[%s1 + $0x190] sm:$0xff]
    %v101 = vld [vmem:[%s1 + $0x198] sm:$0xff]
    %v102 = vld [vmem:[%s1 + $0x1a0] sm:$0xff]
    %v103 = vld [vmem:[%s1 + $0x1a8] sm:$0xff]
    %v104 = vld [vmem:[%s1 + $0x1b0] sm:$0xff]
    %v105 = vld [vmem:[%s1 + $0x1b8] sm:$0xff]
    %v106 = vld [vmem:[%s1 + $0x1c0] sm:$0xff]
    %v107 = vld [vmem:[%s1 + $0x1c8] sm:$0xff]
    %v108 = vld [vmem:[%s1 + $0x1d0] sm:$0xff]
    %v109 = vld [vmem:[%s1 + $0x1d8] sm:$0xff]
    %v110 = vld [vmem:[%s1 + $0x1e0] sm:$0xff]
    %v111 = vld [vmem:[%s1 + $0x1e8] sm:$0xff]
    %v112 = vld [vmem:[%s1 + $0x1f0] sm:$0xff]
    %v113 = vld [vmem:[%s1 + $0x1f8] sm:$0xff]
    %v114 = vld [vmem:[%s1 + $0x200] sm:$0xff]
    %v115 = vld [vmem:[%s1 + $0x208] sm:$0xff]
    %v116 = vld [vmem:[%s1 + $0x210] sm:$0xff]
    %v117 = vld [vmem:[%s1 + $0x218] sm:$0xff]
    %v118 = vld [vmem:[%s1 + $0x220] sm:$0xff]
    %v119 = vld [vmem:[%s1 + $0x228] sm:$0xff]
    %v120 = vld [vmem:[%s1 + $0x230] sm:$0xff]
    %v121 = vld [vmem:[%s1 + $0x238] sm:$0xff]
    %v122 = vld [vmem:[%s1 + $0x240] sm:$0xff]
    %v123 = vld [vmem:[%s1 + $0x248] sm:$0xff]
    %v124 = vld [vmem:[%s1 + $0x250] sm:$0xff]
    %v125 = vld [vmem:[%s1 + $0x258] sm:$0xff]
    %v126 = vld [vmem:[%s1 + $0x260] sm:$0xff]
    %v127 = vld [vmem:[%s1 + $0x268] sm:$0xff]
    %v128 = vld [vmem:[%s1 + $0x270] sm:$0xff]
    %v129 = vld [vmem:[%s1 + $0x278] sm:$0xff]
    %v130 = vld [vmem:[%s1 + $0x280] sm:$0xff]
    %v131 = vld [vmem:[%s1 + $0x288] sm:$0xff]
    %v132 = vld [vmem:[%s1 + $0x290] sm:$0xff]
    %v133 = vld [vmem:[%s1 + $0x298] sm:$0xff]
    %v134 = vld [vmem:[%s1 + $0x2a0] sm:$0xff]
    %v135 = vld [vmem:[%s1 + $0x2a8] sm:$0xff]
    %v136 = vld [vmem:[%s1 + $0x2b0] sm:$0xff]
    %v137 = vld [vmem:[%s1 + $0x2b8] sm:$0xff]
    %v138 = vld [vmem:[%s1 + $0x2c0] sm:$0xff]
    %v139 = vld [vmem:[%s1 + $0x2c8] sm:$0xff]
    %v140 = vld [vmem:[%s1 + $0x2d0] sm:$0xff]
    %v141 = vld [vmem:[%s1 + $0x2d8] sm:$0xff]
    %v142 = vld [vmem:[%s1 + $0x2e0] sm:$0xff]
    %v143 = vld [vmem:[%s1 + $0x2e8] sm:$0xff]
    %v144 = vld [vmem:[%s1 + $0x2f0] sm:$0xff]
    %v145 = vld [vmem:[%s1 + $0x2f8] sm:$0xff]
    %v146 = vld [vmem:[%s1 + $0x300] sm:$0xff]
    %v147 = vld [vmem:[%s1 + $0x308] sm:$0xff]
    %v148 = vld [vmem:[%s1 + $0x310] sm:$0xff]
    %v149 = vld [vmem:[%s1 + $0x318] sm:$0xff]
    %v150 = vld [vmem:[%s1 + $0x320] sm:$0xff]
    %v151 = vld [vmem:[%s1 + $0x328] sm:$0xff]
    %v152 = vld [vmem:[%s1 + $0x330] sm:$0xff]
    %v153 = vld [vmem:[%s1 + $0x338] sm:$0xff]
    %v154 = vld [vmem:[%s1 + $0x340] sm:$0xff]
    %v155 = vld [vmem:[%s1 + $0x348] sm:$0xff]
    %v156 = vld [vmem:[%s1 + $0x350] sm:$0xff]
    %v157 = vld [vmem:[%s1 + $0x358] sm:$0xff]
    %v158 = vld [vmem:[%s1 + $0x360] sm:$0xff]
    %v159 = vld [vmem:[%s1 + $0x368] sm:$0xff]
    %v160 = vld [vmem:[%s1 + $0x370] sm:$0xff]
    %v161 = vld [vmem:[%s1 + $0x378] sm:$0xff]
    %v162 = vld [vmem:[%s1 + $0x380] sm:$0xff]
    %v163 = vld [vmem:[%s1 + $0x388] sm:$0xff]
    %v164 = vld [vmem:[%s1 + $0x390] sm:$0xff]
    %v165 = vld [vmem:[%s1 + $0x398] sm:$0xff]
    %v166 = vld [vmem:[%s1 + $0x3a0] sm:$0xff]
    %v167 = vld [vmem:[%s1 + $0x3a8] sm:$0xff]
    %v168 = vld [vmem:[%s1 + $0x3b0] sm:$0xff]
    %v169 = vld [vmem:[%s1 + $0x3b8] sm:$0xff]
    %v170 = vld [vmem:[%s1 + $0x3c0] sm:$0xff]
    %v171 = vld [vmem:[%s1 + $0x3c8] sm:$0xff]
    %v172 = vld [vmem:[%s1 + $0x3d0] sm:$0xff]
    %v173 = vld [vmem:[%s1 + $0x3d8] sm:$0xff]
    %v174 = vld [vmem:[%s1 + $0x3e0] sm:$0xff]
    %v175 = vld [vmem:[%s1 + $0x3e8] sm:$0xff]
    %v176 = vld [vmem:[%s1 + $0x3f0] sm:$0xff]
    %v177 = vld [vmem:[%s1 + $0x3f8] sm:$0xff]
    %v178 = vld [vmem:[%s1 + $0x400] sm:$0xff]
    %v179 = vld [vmem:[%s1 + $0x408] sm:$0xff]
    %v180 = vld [vmem:[%s1 + $0x410] sm:$0xff]
    %v181 = vld [vmem:[%s1 + $0x418] sm:$0xff]
    %v182 = vld [vmem:[%s1 + $0x420] sm:$0xff]
    %v183 = vld [vmem:[%s1 + $0x428] sm:$0xff]
    %v184 = vld [vmem:[%s1 + $0x430] sm:$0xff]
    %v185 = vld [vmem:[%s1 + $0x438] sm:$0xff]
    %v186 = vld [vmem:[%s1 + $0x440] sm:$0xff]
    %v187 = vld [vmem:[%s1 + $0x448] sm:$0xff]
    %v188 = vld [vmem:[%s1 + $0x450] sm:$0xff]
    %v189 = vld [vmem:[%s1 + $0x458] sm:$0xff]
    %v190 = vld [vmem:[%s1 + $0x460] sm:$0xff]
    %v191 = vld [vmem:[%s1 + $0x468] sm:$0xff]
    %v192 = vld [vmem:[%s1 + $0x470] sm:$0xff]
    %v193 = vld [vmem:[%s1 + $0x478] sm:$0xff]
    %v194 = vld [vmem:[%s1 + $0x480] sm:$0xff]
    %v195 = vld [vmem:[%s1 + $0x488] sm:$0xff]
    %v196 = vld [vmem:[%s1 + $0x490] sm:$0xff]
    %v197 = vld [vmem:[%s1 + $0x498] sm:$0xff]
    %v198 = vld [vmem:[%s1 + $0x4a0] sm:$0xff]
    %v199 = vld [vmem:[%s1 + $0x4a8] sm:$0xff]
    %v200 = vld [vmem:[%s1 + $0x4b0] sm:$0xff]
    %v201 = vld [vmem:[%s1 + $0x4b8] sm:$0xff]
    %v202 = vld [vmem:[%s1 + $0x4c0] sm:$0xff]
    %v203 = vld [vmem:[%s1 + $0x4c8] sm:$0xff]
    %v204 = vld [vmem:[%s1 + $0x4d0] sm:$0xff]
    %v205 = vld [vmem:[%s1 + $0x4d8] sm:$0xff]
    %v206 = vld [vmem:[%s1 + $0x4e0] sm:$0xff]
    %v207 = vld [vmem:[%s1 + $0x4e8] sm:$0xff]
    %v208 = vld [vmem:[%s1 + $0x4f0] sm:$0xff]
    %v209 = vld [vmem:[%s1 + $0x4f8] sm:$0xff]
    %v210 = vld [vmem:[%s1 + $0x500] sm:$0xff]
    %v211 = vld [vmem:[%s1 + $0x508] sm:$0xff]
    %v212 = vld [vmem:[%s1 + $0x510] sm:$0xff]
    %v213 = vld [vmem:[%s1 + $0x518] sm:$0xff]
    %v214 = vld [vmem:[%s1 + $0x520] sm:$0xff]
    %v215 = vld [vmem:[%s1 + $0x528] sm:$0xff]
    %v216 = vld [vmem:[%s1 + $0x530] sm:$0xff]
    %v217 = vld [vmem:[%s1 + $0x538] sm:$0xff]
    %v218 = vld [vmem:[%s1 + $0x540] sm:$0xff]
    %v219 = vld [vmem:[%s1 + $0x548] sm:$0xff]
    %v220 = vld [vmem:[%s1 + $0x550] sm:$0xff]
    %v221 = vld [vmem:[%s1 + $0x558] sm:$0xff]
    %v222 = vld [vmem:[%s1 + $0x560] sm:$0xff]
    %v223 = vld [vmem:[%s1 + $0x568] sm:$0xff]
    %v224 = vld [vmem:[%s1 + $0x570] sm:$0xff]
    %v225 = vld [vmem:[%s1 + $0x578] sm:$0xff]
    %v226 = vld [vmem:[%s1 + $0x580] sm:$0xff]
    %v227 = vld [vmem:[%s1 + $0x588] sm:$0xff]
    %v228 = vld [vmem:[%s1 + $0x590] sm:$0xff]
    %v229 = vld [vmem:[%s1 + $0x598] sm:$0xff]
    %v230 = vld [vmem:[%s1 + $0x5a0] sm:$0xff]
    %v231 = vld [vmem:[%s1 + $0x5a8] sm:$0xff]
    %v232 = vld [vmem:[%s1 + $0x5b0] sm:$0xff]
    %v233 = vld [vmem:[%s1 + $0x5b8] sm:$0xff]
    %v234 = vld [vmem:[%s1 + $0x5c0] sm:$0xff]
    %v235 = vld [vmem:[%s1 + $0x5c8] sm:$0xff]
    %v236 = vld [vmem:[%s1 + $0x5d0] sm:$0xff]
    %v237 = vld [vmem:[%s1 + $0x5d8] sm:$0xff]
    %v238 = vld [vmem:[%s1 + $0x5e0] sm:$0xff]
    %v239 = vld [vmem:[%s1 + $0x5e8] sm:$0xff]
    %v240 = vld [vmem:[%s1 + $0x5f0] sm:$0xff]
    %v241 = vld [vmem:[%s1 + $0x5f8] sm:$0xff]
    %v242 = vld [vmem:[%s1 + $0x600] sm:$0xff]
    %v243 = vld [vmem:[%s1 + $0x608] sm:$0xff]
    %v244 = vld [vmem:[%s1 + $0x610] sm:$0xff]
    %v245 = vld [vmem:[%s1 + $0x618] sm:$0xff]
    %v246 = vld [vmem:[%s1 + $0x620] sm:$0xff]
    %v247 = vld [vmem:[%s1 + $0x628] sm:$0xff]
    %v248 = vld [vmem:[%s1 + $0x630] sm:$0xff]
    %v249 = vld [vmem:[%s1 + $0x638] sm:$0xff]
    %v250 = vld [vmem:[%s1 + $0x640] sm:$0xff]
    %v251 = vld [vmem:[%s1 + $0x648] sm:$0xff]
    %v252 = vld [vmem:[%s1 + $0x650] sm:$0xff]
    %v253 = vld [vmem:[%s1 + $0x658] sm:$0xff]
    %v254 = vld [vmem:[%s1 + $0x660] sm:$0xff]
    %v255 = vld [vmem:[%s1 + $0x668] sm:$0xff]
    %v256 = vld [vmem:[%s1 + $0x670] sm:$0xff]
    %v257 = vld [vmem:[%s1 + $0x678] sm:$0xff]
    %v258 = vld [vmem:[%s1 + $0x680] sm:$0xff]
    %v259 = vld [vmem:[%s1 + $0x688] sm:$0xff]
    %v260 = vld [vmem:[%s1 + $0x690] sm:$0xff]
    %v261 = vld [vmem:[%s1 + $0x698] sm:$0xff]
    %v262 = vld [vmem:[%s1 + $0x6a0] sm:$0xff]
    %v263 = vld [vmem:[%s1 + $0x6a8] sm:$0xff]
    %v264 = vld [vmem:[%s1 + $0x6b0] sm:$0xff]
    %v265 = vld [vmem:[%s1 + $0x6b8] sm:$0xff]
    %v266 = vld [vmem:[%s1 + $0x6c0] sm:$0xff]
    %v267 = vld [vmem:[%s1 + $0x6c8] sm:$0xff]
    %v268 = vld [vmem:[%s1 + $0x6d0] sm:$0xff]
    %v269 = vld [vmem:[%s1 + $0x6d8] sm:$0xff]
    %v270 = vld [vmem:[%s1 + $0x6e0] sm:$0xff]
    %v271 = vld [vmem:[%s1 + $0x6e8] sm:$0xff]
    %v272 = vld [vmem:[%s1 + $0x6f0] sm:$0xff]
    %v273 = vld [vmem:[%s1 + $0x6f8] sm:$0xff]
    %v274 = vld [vmem:[%s1 + $0x700] sm:$0xff]
    %v275 = vld [vmem:[%s1 + $0x708] sm:$0xff]
    %v276 = vld [vmem:[%s1 + $0x710] sm:$0xff]
    %v277 = vld [vmem:[%s1 + $0x718] sm:$0xff]
    %v278 = vld [vmem:[%s1 + $0x720] sm:$0xff]
    %v279 = vld [vmem:[%s1 + $0x728] sm:$0xff]
    %v280 = vld [vmem:[%s1 + $0x730] sm:$0xff]
    %v281 = vld [vmem:[%s1 + $0x738] sm:$0xff]
    %v282 = vld [vmem:[%s1 + $0x740] sm:$0xff]
    %v283 = vld [vmem:[%s1 + $0x748] sm:$0xff]
    %v284 = vld [vmem:[%s1 + $0x750] sm:$0xff]
    %v285 = vld [vmem:[%s1 + $0x758] sm:$0xff]
    %v286 = vld [vmem:[%s1 + $0x760] sm:$0xff]
    %v287 = vld [vmem:[%s1 + $0x768] sm:$0xff]
    %v288 = vld [vmem:[%s1 + $0x770] sm:$0xff]
    %v289 = vld [vmem:[%s1 + $0x778] sm:$0xff]
    %v290 = vld [vmem:[%s1 + $0x780] sm:$0xff]
    %v291 = vld [vmem:[%s1 + $0x788] sm:$0xff]
    %v292 = vld [vmem:[%s1 + $0x790] sm:$0xff]
    %v293 = vld [vmem:[%s1 + $0x798] sm:$0xff]
    %v294 = vld [vmem:[%s1 + $0x7a0] sm:$0xff]
    %v295 = vld [vmem:[%s1 + $0x7a8] sm:$0xff]
    %v296 = vld [vmem:[%s1 + $0x7b0] sm:$0xff]
    %v297 = vld [vmem:[%s1 + $0x7b8] sm:$0xff]
    %v298 = vld [vmem:[%s1 + $0x7c0] sm:$0xff]
    %v299 = vld [vmem:[%s1 + $0x7c8] sm:$0xff]
    %v300 = vld [vmem:[%s1 + $0x7d0] sm:$0xff]
    %v301 = vld [vmem:[%s1 + $0x7d8] sm:$0xff]
    %v302 = vld [vmem:[%s1 + $0x7e0] sm:$0xff]
    %v303 = vld [vmem:[%s1 + $0x7e8] sm:$0xff]
    %v304 = vld [vmem:[%s1 + $0x7f0] sm:$0xff]
    %v305 = vld [vmem:[%s1 + $0x7f8] sm:$0xff]
    %v306 = vld [vmem:[%s2] sm:$0xff]
    %v308 = vlaneseq
    %v309 = vshrl.u32 %v308, 7
    %v310 = vsub.s32 0, %v309
    %v311 = vrot.slane %v306, %v310
    %v312 = vlaneseq
    %v313 = vshrl.u32 %v312, 7
    %v314 = vsub.s32 1, %v313
    %v315 = vrot.slane %v306, %v314
    %v316 = vlaneseq
    %v317 = vshrl.u32 %v316, 7
    %v318 = vsub.s32 2, %v317
    %v319 = vrot.slane %v306, %v318
    %v320 = vlaneseq
    %v321 = vshrl.u32 %v320, 7
    %v322 = vsub.s32 3, %v321
    %v323 = vrot.slane %v306, %v322
    %v324 = vlaneseq
    %v325 = vshrl.u32 %v324, 7
    %v326 = vsub.s32 4, %v325
    %v327 = vrot.slane %v306, %v326
    %v328 = vlaneseq
    %v329 = vshrl.u32 %v328, 7
    %v330 = vsub.s32 5, %v329
    %v331 = vrot.slane %v306, %v330
    %v332 = vlaneseq
    %v333 = vshrl.u32 %v332, 7
    %v334 = vsub.s32 6, %v333
    %v335 = vrot.slane %v306, %v334
    %v336 = vlaneseq
    %v337 = vshrl.u32 %v336, 7
    %v338 = vsub.s32 7, %v337
    %v339 = vrot.slane %v306, %v338
    %348 = vmatprep.subr.mxu0 %v171
    %349 = vmatpush1.msra.mxu0 %v170
    %350 = vmatprep.subr.mxu0 %v163
    %351 = vmatpush1.msra.mxu0 %v162
    %352 = vmatprep.subr.mxu0 %v155
    %353 = vmatpush1.msra.mxu0 %v154
    %354 = vmatprep.subr.mxu0 %v147
    %355 = vmatpush1.msra.mxu0 %v146
    %356 = vmatprep.subr.mxu0 %v139
    %357 = vmatpush1.msra.mxu0 %v138
    %358 = vmatprep.subr.mxu0 %v131
    %359 = vmatpush1.msra.mxu0 %v130
    %360 = vmatprep.subr.mxu0 %v123
    %361 = vmatpush1.msra.mxu0 %v122
    %362 = vmatprep.subr.mxu0 %v115
    %363 = vmatpush1.msra.mxu0 %v114
    %364 = vmatprep.subr.mxu0 %v107
    %365 = vmatpush1.msra.mxu0 %v106
    %366 = vmatprep.subr.mxu0 %v99
    %367 = vmatpush1.msra.mxu0 %v98
    %368 = vmatprep.subr.mxu0 %v91
    %369 = vmatpush1.msra.mxu0 %v90
    %370 = vmatprep.subr.mxu0 %v83
    %371 = vmatpush1.msra.mxu0 %v82
    %372 = vmatprep.subr.mxu0 %v75
    %373 = vmatpush1.msra.mxu0 %v74
    %374 = vmatprep.subr.mxu0 %v67
    %375 = vmatpush1.msra.mxu0 %v66
    %376 = vmatprep.subr.mxu0 %v59
    %377 = vmatpush1.msra.mxu0 %v58
    %378 = vmatprep.subr.mxu0 %v51
    %379 = vmatpush1.msra.mxu0 %v50
    %380 = vmatprep.subr.mxu0 %v299
    %381 = vmatpush2.msra.mxu0 %v298
    %382 = vmatprep.subr.mxu0 %v291
    %383 = vmatpush2.msra.mxu0 %v290
    %384 = vmatprep.subr.mxu0 %v283
    %385 = vmatpush2.msra.mxu0 %v282
    %386 = vmatprep.subr.mxu0 %v275
    %387 = vmatpush2.msra.mxu0 %v274
    %388 = vmatprep.subr.mxu0 %v267
    %389 = vmatpush2.msra.mxu0 %v266
    %390 = vmatprep.subr.mxu0 %v259
    %391 = vmatpush2.msra.mxu0 %v258
    %392 = vmatprep.subr.mxu0 %v251
    %393 = vmatpush2.msra.mxu0 %v250
    %394 = vmatprep.subr.mxu0 %v243
    %395 = vmatpush2.msra.mxu0 %v242
    %396 = vmatprep.subr.mxu0 %v235
    %397 = vmatpush2.msra.mxu0 %v234
    %398 = vmatprep.subr.mxu0 %v227
    %399 = vmatpush2.msra.mxu0 %v226
    %400 = vmatprep.subr.mxu0 %v219
    %401 = vmatpush2.msra.mxu0 %v218
    %402 = vmatprep.subr.mxu0 %v211
    %403 = vmatpush2.msra.mxu0 %v210
    %404 = vmatprep.subr.mxu0 %v203
    %405 = vmatpush2.msra.mxu0 %v202
    %406 = vmatprep.subr.mxu0 %v195
    %407 = vmatpush2.msra.mxu0 %v194
    %408 = vmatprep.subr.mxu0 %v187
    %409 = vmatpush2.msra.mxu0 %v186
    %410 = vmatprep.subr.mxu0 %v179
    %411 = vmatpush2.msra.mxu0 %v178
    %412 = vmatprep.mubr.f32.mxu0 %v19
    %413 = vmatmul.mubr.f32.gmra.mxu0 %v18
    %v414 = vpop.f32.mrf.mxu0
    %v415 = vadd.f32 %v311, %v414
    %v416 = vpop.f32.mrf.mxu0
    %v417 = vadd.f32 %v315, %v416
    %418 = vmatprep.mubr.f32.mxu0 %v21
    %419 = vmatmul.mubr.f32.gmra.mxu0 %v20
    %v420 = vpop.f32.mrf.mxu0
    %v421 = vadd.f32 %v311, %v420
    %v422 = vpop.f32.mrf.mxu0
    %v423 = vadd.f32 %v315, %v422
    %424 = vmatprep.mubr.f32.mxu0 %v23
    %425 = vmatmul.mubr.f32.gmra.mxu0 %v22
    %v426 = vpop.f32.mrf.mxu0
    %v427 = vadd.f32 %v311, %v426
    %v428 = vpop.f32.mrf.mxu0
    %v429 = vadd.f32 %v315, %v428
    %430 = vmatprep.mubr.f32.mxu0 %v25
    %431 = vmatmul.mubr.f32.gmra.mxu0 %v24
    %v432 = vpop.f32.mrf.mxu0
    %v433 = vadd.f32 %v311, %v432
    %v434 = vpop.f32.mrf.mxu0
    %v435 = vadd.f32 %v315, %v434
    %436 = vmatprep.mubr.f32.mxu0 %v27
    %437 = vmatmul.mubr.f32.gmra.mxu0 %v26
    %v438 = vpop.f32.mrf.mxu0
    %v439 = vadd.f32 %v311, %v438
    %v440 = vpop.f32.mrf.mxu0
    %v441 = vadd.f32 %v315, %v440
    %442 = vmatprep.mubr.f32.mxu0 %v29
    %443 = vmatmul.mubr.f32.gmra.mxu0 %v28
    %v444 = vpop.f32.mrf.mxu0
    %v445 = vadd.f32 %v311, %v444
    %v446 = vpop.f32.mrf.mxu0
    %v447 = vadd.f32 %v315, %v446
    %448 = vmatprep.mubr.f32.mxu0 %v31
    %449 = vmatmul.mubr.f32.gmra.mxu0 %v30
    %v450 = vpop.f32.mrf.mxu0
    %v451 = vadd.f32 %v311, %v450
    %v452 = vpop.f32.mrf.mxu0
    %v453 = vadd.f32 %v315, %v452
    %454 = vmatprep.mubr.f32.mxu0 %v33
    %455 = vmatmul.mubr.f32.gmra.mxu0 %v32
    %v456 = vpop.f32.mrf.mxu0
    %v457 = vadd.f32 %v311, %v456
    %v458 = vpop.f32.mrf.mxu0
    %v459 = vadd.f32 %v315, %v458
    %460 = vmatprep.mubr.f32.mxu0 %v35
    %461 = vmatmul.mubr.f32.gmra.mxu0 %v34
    %v462 = vpop.f32.mrf.mxu0
    %v463 = vadd.f32 %v311, %v462
    %v464 = vpop.f32.mrf.mxu0
    %v465 = vadd.f32 %v315, %v464
    %466 = vmatprep.mubr.f32.mxu0 %v37
    %467 = vmatmul.mubr.f32.gmra.mxu0 %v36
    %v468 = vpop.f32.mrf.mxu0
    %v469 = vadd.f32 %v311, %v468
    %v470 = vpop.f32.mrf.mxu0
    %v471 = vadd.f32 %v315, %v470
    %472 = vmatprep.mubr.f32.mxu0 %v39
    %473 = vmatmul.mubr.f32.gmra.mxu0 %v38
    %v474 = vpop.f32.mrf.mxu0
    %v475 = vadd.f32 %v311, %v474
    %v476 = vpop.f32.mrf.mxu0
    %v477 = vadd.f32 %v315, %v476
    %478 = vmatprep.mubr.f32.mxu0 %v41
    %479 = vmatmul.mubr.f32.gmra.mxu0 %v40
    %v480 = vpop.f32.mrf.mxu0
    %v481 = vadd.f32 %v311, %v480
    %v482 = vpop.f32.mrf.mxu0
    %v483 = vadd.f32 %v315, %v482
    %484 = vmatprep.mubr.f32.mxu0 %v43
    %485 = vmatmul.mubr.f32.gmra.mxu0 %v42
    %v486 = vpop.f32.mrf.mxu0
    %v487 = vadd.f32 %v311, %v486
    %v488 = vpop.f32.mrf.mxu0
    %v489 = vadd.f32 %v315, %v488
    %490 = vmatprep.mubr.f32.mxu0 %v45
    %491 = vmatmul.mubr.f32.gmra.mxu0 %v44
    %v492 = vpop.f32.mrf.mxu0
    %v493 = vadd.f32 %v311, %v492
    %v494 = vpop.f32.mrf.mxu0
    %v495 = vadd.f32 %v315, %v494
    %496 = vmatprep.mubr.f32.mxu0 %v47
    %497 = vmatmul.mubr.f32.gmra.mxu0 %v46
    %v498 = vpop.f32.mrf.mxu0
    %v499 = vadd.f32 %v311, %v498
    %v500 = vpop.f32.mrf.mxu0
    %v501 = vadd.f32 %v315, %v500
    %502 = vmatprep.mubr.f32.mxu0 %v49
    %503 = vmatmul.mubr.f32.gmra.mxu0 %v48
    %v504 = vpop.f32.mrf.mxu0
    %v505 = vadd.f32 %v311, %v504
    %v506 = vpop.f32.mrf.mxu0
    %v507 = vadd.f32 %v315, %v506
    %508 = vdwg.mxu0
    %509 = vmatprep.subr.mxu0 %v173
    %510 = vmatpush1.msra.mxu0 %v172
    %511 = vmatprep.subr.mxu0 %v165
    %512 = vmatpush1.msra.mxu0 %v164
    %513 = vmatprep.subr.mxu0 %v157
    %514 = vmatpush1.msra.mxu0 %v156
    %515 = vmatprep.subr.mxu0 %v149
    %516 = vmatpush1.msra.mxu0 %v148
    %517 = vmatprep.subr.mxu0 %v141
    %518 = vmatpush1.msra.mxu0 %v140
    %519 = vmatprep.subr.mxu0 %v133
    %520 = vmatpush1.msra.mxu0 %v132
    %521 = vmatprep.subr.mxu0 %v125
    %522 = vmatpush1.msra.mxu0 %v124
    %523 = vmatprep.subr.mxu0 %v117
    %524 = vmatpush1.msra.mxu0 %v116
    %525 = vmatprep.subr.mxu0 %v109
    %526 = vmatpush1.msra.mxu0 %v108
    %527 = vmatprep.subr.mxu0 %v101
    %528 = vmatpush1.msra.mxu0 %v100
    %529 = vmatprep.subr.mxu0 %v93
    %530 = vmatpush1.msra.mxu0 %v92
    %531 = vmatprep.subr.mxu0 %v85
    %532 = vmatpush1.msra.mxu0 %v84
    %533 = vmatprep.subr.mxu0 %v77
    %534 = vmatpush1.msra.mxu0 %v76
    %535 = vmatprep.subr.mxu0 %v69
    %536 = vmatpush1.msra.mxu0 %v68
    %537 = vmatprep.subr.mxu0 %v61
    %538 = vmatpush1.msra.mxu0 %v60
    %539 = vmatprep.subr.mxu0 %v53
    %540 = vmatpush1.msra.mxu0 %v52
    %541 = vmatprep.subr.mxu0 %v301
    %542 = vmatpush2.msra.mxu0 %v300
    %543 = vmatprep.subr.mxu0 %v293
    %544 = vmatpush2.msra.mxu0 %v292
    %545 = vmatprep.subr.mxu0 %v285
    %546 = vmatpush2.msra.mxu0 %v284
    %547 = vmatprep.subr.mxu0 %v277
    %548 = vmatpush2.msra.mxu0 %v276
    %549 = vmatprep.subr.mxu0 %v269
    %550 = vmatpush2.msra.mxu0 %v268
    %551 = vmatprep.subr.mxu0 %v261
    %552 = vmatpush2.msra.mxu0 %v260
    %553 = vmatprep.subr.mxu0 %v253
    %554 = vmatpush2.msra.mxu0 %v252
    %555 = vmatprep.subr.mxu0 %v245
    %556 = vmatpush2.msra.mxu0 %v244
    %557 = vmatprep.subr.mxu0 %v237
    %558 = vmatpush2.msra.mxu0 %v236
    %559 = vmatprep.subr.mxu0 %v229
    %560 = vmatpush2.msra.mxu0 %v228
    %561 = vmatprep.subr.mxu0 %v221
    %562 = vmatpush2.msra.mxu0 %v220
    %563 = vmatprep.subr.mxu0 %v213
    %564 = vmatpush2.msra.mxu0 %v212
    %565 = vmatprep.subr.mxu0 %v205
    %566 = vmatpush2.msra.mxu0 %v204
    %567 = vmatprep.subr.mxu0 %v197
    %568 = vmatpush2.msra.mxu0 %v196
    %569 = vmatprep.subr.mxu0 %v189
    %570 = vmatpush2.msra.mxu0 %v188
    %571 = vmatprep.subr.mxu0 %v181
    %572 = vmatpush2.msra.mxu0 %v180
    %573 = vmatprep.mubr.f32.mxu0 %v19
    %574 = vmatmul.mubr.f32.gmra.mxu0 %v18
    %v575 = vpop.f32.mrf.mxu0
    %v576 = vadd.f32 %v319, %v575
    %v577 = vpop.f32.mrf.mxu0
    %v578 = vadd.f32 %v323, %v577
    %579 = vmatprep.mubr.f32.mxu0 %v21
    %580 = vmatmul.mubr.f32.gmra.mxu0 %v20
    %v581 = vpop.f32.mrf.mxu0
    %v582 = vadd.f32 %v319, %v581
    %v583 = vpop.f32.mrf.mxu0
    %v584 = vadd.f32 %v323, %v583
    %585 = vmatprep.mubr.f32.mxu0 %v23
    %586 = vmatmul.mubr.f32.gmra.mxu0 %v22
    %v587 = vpop.f32.mrf.mxu0
    %v588 = vadd.f32 %v319, %v587
    %v589 = vpop.f32.mrf.mxu0
    %v590 = vadd.f32 %v323, %v589
    %591 = vmatprep.mubr.f32.mxu0 %v25
    %592 = vmatmul.mubr.f32.gmra.mxu0 %v24
    %v593 = vpop.f32.mrf.mxu0
    %v594 = vadd.f32 %v319, %v593
    %v595 = vpop.f32.mrf.mxu0
    %v596 = vadd.f32 %v323, %v595
    %597 = vmatprep.mubr.f32.mxu0 %v27
    %598 = vmatmul.mubr.f32.gmra.mxu0 %v26
    %v599 = vpop.f32.mrf.mxu0
    %v600 = vadd.f32 %v319, %v599
    %v601 = vpop.f32.mrf.mxu0
    %v602 = vadd.f32 %v323, %v601
    %603 = vmatprep.mubr.f32.mxu0 %v29
    %604 = vmatmul.mubr.f32.gmra.mxu0 %v28
    %v605 = vpop.f32.mrf.mxu0
    %v606 = vadd.f32 %v319, %v605
    %v607 = vpop.f32.mrf.mxu0
    %v608 = vadd.f32 %v323, %v607
    %609 = vmatprep.mubr.f32.mxu0 %v31
    %610 = vmatmul.mubr.f32.gmra.mxu0 %v30
    %v611 = vpop.f32.mrf.mxu0
    %v612 = vadd.f32 %v319, %v611
    %v613 = vpop.f32.mrf.mxu0
    %v614 = vadd.f32 %v323, %v613
    %615 = vmatprep.mubr.f32.mxu0 %v33
    %616 = vmatmul.mubr.f32.gmra.mxu0 %v32
    %v617 = vpop.f32.mrf.mxu0
    %v618 = vadd.f32 %v319, %v617
    %v619 = vpop.f32.mrf.mxu0
    %v620 = vadd.f32 %v323, %v619
    %621 = vmatprep.mubr.f32.mxu0 %v35
    %622 = vmatmul.mubr.f32.gmra.mxu0 %v34
    %v623 = vpop.f32.mrf.mxu0
    %v624 = vadd.f32 %v319, %v623
    %v625 = vpop.f32.mrf.mxu0
    %v626 = vadd.f32 %v323, %v625
    %627 = vmatprep.mubr.f32.mxu0 %v37
    %628 = vmatmul.mubr.f32.gmra.mxu0 %v36
    %v629 = vpop.f32.mrf.mxu0
    %v630 = vadd.f32 %v319, %v629
    %v631 = vpop.f32.mrf.mxu0
    %v632 = vadd.f32 %v323, %v631
    %633 = vmatprep.mubr.f32.mxu0 %v39
    %634 = vmatmul.mubr.f32.gmra.mxu0 %v38
    %v635 = vpop.f32.mrf.mxu0
    %v636 = vadd.f32 %v319, %v635
    %v637 = vpop.f32.mrf.mxu0
    %v638 = vadd.f32 %v323, %v637
    %639 = vmatprep.mubr.f32.mxu0 %v41
    %640 = vmatmul.mubr.f32.gmra.mxu0 %v40
    %v641 = vpop.f32.mrf.mxu0
    %v642 = vadd.f32 %v319, %v641
    %v643 = vpop.f32.mrf.mxu0
    %v644 = vadd.f32 %v323, %v643
    %645 = vmatprep.mubr.f32.mxu0 %v43
    %646 = vmatmul.mubr.f32.gmra.mxu0 %v42
    %v647 = vpop.f32.mrf.mxu0
    %v648 = vadd.f32 %v319, %v647
    %v649 = vpop.f32.mrf.mxu0
    %v650 = vadd.f32 %v323, %v649
    %651 = vmatprep.mubr.f32.mxu0 %v45
    %652 = vmatmul.mubr.f32.gmra.mxu0 %v44
    %v653 = vpop.f32.mrf.mxu0
    %v654 = vadd.f32 %v319, %v653
    %v655 = vpop.f32.mrf.mxu0
    %v656 = vadd.f32 %v323, %v655
    %657 = vmatprep.mubr.f32.mxu0 %v47
    %658 = vmatmul.mubr.f32.gmra.mxu0 %v46
    %v659 = vpop.f32.mrf.mxu0
    %v660 = vadd.f32 %v319, %v659
    %v661 = vpop.f32.mrf.mxu0
    %v662 = vadd.f32 %v323, %v661
    %663 = vmatprep.mubr.f32.mxu0 %v49
    %664 = vmatmul.mubr.f32.gmra.mxu0 %v48
    %v665 = vpop.f32.mrf.mxu0
    %v666 = vadd.f32 %v319, %v665
    %v667 = vpop.f32.mrf.mxu0
    %v668 = vadd.f32 %v323, %v667
    %669 = vdwg.mxu0
    %670 = vmatprep.subr.mxu0 %v175
    %671 = vmatpush1.msra.mxu0 %v174
    %672 = vmatprep.subr.mxu0 %v167
    %673 = vmatpush1.msra.mxu0 %v166
    %674 = vmatprep.subr.mxu0 %v159
    %675 = vmatpush1.msra.mxu0 %v158
    %676 = vmatprep.subr.mxu0 %v151
    %677 = vmatpush1.msra.mxu0 %v150
    %678 = vmatprep.subr.mxu0 %v143
    %679 = vmatpush1.msra.mxu0 %v142
    %680 = vmatprep.subr.mxu0 %v135
    %681 = vmatpush1.msra.mxu0 %v134
    %682 = vmatprep.subr.mxu0 %v127
    %683 = vmatpush1.msra.mxu0 %v126
    %684 = vmatprep.subr.mxu0 %v119
    %685 = vmatpush1.msra.mxu0 %v118
    %686 = vmatprep.subr.mxu0 %v111
    %687 = vmatpush1.msra.mxu0 %v110
    %688 = vmatprep.subr.mxu0 %v103
    %689 = vmatpush1.msra.mxu0 %v102
    %690 = vmatprep.subr.mxu0 %v95
    %691 = vmatpush1.msra.mxu0 %v94
    %692 = vmatprep.subr.mxu0 %v87
    %693 = vmatpush1.msra.mxu0 %v86
    %694 = vmatprep.subr.mxu0 %v79
    %695 = vmatpush1.msra.mxu0 %v78
    %696 = vmatprep.subr.mxu0 %v71
    %697 = vmatpush1.msra.mxu0 %v70
    %698 = vmatprep.subr.mxu0 %v63
    %699 = vmatpush1.msra.mxu0 %v62
    %700 = vmatprep.subr.mxu0 %v55
    %701 = vmatpush1.msra.mxu0 %v54
    %702 = vmatprep.subr.mxu0 %v303
    %703 = vmatpush2.msra.mxu0 %v302
    %704 = vmatprep.subr.mxu0 %v295
    %705 = vmatpush2.msra.mxu0 %v294
    %706 = vmatprep.subr.mxu0 %v287
    %707 = vmatpush2.msra.mxu0 %v286
    %708 = vmatprep.subr.mxu0 %v279
    %709 = vmatpush2.msra.mxu0 %v278
    %710 = vmatprep.subr.mxu0 %v271
    %711 = vmatpush2.msra.mxu0 %v270
    %712 = vmatprep.subr.mxu0 %v263
    %713 = vmatpush2.msra.mxu0 %v262
    %714 = vmatprep.subr.mxu0 %v255
    %715 = vmatpush2.msra.mxu0 %v254
    %716 = vmatprep.subr.mxu0 %v247
    %717 = vmatpush2.msra.mxu0 %v246
    %718 = vmatprep.subr.mxu0 %v239
    %719 = vmatpush2.msra.mxu0 %v238
    %720 = vmatprep.subr.mxu0 %v231
    %721 = vmatpush2.msra.mxu0 %v230
    %722 = vmatprep.subr.mxu0 %v223
    %723 = vmatpush2.msra.mxu0 %v222
    %724 = vmatprep.subr.mxu0 %v215
    %725 = vmatpush2.msra.mxu0 %v214
    %726 = vmatprep.subr.mxu0 %v207
    %727 = vmatpush2.msra.mxu0 %v206
    %728 = vmatprep.subr.mxu0 %v199
    %729 = vmatpush2.msra.mxu0 %v198
    %730 = vmatprep.subr.mxu0 %v191
    %731 = vmatpush2.msra.mxu0 %v190
    %732 = vmatprep.subr.mxu0 %v183
    %733 = vmatpush2.msra.mxu0 %v182
    %734 = vmatprep.mubr.f32.mxu0 %v19
    %735 = vmatmul.mubr.f32.gmra.mxu0 %v18
    %v736 = vpop.f32.mrf.mxu0
    %v737 = vadd.f32 %v327, %v736
    %v738 = vpop.f32.mrf.mxu0
    %v739 = vadd.f32 %v331, %v738
    %740 = vmatprep.mubr.f32.mxu0 %v21
    %741 = vmatmul.mubr.f32.gmra.mxu0 %v20
    %v742 = vpop.f32.mrf.mxu0
    %v743 = vadd.f32 %v327, %v742
    %v744 = vpop.f32.mrf.mxu0
    %v745 = vadd.f32 %v331, %v744
    %746 = vmatprep.mubr.f32.mxu0 %v23
    %747 = vmatmul.mubr.f32.gmra.mxu0 %v22
    %v748 = vpop.f32.mrf.mxu0
    %v749 = vadd.f32 %v327, %v748
    %v750 = vpop.f32.mrf.mxu0
    %v751 = vadd.f32 %v331, %v750
    %752 = vmatprep.mubr.f32.mxu0 %v25
    %753 = vmatmul.mubr.f32.gmra.mxu0 %v24
    %v754 = vpop.f32.mrf.mxu0
    %v755 = vadd.f32 %v327, %v754
    %v756 = vpop.f32.mrf.mxu0
    %v757 = vadd.f32 %v331, %v756
    %758 = vmatprep.mubr.f32.mxu0 %v27
    %759 = vmatmul.mubr.f32.gmra.mxu0 %v26
    %v760 = vpop.f32.mrf.mxu0
    %v761 = vadd.f32 %v327, %v760
    %v762 = vpop.f32.mrf.mxu0
    %v763 = vadd.f32 %v331, %v762
    %764 = vmatprep.mubr.f32.mxu0 %v29
    %765 = vmatmul.mubr.f32.gmra.mxu0 %v28
    %v766 = vpop.f32.mrf.mxu0
    %v767 = vadd.f32 %v327, %v766
    %v768 = vpop.f32.mrf.mxu0
    %v769 = vadd.f32 %v331, %v768
    %770 = vmatprep.mubr.f32.mxu0 %v31
    %771 = vmatmul.mubr.f32.gmra.mxu0 %v30
    %v772 = vpop.f32.mrf.mxu0
    %v773 = vadd.f32 %v327, %v772
    %v774 = vpop.f32.mrf.mxu0
    %v775 = vadd.f32 %v331, %v774
    %776 = vmatprep.mubr.f32.mxu0 %v33
    %777 = vmatmul.mubr.f32.gmra.mxu0 %v32
    %v778 = vpop.f32.mrf.mxu0
    %v779 = vadd.f32 %v327, %v778
    %v780 = vpop.f32.mrf.mxu0
    %v781 = vadd.f32 %v331, %v780
    %782 = vmatprep.mubr.f32.mxu0 %v35
    %783 = vmatmul.mubr.f32.gmra.mxu0 %v34
    %v784 = vpop.f32.mrf.mxu0
    %v785 = vadd.f32 %v327, %v784
    %v786 = vpop.f32.mrf.mxu0
    %v787 = vadd.f32 %v331, %v786
    %788 = vmatprep.mubr.f32.mxu0 %v37
    %789 = vmatmul.mubr.f32.gmra.mxu0 %v36
    %v790 = vpop.f32.mrf.mxu0
    %v791 = vadd.f32 %v327, %v790
    %v792 = vpop.f32.mrf.mxu0
    %v793 = vadd.f32 %v331, %v792
    %794 = vmatprep.mubr.f32.mxu0 %v39
    %795 = vmatmul.mubr.f32.gmra.mxu0 %v38
    %v796 = vpop.f32.mrf.mxu0
    %v797 = vadd.f32 %v327, %v796
    %v798 = vpop.f32.mrf.mxu0
    %v799 = vadd.f32 %v331, %v798
    %800 = vmatprep.mubr.f32.mxu0 %v41
    %801 = vmatmul.mubr.f32.gmra.mxu0 %v40
    %v802 = vpop.f32.mrf.mxu0
    %v803 = vadd.f32 %v327, %v802
    %v804 = vpop.f32.mrf.mxu0
    %v805 = vadd.f32 %v331, %v804
    %806 = vmatprep.mubr.f32.mxu0 %v43
    %807 = vmatmul.mubr.f32.gmra.mxu0 %v42
    %v808 = vpop.f32.mrf.mxu0
    %v809 = vadd.f32 %v327, %v808
    %v810 = vpop.f32.mrf.mxu0
    %v811 = vadd.f32 %v331, %v810
    %812 = vmatprep.mubr.f32.mxu0 %v45
    %813 = vmatmul.mubr.f32.gmra.mxu0 %v44
    %v814 = vpop.f32.mrf.mxu0
    %v815 = vadd.f32 %v327, %v814
    %v816 = vpop.f32.mrf.mxu0
    %v817 = vadd.f32 %v331, %v816
    %818 = vmatprep.mubr.f32.mxu0 %v47
    %819 = vmatmul.mubr.f32.gmra.mxu0 %v46
    %v820 = vpop.f32.mrf.mxu0
    %v821 = vadd.f32 %v327, %v820
    %v822 = vpop.f32.mrf.mxu0
    %v823 = vadd.f32 %v331, %v822
    %824 = vmatprep.mubr.f32.mxu0 %v49
    %825 = vmatmul.mubr.f32.gmra.mxu0 %v48
    %v826 = vpop.f32.mrf.mxu0
    %v827 = vadd.f32 %v327, %v826
    %v828 = vpop.f32.mrf.mxu0
    %v829 = vadd.f32 %v331, %v828
    %830 = vdwg.mxu0
    %831 = vmatprep.subr.mxu0 %v177
    %832 = vmatpush1.msra.mxu0 %v176
    %833 = vmatprep.subr.mxu0 %v169
    %834 = vmatpush1.msra.mxu0 %v168
    %835 = vmatprep.subr.mxu0 %v161
    %836 = vmatpush1.msra.mxu0 %v160
    %837 = vmatprep.subr.mxu0 %v153
    %838 = vmatpush1.msra.mxu0 %v152
    %839 = vmatprep.subr.mxu0 %v145
    %840 = vmatpush1.msra.mxu0 %v144
    %841 = vmatprep.subr.mxu0 %v137
    %842 = vmatpush1.msra.mxu0 %v136
    %843 = vmatprep.subr.mxu0 %v129
    %844 = vmatpush1.msra.mxu0 %v128
    %845 = vmatprep.subr.mxu0 %v121
    %846 = vmatpush1.msra.mxu0 %v120
    %847 = vmatprep.subr.mxu0 %v113
    %848 = vmatpush1.msra.mxu0 %v112
    %849 = vmatprep.subr.mxu0 %v105
    %850 = vmatpush1.msra.mxu0 %v104
    %851 = vmatprep.subr.mxu0 %v97
    %852 = vmatpush1.msra.mxu0 %v96
    %853 = vmatprep.subr.mxu0 %v89
    %854 = vmatpush1.msra.mxu0 %v88
    %855 = vmatprep.subr.mxu0 %v81
    %856 = vmatpush1.msra.mxu0 %v80
    %857 = vmatprep.subr.mxu0 %v73
    %858 = vmatpush1.msra.mxu0 %v72
    %859 = vmatprep.subr.mxu0 %v65
    %860 = vmatpush1.msra.mxu0 %v64
    %861 = vmatprep.subr.mxu0 %v57
    %862 = vmatpush1.msra.mxu0 %v56
    %863 = vmatprep.subr.mxu0 %v305
    %864 = vmatpush2.msra.mxu0 %v304
    %865 = vmatprep.subr.mxu0 %v297
    %866 = vmatpush2.msra.mxu0 %v296
    %867 = vmatprep.subr.mxu0 %v289
    %868 = vmatpush2.msra.mxu0 %v288
    %869 = vmatprep.subr.mxu0 %v281
    %870 = vmatpush2.msra.mxu0 %v280
    %871 = vmatprep.subr.mxu0 %v273
    %872 = vmatpush2.msra.mxu0 %v272
    %873 = vmatprep.subr.mxu0 %v265
    %874 = vmatpush2.msra.mxu0 %v264
    %875 = vmatprep.subr.mxu0 %v257
    %876 = vmatpush2.msra.mxu0 %v256
    %877 = vmatprep.subr.mxu0 %v249
    %878 = vmatpush2.msra.mxu0 %v248
    %879 = vmatprep.subr.mxu0 %v241
    %880 = vmatpush2.msra.mxu0 %v240
    %881 = vmatprep.subr.mxu0 %v233
    %882 = vmatpush2.msra.mxu0 %v232
    %883 = vmatprep.subr.mxu0 %v225
    %884 = vmatpush2.msra.mxu0 %v224
    %885 = vmatprep.subr.mxu0 %v217
    %886 = vmatpush2.msra.mxu0 %v216
    %887 = vmatprep.subr.mxu0 %v209
    %888 = vmatpush2.msra.mxu0 %v208
    %889 = vmatprep.subr.mxu0 %v201
    %890 = vmatpush2.msra.mxu0 %v200
    %891 = vmatprep.subr.mxu0 %v193
    %892 = vmatpush2.msra.mxu0 %v192
    %893 = vmatprep.subr.mxu0 %v185
    %894 = vmatpush2.msra.mxu0 %v184
    %895 = vmatprep.mubr.f32.mxu0 %v19
    %896 = vmatmul.mubr.f32.gmra.mxu0 %v18
    %v897 = vpop.f32.mrf.mxu0
    %v898 = vadd.f32 %v335, %v897
    %v899 = vpop.f32.mrf.mxu0
    %v900 = vadd.f32 %v339, %v899
    %901 = vmatprep.mubr.f32.mxu0 %v21
    %902 = vmatmul.mubr.f32.gmra.mxu0 %v20
    %v903 = vpop.f32.mrf.mxu0
    %v904 = vadd.f32 %v335, %v903
    %v905 = vpop.f32.mrf.mxu0
    %v906 = vadd.f32 %v339, %v905
    %907 = vmatprep.mubr.f32.mxu0 %v23
    %908 = vmatmul.mubr.f32.gmra.mxu0 %v22
    %v909 = vpop.f32.mrf.mxu0
    %v910 = vadd.f32 %v335, %v909
    %v911 = vpop.f32.mrf.mxu0
    %v912 = vadd.f32 %v339, %v911
    %913 = vmatprep.mubr.f32.mxu0 %v25
    %914 = vmatmul.mubr.f32.gmra.mxu0 %v24
    %v915 = vpop.f32.mrf.mxu0
    %v916 = vadd.f32 %v335, %v915
    %v917 = vpop.f32.mrf.mxu0
    %v918 = vadd.f32 %v339, %v917
    %919 = vmatprep.mubr.f32.mxu0 %v27
    %920 = vmatmul.mubr.f32.gmra.mxu0 %v26
    %v921 = vpop.f32.mrf.mxu0
    %v922 = vadd.f32 %v335, %v921
    %v923 = vpop.f32.mrf.mxu0
    %v924 = vadd.f32 %v339, %v923
    %925 = vmatprep.mubr.f32.mxu0 %v29
    %926 = vmatmul.mubr.f32.gmra.mxu0 %v28
    %v927 = vpop.f32.mrf.mxu0
    %v928 = vadd.f32 %v335, %v927
    %v929 = vpop.f32.mrf.mxu0
    %v930 = vadd.f32 %v339, %v929
    %931 = vmatprep.mubr.f32.mxu0 %v31
    %932 = vmatmul.mubr.f32.gmra.mxu0 %v30
    %v933 = vpop.f32.mrf.mxu0
    %v934 = vadd.f32 %v335, %v933
    %v935 = vpop.f32.mrf.mxu0
    %v936 = vadd.f32 %v339, %v935
    %937 = vmatprep.mubr.f32.mxu0 %v33
    %938 = vmatmul.mubr.f32.gmra.mxu0 %v32
    %v939 = vpop.f32.mrf.mxu0
    %v940 = vadd.f32 %v335, %v939
    %v941 = vpop.f32.mrf.mxu0
    %v942 = vadd.f32 %v339, %v941
    %943 = vmatprep.mubr.f32.mxu0 %v35
    %944 = vmatmul.mubr.f32.gmra.mxu0 %v34
    %v945 = vpop.f32.mrf.mxu0
    %v946 = vadd.f32 %v335, %v945
    %v947 = vpop.f32.mrf.mxu0
    %v948 = vadd.f32 %v339, %v947
    %949 = vmatprep.mubr.f32.mxu0 %v37
    %950 = vmatmul.mubr.f32.gmra.mxu0 %v36
    %v951 = vpop.f32.mrf.mxu0
    %v952 = vadd.f32 %v335, %v951
    %v953 = vpop.f32.mrf.mxu0
    %v954 = vadd.f32 %v339, %v953
    %955 = vmatprep.mubr.f32.mxu0 %v39
    %956 = vmatmul.mubr.f32.gmra.mxu0 %v38
    %v957 = vpop.f32.mrf.mxu0
    %v958 = vadd.f32 %v335, %v957
    %v959 = vpop.f32.mrf.mxu0
    %v960 = vadd.f32 %v339, %v959
    %961 = vmatprep.mubr.f32.mxu0 %v41
    %962 = vmatmul.mubr.f32.gmra.mxu0 %v40
    %v963 = vpop.f32.mrf.mxu0
    %v964 = vadd.f32 %v335, %v963
    %v965 = vpop.f32.mrf.mxu0
    %v966 = vadd.f32 %v339, %v965
    %967 = vmatprep.mubr.f32.mxu0 %v43
    %968 = vmatmul.mubr.f32.gmra.mxu0 %v42
    %v969 = vpop.f32.mrf.mxu0
    %v970 = vadd.f32 %v335, %v969
    %v971 = vpop.f32.mrf.mxu0
    %v972 = vadd.f32 %v339, %v971
    %973 = vmatprep.mubr.f32.mxu0 %v45
    %974 = vmatmul.mubr.f32.gmra.mxu0 %v44
    %v975 = vpop.f32.mrf.mxu0
    %v976 = vadd.f32 %v335, %v975
    %v977 = vpop.f32.mrf.mxu0
    %v978 = vadd.f32 %v339, %v977
    %979 = vmatprep.mubr.f32.mxu0 %v47
    %980 = vmatmul.mubr.f32.gmra.mxu0 %v46
    %v981 = vpop.f32.mrf.mxu0
    %v982 = vadd.f32 %v335, %v981
    %v983 = vpop.f32.mrf.mxu0
    %v984 = vadd.f32 %v339, %v983
    %985 = vmatprep.mubr.f32.mxu0 %v49
    %986 = vmatmul.mubr.f32.gmra.mxu0 %v48
    %v987 = vpop.f32.mrf.mxu0
    %v988 = vadd.f32 %v335, %v987
    %v989 = vpop.f32.mrf.mxu0
    %v990 = vadd.f32 %v339, %v989
    %991 = vdwg.mxu0
    %v992 = vld [vmem:[%s3] sm:$0xff]
    %v993 = vld [vmem:[%s3 + $0x8] sm:$0xff]
    %v994 = vld [vmem:[%s3 + $0x10] sm:$0xff]
    %v995 = vld [vmem:[%s3 + $0x18] sm:$0xff]
    %v996 = vld [vmem:[%s3 + $0x20] sm:$0xff]
    %v997 = vld [vmem:[%s3 + $0x28] sm:$0xff]
    %v998 = vld [vmem:[%s3 + $0x30] sm:$0xff]
    %v999 = vld [vmem:[%s3 + $0x38] sm:$0xff]
    %v1000 = vld [vmem:[%s3 + $0x40] sm:$0xff]
    %v1001 = vld [vmem:[%s3 + $0x48] sm:$0xff]
    %v1002 = vld [vmem:[%s3 + $0x50] sm:$0xff]
    %v1003 = vld [vmem:[%s3 + $0x58] sm:$0xff]
    %v1004 = vld [vmem:[%s3 + $0x60] sm:$0xff]
    %v1005 = vld [vmem:[%s3 + $0x68] sm:$0xff]
    %v1006 = vld [vmem:[%s3 + $0x70] sm:$0xff]
    %v1007 = vld [vmem:[%s3 + $0x78] sm:$0xff]
    %v1008 = vld [vmem:[%s3 + $0x80] sm:$0xff]
    %v1009 = vld [vmem:[%s3 + $0x88] sm:$0xff]
    %v1010 = vld [vmem:[%s3 + $0x90] sm:$0xff]
    %v1011 = vld [vmem:[%s3 + $0x98] sm:$0xff]
    %v1012 = vld [vmem:[%s3 + $0xa0] sm:$0xff]
    %v1013 = vld [vmem:[%s3 + $0xa8] sm:$0xff]
    %v1014 = vld [vmem:[%s3 + $0xb0] sm:$0xff]
    %v1015 = vld [vmem:[%s3 + $0xb8] sm:$0xff]
    %v1016 = vld [vmem:[%s3 + $0xc0] sm:$0xff]
    %v1017 = vld [vmem:[%s3 + $0xc8] sm:$0xff]
    %v1018 = vld [vmem:[%s3 + $0xd0] sm:$0xff]
    %v1019 = vld [vmem:[%s3 + $0xd8] sm:$0xff]
    %v1020 = vld [vmem:[%s3 + $0xe0] sm:$0xff]
    %v1021 = vld [vmem:[%s3 + $0xe8] sm:$0xff]
    %v1022 = vld [vmem:[%s3 + $0xf0] sm:$0xff]
    %v1023 = vld [vmem:[%s3 + $0xf8] sm:$0xff]
    %v1024 = vld [vmem:[%s3 + $0x100] sm:$0xff]
    %v1025 = vld [vmem:[%s3 + $0x108] sm:$0xff]
    %v1026 = vld [vmem:[%s3 + $0x110] sm:$0xff]
    %v1027 = vld [vmem:[%s3 + $0x118] sm:$0xff]
    %v1028 = vld [vmem:[%s3 + $0x120] sm:$0xff]
    %v1029 = vld [vmem:[%s3 + $0x128] sm:$0xff]
    %v1030 = vld [vmem:[%s3 + $0x130] sm:$0xff]
    %v1031 = vld [vmem:[%s3 + $0x138] sm:$0xff]
    %v1032 = vld [vmem:[%s3 + $0x140] sm:$0xff]
    %v1033 = vld [vmem:[%s3 + $0x148] sm:$0xff]
    %v1034 = vld [vmem:[%s3 + $0x150] sm:$0xff]
    %v1035 = vld [vmem:[%s3 + $0x158] sm:$0xff]
    %v1036 = vld [vmem:[%s3 + $0x160] sm:$0xff]
    %v1037 = vld [vmem:[%s3 + $0x168] sm:$0xff]
    %v1038 = vld [vmem:[%s3 + $0x170] sm:$0xff]
    %v1039 = vld [vmem:[%s3 + $0x178] sm:$0xff]
    %v1040 = vld [vmem:[%s3 + $0x180] sm:$0xff]
    %v1041 = vld [vmem:[%s3 + $0x188] sm:$0xff]
    %v1042 = vld [vmem:[%s3 + $0x190] sm:$0xff]
    %v1043 = vld [vmem:[%s3 + $0x198] sm:$0xff]
    %v1044 = vld [vmem:[%s3 + $0x1a0] sm:$0xff]
    %v1045 = vld [vmem:[%s3 + $0x1a8] sm:$0xff]
    %v1046 = vld [vmem:[%s3 + $0x1b0] sm:$0xff]
    %v1047 = vld [vmem:[%s3 + $0x1b8] sm:$0xff]
    %v1048 = vld [vmem:[%s3 + $0x1c0] sm:$0xff]
    %v1049 = vld [vmem:[%s3 + $0x1c8] sm:$0xff]
    %v1050 = vld [vmem:[%s3 + $0x1d0] sm:$0xff]
    %v1051 = vld [vmem:[%s3 + $0x1d8] sm:$0xff]
    %v1052 = vld [vmem:[%s3 + $0x1e0] sm:$0xff]
    %v1053 = vld [vmem:[%s3 + $0x1e8] sm:$0xff]
    %v1054 = vld [vmem:[%s3 + $0x1f0] sm:$0xff]
    %v1055 = vld [vmem:[%s3 + $0x1f8] sm:$0xff]
    %v1056 = vld [vmem:[%s3 + $0x200] sm:$0xff]
    %v1057 = vld [vmem:[%s3 + $0x208] sm:$0xff]
    %v1058 = vld [vmem:[%s3 + $0x210] sm:$0xff]
    %v1059 = vld [vmem:[%s3 + $0x218] sm:$0xff]
    %v1060 = vld [vmem:[%s3 + $0x220] sm:$0xff]
    %v1061 = vld [vmem:[%s3 + $0x228] sm:$0xff]
    %v1062 = vld [vmem:[%s3 + $0x230] sm:$0xff]
    %v1063 = vld [vmem:[%s3 + $0x238] sm:$0xff]
    %v1064 = vld [vmem:[%s3 + $0x240] sm:$0xff]
    %v1065 = vld [vmem:[%s3 + $0x248] sm:$0xff]
    %v1066 = vld [vmem:[%s3 + $0x250] sm:$0xff]
    %v1067 = vld [vmem:[%s3 + $0x258] sm:$0xff]
    %v1068 = vld [vmem:[%s3 + $0x260] sm:$0xff]
    %v1069 = vld [vmem:[%s3 + $0x268] sm:$0xff]
    %v1070 = vld [vmem:[%s3 + $0x270] sm:$0xff]
    %v1071 = vld [vmem:[%s3 + $0x278] sm:$0xff]
    %v1072 = vld [vmem:[%s3 + $0x280] sm:$0xff]
    %v1073 = vld [vmem:[%s3 + $0x288] sm:$0xff]
    %v1074 = vld [vmem:[%s3 + $0x290] sm:$0xff]
    %v1075 = vld [vmem:[%s3 + $0x298] sm:$0xff]
    %v1076 = vld [vmem:[%s3 + $0x2a0] sm:$0xff]
    %v1077 = vld [vmem:[%s3 + $0x2a8] sm:$0xff]
    %v1078 = vld [vmem:[%s3 + $0x2b0] sm:$0xff]
    %v1079 = vld [vmem:[%s3 + $0x2b8] sm:$0xff]
    %v1080 = vld [vmem:[%s3 + $0x2c0] sm:$0xff]
    %v1081 = vld [vmem:[%s3 + $0x2c8] sm:$0xff]
    %v1082 = vld [vmem:[%s3 + $0x2d0] sm:$0xff]
    %v1083 = vld [vmem:[%s3 + $0x2d8] sm:$0xff]
    %v1084 = vld [vmem:[%s3 + $0x2e0] sm:$0xff]
    %v1085 = vld [vmem:[%s3 + $0x2e8] sm:$0xff]
    %v1086 = vld [vmem:[%s3 + $0x2f0] sm:$0xff]
    %v1087 = vld [vmem:[%s3 + $0x2f8] sm:$0xff]
    %v1088 = vld [vmem:[%s3 + $0x300] sm:$0xff]
    %v1089 = vld [vmem:[%s3 + $0x308] sm:$0xff]
    %v1090 = vld [vmem:[%s3 + $0x310] sm:$0xff]
    %v1091 = vld [vmem:[%s3 + $0x318] sm:$0xff]
    %v1092 = vld [vmem:[%s3 + $0x320] sm:$0xff]
    %v1093 = vld [vmem:[%s3 + $0x328] sm:$0xff]
    %v1094 = vld [vmem:[%s3 + $0x330] sm:$0xff]
    %v1095 = vld [vmem:[%s3 + $0x338] sm:$0xff]
    %v1096 = vld [vmem:[%s3 + $0x340] sm:$0xff]
    %v1097 = vld [vmem:[%s3 + $0x348] sm:$0xff]
    %v1098 = vld [vmem:[%s3 + $0x350] sm:$0xff]
    %v1099 = vld [vmem:[%s3 + $0x358] sm:$0xff]
    %v1100 = vld [vmem:[%s3 + $0x360] sm:$0xff]
    %v1101 = vld [vmem:[%s3 + $0x368] sm:$0xff]
    %v1102 = vld [vmem:[%s3 + $0x370] sm:$0xff]
    %v1103 = vld [vmem:[%s3 + $0x378] sm:$0xff]
    %v1104 = vld [vmem:[%s3 + $0x380] sm:$0xff]
    %v1105 = vld [vmem:[%s3 + $0x388] sm:$0xff]
    %v1106 = vld [vmem:[%s3 + $0x390] sm:$0xff]
    %v1107 = vld [vmem:[%s3 + $0x398] sm:$0xff]
    %v1108 = vld [vmem:[%s3 + $0x3a0] sm:$0xff]
    %v1109 = vld [vmem:[%s3 + $0x3a8] sm:$0xff]
    %v1110 = vld [vmem:[%s3 + $0x3b0] sm:$0xff]
    %v1111 = vld [vmem:[%s3 + $0x3b8] sm:$0xff]
    %v1112 = vld [vmem:[%s3 + $0x3c0] sm:$0xff]
    %v1113 = vld [vmem:[%s3 + $0x3c8] sm:$0xff]
    %v1114 = vld [vmem:[%s3 + $0x3d0] sm:$0xff]
    %v1115 = vld [vmem:[%s3 + $0x3d8] sm:$0xff]
    %v1116 = vld [vmem:[%s3 + $0x3e0] sm:$0xff]
    %v1117 = vld [vmem:[%s3 + $0x3e8] sm:$0xff]
    %v1118 = vld [vmem:[%s3 + $0x3f0] sm:$0xff]
    %v1119 = vld [vmem:[%s3 + $0x3f8] sm:$0xff]
    %v1120 = vadd.f32 %v415, %v992
    %v1121 = vadd.f32 %v417, %v993
    %v1122 = vadd.f32 %v576, %v994
    %v1123 = vadd.f32 %v578, %v995
    %v1124 = vadd.f32 %v737, %v996
    %v1125 = vadd.f32 %v739, %v997
    %v1126 = vadd.f32 %v898, %v998
    %v1127 = vadd.f32 %v900, %v999
    %v1128 = vadd.f32 %v421, %v1000
    %v1129 = vadd.f32 %v423, %v1001
    %v1130 = vadd.f32 %v582, %v1002
    %v1131 = vadd.f32 %v584, %v1003
    %v1132 = vadd.f32 %v743, %v1004
    %v1133 = vadd.f32 %v745, %v1005
    %v1134 = vadd.f32 %v904, %v1006
    %v1135 = vadd.f32 %v906, %v1007
    %v1136 = vadd.f32 %v427, %v1008
    %v1137 = vadd.f32 %v429, %v1009
    %v1138 = vadd.f32 %v588, %v1010
    %v1139 = vadd.f32 %v590, %v1011
    %v1140 = vadd.f32 %v749, %v1012
    %v1141 = vadd.f32 %v751, %v1013
    %v1142 = vadd.f32 %v910, %v1014
    %v1143 = vadd.f32 %v912, %v1015
    %v1144 = vadd.f32 %v433, %v1016
    %v1145 = vadd.f32 %v435, %v1017
    %v1146 = vadd.f32 %v594, %v1018
    %v1147 = vadd.f32 %v596, %v1019
    %v1148 = vadd.f32 %v755, %v1020
    %v1149 = vadd.f32 %v757, %v1021
    %v1150 = vadd.f32 %v916, %v1022
    %v1151 = vadd.f32 %v918, %v1023
    %v1152 = vadd.f32 %v439, %v1024
    %v1153 = vadd.f32 %v441, %v1025
    %v1154 = vadd.f32 %v600, %v1026
    %v1155 = vadd.f32 %v602, %v1027
    %v1156 = vadd.f32 %v761, %v1028
    %v1157 = vadd.f32 %v763, %v1029
    %v1158 = vadd.f32 %v922, %v1030
    %v1159 = vadd.f32 %v924, %v1031
    %v1160 = vadd.f32 %v445, %v1032
    %v1161 = vadd.f32 %v447, %v1033
    %v1162 = vadd.f32 %v606, %v1034
    %v1163 = vadd.f32 %v608, %v1035
    %v1164 = vadd.f32 %v767, %v1036
    %v1165 = vadd.f32 %v769, %v1037
    %v1166 = vadd.f32 %v928, %v1038
    %v1167 = vadd.f32 %v930, %v1039
    %v1168 = vadd.f32 %v451, %v1040
    %v1169 = vadd.f32 %v453, %v1041
    %v1170 = vadd.f32 %v612, %v1042
    %v1171 = vadd.f32 %v614, %v1043
    %v1172 = vadd.f32 %v773, %v1044
    %v1173 = vadd.f32 %v775, %v1045
    %v1174 = vadd.f32 %v934, %v1046
    %v1175 = vadd.f32 %v936, %v1047
    %v1176 = vadd.f32 %v457, %v1048
    %v1177 = vadd.f32 %v459, %v1049
    %v1178 = vadd.f32 %v618, %v1050
    %v1179 = vadd.f32 %v620, %v1051
    %v1180 = vadd.f32 %v779, %v1052
    %v1181 = vadd.f32 %v781, %v1053
    %v1182 = vadd.f32 %v940, %v1054
    %v1183 = vadd.f32 %v942, %v1055
    %v1184 = vadd.f32 %v463, %v1056
    %v1185 = vadd.f32 %v465, %v1057
    %v1186 = vadd.f32 %v624, %v1058
    %v1187 = vadd.f32 %v626, %v1059
    %v1188 = vadd.f32 %v785, %v1060
    %v1189 = vadd.f32 %v787, %v1061
    %v1190 = vadd.f32 %v946, %v1062
    %v1191 = vadd.f32 %v948, %v1063
    %v1192 = vadd.f32 %v469, %v1064
    %v1193 = vadd.f32 %v471, %v1065
    %v1194 = vadd.f32 %v630, %v1066
    %v1195 = vadd.f32 %v632, %v1067
    %v1196 = vadd.f32 %v791, %v1068
    %v1197 = vadd.f32 %v793, %v1069
    %v1198 = vadd.f32 %v952, %v1070
    %v1199 = vadd.f32 %v954, %v1071
    %v1200 = vadd.f32 %v475, %v1072
    %v1201 = vadd.f32 %v477, %v1073
    %v1202 = vadd.f32 %v636, %v1074
    %v1203 = vadd.f32 %v638, %v1075
    %v1204 = vadd.f32 %v797, %v1076
    %v1205 = vadd.f32 %v799, %v1077
    %v1206 = vadd.f32 %v958, %v1078
    %v1207 = vadd.f32 %v960, %v1079
    %v1208 = vadd.f32 %v481, %v1080
    %v1209 = vadd.f32 %v483, %v1081
    %v1210 = vadd.f32 %v642, %v1082
    %v1211 = vadd.f32 %v644, %v1083
    %v1212 = vadd.f32 %v803, %v1084
    %v1213 = vadd.f32 %v805, %v1085
    %v1214 = vadd.f32 %v964, %v1086
    %v1215 = vadd.f32 %v966, %v1087
    %v1216 = vadd.f32 %v487, %v1088
    %v1217 = vadd.f32 %v489, %v1089
    %v1218 = vadd.f32 %v648, %v1090
    %v1219 = vadd.f32 %v650, %v1091
    %v1220 = vadd.f32 %v809, %v1092
    %v1221 = vadd.f32 %v811, %v1093
    %v1222 = vadd.f32 %v970, %v1094
    %v1223 = vadd.f32 %v972, %v1095
    %v1224 = vadd.f32 %v493, %v1096
    %v1225 = vadd.f32 %v495, %v1097
    %v1226 = vadd.f32 %v654, %v1098
    %v1227 = vadd.f32 %v656, %v1099
    %v1228 = vadd.f32 %v815, %v1100
    %v1229 = vadd.f32 %v817, %v1101
    %v1230 = vadd.f32 %v976, %v1102
    %v1231 = vadd.f32 %v978, %v1103
    %v1232 = vadd.f32 %v499, %v1104
    %v1233 = vadd.f32 %v501, %v1105
    %v1234 = vadd.f32 %v660, %v1106
    %v1235 = vadd.f32 %v662, %v1107
    %v1236 = vadd.f32 %v821, %v1108
    %v1237 = vadd.f32 %v823, %v1109
    %v1238 = vadd.f32 %v982, %v1110
    %v1239 = vadd.f32 %v984, %v1111
    %v1240 = vadd.f32 %v505, %v1112
    %v1241 = vadd.f32 %v507, %v1113
    %v1242 = vadd.f32 %v666, %v1114
    %v1243 = vadd.f32 %v668, %v1115
    %v1244 = vadd.f32 %v827, %v1116
    %v1245 = vadd.f32 %v829, %v1117
    %v1246 = vadd.f32 %v988, %v1118
    %v1247 = vadd.f32 %v990, %v1119
    %v1248 = vmax.f32 %v1120, 0.0
    %v1249 = vmax.f32 %v1121, 0.0
    %v1250 = vmax.f32 %v1122, 0.0
    %v1251 = vmax.f32 %v1123, 0.0
    %v1252 = vmax.f32 %v1124, 0.0
    %v1253 = vmax.f32 %v1125, 0.0
    %v1254 = vmax.f32 %v1126, 0.0
    %v1255 = vmax.f32 %v1127, 0.0
    %v1256 = vmax.f32 %v1128, 0.0
    %v1257 = vmax.f32 %v1129, 0.0
    %v1258 = vmax.f32 %v1130, 0.0
    %v1259 = vmax.f32 %v1131, 0.0
    %v1260 = vmax.f32 %v1132, 0.0
    %v1261 = vmax.f32 %v1133, 0.0
    %v1262 = vmax.f32 %v1134, 0.0
    %v1263 = vmax.f32 %v1135, 0.0
    %v1264 = vmax.f32 %v1136, 0.0
    %v1265 = vmax.f32 %v1137, 0.0
    %v1266 = vmax.f32 %v1138, 0.0
    %v1267 = vmax.f32 %v1139, 0.0
    %v1268 = vmax.f32 %v1140, 0.0
    %v1269 = vmax.f32 %v1141, 0.0
    %v1270 = vmax.f32 %v1142, 0.0
    %v1271 = vmax.f32 %v1143, 0.0
    %v1272 = vmax.f32 %v1144, 0.0
    %v1273 = vmax.f32 %v1145, 0.0
    %v1274 = vmax.f32 %v1146, 0.0
    %v1275 = vmax.f32 %v1147, 0.0
    %v1276 = vmax.f32 %v1148, 0.0
    %v1277 = vmax.f32 %v1149, 0.0
    %v1278 = vmax.f32 %v1150, 0.0
    %v1279 = vmax.f32 %v1151, 0.0
    %v1280 = vmax.f32 %v1152, 0.0
    %v1281 = vmax.f32 %v1153, 0.0
    %v1282 = vmax.f32 %v1154, 0.0
    %v1283 = vmax.f32 %v1155, 0.0
    %v1284 = vmax.f32 %v1156, 0.0
    %v1285 = vmax.f32 %v1157, 0.0
    %v1286 = vmax.f32 %v1158, 0.0
    %v1287 = vmax.f32 %v1159, 0.0
    %v1288 = vmax.f32 %v1160, 0.0
    %v1289 = vmax.f32 %v1161, 0.0
    %v1290 = vmax.f32 %v1162, 0.0
    %v1291 = vmax.f32 %v1163, 0.0
    %v1292 = vmax.f32 %v1164, 0.0
    %v1293 = vmax.f32 %v1165, 0.0
    %v1294 = vmax.f32 %v1166, 0.0
    %v1295 = vmax.f32 %v1167, 0.0
    %v1296 = vmax.f32 %v1168, 0.0
    %v1297 = vmax.f32 %v1169, 0.0
    %v1298 = vmax.f32 %v1170, 0.0
    %v1299 = vmax.f32 %v1171, 0.0
    %v1300 = vmax.f32 %v1172, 0.0
    %v1301 = vmax.f32 %v1173, 0.0
    %v1302 = vmax.f32 %v1174, 0.0
    %v1303 = vmax.f32 %v1175, 0.0
    %v1304 = vmax.f32 %v1176, 0.0
    %v1305 = vmax.f32 %v1177, 0.0
    %v1306 = vmax.f32 %v1178, 0.0
    %v1307 = vmax.f32 %v1179, 0.0
    %v1308 = vmax.f32 %v1180, 0.0
    %v1309 = vmax.f32 %v1181, 0.0
    %v1310 = vmax.f32 %v1182, 0.0
    %v1311 = vmax.f32 %v1183, 0.0
    %v1312 = vmax.f32 %v1184, 0.0
    %v1313 = vmax.f32 %v1185, 0.0
    %v1314 = vmax.f32 %v1186, 0.0
    %v1315 = vmax.f32 %v1187, 0.0
    %v1316 = vmax.f32 %v1188, 0.0
    %v1317 = vmax.f32 %v1189, 0.0
    %v1318 = vmax.f32 %v1190, 0.0
    %v1319 = vmax.f32 %v1191, 0.0
    %v1320 = vmax.f32 %v1192, 0.0
    %v1321 = vmax.f32 %v1193, 0.0
    %v1322 = vmax.f32 %v1194, 0.0
    %v1323 = vmax.f32 %v1195, 0.0
    %v1324 = vmax.f32 %v1196, 0.0
    %v1325 = vmax.f32 %v1197, 0.0
    %v1326 = vmax.f32 %v1198, 0.0
    %v1327 = vmax.f32 %v1199, 0.0
    %v1328 = vmax.f32 %v1200, 0.0
    %v1329 = vmax.f32 %v1201, 0.0
    %v1330 = vmax.f32 %v1202, 0.0
    %v1331 = vmax.f32 %v1203, 0.0
    %v1332 = vmax.f32 %v1204, 0.0
    %v1333 = vmax.f32 %v1205, 0.0
    %v1334 = vmax.f32 %v1206, 0.0
    %v1335 = vmax.f32 %v1207, 0.0
    %v1336 = vmax.f32 %v1208, 0.0
    %v1337 = vmax.f32 %v1209, 0.0
    %v1338 = vmax.f32 %v1210, 0.0
    %v1339 = vmax.f32 %v1211, 0.0
    %v1340 = vmax.f32 %v1212, 0.0
    %v1341 = vmax.f32 %v1213, 0.0
    %v1342 = vmax.f32 %v1214, 0.0
    %v1343 = vmax.f32 %v1215, 0.0
    %v1344 = vmax.f32 %v1216, 0.0
    %v1345 = vmax.f32 %v1217, 0.0
    %v1346 = vmax.f32 %v1218, 0.0
    %v1347 = vmax.f32 %v1219, 0.0
    %v1348 = vmax.f32 %v1220, 0.0
    %v1349 = vmax.f32 %v1221, 0.0
    %v1350 = vmax.f32 %v1222, 0.0
    %v1351 = vmax.f32 %v1223, 0.0
    %v1352 = vmax.f32 %v1224, 0.0
    %v1353 = vmax.f32 %v1225, 0.0
    %v1354 = vmax.f32 %v1226, 0.0
    %v1355 = vmax.f32 %v1227, 0.0
    %v1356 = vmax.f32 %v1228, 0.0
    %v1357 = vmax.f32 %v1229, 0.0
    %v1358 = vmax.f32 %v1230, 0.0
    %v1359 = vmax.f32 %v1231, 0.0
    %v1360 = vmax.f32 %v1232, 0.0
    %v1361 = vmax.f32 %v1233, 0.0
    %v1362 = vmax.f32 %v1234, 0.0
    %v1363 = vmax.f32 %v1235, 0.0
    %v1364 = vmax.f32 %v1236, 0.0
    %v1365 = vmax.f32 %v1237, 0.0
    %v1366 = vmax.f32 %v1238, 0.0
    %v1367 = vmax.f32 %v1239, 0.0
    %v1368 = vmax.f32 %v1240, 0.0
    %v1369 = vmax.f32 %v1241, 0.0
    %v1370 = vmax.f32 %v1242, 0.0
    %v1371 = vmax.f32 %v1243, 0.0
    %v1372 = vmax.f32 %v1244, 0.0
    %v1373 = vmax.f32 %v1245, 0.0
    %v1374 = vmax.f32 %v1246, 0.0
    %v1375 = vmax.f32 %v1247, 0.0
    %1376 = vst [vmem:[#allocation2] sm:$0xff] %v1248
    %1377 = vst [vmem:[#allocation2 + $0x8] sm:$0xff] %v1249
    %1378 = vst [vmem:[#allocation2 + $0x10] sm:$0xff] %v1250
    %1379 = vst [vmem:[#allocation2 + $0x18] sm:$0xff] %v1251
    %1380 = vst [vmem:[#allocation2 + $0x20] sm:$0xff] %v1252
    %1381 = vst [vmem:[#allocation2 + $0x28] sm:$0xff] %v1253
    %1382 = vst [vmem:[#allocation2 + $0x30] sm:$0xff] %v1254
    %1383 = vst [vmem:[#allocation2 + $0x38] sm:$0xff] %v1255
    %1384 = vst [vmem:[#allocation2 + $0x40] sm:$0xff] %v1256
    %1385 = vst [vmem:[#allocation2 + $0x48] sm:$0xff] %v1257
    %1386 = vst [vmem:[#allocation2 + $0x50] sm:$0xff] %v1258
    %1387 = vst [vmem:[#allocation2 + $0x58] sm:$0xff] %v1259
    %1388 = vst [vmem:[#allocation2 + $0x60] sm:$0xff] %v1260
    %1389 = vst [vmem:[#allocation2 + $0x68] sm:$0xff] %v1261
    %1390 = vst [vmem:[#allocation2 + $0x70] sm:$0xff] %v1262
    %1391 = vst [vmem:[#allocation2 + $0x78] sm:$0xff] %v1263
    %1392 = vst [vmem:[#allocation2 + $0x80] sm:$0xff] %v1264
    %1393 = vst [vmem:[#allocation2 + $0x88] sm:$0xff] %v1265
    %1394 = vst [vmem:[#allocation2 + $0x90] sm:$0xff] %v1266
    %1395 = vst [vmem:[#allocation2 + $0x98] sm:$0xff] %v1267
    %1396 = vst [vmem:[#allocation2 + $0xa0] sm:$0xff] %v1268
    %1397 = vst [vmem:[#allocation2 + $0xa8] sm:$0xff] %v1269
    %1398 = vst [vmem:[#allocation2 + $0xb0] sm:$0xff] %v1270
    %1399 = vst [vmem:[#allocation2 + $0xb8] sm:$0xff] %v1271
    %1400 = vst [vmem:[#allocation2 + $0xc0] sm:$0xff] %v1272
    %1401 = vst [vmem:[#allocation2 + $0xc8] sm:$0xff] %v1273
    %1402 = vst [vmem:[#allocation2 + $0xd0] sm:$0xff] %v1274
    %1403 = vst [vmem:[#allocation2 + $0xd8] sm:$0xff] %v1275
    %1404 = vst [vmem:[#allocation2 + $0xe0] sm:$0xff] %v1276
    %1405 = vst [vmem:[#allocation2 + $0xe8] sm:$0xff] %v1277
    %1406 = vst [vmem:[#allocation2 + $0xf0] sm:$0xff] %v1278
    %1407 = vst [vmem:[#allocation2 + $0xf8] sm:$0xff] %v1279
    %1408 = vst [vmem:[#allocation2 + $0x100] sm:$0xff] %v1280
    %1409 = vst [vmem:[#allocation2 + $0x108] sm:$0xff] %v1281
    %1410 = vst [vmem:[#allocation2 + $0x110] sm:$0xff] %v1282
    %1411 = vst [vmem:[#allocation2 + $0x118] sm:$0xff] %v1283
    %1412 = vst [vmem:[#allocation2 + $0x120] sm:$0xff] %v1284
    %1413 = vst [vmem:[#allocation2 + $0x128] sm:$0xff] %v1285
    %1414 = vst [vmem:[#allocation2 + $0x130] sm:$0xff] %v1286
    %1415 = vst [vmem:[#allocation2 + $0x138] sm:$0xff] %v1287
    %1416 = vst [vmem:[#allocation2 + $0x140] sm:$0xff] %v1288
    %1417 = vst [vmem:[#allocation2 + $0x148] sm:$0xff] %v1289
    %1418 = vst [vmem:[#allocation2 + $0x150] sm:$0xff] %v1290
    %1419 = vst [vmem:[#allocation2 + $0x158] sm:$0xff] %v1291
    %1420 = vst [vmem:[#allocation2 + $0x160] sm:$0xff] %v1292
    %1421 = vst [vmem:[#allocation2 + $0x168] sm:$0xff] %v1293
    %1422 = vst [vmem:[#allocation2 + $0x170] sm:$0xff] %v1294
    %1423 = vst [vmem:[#allocation2 + $0x178] sm:$0xff] %v1295
    %1424 = vst [vmem:[#allocation2 + $0x180] sm:$0xff] %v1296
    %1425 = vst [vmem:[#allocation2 + $0x188] sm:$0xff] %v1297
    %1426 = vst [vmem:[#allocation2 + $0x190] sm:$0xff] %v1298
    %1427 = vst [vmem:[#allocation2 + $0x198] sm:$0xff] %v1299
    %1428 = vst [vmem:[#allocation2 + $0x1a0] sm:$0xff] %v1300
    %1429 = vst [vmem:[#allocation2 + $0x1a8] sm:$0xff] %v1301
    %1430 = vst [vmem:[#allocation2 + $0x1b0] sm:$0xff] %v1302
    %1431 = vst [vmem:[#allocation2 + $0x1b8] sm:$0xff] %v1303
    %1432 = vst [vmem:[#allocation2 + $0x1c0] sm:$0xff] %v1304
    %1433 = vst [vmem:[#allocation2 + $0x1c8] sm:$0xff] %v1305
    %1434 = vst [vmem:[#allocation2 + $0x1d0] sm:$0xff] %v1306
    %1435 = vst [vmem:[#allocation2 + $0x1d8] sm:$0xff] %v1307
    %1436 = vst [vmem:[#allocation2 + $0x1e0] sm:$0xff] %v1308
    %1437 = vst [vmem:[#allocation2 + $0x1e8] sm:$0xff] %v1309
    %1438 = vst [vmem:[#allocation2 + $0x1f0] sm:$0xff] %v1310
    %1439 = vst [vmem:[#allocation2 + $0x1f8] sm:$0xff] %v1311
    %1440 = vst [vmem:[#allocation2 + $0x200] sm:$0xff] %v1312
    %1441 = vst [vmem:[#allocation2 + $0x208] sm:$0xff] %v1313
    %1442 = vst [vmem:[#allocation2 + $0x210] sm:$0xff] %v1314
    %1443 = vst [vmem:[#allocation2 + $0x218] sm:$0xff] %v1315
    %1444 = vst [vmem:[#allocation2 + $0x220] sm:$0xff] %v1316
    %1445 = vst [vmem:[#allocation2 + $0x228] sm:$0xff] %v1317
    %1446 = vst [vmem:[#allocation2 + $0x230] sm:$0xff] %v1318
    %1447 = vst [vmem:[#allocation2 + $0x238] sm:$0xff] %v1319
    %1448 = vst [vmem:[#allocation2 + $0x240] sm:$0xff] %v1320
    %1449 = vst [vmem:[#allocation2 + $0x248] sm:$0xff] %v1321
    %1450 = vst [vmem:[#allocation2 + $0x250] sm:$0xff] %v1322
    %1451 = vst [vmem:[#allocation2 + $0x258] sm:$0xff] %v1323
    %1452 = vst [vmem:[#allocation2 + $0x260] sm:$0xff] %v1324
    %1453 = vst [vmem:[#allocation2 + $0x268] sm:$0xff] %v1325
    %1454 = vst [vmem:[#allocation2 + $0x270] sm:$0xff] %v1326
    %1455 = vst [vmem:[#allocation2 + $0x278] sm:$0xff] %v1327
    %1456 = vst [vmem:[#allocation2 + $0x280] sm:$0xff] %v1328
    %1457 = vst [vmem:[#allocation2 + $0x288] sm:$0xff] %v1329
    %1458 = vst [vmem:[#allocation2 + $0x290] sm:$0xff] %v1330
    %1459 = vst [vmem:[#allocation2 + $0x298] sm:$0xff] %v1331
    %1460 = vst [vmem:[#allocation2 + $0x2a0] sm:$0xff] %v1332
    %1461 = vst [vmem:[#allocation2 + $0x2a8] sm:$0xff] %v1333
    %1462 = vst [vmem:[#allocation2 + $0x2b0] sm:$0xff] %v1334
    %1463 = vst [vmem:[#allocation2 + $0x2b8] sm:$0xff] %v1335
    %1464 = vst [vmem:[#allocation2 + $0x2c0] sm:$0xff] %v1336
    %1465 = vst [vmem:[#allocation2 + $0x2c8] sm:$0xff] %v1337
    %1466 = vst [vmem:[#allocation2 + $0x2d0] sm:$0xff] %v1338
    %1467 = vst [vmem:[#allocation2 + $0x2d8] sm:$0xff] %v1339
    %1468 = vst [vmem:[#allocation2 + $0x2e0] sm:$0xff] %v1340
    %1469 = vst [vmem:[#allocation2 + $0x2e8] sm:$0xff] %v1341
    %1470 = vst [vmem:[#allocation2 + $0x2f0] sm:$0xff] %v1342
    %1471 = vst [vmem:[#allocation2 + $0x2f8] sm:$0xff] %v1343
    %1472 = vst [vmem:[#allocation2 + $0x300] sm:$0xff] %v1344
    %1473 = vst [vmem:[#allocation2 + $0x308] sm:$0xff] %v1345
    %1474 = vst [vmem:[#allocation2 + $0x310] sm:$0xff] %v1346
    %1475 = vst [vmem:[#allocation2 + $0x318] sm:$0xff] %v1347
    %1476 = vst [vmem:[#allocation2 + $0x320] sm:$0xff] %v1348
    %1477 = vst [vmem:[#allocation2 + $0x328] sm:$0xff] %v1349
    %1478 = vst [vmem:[#allocation2 + $0x330] sm:$0xff] %v1350
    %1479 = vst [vmem:[#allocation2 + $0x338] sm:$0xff] %v1351
    %1480 = vst [vmem:[#allocation2 + $0x340] sm:$0xff] %v1352
    %1481 = vst [vmem:[#allocation2 + $0x348] sm:$0xff] %v1353
    %1482 = vst [vmem:[#allocation2 + $0x350] sm:$0xff] %v1354
    %1483 = vst [vmem:[#allocation2 + $0x358] sm:$0xff] %v1355
    %1484 = vst [vmem:[#allocation2 + $0x360] sm:$0xff] %v1356
    %1485 = vst [vmem:[#allocation2 + $0x368] sm:$0xff] %v1357
    %1486 = vst [vmem:[#allocation2 + $0x370] sm:$0xff] %v1358
    %1487 = vst [vmem:[#allocation2 + $0x378] sm:$0xff] %v1359
    %1488 = vst [vmem:[#allocation2 + $0x380] sm:$0xff] %v1360
    %1489 = vst [vmem:[#allocation2 + $0x388] sm:$0xff] %v1361
    %1490 = vst [vmem:[#allocation2 + $0x390] sm:$0xff] %v1362
    %1491 = vst [vmem:[#allocation2 + $0x398] sm:$0xff] %v1363
    %1492 = vst [vmem:[#allocation2 + $0x3a0] sm:$0xff] %v1364
    %1493 = vst [vmem:[#allocation2 + $0x3a8] sm:$0xff] %v1365
    %1494 = vst [vmem:[#allocation2 + $0x3b0] sm:$0xff] %v1366
    %1495 = vst [vmem:[#allocation2 + $0x3b8] sm:$0xff] %v1367
    %1496 = vst [vmem:[#allocation2 + $0x3c0] sm:$0xff] %v1368
    %1497 = vst [vmem:[#allocation2 + $0x3c8] sm:$0xff] %v1369
    %1498 = vst [vmem:[#allocation2 + $0x3d0] sm:$0xff] %v1370
    %1499 = vst [vmem:[#allocation2 + $0x3d8] sm:$0xff] %v1371
    %1500 = vst [vmem:[#allocation2 + $0x3e0] sm:$0xff] %v1372
    %1501 = vst [vmem:[#allocation2 + $0x3e8] sm:$0xff] %v1373
    %1502 = vst [vmem:[#allocation2 + $0x3f0] sm:$0xff] %v1374
    %1503 = vst [vmem:[#allocation2 + $0x3f8] sm:$0xff] %v1375
    // Predicated region
    $region18: #{res50_layer4_forward.37} parent=1 // pred_check
      _
    $region19: #{res50_layer4_forward.37} parent=1 // pred_check_branch
      %1505 = sbr.rel (0) target = $region21
    $region20: #{res50_layer4_forward.37} parent=1 // pred_region
      %s1507 = ssub.s32 16384, 16384
      %1508 = vsyncadd [#allocation3], %s1507
      %s1509 = sshll.u32 [#allocation2], 4
      %s1510 = int_to_ptr.vmem [resolvable:$true] %s1509
      %1515 = dma.vmem_to_hbm [thread:$0]  %s1510, 16384, %s4, [#allocation3], 1024, 1024, 64
    $region21: #{res50_layer4_forward.37} parent=1 // pred_fallthru
      _
    // Predicated region
    $region22: #{res50_layer4_forward.37} parent=1 // pred_check
      _
    $region23: #{res50_layer4_forward.37} parent=1 // pred_check_branch
      %1517 = sbr.rel (0) target = $region25
    $region24: #{res50_layer4_forward.37} parent=1 // pred_region
      %1518 = dma.done [#allocation3], 16384
    $region25: #{res50_layer4_forward.37} parent=1 // pred_fallthru
      _
    %1519 = vsyncpa [#allocation3], 1

</llo_original>
